<compile_context>
chip_gen: v7x
topology: tpu7x:2x2x1
jax: 0.10.0
libtpu: 0.0.40
codegen_flags: <defaults>
</compile_context>

<pallas_src>
import functools

import jax
import jax.numpy as jnp
import numpy as np
from jax.experimental import pallas as pl
from jax.experimental.pallas import tpu as pltpu

_VMEM_LIMIT = 32 * 1024 * 1024   # safe on v5e/v6e/v7x (>= every scoped default)


def _round_up(n, m):
    return ((n + m - 1) // m) * m


def _row_tile(ho, wo, multiple=1, cap_elems=256):
    """Largest divisor of `ho` (a multiple of `multiple`) whose (rows*wo) output
    tile stays <= cap_elems, preferring >= 2 row tiles so the grid always has a
    parallel spatial axis (v7x megacore).  Falls back to the smallest legal tile."""
    best = None
    for d in range(1, ho + 1):
        if ho % d or d % multiple:
            continue
        if best is None:
            best = d                      # smallest legal divisor (fallback)
        if d < ho and d * wo <= cap_elems:
            best = d                      # largest in-budget proper divisor
    return best if best is not None else ho


# ---------------------------------------------------------------------------
# Pallas kernels
# ---------------------------------------------------------------------------

def _conv_kernel(xs_ref, w_ref, o_ref, *, ksize, stride, th, wo):
    # Direct convolution for one (batch, cout-tile, row-tile) grid step.
    #   xs_ref: (1, s*s, Hq, Wq, Cin) bf16 phase-decomposed, spatially padded input
    #   w_ref : (k*k, Cin, TN)        bf16 weights for this cout tile
    #   o_ref : (1, TH, Wo, TN)
    # Tap (i, j) of a stride-s conv reads plane (i%s, j%s) at a *contiguous*
    # (TH, Wo) window — no strided slices anywhere.
    cin = xs_ref.shape[-1]
    tn = o_ref.shape[-1]
    r0 = pl.multiple_of(pl.program_id(2) * th, th)        # first output row of tile
    acc = None
    for i in range(ksize):
        for j in range(ksize):
            p = (i % stride) * stride + (j % stride)
            patch = xs_ref[0, p, pl.ds(r0 + i // stride, th),
                           pl.ds(j // stride, wo), :]
            a = patch.reshape(th * wo, cin)
            m = jnp.dot(a, w_ref[i * ksize + j],
                        preferred_element_type=jnp.float32)
            acc = m if acc is None else acc + m
    o_ref[0] = acc.reshape(th, wo, tn).astype(o_ref.dtype)


def _conv_gate_kernel(xp_ref, t_ref, w_ref, o_ref, *, ksize, th, wo, pad):
    # Fused paths[2] conv + self-calibration gate (stride is always 1 here):
    #   o = conv(x1, w) * sigmoid(x1 + nearest_upsample4(t))
    #   xp_ref: (1, H+2p, W+2p, C) bf16 spatially padded x1 (gate read from interior)
    #   t_ref : (1, TH//4, W//4, TN)
    #   w_ref : (k*k, C, TN) bf16
    #   o_ref : (1, TH, Wo, TN)
    cin = xp_ref.shape[-1]
    tn = o_ref.shape[-1]
    r0 = pl.multiple_of(pl.program_id(2) * th, th)
    acc = None
    for i in range(ksize):
        for j in range(ksize):
            patch = xp_ref[0, pl.ds(r0 + i, th), pl.ds(j, wo), :]
            a = patch.reshape(th * wo, cin)
            m = jnp.dot(a, w_ref[i * ksize + j],
                        preferred_element_type=jnp.float32)
            acc = m if acc is None else acc + m
    # Gate activation: the x1 tile is already resident inside the padded block.
    if cin == tn:                      # common case (padded C == TN): static slice
        x1 = xp_ref[0, pl.ds(r0 + pad, th), pl.ds(pad, wo), :]
    else:
        c0 = pl.multiple_of(pl.program_id(1) * tn, 128)
        x1 = xp_ref[0, pl.ds(r0 + pad, th), pl.ds(pad, wo), pl.ds(c0, tn)]
    x1 = x1.astype(jnp.float32)
    # Nearest x4 upsample of t via broadcast + merge (small tensor only).
    hq, wq = th // 4, wo // 4
    t = t_ref[0].astype(jnp.float32)                                   # (hq, wq, tn)
    t = jnp.broadcast_to(t[:, :, None, :], (hq, wq, 4, tn)).reshape(hq, wo, tn)
    t = jnp.broadcast_to(t[:, None, :, :], (hq, 4, wo, tn)).reshape(th, wo, tn)
    gate = jax.nn.sigmoid(x1 + t)                                      # EUP slot
    o_ref[0] = (acc.reshape(th, wo, tn) * gate).astype(o_ref.dtype)


def _avgpool4_kernel(x_ref, o_ref):
    # x: (1, 4*TP, W, C) -> o: (1, TP, W//4, C), 4x4 non-overlapping mean.
    _, tp, wq, c = o_ref.shape
    x = x_ref[0].astype(jnp.float32)                      # (4*TP, W, C)
    w = x.shape[1]
    s = jnp.sum(x.reshape(tp, 4, w, c), axis=1)           # reduce 4 rows -> (TP, W, C)
    s = jnp.sum(s.reshape(tp, wq, 4, c), axis=2)          # reduce 4 cols -> (TP, WQ, C)
    o_ref[0] = (s * 0.0625).astype(o_ref.dtype)


# ---------------------------------------------------------------------------
# Pallas wrappers
# ---------------------------------------------------------------------------

def conv2d_pallas(x, w, *, stride=1, tile_n=None, out_dtype=None):
    """x: (B, H, W, Cin) NHWC; w: (KH, KW, Cin, Cout) HWIO; pad=(k-1)//2, no bias."""
    B, H, W, Cin = x.shape
    k = w.shape[0]
    Cout = w.shape[-1]
    assert w.shape[1] == k and w.shape[2] == Cin
    assert Cout % 128 == 0, "pad out-channels to a multiple of 128 before calling"
    pad = (k - 1) // 2
    s = stride
    ho = (H + 2 * pad - k) // s + 1
    wo = (W + 2 * pad - k) // s + 1
    out_dtype = out_dtype or x.dtype
    tn = tile_n or (256 if Cout % 256 == 0 else 128)      # v6e/v7x: full MXU N width

    # Halo pad + bf16 cast once in the wrapper (halves the image DMA/VMEM).
    Hp, Wp = H + 2 * pad, W + 2 * pad
    hq = max(-(-Hp // s), (k - 1) // s + ho)              # phase-plane rows
    wq = max(-(-Wp // s), (k - 1) // s + wo)              # phase-plane cols
    xp = jnp.pad(x, ((0, 0), (pad, pad + s * hq - Hp),
                     (pad, pad + s * wq - Wp), (0, 0))).astype(jnp.bfloat16)
    if s == 1:
        xs = xp[:, None]                                  # (B, 1, Hp, Wp, Cin)
    else:                                                 # phase decomposition
        xs = jnp.stack([xp[:, a::s, b::s, :] for a in range(s) for b in range(s)],
                       axis=1)                            # (B, s*s, hq, wq, Cin)
    wr = w.reshape(k * k, Cin, Cout).astype(jnp.bfloat16)

    th = _row_tile(ho, wo, multiple=1, cap_elems=max(1, 32768 // tn))
    assert ho % th == 0

    kern = functools.partial(_conv_kernel, ksize=k, stride=s, th=th, wo=wo)
    return pl.pallas_call(
        kern,
        out_shape=jax.ShapeDtypeStruct((B, ho, wo, Cout), out_dtype),
        grid=(B, Cout // tn, ho // th),                   # rows innermost: RHS reuse
        in_specs=[
            pl.BlockSpec((1, s * s, hq, wq, Cin), lambda b, j, r: (b, 0, 0, 0, 0)),
            pl.BlockSpec((k * k, Cin, tn), lambda b, j, r: (0, 0, j)),
        ],
        out_specs=pl.BlockSpec((1, th, wo, tn), lambda b, j, r: (b, r, 0, j)),
        compiler_params=pltpu.CompilerParams(
            dimension_semantics=("parallel", "parallel", "parallel"),
            vmem_limit_bytes=_VMEM_LIMIT),
    )(xs, wr)


def conv2d_gate_pallas(x1, t, w, *, tile_n=None, out_dtype=None):
    """o = conv(x1, w, stride=1) * sigmoid(x1 + nearest_upsample4(t)), all fused."""
    B, H, W, Cin = x1.shape
    k = w.shape[0]
    Cout = w.shape[-1]
    assert w.shape[2] == Cin and Cout == Cin              # gate broadcast requirement
    assert Cout % 128 == 0
    assert H % 4 == 0 and W % 4 == 0
    hq4, wq4 = H // 4, W // 4
    assert t.shape == (B, hq4, wq4, Cout), t.shape
    pad = (k - 1) // 2
    out_dtype = out_dtype or x1.dtype
    tn = tile_n or (256 if Cout % 256 == 0 else 128)

    xp = jnp.pad(x1, ((0, 0), (pad, pad), (pad, pad), (0, 0))).astype(jnp.bfloat16)
    wr = w.reshape(k * k, Cin, Cout).astype(jnp.bfloat16)

    th = _row_tile(H, W, multiple=4, cap_elems=max(4, 32768 // tn))
    assert H % th == 0 and th % 4 == 0

    kern = functools.partial(_conv_gate_kernel, ksize=k, th=th, wo=W, pad=pad)
    return pl.pallas_call(
        kern,
        out_shape=jax.ShapeDtypeStruct((B, H, W, Cout), out_dtype),
        grid=(B, Cout // tn, H // th),
        in_specs=[
            pl.BlockSpec((1, H + 2 * pad, W + 2 * pad, Cin),
                         lambda b, j, r: (b, 0, 0, 0)),
            pl.BlockSpec((1, th // 4, wq4, tn), lambda b, j, r: (b, r, 0, j)),
            pl.BlockSpec((k * k, Cin, tn), lambda b, j, r: (0, 0, j)),
        ],
        out_specs=pl.BlockSpec((1, th, W, tn), lambda b, j, r: (b, r, 0, j)),
        compiler_params=pltpu.CompilerParams(
            dimension_semantics=("parallel", "parallel", "parallel"),
            vmem_limit_bytes=_VMEM_LIMIT),
    )(xp, t, wr)


def _pool_row_tile(hq, w, c, itemsize, budget=8 * 1024 * 1024):
    # Largest divisor of hq whose (4*tp, W, C) input block stays under `budget`.
    tp = hq
    while tp > 1 and 4 * tp * w * c * itemsize > budget:
        tp -= 1
        while hq % tp:
            tp -= 1
    return tp


def avgpool4_pallas(x):
    # x: (B, H, W, C) NHWC -> (B, H//4, W//4, C)
    B, H, W, C = x.shape
    assert H % 4 == 0 and W % 4 == 0
    hq, wq = H // 4, W // 4
    tp = _pool_row_tile(hq, W, C, x.dtype.itemsize)
    return pl.pallas_call(
        _avgpool4_kernel,
        out_shape=jax.ShapeDtypeStruct((B, hq, wq, C), x.dtype),
        grid=(B, hq // tp),
        in_specs=[pl.BlockSpec((1, 4 * tp, W, C), lambda b, r: (b, r, 0, 0))],
        out_specs=pl.BlockSpec((1, tp, wq, C), lambda b, r: (b, r, 0, 0)),
        compiler_params=pltpu.CompilerParams(
            dimension_semantics=("parallel", "parallel"),
            vmem_limit_bytes=_VMEM_LIMIT),
    )(x)


# ---------------------------------------------------------------------------
# SCConv2d forward (Pallas) — matches the PyTorch module semantics
# ---------------------------------------------------------------------------

def scconv2d_pallas(x_nchw, ws_hwio, stride=1):
    B, C, H, W = x_nchw.shape
    assert C % 2 == 0
    assert H % 4 == 0 and W % 4 == 0, "AvgPool2d(4,4) + nearest-x4 needs H, W % 4 == 0"
    c2 = C // 2
    cout2 = ws_hwio[0].shape[-1]
    # Same implicit requirement as the PyTorch broadcast in `x1 + y1_d`:
    assert cout2 == c2, "SCConv2d gate needs in_channels//2 == out_channels//2"
    cpad = _round_up(c2, 128)   # lane-dense channel padding, done once
    out_dtype = x_nchw.dtype

    x = jnp.transpose(x_nchw, (0, 2, 3, 1))                       # NCHW -> NHWC
    x1 = jnp.pad(x[..., :c2], ((0, 0), (0, 0), (0, 0), (0, cpad - c2)))
    x2 = jnp.pad(x[..., c2:], ((0, 0), (0, 0), (0, 0), (0, cpad - c2)))
    # Zero-padded in/out channels contribute exact zeros through every stage.
    wp = [jnp.pad(w, ((0, 0), (0, 0), (0, cpad - c2), (0, cpad - cout2)))
          for w in ws_hwio]

    y2 = conv2d_pallas(x2, wp[0], stride=stride, out_dtype=out_dtype)   # paths[0]
    pooled = avgpool4_pallas(x1)                                        # AvgPool2d(4,4)
    t = conv2d_pallas(pooled, wp[1], stride=1)                          # paths[1]
    y1g = conv2d_gate_pallas(x1, t, wp[2],
                             out_dtype=jnp.bfloat16)   # paths[2] * sigmoid(x1+up(t))
    y1 = conv2d_pallas(y1g, wp[3], stride=stride, out_dtype=out_dtype)  # paths[3]

    y = jnp.concatenate([y1[..., :cout2], y2[..., :cout2]], axis=-1)
    return jnp.transpose(y, (0, 3, 1, 2))                         # NHWC -> NCHW


# ---------------------------------------------------------------------------
# Pure-JAX reference (mirrors the PyTorch forward and the bf16 MXU numerics)
# ---------------------------------------------------------------------------

def scconv2d_reference(x, ws_hwio, stride=1):
    k = ws_hwio[0].shape[0]
    pad = (k - 1) // 2
    ws = [jnp.transpose(w, (3, 2, 0, 1)) for w in ws_hwio]        # HWIO -> OIHW

    def conv(x_, w_, s):
        return jax.lax.conv_general_dilated(
            x_.astype(jnp.bfloat16), w_.astype(jnp.bfloat16),
            (s, s), ((pad, pad), (pad, pad)),
            dimension_numbers=("NCHW", "OIHW", "NCHW"),
            preferred_element_type=jnp.float32)

    B, C, H, W = x.shape
    c2 = C // 2
    x1, x2 = x[:, :c2], x[:, c2:]
    y2 = conv(x2, ws[0], stride)
    pooled = x1.reshape(B, c2, H // 4, 4, W // 4, 4).mean(axis=(3, 5))
    t = conv(pooled, ws[1], 1)
    up = jnp.repeat(jnp.repeat(t, 4, axis=2), 4, axis=3)          # nearest to (H, W)
    gate = jax.nn.sigmoid(x1 + up)
    y1 = conv(x1, ws[2], 1) * gate
    y1 = conv(y1, ws[3], stride)
    return jnp.concatenate([y1, y2], axis=1)


# ---------------------------------------------------------------------------

if __name__ == "__main__":
    B, C_in, C_out, H, W = 2, 4, 4, 16, 16
    kernel_size, stride = 3, 1
    c_in2, c_out2 = C_in // 2, C_out // 2

    key = jax.random.PRNGKey(0)
    keys = jax.random.split(key, 5)
    # Deterministic synthetic weights, HWIO: (KH, KW, Cin//2, Cout//2) per path.
    ws = [0.1 * jax.random.normal(keys[i], (kernel_size, kernel_size, c_in2, c_out2),
                                  jnp.float32) for i in range(4)]
    x = jax.random.normal(keys[4], (B, C_in, H, W), jnp.float32)

    fwd = jax.jit(functools.partial(scconv2d_pallas, stride=stride))
    y = jax.block_until_ready(fwd(x, ws))

    y_ref = jax.block_until_ready(scconv2d_reference(x, ws, stride))
    assert y.shape == (B, C_out, H, W), y.shape
    err = float(np.max(np.abs(np.asarray(y) - np.asarray(y_ref))))
    assert err < 2e-2, "max abs diff %g" % err

    print("KERNEL_OK")
</pallas_src>

<mosaic_0001>
module attributes {stable_mosaic.version = 11 : i64} {
  func.func @_avgpool4_kernel(%arg0: i32, %arg1: i32, %arg2: memref<1x16x16x128xf32, #tpu.memory_space<vmem>>, %arg3: memref<1x4x4x128xf32, #tpu.memory_space<vmem>>) attributes {dimension_semantics = [#tpu.dimension_semantics<parallel>, #tpu.dimension_semantics<parallel>], iteration_bounds = array<i64: 2, 1>, scalar_prefetch = 0 : i64, scratch_operands = 0 : i64, tpu.core_type = #tpu.core_type<tc>, window_params = [{transform_indices = @transform_0, window_bounds = array<i64: 1, 16, 16, 128>}, {transform_indices = @transform_1, window_bounds = array<i64: 1, 4, 4, 128>}]} {
    %c0 = arith.constant 0 : index
    %c0_0 = arith.constant 0 : index
    %c0_1 = arith.constant 0 : index
    %c0_2 = arith.constant 0 : index
    %0 = vector.load %arg2[%c0, %c0_0, %c0_1, %c0_2] : memref<1x16x16x128xf32, #tpu.memory_space<vmem>>, vector<1x16x16x128xf32>
    %1 = vector.shape_cast %0 : vector<1x16x16x128xf32> to vector<16x16x128xf32>
    %2 = vector.shape_cast %1 : vector<16x16x128xf32> to vector<4x4x16x128xf32>
    %cst = arith.constant dense<0.000000e+00> : vector<4x16x128xf32>
    %3 = vector.multi_reduction <add>, %2, %cst [1] : vector<4x4x16x128xf32> to vector<4x16x128xf32>
    %4 = vector.shape_cast %3 : vector<4x16x128xf32> to vector<4x4x4x128xf32>
    %cst_3 = arith.constant dense<0.000000e+00> : vector<4x4x128xf32>
    %5 = vector.multi_reduction <add>, %4, %cst_3 [2] : vector<4x4x4x128xf32> to vector<4x4x128xf32>
    %cst_4 = arith.constant 6.250000e-02 : f32
    %6 = vector.broadcast %cst_4 : f32 to vector<4x4x128xf32>
    %7 = arith.mulf %5, %6 : vector<4x4x128xf32>
    %c0_5 = arith.constant 0 : index
    %c0_6 = arith.constant 0 : index
    %c0_7 = arith.constant 0 : index
    %c0_8 = arith.constant 0 : index
    %8 = vector.load %arg3[%c0_5, %c0_6, %c0_7, %c0_8] : memref<1x4x4x128xf32, #tpu.memory_space<vmem>>, vector<1x4x4x128xf32>
    %9 = vector.shape_cast %8 : vector<1x4x4x128xf32> to vector<4x4x128xf32>
    %10 = vector.shape_cast %7 : vector<4x4x128xf32> to vector<1x4x4x128xf32>
    tpu.vector_store %arg3[%c0_5, %c0_6, %c0_7, %c0_8], %10 {strides = array<i32>} : memref<1x4x4x128xf32, #tpu.memory_space<vmem>>, vector<1x4x4x128xf32>,
    return
  }
  func.func @transform_0(%arg0: i32, %arg1: i32) -> (i32, i32, i32, i32) {
    %c0_i32 = arith.constant 0 : i32
    %c0_i32_0 = arith.constant 0 : i32
    %c0_i32_1 = arith.constant 0 : i32
    return %arg0, %arg1, %c0_i32, %c0_i32_0 : i32, i32, i32, i32
  }
  func.func @transform_1(%arg0: i32, %arg1: i32) -> (i32, i32, i32, i32) {
    %c0_i32 = arith.constant 0 : i32
    %c0_i32_0 = arith.constant 0 : i32
    %c0_i32_1 = arith.constant 0 : i32
    return %arg0, %arg1, %c0_i32, %c0_i32_0 : i32, i32, i32, i32
  }
}

module attributes {stable_mosaic.version = 11 : i64} {
  func.func @_conv_kernel(%arg0: i32, %arg1: i32, %arg2: i32, %arg3: memref<1x1x6x6x128xbf16, #tpu.memory_space<vmem>>, %arg4: memref<9x128x128xbf16, #tpu.memory_space<vmem>>, %arg5: memref<1x2x4x128xf32, #tpu.memory_space<vmem>>) attributes {dimension_semantics = [#tpu.dimension_semantics<parallel>, #tpu.dimension_semantics<parallel>, #tpu.dimension_semantics<parallel>], iteration_bounds = array<i64: 2, 1, 2>, scalar_prefetch = 0 : i64, scratch_operands = 0 : i64, tpu.core_type = #tpu.core_type<tc>, window_params = [{transform_indices = @transform_0, window_bounds = array<i64: 1, 1, 6, 6, 128>}, {transform_indices = @transform_1, window_bounds = array<i64: 9, 128, 128>}, {transform_indices = @transform_2, window_bounds = array<i64: 1, 2, 4, 128>}]} {
    %c2_i32 = arith.constant 2 : i32
    %0 = arith.muli %arg2, %c2_i32 : i32
    %1 = tpu.assume_multiple %0, 2 : i32
    %c0_i32 = arith.constant 0 : i32
    %2 = arith.addi %1, %c0_i32 : i32
    %c0 = arith.constant 0 : index
    %c0_0 = arith.constant 0 : index
    %3 = arith.index_cast %2 : i32 to index
    %c0_1 = arith.constant 0 : index
    %c0_2 = arith.constant 0 : index
    %4 = vector.load %arg3[%c0, %c0_0, %3, %c0_1, %c0_2] : memref<1x1x6x6x128xbf16, #tpu.memory_space<vmem>>, vector<1x1x2x4x128xbf16>
    %5 = vector.shape_cast %4 : vector<1x1x2x4x128xbf16> to vector<2x4x128xbf16>
    %6 = vector.shape_cast %5 : vector<2x4x128xbf16> to vector<8x128xbf16>
    %c0_3 = arith.constant 0 : index
    %c0_4 = arith.constant 0 : index
    %c0_5 = arith.constant 0 : index
    %7 = vector.load %arg4[%c0_3, %c0_4, %c0_5] : memref<9x128x128xbf16, #tpu.memory_space<vmem>>, vector<1x128x128xbf16>
    %8 = vector.shape_cast %7 : vector<1x128x128xbf16> to vector<128x128xbf16>
    %cst = arith.constant dense<0.000000e+00> : vector<8x128xf32>
    %9 = tpu.matmul %6, %8, %cst {dimension_numbers = #tpu.dot_dimension_numbers<[1], [0], [0], [1], [0, 0, 1, 1], [], []>} : vector<8x128xbf16>, vector<128x128xbf16>, vector<8x128xf32> -> vector<8x128xf32>
    %c0_i32_6 = arith.constant 0 : i32
    %10 = arith.addi %1, %c0_i32_6 : i32
    %c0_7 = arith.constant 0 : index
    %c0_8 = arith.constant 0 : index
    %11 = arith.index_cast %10 : i32 to index
    %c1 = arith.constant 1 : index
    %c0_9 = arith.constant 0 : index
    %12 = vector.load %arg3[%c0_7, %c0_8, %11, %c1, %c0_9] : memref<1x1x6x6x128xbf16, #tpu.memory_space<vmem>>, vector<1x1x2x4x128xbf16>
    %13 = vector.shape_cast %12 : vector<1x1x2x4x128xbf16> to vector<2x4x128xbf16>
    %14 = vector.shape_cast %13 : vector<2x4x128xbf16> to vector<8x128xbf16>
    %c1_10 = arith.constant 1 : index
    %c0_11 = arith.constant 0 : index
    %c0_12 = arith.constant 0 : index
    %15 = vector.load %arg4[%c1_10, %c0_11, %c0_12] : memref<9x128x128xbf16, #tpu.memory_space<vmem>>, vector<1x128x128xbf16>
    %16 = vector.shape_cast %15 : vector<1x128x128xbf16> to vector<128x128xbf16>
    %cst_13 = arith.constant dense<0.000000e+00> : vector<8x128xf32>
    %17 = tpu.matmul %14, %16, %cst_13 {dimension_numbers = #tpu.dot_dimension_numbers<[1], [0], [0], [1], [0, 0, 1, 1], [], []>} : vector<8x128xbf16>, vector<128x128xbf16>, vector<8x128xf32> -> vector<8x128xf32>
    %18 = arith.addf %9, %17 : vector<8x128xf32>
    %c0_i32_14 = arith.constant 0 : i32
    %19 = arith.addi %1, %c0_i32_14 : i32
    %c0_15 = arith.constant 0 : index
    %c0_16 = arith.constant 0 : index
    %20 = arith.index_cast %19 : i32 to index
    %c2 = arith.constant 2 : index
    %c0_17 = arith.constant 0 : index
    %21 = vector.load %arg3[%c0_15, %c0_16, %20, %c2, %c0_17] : memref<1x1x6x6x128xbf16, #tpu.memory_space<vmem>>, vector<1x1x2x4x128xbf16>
    %22 = vector.shape_cast %21 : vector<1x1x2x4x128xbf16> to vector<2x4x128xbf16>
    %23 = vector.shape_cast %22 : vector<2x4x128xbf16> to vector<8x128xbf16>
    %c2_18 = arith.constant 2 : index
    %c0_19 = arith.constant 0 : index
    %c0_20 = arith.constant 0 : index
    %24 = vector.load %arg4[%c2_18, %c0_19, %c0_20] : memref<9x128x128xbf16, #tpu.memory_space<vmem>>, vector<1x128x128xbf16>
    %25 = vector.shape_cast %24 : vector<1x128x128xbf16> to vector<128x128xbf16>
    %cst_21 = arith.constant dense<0.000000e+00> : vector<8x128xf32>
    %26 = tpu.matmul %23, %25, %cst_21 {dimension_numbers = #tpu.dot_dimension_numbers<[1], [0], [0], [1], [0, 0, 1, 1], [], []>} : vector<8x128xbf16>, vector<128x128xbf16>, vector<8x128xf32> -> vector<8x128xf32>
    %27 = arith.addf %18, %26 : vector<8x128xf32>
    %c1_i32 = arith.constant 1 : i32
    %28 = arith.addi %1, %c1_i32 : i32
    %c0_22 = arith.constant 0 : index
    %c0_23 = arith.constant 0 : index
    %29 = arith.index_cast %28 : i32 to index
    %c0_24 = arith.constant 0 : index
    %c0_25 = arith.constant 0 : index
    %30 = vector.load %arg3[%c0_22, %c0_23, %29, %c0_24, %c0_25] : memref<1x1x6x6x128xbf16, #tpu.memory_space<vmem>>, vector<1x1x2x4x128xbf16>
    %31 = vector.shape_cast %30 : vector<1x1x2x4x128xbf16> to vector<2x4x128xbf16>
    %32 = vector.shape_cast %31 : vector<2x4x128xbf16> to vector<8x128xbf16>
    %c3 = arith.constant 3 : index
    %c0_26 = arith.constant 0 : index
    %c0_27 = arith.constant 0 : index
    %33 = vector.load %arg4[%c3, %c0_26, %c0_27] : memref<9x128x128xbf16, #tpu.memory_space<vmem>>, vector<1x128x128xbf16>
    %34 = vector.shape_cast %33 : vector<1x128x128xbf16> to vector<128x128xbf16>
    %cst_28 = arith.constant dense<0.000000e+00> : vector<8x128xf32>
    %35 = tpu.matmul %32, %34, %cst_28 {dimension_numbers = #tpu.dot_dimension_numbers<[1], [0], [0], [1], [0, 0, 1, 1], [], []>} : vector<8x128xbf16>, vector<128x128xbf16>, vector<8x128xf32> -> vector<8x128xf32>
    %36 = arith.addf %27, %35 : vector<8x128xf32>
    %c1_i32_29 = arith.constant 1 : i32
    %37 = arith.addi %1, %c1_i32_29 : i32
    %c0_30 = arith.constant 0 : index
    %c0_31 = arith.constant 0 : index
    %38 = arith.index_cast %37 : i32 to index
    %c1_32 = arith.constant 1 : index
    %c0_33 = arith.constant 0 : index
    %39 = vector.load %arg3[%c0_30, %c0_31, %38, %c1_32, %c0_33] : memref<1x1x6x6x128xbf16, #tpu.memory_space<vmem>>, vector<1x1x2x4x128xbf16>
    %40 = vector.shape_cast %39 : vector<1x1x2x4x128xbf16> to vector<2x4x128xbf16>
    %41 = vector.shape_cast %40 : vector<2x4x128xbf16> to vector<8x128xbf16>
    %c4 = arith.constant 4 : index
    %c0_34 = arith.constant 0 : index
    %c0_35 = arith.constant 0 : index
    %42 = vector.load %arg4[%c4, %c0_34, %c0_35] : memref<9x128x128xbf16, #tpu.memory_space<vmem>>, vector<1x128x128xbf16>
    %43 = vector.shape_cast %42 : vector<1x128x128xbf16> to vector<128x128xbf16>
    %cst_36 = arith.constant dense<0.000000e+00> : vector<8x128xf32>
    %44 = tpu.matmul %41, %43, %cst_36 {dimension_numbers = #tpu.dot_dimension_numbers<[1], [0], [0], [1], [0, 0, 1, 1], [], []>} : vector<8x128xbf16>, vector<128x128xbf16>, vector<8x128xf32> -> vector<8x128xf32>
    %45 = arith.addf %36, %44 : vector<8x128xf32>
    %c1_i32_37 = arith.constant 1 : i32
    %46 = arith.addi %1, %c1_i32_37 : i32
    %c0_38 = arith.constant 0 : index
    %c0_39 = arith.constant 0 : index
    %47 = arith.index_cast %46 : i32 to index
    %c2_40 = arith.constant 2 : index
    %c0_41 = arith.constant 0 : index
    %48 = vector.load %arg3[%c0_38, %c0_39, %47, %c2_40, %c0_41] : memref<1x1x6x6x128xbf16, #tpu.memory_space<vmem>>, vector<1x1x2x4x128xbf16>
    %49 = vector.shape_cast %48 : vector<1x1x2x4x128xbf16> to vector<2x4x128xbf16>
    %50 = vector.shape_cast %49 : vector<2x4x128xbf16> to vector<8x128xbf16>
    %c5 = arith.constant 5 : index
    %c0_42 = arith.constant 0 : index
    %c0_43 = arith.constant 0 : index
    %51 = vector.load %arg4[%c5, %c0_42, %c0_43] : memref<9x128x128xbf16, #tpu.memory_space<vmem>>, vector<1x128x128xbf16>
    %52 = vector.shape_cast %51 : vector<1x128x128xbf16> to vector<128x128xbf16>
    %cst_44 = arith.constant dense<0.000000e+00> : vector<8x128xf32>
    %53 = tpu.matmul %50, %52, %cst_44 {dimension_numbers = #tpu.dot_dimension_numbers<[1], [0], [0], [1], [0, 0, 1, 1], [], []>} : vector<8x128xbf16>, vector<128x128xbf16>, vector<8x128xf32> -> vector<8x128xf32>
    %54 = arith.addf %45, %53 : vector<8x128xf32>
    %c2_i32_45 = arith.constant 2 : i32
    %55 = arith.addi %1, %c2_i32_45 : i32
    %c0_46 = arith.constant 0 : index
    %c0_47 = arith.constant 0 : index
    %56 = arith.index_cast %55 : i32 to index
    %c0_48 = arith.constant 0 : index
    %c0_49 = arith.constant 0 : index
    %57 = vector.load %arg3[%c0_46, %c0_47, %56, %c0_48, %c0_49] : memref<1x1x6x6x128xbf16, #tpu.memory_space<vmem>>, vector<1x1x2x4x128xbf16>
    %58 = vector.shape_cast %57 : vector<1x1x2x4x128xbf16> to vector<2x4x128xbf16>
    %59 = vector.shape_cast %58 : vector<2x4x128xbf16> to vector<8x128xbf16>
    %c6 = arith.constant 6 : index
    %c0_50 = arith.constant 0 : index
    %c0_51 = arith.constant 0 : index
    %60 = vector.load %arg4[%c6, %c0_50, %c0_51] : memref<9x128x128xbf16, #tpu.memory_space<vmem>>, vector<1x128x128xbf16>
    %61 = vector.shape_cast %60 : vector<1x128x128xbf16> to vector<128x128xbf16>
    %cst_52 = arith.constant dense<0.000000e+00> : vector<8x128xf32>
    %62 = tpu.matmul %59, %61, %cst_52 {dimension_numbers = #tpu.dot_dimension_numbers<[1], [0], [0], [1], [0, 0, 1, 1], [], []>} : vector<8x128xbf16>, vector<128x128xbf16>, vector<8x128xf32> -> vector<8x128xf32>
    %63 = arith.addf %54, %62 : vector<8x128xf32>
    %c2_i32_53 = arith.constant 2 : i32
    %64 = arith.addi %1, %c2_i32_53 : i32
    %c0_54 = arith.constant 0 : index
    %c0_55 = arith.constant 0 : index
    %65 = arith.index_cast %64 : i32 to index
    %c1_56 = arith.constant 1 : index
    %c0_57 = arith.constant 0 : index
    %66 = vector.load %arg3[%c0_54, %c0_55, %65, %c1_56, %c0_57] : memref<1x1x6x6x128xbf16, #tpu.memory_space<vmem>>, vector<1x1x2x4x128xbf16>
    %67 = vector.shape_cast %66 : vector<1x1x2x4x128xbf16> to vector<2x4x128xbf16>
    %68 = vector.shape_cast %67 : vector<2x4x128xbf16> to vector<8x128xbf16>
    %c7 = arith.constant 7 : index
    %c0_58 = arith.constant 0 : index
    %c0_59 = arith.constant 0 : index
    %69 = vector.load %arg4[%c7, %c0_58, %c0_59] : memref<9x128x128xbf16, #tpu.memory_space<vmem>>, vector<1x128x128xbf16>
    %70 = vector.shape_cast %69 : vector<1x128x128xbf16> to vector<128x128xbf16>
    %cst_60 = arith.constant dense<0.000000e+00> : vector<8x128xf32>
    %71 = tpu.matmul %68, %70, %cst_60 {dimension_numbers = #tpu.dot_dimension_numbers<[1], [0], [0], [1], [0, 0, 1, 1], [], []>} : vector<8x128xbf16>, vector<128x128xbf16>, vector<8x128xf32> -> vector<8x128xf32>
    %72 = arith.addf %63, %71 : vector<8x128xf32>
    %c2_i32_61 = arith.constant 2 : i32
    %73 = arith.addi %1, %c2_i32_61 : i32
    %c0_62 = arith.constant 0 : index
    %c0_63 = arith.constant 0 : index
    %74 = arith.index_cast %73 : i32 to index
    %c2_64 = arith.constant 2 : index
    %c0_65 = arith.constant 0 : index
    %75 = vector.load %arg3[%c0_62, %c0_63, %74, %c2_64, %c0_65] : memref<1x1x6x6x128xbf16, #tpu.memory_space<vmem>>, vector<1x1x2x4x128xbf16>
    %76 = vector.shape_cast %75 : vector<1x1x2x4x128xbf16> to vector<2x4x128xbf16>
    %77 = vector.shape_cast %76 : vector<2x4x128xbf16> to vector<8x128xbf16>
    %c8 = arith.constant 8 : index
    %c0_66 = arith.constant 0 : index
    %c0_67 = arith.constant 0 : index
    %78 = vector.load %arg4[%c8, %c0_66, %c0_67] : memref<9x128x128xbf16, #tpu.memory_space<vmem>>, vector<1x128x128xbf16>
    %79 = vector.shape_cast %78 : vector<1x128x128xbf16> to vector<128x128xbf16>
    %cst_68 = arith.constant dense<0.000000e+00> : vector<8x128xf32>
    %80 = tpu.matmul %77, %79, %cst_68 {dimension_numbers = #tpu.dot_dimension_numbers<[1], [0], [0], [1], [0, 0, 1, 1], [], []>} : vector<8x128xbf16>, vector<128x128xbf16>, vector<8x128xf32> -> vector<8x128xf32>
    %81 = arith.addf %72, %80 : vector<8x128xf32>
    %82 = vector.shape_cast %81 : vector<8x128xf32> to vector<2x4x128xf32>
    %c0_69 = arith.constant 0 : index
    %c0_70 = arith.constant 0 : index
    %c0_71 = arith.constant 0 : index
    %c0_72 = arith.constant 0 : index
    %83 = vector.load %arg5[%c0_69, %c0_70, %c0_71, %c0_72] : memref<1x2x4x128xf32, #tpu.memory_space<vmem>>, vector<1x2x4x128xf32>
    %84 = vector.shape_cast %83 : vector<1x2x4x128xf32> to vector<2x4x128xf32>
    %85 = vector.shape_cast %82 : vector<2x4x128xf32> to vector<1x2x4x128xf32>
    tpu.vector_store %arg5[%c0_69, %c0_70, %c0_71, %c0_72], %85 {strides = array<i32>} : memref<1x2x4x128xf32, #tpu.memory_space<vmem>>, vector<1x2x4x128xf32>,
    return
  }
  func.func @transform_0(%arg0: i32, %arg1: i32, %arg2: i32) -> (i32, i32, i32, i32, i32) {
    %c0_i32 = arith.constant 0 : i32
    %c0_i32_0 = arith.constant 0 : i32
    %c0_i32_1 = arith.constant 0 : i32
    %c0_i32_2 = arith.constant 0 : i32
    %c0_i32_3 = arith.constant 0 : i32
    return %arg0, %c0_i32, %c0_i32_0, %c0_i32_1, %c0_i32_2 : i32, i32, i32, i32, i32
  }
  func.func @transform_1(%arg0: i32, %arg1: i32, %arg2: i32) -> (i32, i32, i32) {
    %c0_i32 = arith.constant 0 : i32
    %c0_i32_0 = arith.constant 0 : i32
    %c0_i32_1 = arith.constant 0 : i32
    return %c0_i32, %c0_i32_0, %arg1 : i32, i32, i32
  }
  func.func @transform_2(%arg0: i32, %arg1: i32, %arg2: i32) -> (i32, i32, i32, i32) {
    %c0_i32 = arith.constant 0 : i32
    %c0_i32_0 = arith.constant 0 : i32
    return %arg0, %arg2, %c0_i32, %arg1 : i32, i32, i32, i32
  }
}

module attributes {stable_mosaic.version = 11 : i64} {
  func.func @_conv_gate_kernel(%arg0: i32, %arg1: i32, %arg2: i32, %arg3: memref<1x18x18x128xbf16, #tpu.memory_space<vmem>>, %arg4: memref<1x2x4x128xf32, #tpu.memory_space<vmem>>, %arg5: memref<9x128x128xbf16, #tpu.memory_space<vmem>>, %arg6: memref<1x8x16x128xbf16, #tpu.memory_space<vmem>>) attributes {dimension_semantics = [#tpu.dimension_semantics<parallel>, #tpu.dimension_semantics<parallel>, #tpu.dimension_semantics<parallel>], iteration_bounds = array<i64: 2, 1, 2>, scalar_prefetch = 0 : i64, scratch_operands = 0 : i64, tpu.core_type = #tpu.core_type<tc>, window_params = [{transform_indices = @transform_0, window_bounds = array<i64: 1, 18, 18, 128>}, {transform_indices = @transform_1, window_bounds = array<i64: 1, 2, 4, 128>}, {transform_indices = @transform_2, window_bounds = array<i64: 9, 128, 128>}, {transform_indices = @transform_3, window_bounds = array<i64: 1, 8, 16, 128>}]} {
    %c8_i32 = arith.constant 8 : i32
    %0 = arith.muli %arg2, %c8_i32 : i32
    %1 = tpu.assume_multiple %0, 8 : i32
    %c0_i32 = arith.constant 0 : i32
    %2 = arith.addi %1, %c0_i32 : i32
    %c0 = arith.constant 0 : index
    %3 = arith.index_cast %2 : i32 to index
    %c0_0 = arith.constant 0 : index
    %c0_1 = arith.constant 0 : index
    %4 = vector.load %arg3[%c0, %3, %c0_0, %c0_1] : memref<1x18x18x128xbf16, #tpu.memory_space<vmem>>, vector<1x8x16x128xbf16>
    %5 = vector.shape_cast %4 : vector<1x8x16x128xbf16> to vector<8x16x128xbf16>
    %6 = vector.shape_cast %5 : vector<8x16x128xbf16> to vector<128x128xbf16>
    %c0_2 = arith.constant 0 : index
    %c0_3 = arith.constant 0 : index
    %c0_4 = arith.constant 0 : index
    %7 = vector.load %arg5[%c0_2, %c0_3, %c0_4] : memref<9x128x128xbf16, #tpu.memory_space<vmem>>, vector<1x128x128xbf16>
    %8 = vector.shape_cast %7 : vector<1x128x128xbf16> to vector<128x128xbf16>
    %cst = arith.constant dense<0.000000e+00> : vector<128x128xf32>
    %9 = tpu.matmul %6, %8, %cst {dimension_numbers = #tpu.dot_dimension_numbers<[1], [0], [0], [1], [0, 0, 1, 1], [], []>} : vector<128x128xbf16>, vector<128x128xbf16>, vector<128x128xf32> -> vector<128x128xf32>
    %c0_i32_5 = arith.constant 0 : i32
    %10 = arith.addi %1, %c0_i32_5 : i32
    %c0_6 = arith.constant 0 : index
    %11 = arith.index_cast %10 : i32 to index
    %c1 = arith.constant 1 : index
    %c0_7 = arith.constant 0 : index
    %12 = vector.load %arg3[%c0_6, %11, %c1, %c0_7] : memref<1x18x18x128xbf16, #tpu.memory_space<vmem>>, vector<1x8x16x128xbf16>
    %13 = vector.shape_cast %12 : vector<1x8x16x128xbf16> to vector<8x16x128xbf16>
    %14 = vector.shape_cast %13 : vector<8x16x128xbf16> to vector<128x128xbf16>
    %c1_8 = arith.constant 1 : index
    %c0_9 = arith.constant 0 : index
    %c0_10 = arith.constant 0 : index
    %15 = vector.load %arg5[%c1_8, %c0_9, %c0_10] : memref<9x128x128xbf16, #tpu.memory_space<vmem>>, vector<1x128x128xbf16>
    %16 = vector.shape_cast %15 : vector<1x128x128xbf16> to vector<128x128xbf16>
    %cst_11 = arith.constant dense<0.000000e+00> : vector<128x128xf32>
    %17 = tpu.matmul %14, %16, %cst_11 {dimension_numbers = #tpu.dot_dimension_numbers<[1], [0], [0], [1], [0, 0, 1, 1], [], []>} : vector<128x128xbf16>, vector<128x128xbf16>, vector<128x128xf32> -> vector<128x128xf32>
    %18 = arith.addf %9, %17 : vector<128x128xf32>
    %c0_i32_12 = arith.constant 0 : i32
    %19 = arith.addi %1, %c0_i32_12 : i32
    %c0_13 = arith.constant 0 : index
    %20 = arith.index_cast %19 : i32 to index
    %c2 = arith.constant 2 : index
    %c0_14 = arith.constant 0 : index
    %21 = vector.load %arg3[%c0_13, %20, %c2, %c0_14] : memref<1x18x18x128xbf16, #tpu.memory_space<vmem>>, vector<1x8x16x128xbf16>
    %22 = vector.shape_cast %21 : vector<1x8x16x128xbf16> to vector<8x16x128xbf16>
    %23 = vector.shape_cast %22 : vector<8x16x128xbf16> to vector<128x128xbf16>
    %c2_15 = arith.constant 2 : index
    %c0_16 = arith.constant 0 : index
    %c0_17 = arith.constant 0 : index
    %24 = vector.load %arg5[%c2_15, %c0_16, %c0_17] : memref<9x128x128xbf16, #tpu.memory_space<vmem>>, vector<1x128x128xbf16>
    %25 = vector.shape_cast %24 : vector<1x128x128xbf16> to vector<128x128xbf16>
    %cst_18 = arith.constant dense<0.000000e+00> : vector<128x128xf32>
    %26 = tpu.matmul %23, %25, %cst_18 {dimension_numbers = #tpu.dot_dimension_numbers<[1], [0], [0], [1], [0, 0, 1, 1], [], []>} : vector<128x128xbf16>, vector<128x128xbf16>, vector<128x128xf32> -> vector<128x128xf32>
    %27 = arith.addf %18, %26 : vector<128x128xf32>
    %c1_i32 = arith.constant 1 : i32
    %28 = arith.addi %1, %c1_i32 : i32
    %c0_19 = arith.constant 0 : index
    %29 = arith.index_cast %28 : i32 to index
    %c0_20 = arith.constant 0 : index
    %c0_21 = arith.constant 0 : index
    %30 = vector.load %arg3[%c0_19, %29, %c0_20, %c0_21] : memref<1x18x18x128xbf16, #tpu.memory_space<vmem>>, vector<1x8x16x128xbf16>
    %31 = vector.shape_cast %30 : vector<1x8x16x128xbf16> to vector<8x16x128xbf16>
    %32 = vector.shape_cast %31 : vector<8x16x128xbf16> to vector<128x128xbf16>
    %c3 = arith.constant 3 : index
    %c0_22 = arith.constant 0 : index
    %c0_23 = arith.constant 0 : index
    %33 = vector.load %arg5[%c3, %c0_22, %c0_23] : memref<9x128x128xbf16, #tpu.memory_space<vmem>>, vector<1x128x128xbf16>
    %34 = vector.shape_cast %33 : vector<1x128x128xbf16> to vector<128x128xbf16>
    %cst_24 = arith.constant dense<0.000000e+00> : vector<128x128xf32>
    %35 = tpu.matmul %32, %34, %cst_24 {dimension_numbers = #tpu.dot_dimension_numbers<[1], [0], [0], [1], [0, 0, 1, 1], [], []>} : vector<128x128xbf16>, vector<128x128xbf16>, vector<128x128xf32> -> vector<128x128xf32>
    %36 = arith.addf %27, %35 : vector<128x128xf32>
    %c1_i32_25 = arith.constant 1 : i32
    %37 = arith.addi %1, %c1_i32_25 : i32
    %c0_26 = arith.constant 0 : index
    %38 = arith.index_cast %37 : i32 to index
    %c1_27 = arith.constant 1 : index
    %c0_28 = arith.constant 0 : index
    %39 = vector.load %arg3[%c0_26, %38, %c1_27, %c0_28] : memref<1x18x18x128xbf16, #tpu.memory_space<vmem>>, vector<1x8x16x128xbf16>
    %40 = vector.shape_cast %39 : vector<1x8x16x128xbf16> to vector<8x16x128xbf16>
    %41 = vector.shape_cast %40 : vector<8x16x128xbf16> to vector<128x128xbf16>
    %c4 = arith.constant 4 : index
    %c0_29 = arith.constant 0 : index
    %c0_30 = arith.constant 0 : index
    %42 = vector.load %arg5[%c4, %c0_29, %c0_30] : memref<9x128x128xbf16, #tpu.memory_space<vmem>>, vector<1x128x128xbf16>
    %43 = vector.shape_cast %42 : vector<1x128x128xbf16> to vector<128x128xbf16>
    %cst_31 = arith.constant dense<0.000000e+00> : vector<128x128xf32>
    %44 = tpu.matmul %41, %43, %cst_31 {dimension_numbers = #tpu.dot_dimension_numbers<[1], [0], [0], [1], [0, 0, 1, 1], [], []>} : vector<128x128xbf16>, vector<128x128xbf16>, vector<128x128xf32> -> vector<128x128xf32>
    %45 = arith.addf %36, %44 : vector<128x128xf32>
    %c1_i32_32 = arith.constant 1 : i32
    %46 = arith.addi %1, %c1_i32_32 : i32
    %c0_33 = arith.constant 0 : index
    %47 = arith.index_cast %46 : i32 to index
    %c2_34 = arith.constant 2 : index
    %c0_35 = arith.constant 0 : index
    %48 = vector.load %arg3[%c0_33, %47, %c2_34, %c0_35] : memref<1x18x18x128xbf16, #tpu.memory_space<vmem>>, vector<1x8x16x128xbf16>
    %49 = vector.shape_cast %48 : vector<1x8x16x128xbf16> to vector<8x16x128xbf16>
    %50 = vector.shape_cast %49 : vector<8x16x128xbf16> to vector<128x128xbf16>
    %c5 = arith.constant 5 : index
    %c0_36 = arith.constant 0 : index
    %c0_37 = arith.constant 0 : index
    %51 = vector.load %arg5[%c5, %c0_36, %c0_37] : memref<9x128x128xbf16, #tpu.memory_space<vmem>>, vector<1x128x128xbf16>
    %52 = vector.shape_cast %51 : vector<1x128x128xbf16> to vector<128x128xbf16>
    %cst_38 = arith.constant dense<0.000000e+00> : vector<128x128xf32>
    %53 = tpu.matmul %50, %52, %cst_38 {dimension_numbers = #tpu.dot_dimension_numbers<[1], [0], [0], [1], [0, 0, 1, 1], [], []>} : vector<128x128xbf16>, vector<128x128xbf16>, vector<128x128xf32> -> vector<128x128xf32>
    %54 = arith.addf %45, %53 : vector<128x128xf32>
    %c2_i32 = arith.constant 2 : i32
    %55 = arith.addi %1, %c2_i32 : i32
    %c0_39 = arith.constant 0 : index
    %56 = arith.index_cast %55 : i32 to index
    %c0_40 = arith.constant 0 : index
    %c0_41 = arith.constant 0 : index
    %57 = vector.load %arg3[%c0_39, %56, %c0_40, %c0_41] : memref<1x18x18x128xbf16, #tpu.memory_space<vmem>>, vector<1x8x16x128xbf16>
    %58 = vector.shape_cast %57 : vector<1x8x16x128xbf16> to vector<8x16x128xbf16>
    %59 = vector.shape_cast %58 : vector<8x16x128xbf16> to vector<128x128xbf16>
    %c6 = arith.constant 6 : index
    %c0_42 = arith.constant 0 : index
    %c0_43 = arith.constant 0 : index
    %60 = vector.load %arg5[%c6, %c0_42, %c0_43] : memref<9x128x128xbf16, #tpu.memory_space<vmem>>, vector<1x128x128xbf16>
    %61 = vector.shape_cast %60 : vector<1x128x128xbf16> to vector<128x128xbf16>
    %cst_44 = arith.constant dense<0.000000e+00> : vector<128x128xf32>
    %62 = tpu.matmul %59, %61, %cst_44 {dimension_numbers = #tpu.dot_dimension_numbers<[1], [0], [0], [1], [0, 0, 1, 1], [], []>} : vector<128x128xbf16>, vector<128x128xbf16>, vector<128x128xf32> -> vector<128x128xf32>
    %63 = arith.addf %54, %62 : vector<128x128xf32>
    %c2_i32_45 = arith.constant 2 : i32
    %64 = arith.addi %1, %c2_i32_45 : i32
    %c0_46 = arith.constant 0 : index
    %65 = arith.index_cast %64 : i32 to index
    %c1_47 = arith.constant 1 : index
    %c0_48 = arith.constant 0 : index
    %66 = vector.load %arg3[%c0_46, %65, %c1_47, %c0_48] : memref<1x18x18x128xbf16, #tpu.memory_space<vmem>>, vector<1x8x16x128xbf16>
    %67 = vector.shape_cast %66 : vector<1x8x16x128xbf16> to vector<8x16x128xbf16>
    %68 = vector.shape_cast %67 : vector<8x16x128xbf16> to vector<128x128xbf16>
    %c7 = arith.constant 7 : index
    %c0_49 = arith.constant 0 : index
    %c0_50 = arith.constant 0 : index
    %69 = vector.load %arg5[%c7, %c0_49, %c0_50] : memref<9x128x128xbf16, #tpu.memory_space<vmem>>, vector<1x128x128xbf16>
    %70 = vector.shape_cast %69 : vector<1x128x128xbf16> to vector<128x128xbf16>
    %cst_51 = arith.constant dense<0.000000e+00> : vector<128x128xf32>
    %71 = tpu.matmul %68, %70, %cst_51 {dimension_numbers = #tpu.dot_dimension_numbers<[1], [0], [0], [1], [0, 0, 1, 1], [], []>} : vector<128x128xbf16>, vector<128x128xbf16>, vector<128x128xf32> -> vector<128x128xf32>
    %72 = arith.addf %63, %71 : vector<128x128xf32>
    %c2_i32_52 = arith.constant 2 : i32
    %73 = arith.addi %1, %c2_i32_52 : i32
    %c0_53 = arith.constant 0 : index
    %74 = arith.index_cast %73 : i32 to index
    %c2_54 = arith.constant 2 : index
    %c0_55 = arith.constant 0 : index
    %75 = vector.load %arg3[%c0_53, %74, %c2_54, %c0_55] : memref<1x18x18x128xbf16, #tpu.memory_space<vmem>>, vector<1x8x16x128xbf16>
    %76 = vector.shape_cast %75 : vector<1x8x16x128xbf16> to vector<8x16x128xbf16>
    %77 = vector.shape_cast %76 : vector<8x16x128xbf16> to vector<128x128xbf16>
    %c8 = arith.constant 8 : index
    %c0_56 = arith.constant 0 : index
    %c0_57 = arith.constant 0 : index
    %78 = vector.load %arg5[%c8, %c0_56, %c0_57] : memref<9x128x128xbf16, #tpu.memory_space<vmem>>, vector<1x128x128xbf16>
    %79 = vector.shape_cast %78 : vector<1x128x128xbf16> to vector<128x128xbf16>
    %cst_58 = arith.constant dense<0.000000e+00> : vector<128x128xf32>
    %80 = tpu.matmul %77, %79, %cst_58 {dimension_numbers = #tpu.dot_dimension_numbers<[1], [0], [0], [1], [0, 0, 1, 1], [], []>} : vector<128x128xbf16>, vector<128x128xbf16>, vector<128x128xf32> -> vector<128x128xf32>
    %81 = arith.addf %72, %80 : vector<128x128xf32>
    %c1_i32_59 = arith.constant 1 : i32
    %82 = arith.addi %1, %c1_i32_59 : i32
    %c0_60 = arith.constant 0 : index
    %83 = arith.index_cast %82 : i32 to index
    %c1_61 = arith.constant 1 : index
    %c0_62 = arith.constant 0 : index
    %84 = vector.load %arg3[%c0_60, %83, %c1_61, %c0_62] : memref<1x18x18x128xbf16, #tpu.memory_space<vmem>>, vector<1x8x16x128xbf16>
    %85 = vector.shape_cast %84 : vector<1x8x16x128xbf16> to vector<8x16x128xbf16>
    %86 = arith.extf %85 : vector<8x16x128xbf16> to vector<8x16x128xf32>
    %c0_63 = arith.constant 0 : index
    %c0_64 = arith.constant 0 : index
    %c0_65 = arith.constant 0 : index
    %c0_66 = arith.constant 0 : index
    %87 = vector.load %arg4[%c0_63, %c0_64, %c0_65, %c0_66] : memref<1x2x4x128xf32, #tpu.memory_space<vmem>>, vector<1x2x4x128xf32>
    %88 = vector.shape_cast %87 : vector<1x2x4x128xf32> to vector<2x4x128xf32>
    %89 = vector.shape_cast %88 : vector<2x4x128xf32> to vector<2x4x1x128xf32>
    %90 = vector.shape_cast %89 : vector<2x4x1x128xf32> to vector<2x4x1x128xf32>
    %91 = vector.broadcast %90 : vector<2x4x1x128xf32> to vector<2x4x4x128xf32>
    %92 = vector.shape_cast %91 : vector<2x4x4x128xf32> to vector<2x16x128xf32>
    %93 = vector.shape_cast %92 : vector<2x16x128xf32> to vector<2x1x16x128xf32>
    %94 = vector.shape_cast %93 : vector<2x1x16x128xf32> to vector<2x1x16x128xf32>
    %95 = vector.broadcast %94 : vector<2x1x16x128xf32> to vector<2x4x16x128xf32>
    %96 = vector.shape_cast %95 : vector<2x4x16x128xf32> to vector<8x16x128xf32>
    %97 = arith.addf %86, %96 : vector<8x16x128xf32>
    %98 = arith.negf %97 : vector<8x16x128xf32>
    %99 = math.exp %98 : vector<8x16x128xf32>
    %cst_67 = arith.constant 1.000000e+00 : f32
    %100 = vector.broadcast %cst_67 : f32 to vector<8x16x128xf32>
    %101 = arith.addf %100, %99 : vector<8x16x128xf32>
    %102 = arith.divf %100, %101 : vector<8x16x128xf32>
    %103 = vector.shape_cast %81 : vector<128x128xf32> to vector<8x16x128xf32>
    %104 = arith.mulf %103, %102 : vector<8x16x128xf32>
    %105 = arith.truncf %104 : vector<8x16x128xf32> to vector<8x16x128xbf16>
    %c0_68 = arith.constant 0 : index
    %c0_69 = arith.constant 0 : index
    %c0_70 = arith.constant 0 : index
    %c0_71 = arith.constant 0 : index
    %106 = vector.load %arg6[%c0_68, %c0_69, %c0_70, %c0_71] : memref<1x8x16x128xbf16, #tpu.memory_space<vmem>>, vector<1x8x16x128xbf16>
    %107 = vector.shape_cast %106 : vector<1x8x16x128xbf16> to vector<8x16x128xbf16>
    %108 = vector.shape_cast %105 : vector<8x16x128xbf16> to vector<1x8x16x128xbf16>
    tpu.vector_store %arg6[%c0_68, %c0_69, %c0_70, %c0_71], %108 {strides = array<i32>} : memref<1x8x16x128xbf16, #tpu.memory_space<vmem>>, vector<1x8x16x128xbf16>,
    return
  }
  func.func @transform_0(%arg0: i32, %arg1: i32, %arg2: i32) -> (i32, i32, i32, i32) {
    %c0_i32 = arith.constant 0 : i32
    %c0_i32_0 = arith.constant 0 : i32
    %c0_i32_1 = arith.constant 0 : i32
    %c0_i32_2 = arith.constant 0 : i32
    return %arg0, %c0_i32, %c0_i32_0, %c0_i32_1 : i32, i32, i32, i32
  }
  func.func @transform_1(%arg0: i32, %arg1: i32, %arg2: i32) -> (i32, i32, i32, i32) {
    %c0_i32 = arith.constant 0 : i32
    %c0_i32_0 = arith.constant 0 : i32
    return %arg0, %arg2, %c0_i32, %arg1 : i32, i32, i32, i32
  }
  func.func @transform_2(%arg0: i32, %arg1: i32, %arg2: i32) -> (i32, i32, i32) {
    %c0_i32 = arith.constant 0 : i32
    %c0_i32_0 = arith.constant 0 : i32
    %c0_i32_1 = arith.constant 0 : i32
    return %c0_i32, %c0_i32_0, %arg1 : i32, i32, i32
  }
  func.func @transform_3(%arg0: i32, %arg1: i32, %arg2: i32) -> (i32, i32, i32, i32) {
    %c0_i32 = arith.constant 0 : i32
    %c0_i32_0 = arith.constant 0 : i32
    return %arg0, %arg2, %c0_i32, %arg1 : i32, i32, i32, i32
  }
}

module attributes {stable_mosaic.version = 11 : i64} {
  func.func @_conv_kernel(%arg0: i32, %arg1: i32, %arg2: i32, %arg3: memref<1x1x18x18x128xbf16, #tpu.memory_space<vmem>>, %arg4: memref<9x128x128xbf16, #tpu.memory_space<vmem>>, %arg5: memref<1x8x16x128xf32, #tpu.memory_space<vmem>>) attributes {dimension_semantics = [#tpu.dimension_semantics<parallel>, #tpu.dimension_semantics<parallel>, #tpu.dimension_semantics<parallel>], iteration_bounds = array<i64: 2, 1, 2>, scalar_prefetch = 0 : i64, scratch_operands = 0 : i64, tpu.core_type = #tpu.core_type<tc>, window_params = [{transform_indices = @transform_0, window_bounds = array<i64: 1, 1, 18, 18, 128>}, {transform_indices = @transform_1, window_bounds = array<i64: 9, 128, 128>}, {transform_indices = @transform_2, window_bounds = array<i64: 1, 8, 16, 128>}]} {
    %c8_i32 = arith.constant 8 : i32
    %0 = arith.muli %arg2, %c8_i32 : i32
    %1 = tpu.assume_multiple %0, 8 : i32
    %c0_i32 = arith.constant 0 : i32
    %2 = arith.addi %1, %c0_i32 : i32
    %c0 = arith.constant 0 : index
    %c0_0 = arith.constant 0 : index
    %3 = arith.index_cast %2 : i32 to index
    %c0_1 = arith.constant 0 : index
    %c0_2 = arith.constant 0 : index
    %4 = vector.load %arg3[%c0, %c0_0, %3, %c0_1, %c0_2] : memref<1x1x18x18x128xbf16, #tpu.memory_space<vmem>>, vector<1x1x8x16x128xbf16>
    %5 = vector.shape_cast %4 : vector<1x1x8x16x128xbf16> to vector<8x16x128xbf16>
    %6 = vector.shape_cast %5 : vector<8x16x128xbf16> to vector<128x128xbf16>
    %c0_3 = arith.constant 0 : index
    %c0_4 = arith.constant 0 : index
    %c0_5 = arith.constant 0 : index
    %7 = vector.load %arg4[%c0_3, %c0_4, %c0_5] : memref<9x128x128xbf16, #tpu.memory_space<vmem>>, vector<1x128x128xbf16>
    %8 = vector.shape_cast %7 : vector<1x128x128xbf16> to vector<128x128xbf16>
    %cst = arith.constant dense<0.000000e+00> : vector<128x128xf32>
    %9 = tpu.matmul %6, %8, %cst {dimension_numbers = #tpu.dot_dimension_numbers<[1], [0], [0], [1], [0, 0, 1, 1], [], []>} : vector<128x128xbf16>, vector<128x128xbf16>, vector<128x128xf32> -> vector<128x128xf32>
    %c0_i32_6 = arith.constant 0 : i32
    %10 = arith.addi %1, %c0_i32_6 : i32
    %c0_7 = arith.constant 0 : index
    %c0_8 = arith.constant 0 : index
    %11 = arith.index_cast %10 : i32 to index
    %c1 = arith.constant 1 : index
    %c0_9 = arith.constant 0 : index
    %12 = vector.load %arg3[%c0_7, %c0_8, %11, %c1, %c0_9] : memref<1x1x18x18x128xbf16, #tpu.memory_space<vmem>>, vector<1x1x8x16x128xbf16>
    %13 = vector.shape_cast %12 : vector<1x1x8x16x128xbf16> to vector<8x16x128xbf16>
    %14 = vector.shape_cast %13 : vector<8x16x128xbf16> to vector<128x128xbf16>
    %c1_10 = arith.constant 1 : index
    %c0_11 = arith.constant 0 : index
    %c0_12 = arith.constant 0 : index
    %15 = vector.load %arg4[%c1_10, %c0_11, %c0_12] : memref<9x128x128xbf16, #tpu.memory_space<vmem>>, vector<1x128x128xbf16>
    %16 = vector.shape_cast %15 : vector<1x128x128xbf16> to vector<128x128xbf16>
    %cst_13 = arith.constant dense<0.000000e+00> : vector<128x128xf32>
    %17 = tpu.matmul %14, %16, %cst_13 {dimension_numbers = #tpu.dot_dimension_numbers<[1], [0], [0], [1], [0, 0, 1, 1], [], []>} : vector<128x128xbf16>, vector<128x128xbf16>, vector<128x128xf32> -> vector<128x128xf32>
    %18 = arith.addf %9, %17 : vector<128x128xf32>
    %c0_i32_14 = arith.constant 0 : i32
    %19 = arith.addi %1, %c0_i32_14 : i32
    %c0_15 = arith.constant 0 : index
    %c0_16 = arith.constant 0 : index
    %20 = arith.index_cast %19 : i32 to index
    %c2 = arith.constant 2 : index
    %c0_17 = arith.constant 0 : index
    %21 = vector.load %arg3[%c0_15, %c0_16, %20, %c2, %c0_17] : memref<1x1x18x18x128xbf16, #tpu.memory_space<vmem>>, vector<1x1x8x16x128xbf16>
    %22 = vector.shape_cast %21 : vector<1x1x8x16x128xbf16> to vector<8x16x128xbf16>
    %23 = vector.shape_cast %22 : vector<8x16x128xbf16> to vector<128x128xbf16>
    %c2_18 = arith.constant 2 : index
    %c0_19 = arith.constant 0 : index
    %c0_20 = arith.constant 0 : index
    %24 = vector.load %arg4[%c2_18, %c0_19, %c0_20] : memref<9x128x128xbf16, #tpu.memory_space<vmem>>, vector<1x128x128xbf16>
    %25 = vector.shape_cast %24 : vector<1x128x128xbf16> to vector<128x128xbf16>
    %cst_21 = arith.constant dense<0.000000e+00> : vector<128x128xf32>
    %26 = tpu.matmul %23, %25, %cst_21 {dimension_numbers = #tpu.dot_dimension_numbers<[1], [0], [0], [1], [0, 0, 1, 1], [], []>} : vector<128x128xbf16>, vector<128x128xbf16>, vector<128x128xf32> -> vector<128x128xf32>
    %27 = arith.addf %18, %26 : vector<128x128xf32>
    %c1_i32 = arith.constant 1 : i32
    %28 = arith.addi %1, %c1_i32 : i32
    %c0_22 = arith.constant 0 : index
    %c0_23 = arith.constant 0 : index
    %29 = arith.index_cast %28 : i32 to index
    %c0_24 = arith.constant 0 : index
    %c0_25 = arith.constant 0 : index
    %30 = vector.load %arg3[%c0_22, %c0_23, %29, %c0_24, %c0_25] : memref<1x1x18x18x128xbf16, #tpu.memory_space<vmem>>, vector<1x1x8x16x128xbf16>
    %31 = vector.shape_cast %30 : vector<1x1x8x16x128xbf16> to vector<8x16x128xbf16>
    %32 = vector.shape_cast %31 : vector<8x16x128xbf16> to vector<128x128xbf16>
    %c3 = arith.constant 3 : index
    %c0_26 = arith.constant 0 : index
    %c0_27 = arith.constant 0 : index
    %33 = vector.load %arg4[%c3, %c0_26, %c0_27] : memref<9x128x128xbf16, #tpu.memory_space<vmem>>, vector<1x128x128xbf16>
    %34 = vector.shape_cast %33 : vector<1x128x128xbf16> to vector<128x128xbf16>
    %cst_28 = arith.constant dense<0.000000e+00> : vector<128x128xf32>
    %35 = tpu.matmul %32, %34, %cst_28 {dimension_numbers = #tpu.dot_dimension_numbers<[1], [0], [0], [1], [0, 0, 1, 1], [], []>} : vector<128x128xbf16>, vector<128x128xbf16>, vector<128x128xf32> -> vector<128x128xf32>
    %36 = arith.addf %27, %35 : vector<128x128xf32>
    %c1_i32_29 = arith.constant 1 : i32
    %37 = arith.addi %1, %c1_i32_29 : i32
    %c0_30 = arith.constant 0 : index
    %c0_31 = arith.constant 0 : index
    %38 = arith.index_cast %37 : i32 to index
    %c1_32 = arith.constant 1 : index
    %c0_33 = arith.constant 0 : index
    %39 = vector.load %arg3[%c0_30, %c0_31, %38, %c1_32, %c0_33] : memref<1x1x18x18x128xbf16, #tpu.memory_space<vmem>>, vector<1x1x8x16x128xbf16>
    %40 = vector.shape_cast %39 : vector<1x1x8x16x128xbf16> to vector<8x16x128xbf16>
    %41 = vector.shape_cast %40 : vector<8x16x128xbf16> to vector<128x128xbf16>
    %c4 = arith.constant 4 : index
    %c0_34 = arith.constant 0 : index
    %c0_35 = arith.constant 0 : index
    %42 = vector.load %arg4[%c4, %c0_34, %c0_35] : memref<9x128x128xbf16, #tpu.memory_space<vmem>>, vector<1x128x128xbf16>
    %43 = vector.shape_cast %42 : vector<1x128x128xbf16> to vector<128x128xbf16>
    %cst_36 = arith.constant dense<0.000000e+00> : vector<128x128xf32>
    %44 = tpu.matmul %41, %43, %cst_36 {dimension_numbers = #tpu.dot_dimension_numbers<[1], [0], [0], [1], [0, 0, 1, 1], [], []>} : vector<128x128xbf16>, vector<128x128xbf16>, vector<128x128xf32> -> vector<128x128xf32>
    %45 = arith.addf %36, %44 : vector<128x128xf32>
    %c1_i32_37 = arith.constant 1 : i32
    %46 = arith.addi %1, %c1_i32_37 : i32
    %c0_38 = arith.constant 0 : index
    %c0_39 = arith.constant 0 : index
    %47 = arith.index_cast %46 : i32 to index
    %c2_40 = arith.constant 2 : index
    %c0_41 = arith.constant 0 : index
    %48 = vector.load %arg3[%c0_38, %c0_39, %47, %c2_40, %c0_41] : memref<1x1x18x18x128xbf16, #tpu.memory_space<vmem>>, vector<1x1x8x16x128xbf16>
    %49 = vector.shape_cast %48 : vector<1x1x8x16x128xbf16> to vector<8x16x128xbf16>
    %50 = vector.shape_cast %49 : vector<8x16x128xbf16> to vector<128x128xbf16>
    %c5 = arith.constant 5 : index
    %c0_42 = arith.constant 0 : index
    %c0_43 = arith.constant 0 : index
    %51 = vector.load %arg4[%c5, %c0_42, %c0_43] : memref<9x128x128xbf16, #tpu.memory_space<vmem>>, vector<1x128x128xbf16>
    %52 = vector.shape_cast %51 : vector<1x128x128xbf16> to vector<128x128xbf16>
    %cst_44 = arith.constant dense<0.000000e+00> : vector<128x128xf32>
    %53 = tpu.matmul %50, %52, %cst_44 {dimension_numbers = #tpu.dot_dimension_numbers<[1], [0], [0], [1], [0, 0, 1, 1], [], []>} : vector<128x128xbf16>, vector<128x128xbf16>, vector<128x128xf32> -> vector<128x128xf32>
    %54 = arith.addf %45, %53 : vector<128x128xf32>
    %c2_i32 = arith.constant 2 : i32
    %55 = arith.addi %1, %c2_i32 : i32
    %c0_45 = arith.constant 0 : index
    %c0_46 = arith.constant 0 : index
    %56 = arith.index_cast %55 : i32 to index
    %c0_47 = arith.constant 0 : index
    %c0_48 = arith.constant 0 : index
    %57 = vector.load %arg3[%c0_45, %c0_46, %56, %c0_47, %c0_48] : memref<1x1x18x18x128xbf16, #tpu.memory_space<vmem>>, vector<1x1x8x16x128xbf16>
    %58 = vector.shape_cast %57 : vector<1x1x8x16x128xbf16> to vector<8x16x128xbf16>
    %59 = vector.shape_cast %58 : vector<8x16x128xbf16> to vector<128x128xbf16>
    %c6 = arith.constant 6 : index
    %c0_49 = arith.constant 0 : index
    %c0_50 = arith.constant 0 : index
    %60 = vector.load %arg4[%c6, %c0_49, %c0_50] : memref<9x128x128xbf16, #tpu.memory_space<vmem>>, vector<1x128x128xbf16>
    %61 = vector.shape_cast %60 : vector<1x128x128xbf16> to vector<128x128xbf16>
    %cst_51 = arith.constant dense<0.000000e+00> : vector<128x128xf32>
    %62 = tpu.matmul %59, %61, %cst_51 {dimension_numbers = #tpu.dot_dimension_numbers<[1], [0], [0], [1], [0, 0, 1, 1], [], []>} : vector<128x128xbf16>, vector<128x128xbf16>, vector<128x128xf32> -> vector<128x128xf32>
    %63 = arith.addf %54, %62 : vector<128x128xf32>
    %c2_i32_52 = arith.constant 2 : i32
    %64 = arith.addi %1, %c2_i32_52 : i32
    %c0_53 = arith.constant 0 : index
    %c0_54 = arith.constant 0 : index
    %65 = arith.index_cast %64 : i32 to index
    %c1_55 = arith.constant 1 : index
    %c0_56 = arith.constant 0 : index
    %66 = vector.load %arg3[%c0_53, %c0_54, %65, %c1_55, %c0_56] : memref<1x1x18x18x128xbf16, #tpu.memory_space<vmem>>, vector<1x1x8x16x128xbf16>
    %67 = vector.shape_cast %66 : vector<1x1x8x16x128xbf16> to vector<8x16x128xbf16>
    %68 = vector.shape_cast %67 : vector<8x16x128xbf16> to vector<128x128xbf16>
    %c7 = arith.constant 7 : index
    %c0_57 = arith.constant 0 : index
    %c0_58 = arith.constant 0 : index
    %69 = vector.load %arg4[%c7, %c0_57, %c0_58] : memref<9x128x128xbf16, #tpu.memory_space<vmem>>, vector<1x128x128xbf16>
    %70 = vector.shape_cast %69 : vector<1x128x128xbf16> to vector<128x128xbf16>
    %cst_59 = arith.constant dense<0.000000e+00> : vector<128x128xf32>
    %71 = tpu.matmul %68, %70, %cst_59 {dimension_numbers = #tpu.dot_dimension_numbers<[1], [0], [0], [1], [0, 0, 1, 1], [], []>} : vector<128x128xbf16>, vector<128x128xbf16>, vector<128x128xf32> -> vector<128x128xf32>
    %72 = arith.addf %63, %71 : vector<128x128xf32>
    %c2_i32_60 = arith.constant 2 : i32
    %73 = arith.addi %1, %c2_i32_60 : i32
    %c0_61 = arith.constant 0 : index
    %c0_62 = arith.constant 0 : index
    %74 = arith.index_cast %73 : i32 to index
    %c2_63 = arith.constant 2 : index
    %c0_64 = arith.constant 0 : index
    %75 = vector.load %arg3[%c0_61, %c0_62, %74, %c2_63, %c0_64] : memref<1x1x18x18x128xbf16, #tpu.memory_space<vmem>>, vector<1x1x8x16x128xbf16>
    %76 = vector.shape_cast %75 : vector<1x1x8x16x128xbf16> to vector<8x16x128xbf16>
    %77 = vector.shape_cast %76 : vector<8x16x128xbf16> to vector<128x128xbf16>
    %c8 = arith.constant 8 : index
    %c0_65 = arith.constant 0 : index
    %c0_66 = arith.constant 0 : index
    %78 = vector.load %arg4[%c8, %c0_65, %c0_66] : memref<9x128x128xbf16, #tpu.memory_space<vmem>>, vector<1x128x128xbf16>
    %79 = vector.shape_cast %78 : vector<1x128x128xbf16> to vector<128x128xbf16>
    %cst_67 = arith.constant dense<0.000000e+00> : vector<128x128xf32>
    %80 = tpu.matmul %77, %79, %cst_67 {dimension_numbers = #tpu.dot_dimension_numbers<[1], [0], [0], [1], [0, 0, 1, 1], [], []>} : vector<128x128xbf16>, vector<128x128xbf16>, vector<128x128xf32> -> vector<128x128xf32>
    %81 = arith.addf %72, %80 : vector<128x128xf32>
    %82 = vector.shape_cast %81 : vector<128x128xf32> to vector<8x16x128xf32>
    %c0_68 = arith.constant 0 : index
    %c0_69 = arith.constant 0 : index
    %c0_70 = arith.constant 0 : index
    %c0_71 = arith.constant 0 : index
    %83 = vector.load %arg5[%c0_68, %c0_69, %c0_70, %c0_71] : memref<1x8x16x128xf32, #tpu.memory_space<vmem>>, vector<1x8x16x128xf32>
    %84 = vector.shape_cast %83 : vector<1x8x16x128xf32> to vector<8x16x128xf32>
    %85 = vector.shape_cast %82 : vector<8x16x128xf32> to vector<1x8x16x128xf32>
    tpu.vector_store %arg5[%c0_68, %c0_69, %c0_70, %c0_71], %85 {strides = array<i32>} : memref<1x8x16x128xf32, #tpu.memory_space<vmem>>, vector<1x8x16x128xf32>,
    return
  }
  func.func @transform_0(%arg0: i32, %arg1: i32, %arg2: i32) -> (i32, i32, i32, i32, i32) {
    %c0_i32 = arith.constant 0 : i32
    %c0_i32_0 = arith.constant 0 : i32
    %c0_i32_1 = arith.constant 0 : i32
    %c0_i32_2 = arith.constant 0 : i32
    %c0_i32_3 = arith.constant 0 : i32
    return %arg0, %c0_i32, %c0_i32_0, %c0_i32_1, %c0_i32_2 : i32, i32, i32, i32, i32
  }
  func.func @transform_1(%arg0: i32, %arg1: i32, %arg2: i32) -> (i32, i32, i32) {
    %c0_i32 = arith.constant 0 : i32
    %c0_i32_0 = arith.constant 0 : i32
    %c0_i32_1 = arith.constant 0 : i32
    return %c0_i32, %c0_i32_0, %arg1 : i32, i32, i32
  }
  func.func @transform_2(%arg0: i32, %arg1: i32, %arg2: i32) -> (i32, i32, i32, i32) {
    %c0_i32 = arith.constant 0 : i32
    %c0_i32_0 = arith.constant 0 : i32
    return %arg0, %arg2, %c0_i32, %arg1 : i32, i32, i32, i32
  }
}

</mosaic_0001>

<llo_original>
// kernel: scconv2d_pallas.6
$region0: #{scconv2d_pallas.6}
  #allocation0 [shape = 'u32[]', space=smem, size = 0x4, offset = 0x4, fixed_abs, tag = 'smem constant byte address 0x4 - core index']
  #allocation1 [shape = 'u32[144,128]{1,0:T(1,128)}', space=vmem, size = 0x12000, scoped, tag = 'internal scratch']
  %s0 = inlined_call_operand.vmem [shape: f32[2,16,16,128], index: 0, kind: input, shape index: {}]
  %s1 = inlined_call_operand.vmem [shape: f32[2,4,4,128], index: 1, kind: output, shape index: {}]
  %s2 = sld [smem:[#allocation0]]
  $region37: #{scconv2d_pallas.6} parent=0
    _
  %s4 = ssub.s32 1, %s2
  %s5 = scalar_select 0, %s4, %s2
  loop: start=0, step=1, limit=4
  $region2: #{scconv2d_pallas.6} parent=0 // loop_pre_header
    _
  $region3: #{scconv2d_pallas.6} parent=0 // loop_header
    %s7 = sphi 0, %s11
    %p8 = scmp.ge.s32.totalorder %s7, 4
    %s14 = sphi 0, %s26
    %s15 = sphi 0, %s22
    %s16 = sphi 0, %s14
    %s17 = sphi 0, %s15
    %s18 = sphi 0, %s16
    %s19 = sphi 0, %s17
    %s31 = sphi 0, %s33
    %s34 = sphi 0, %s31
    %s35 = sphi 0, %s34
    %s51 = sphi 0, %s35
    %s59 = sphi 0, %s61
    %s62 = sphi 0, %s59
    %s63 = sphi 0, %s62
    %s79 = sphi 0, %s63
  $region4: #{scconv2d_pallas.6} parent=0 // loop_header_branch
    %10 = sbr.rel (%p8) target = $region8
  $region5: #{scconv2d_pallas.6} parent=0 // loop_body
    %s12 = ssub.s32 %s7, 1
    %s13 = ssub.s32 %s7, 2
    %s20 = sadd.s32 1, %s15
    %p21 = scmp.ge.s32.totalorder %s20, 1
    %s22 = scalar_select %p21, 0, %s20
    %s23 = sadd.s32 1, %s14
    %s24 = scalar_select %p21, %s23, %s14
    %p25 = scmp.ge.s32.totalorder %s24, 2
    %s26 = scalar_select %p25, 0, %s24
    %s27 = ssub.s32 %s14, %s26
    %s28 = ssub.s32 %s15, %s22
    %s29 = sor.u32 %s27, %s28
    %p30 = scmp.eq.s32.totalorder %s29, 0
    %s32 = sadd.s32 %s31, 1
    %s33 = scalar_select %p30, %s31, %s32
    %p36 = pneg %p30
    %p37 = scmp.eq.s32.totalorder %s7, 1
    %p38 = por %p36, %p37
    %p39 = scmp.ne.s32.totalorder %s31, %s34
    %p40 = scmp.eq.s32.totalorder %s7, 0
    %p41 = por %p39, %p40
    %p42 = scmp.ne.s32.totalorder %s31, %s34
    %p43 = scmp.eq.s32.totalorder %s12, 1
    %p44 = por %p42, %p43
    %p45 = scmp.ne.s32.totalorder %s34, %s35
    %p46 = scmp.eq.s32.totalorder %s12, 0
    %p47 = por %p45, %p46
    %p48 = scmp.ne.s32.totalorder %s34, %s35
    %p49 = scmp.eq.s32.totalorder %s13, 1
    %p50 = por %p48, %p49
    %p52 = scmp.ne.s32.totalorder %s35, %s51
    %p53 = scmp.eq.s32.totalorder %s13, 0
    %p54 = por %p52, %p53
    %s55 = ssub.s32 %s14, %s26
    %s56 = ssub.s32 %s15, %s22
    %s57 = sor.u32 %s55, %s56
    %p58 = scmp.eq.s32.totalorder %s57, 0
    %s60 = sadd.s32 %s59, 1
    %s61 = scalar_select %p58, %s59, %s60
    %p64 = pneg %p58
    %p65 = scmp.eq.s32.totalorder %s7, 1
    %p66 = por %p64, %p65
    %p67 = scmp.ne.s32.totalorder %s59, %s62
    %p68 = scmp.eq.s32.totalorder %s7, 0
    %p69 = por %p67, %p68
    %p70 = scmp.ne.s32.totalorder %s59, %s62
    %p71 = scmp.eq.s32.totalorder %s12, 1
    %p72 = por %p70, %p71
    %p73 = scmp.ne.s32.totalorder %s62, %s63
    %p74 = scmp.eq.s32.totalorder %s12, 0
    %p75 = por %p73, %p74
    %p76 = scmp.ne.s32.totalorder %s62, %s63
    %p77 = scmp.eq.s32.totalorder %s13, 1
    %p78 = por %p76, %p77
    %p80 = scmp.ne.s32.totalorder %s63, %s79
    %p81 = scmp.eq.s32.totalorder %s13, 0
    %p82 = por %p80, %p81
    %p83 = scmp.le.s32.totalorder 1, %s7
    %p84 = scmp.lt.s32.totalorder %s7, 3
    %p85 = pnand %p83, %p84
    %p86 = pneg %p85
    // Predicated region
    $region9: #{scconv2d_pallas.6} parent=5 // pred_check
      _
    $region10: #{scconv2d_pallas.6} parent=5 // pred_check_branch
      %88 = sbr.rel (%p85) target = $region12
    $region11: #{scconv2d_pallas.6} parent=5 // pred_region
      %s89 = ssub.s32 %s7, 1
    $region12: #{scconv2d_pallas.6} parent=5 // pred_fallthru
      _
    %p90 = scmp.lt.s32.totalorder %s7, 2
    // Predicated region
    $region13: #{scconv2d_pallas.6} parent=5 // pred_check
      %p91 = pneg %p90
    $region14: #{scconv2d_pallas.6} parent=5 // pred_check_branch
      %93 = sbr.rel (%p91) target = $region16
    $region15: #{scconv2d_pallas.6} parent=5 // pred_region
      // Predicated region
      $region17: #{scconv2d_pallas.6} parent=15 // pred_check
        %p94 = pneg %p41
      $region18: #{scconv2d_pallas.6} parent=15 // pred_check_branch
        %96 = sbr.rel (%p94) target = $region20
      $region19: #{scconv2d_pallas.6} parent=15 // pred_region
        %s97 = smul.u32 16, %s15
        %p98 = scmp.lt.s32.totalorder %s14, 1
        %s99 = scalar_select %p98, %s14, 1
        %p100 = scmp.lt.s32.totalorder %s97, 15
        %s101 = scalar_select %p100, %s97, 15
        %s102 = smul.addr %s101, 2
        %s103 = smul.addr %s99, 32
        %s104 = sadd.s32 %s102, %s103
        %s105 = smul.addr %s104, 8
        %s106 = scalar_lea.vmem %s0, %s105
        %s107 = smul.u32 16, %s15
      $region20: #{scconv2d_pallas.6} parent=15 // pred_fallthru
        _
    $region16: #{scconv2d_pallas.6} parent=5 // pred_fallthru
      _
    %p108 = scmp.le.s32.totalorder 1, %s7
    %p109 = scmp.lt.s32.totalorder %s7, 3
    %p110 = pnand %p108, %p109
    %p111 = pneg %p110
    // Predicated region
    $region21: #{scconv2d_pallas.6} parent=5 // pred_check
      _
    $region22: #{scconv2d_pallas.6} parent=5 // pred_check_branch
      %113 = sbr.rel (%p110) target = $region24
    $region23: #{scconv2d_pallas.6} parent=5 // pred_region
      %s114 = ssub.s32 %s7, 1
      %s115 = smul.u32 16, %s17
      %p116 = scmp.lt.s32.totalorder %s16, 1
      %s117 = scalar_select %p116, %s16, 1
      %p118 = scmp.lt.s32.totalorder %s115, 15
      %s119 = scalar_select %p118, %s115, 15
      %s120 = smul.addr %s119, 2
      %s121 = smul.addr %s117, 32
      %s122 = sadd.s32 %s120, %s121
      %s123 = smul.addr %s122, 8
      %s124 = scalar_lea.vmem %s0, %s123
      %p125 = pneg %p47
      %p126 = pneg %p44
      %p127 = pneg %p75
      %p128 = pneg %p72
      %s129 = smul.u32 4, %s17
      %p130 = scmp.lt.s32.totalorder %s16, 1
      %s131 = scalar_select %p130, %s16, 1
      %p132 = scmp.lt.s32.totalorder %s129, 3
      %s133 = scalar_select %p132, %s129, 3
      %s134 = smul.addr %s131, 4
      %s135 = sadd.s32 %s133, %s134
      %s136 = smul.addr %s135, 4
      %s137 = scalar_lea.vmem %s1, %s136
      %s138 = smul.u32 16, %s17
      %p139 = scmp.lt.s32.totalorder %s16, 1
      %s140 = scalar_select %p139, %s16, 1
      %p141 = scmp.lt.s32.totalorder %s138, 15
      %s142 = scalar_select %p141, %s138, 15
      %s143 = smul.addr %s142, 2
      %s144 = smul.addr %s140, 32
      %s145 = sadd.s32 %s143, %s144
      %s146 = smul.addr %s145, 8
      %s147 = scalar_lea.vmem %s0, %s146
      %s148 = smul.u32 16, %s17
      %s149 = smul.u32 4, %s17
      %p150 = scmp.lt.s32.totalorder %s16, 1
      %s151 = scalar_select %p150, %s16, 1
      %p152 = scmp.lt.s32.totalorder %s149, 3
      %s153 = scalar_select %p152, %s149, 3
      %s154 = smul.addr %s151, 4
      %s155 = sadd.s32 %s153, %s154
      %s156 = smul.addr %s155, 4
      %s157 = scalar_lea.vmem %s1, %s156
      %s158 = smul.u32 4, %s17
      %v159 = vld [vmem:[%s147] sm:$0xff]
      %v160 = vld [vmem:[%s147 + $0x8] sm:$0xff]
      %v161 = vld [vmem:[%s147 + $0x10] sm:$0xff]
      %v162 = vld [vmem:[%s147 + $0x18] sm:$0xff]
      %v163 = vld [vmem:[%s147 + $0x20] sm:$0xff]
      %v164 = vld [vmem:[%s147 + $0x28] sm:$0xff]
      %v165 = vld [vmem:[%s147 + $0x30] sm:$0xff]
      %v166 = vld [vmem:[%s147 + $0x38] sm:$0xff]
      %v167 = vld [vmem:[%s147 + $0x40] sm:$0xff]
      %v168 = vld [vmem:[%s147 + $0x48] sm:$0xff]
      %v169 = vld [vmem:[%s147 + $0x50] sm:$0xff]
      %v170 = vld [vmem:[%s147 + $0x58] sm:$0xff]
      %v171 = vld [vmem:[%s147 + $0x60] sm:$0xff]
      %v172 = vld [vmem:[%s147 + $0x68] sm:$0xff]
      %v173 = vld [vmem:[%s147 + $0x70] sm:$0xff]
      %v174 = vld [vmem:[%s147 + $0x78] sm:$0xff]
      %v175 = vld [vmem:[%s147 + $0x80] sm:$0xff]
      %v176 = vld [vmem:[%s147 + $0x88] sm:$0xff]
      %v177 = vld [vmem:[%s147 + $0x90] sm:$0xff]
      %v178 = vld [vmem:[%s147 + $0x98] sm:$0xff]
      %v179 = vld [vmem:[%s147 + $0xa0] sm:$0xff]
      %v180 = vld [vmem:[%s147 + $0xa8] sm:$0xff]
      %v181 = vld [vmem:[%s147 + $0xb0] sm:$0xff]
      %v182 = vld [vmem:[%s147 + $0xb8] sm:$0xff]
      %v183 = vld [vmem:[%s147 + $0xc0] sm:$0xff]
      %v184 = vld [vmem:[%s147 + $0xc8] sm:$0xff]
      %v185 = vld [vmem:[%s147 + $0xd0] sm:$0xff]
      %v186 = vld [vmem:[%s147 + $0xd8] sm:$0xff]
      %v187 = vld [vmem:[%s147 + $0xe0] sm:$0xff]
      %v188 = vld [vmem:[%s147 + $0xe8] sm:$0xff]
      %v189 = vld [vmem:[%s147 + $0xf0] sm:$0xff]
      %v190 = vld [vmem:[%s147 + $0xf8] sm:$0xff]
      %v191 = vadd.f32 %v159, %v161
      %v192 = vadd.f32 %v191, %v163
      %v193 = vadd.f32 %v192, %v165
      %v194 = vadd.f32 %v160, %v162
      %v195 = vadd.f32 %v194, %v164
      %v196 = vadd.f32 %v195, %v166
      %v197 = vadd.f32 %v167, %v169
      %v198 = vadd.f32 %v197, %v171
      %v199 = vadd.f32 %v198, %v173
      %v200 = vadd.f32 %v168, %v170
      %v201 = vadd.f32 %v200, %v172
      %v202 = vadd.f32 %v201, %v174
      %v203 = vadd.f32 %v175, %v177
      %v204 = vadd.f32 %v203, %v179
      %v205 = vadd.f32 %v204, %v181
      %v206 = vadd.f32 %v176, %v178
      %v207 = vadd.f32 %v206, %v180
      %v208 = vadd.f32 %v207, %v182
      %v209 = vadd.f32 %v183, %v185
      %v210 = vadd.f32 %v209, %v187
      %v211 = vadd.f32 %v210, %v189
      %v212 = vadd.f32 %v184, %v186
      %v213 = vadd.f32 %v212, %v188
      %v214 = vadd.f32 %v213, %v190
      %v223 = vcombine.high %v193, %v193
      %v224 = vcombine.high %v196, %v196
      %v225 = vcombine.high %v199, %v199
      %v226 = vcombine.high %v202, %v202
      %v227 = vcombine.high %v205, %v205
      %v228 = vcombine.high %v208, %v208
      %v229 = vcombine.high %v211, %v211
      %v230 = vcombine.high %v214, %v214
      %vm239 = vcmask 1043456
      %v240 = vsel %vm239, %v193, 0.0
      %v241 = vrot.slane %v240, 4
      %v242 = vadd.f32 %v240, %v241
      %v243 = vrot.slane %v242, 2
      %v244 = vadd.f32 %v242, %v243
      %v245 = vrot.slane %v244, 1
      %v246 = vadd.f32 %v244, %v245
      %v247 = vsel %vm239, %v223, 0.0
      %v248 = vrot.slane %v247, 4
      %v249 = vadd.f32 %v247, %v248
      %v250 = vrot.slane %v249, 2
      %v251 = vadd.f32 %v249, %v250
      %v252 = vrot.slane %v251, 1
      %v253 = vadd.f32 %v251, %v252
      %v254 = vsel %vm239, %v196, 0.0
      %v255 = vrot.slane %v254, 4
      %v256 = vadd.f32 %v254, %v255
      %v257 = vrot.slane %v256, 2
      %v258 = vadd.f32 %v256, %v257
      %v259 = vrot.slane %v258, 1
      %v260 = vadd.f32 %v258, %v259
      %v261 = vsel %vm239, %v224, 0.0
      %v262 = vrot.slane %v261, 4
      %v263 = vadd.f32 %v261, %v262
      %v264 = vrot.slane %v263, 2
      %v265 = vadd.f32 %v263, %v264
      %v266 = vrot.slane %v265, 1
      %v267 = vadd.f32 %v265, %v266
      %v268 = vsel %vm239, %v199, 0.0
      %v269 = vrot.slane %v268, 4
      %v270 = vadd.f32 %v268, %v269
      %v271 = vrot.slane %v270, 2
      %v272 = vadd.f32 %v270, %v271
      %v273 = vrot.slane %v272, 1
      %v274 = vadd.f32 %v272, %v273
      %v275 = vsel %vm239, %v225, 0.0
      %v276 = vrot.slane %v275, 4
      %v277 = vadd.f32 %v275, %v276
      %v278 = vrot.slane %v277, 2
      %v279 = vadd.f32 %v277, %v278
      %v280 = vrot.slane %v279, 1
      %v281 = vadd.f32 %v279, %v280
      %v282 = vsel %vm239, %v202, 0.0
      %v283 = vrot.slane %v282, 4
      %v284 = vadd.f32 %v282, %v283
      %v285 = vrot.slane %v284, 2
      %v286 = vadd.f32 %v284, %v285
      %v287 = vrot.slane %v286, 1
      %v288 = vadd.f32 %v286, %v287
      %v289 = vsel %vm239, %v226, 0.0
      %v290 = vrot.slane %v289, 4
      %v291 = vadd.f32 %v289, %v290
      %v292 = vrot.slane %v291, 2
      %v293 = vadd.f32 %v291, %v292
      %v294 = vrot.slane %v293, 1
      %v295 = vadd.f32 %v293, %v294
      %v296 = vsel %vm239, %v205, 0.0
      %v297 = vrot.slane %v296, 4
      %v298 = vadd.f32 %v296, %v297
      %v299 = vrot.slane %v298, 2
      %v300 = vadd.f32 %v298, %v299
      %v301 = vrot.slane %v300, 1
      %v302 = vadd.f32 %v300, %v301
      %v303 = vsel %vm239, %v227, 0.0
      %v304 = vrot.slane %v303, 4
      %v305 = vadd.f32 %v303, %v304
      %v306 = vrot.slane %v305, 2
      %v307 = vadd.f32 %v305, %v306
      %v308 = vrot.slane %v307, 1
      %v309 = vadd.f32 %v307, %v308
      %v310 = vsel %vm239, %v208, 0.0
      %v311 = vrot.slane %v310, 4
      %v312 = vadd.f32 %v310, %v311
      %v313 = vrot.slane %v312, 2
      %v314 = vadd.f32 %v312, %v313
      %v315 = vrot.slane %v314, 1
      %v316 = vadd.f32 %v314, %v315
      %v317 = vsel %vm239, %v228, 0.0
      %v318 = vrot.slane %v317, 4
      %v319 = vadd.f32 %v317, %v318
      %v320 = vrot.slane %v319, 2
      %v321 = vadd.f32 %v319, %v320
      %v322 = vrot.slane %v321, 1
      %v323 = vadd.f32 %v321, %v322
      %v324 = vsel %vm239, %v211, 0.0
      %v325 = vrot.slane %v324, 4
      %v326 = vadd.f32 %v324, %v325
      %v327 = vrot.slane %v326, 2
      %v328 = vadd.f32 %v326, %v327
      %v329 = vrot.slane %v328, 1
      %v330 = vadd.f32 %v328, %v329
      %v331 = vsel %vm239, %v229, 0.0
      %v332 = vrot.slane %v331, 4
      %v333 = vadd.f32 %v331, %v332
      %v334 = vrot.slane %v333, 2
      %v335 = vadd.f32 %v333, %v334
      %v336 = vrot.slane %v335, 1
      %v337 = vadd.f32 %v335, %v336
      %v338 = vsel %vm239, %v214, 0.0
      %v339 = vrot.slane %v338, 4
      %v340 = vadd.f32 %v338, %v339
      %v341 = vrot.slane %v340, 2
      %v342 = vadd.f32 %v340, %v341
      %v343 = vrot.slane %v342, 1
      %v344 = vadd.f32 %v342, %v343
      %v345 = vsel %vm239, %v230, 0.0
      %v346 = vrot.slane %v345, 4
      %v347 = vadd.f32 %v345, %v346
      %v348 = vrot.slane %v347, 2
      %v349 = vadd.f32 %v347, %v348
      %v350 = vrot.slane %v349, 1
      %v351 = vadd.f32 %v349, %v350
      %v352 = vmul.f32 %v246, 0.0625
      %v353 = vmul.f32 %v253, 0.0625
      %v354 = vmul.f32 %v260, 0.0625
      %v355 = vmul.f32 %v267, 0.0625
      %v356 = vmul.f32 %v274, 0.0625
      %v357 = vmul.f32 %v281, 0.0625
      %v358 = vmul.f32 %v288, 0.0625
      %v359 = vmul.f32 %v295, 0.0625
      %v360 = vmul.f32 %v302, 0.0625
      %v361 = vmul.f32 %v309, 0.0625
      %v362 = vmul.f32 %v316, 0.0625
      %v363 = vmul.f32 %v323, 0.0625
      %v364 = vmul.f32 %v330, 0.0625
      %v365 = vmul.f32 %v337, 0.0625
      %v366 = vmul.f32 %v344, 0.0625
      %v367 = vmul.f32 %v351, 0.0625
      %vm384 = vcmask 1041409
      %v385 = vsel %vm384, %v353, %v352
      %vm386 = vcmask 1042434
      %v387 = vsel %vm386, %v354, %v385
      %vm388 = vcmask 1043459
      %v389 = vsel %vm388, %v355, %v387
      %v390 = vsel %vm384, %v357, %v356
      %v391 = vsel %vm386, %v358, %v390
      %v392 = vsel %vm388, %v359, %v391
      %v393 = vsel %vm384, %v361, %v360
      %v394 = vsel %vm386, %v362, %v393
      %v395 = vsel %vm388, %v363, %v394
      %v396 = vsel %vm384, %v365, %v364
      %v397 = vsel %vm386, %v366, %v396
      %v398 = vsel %vm388, %v367, %v397
      %403 = vst [vmem:[%s157] sm:$0xf] %v389
      %404 = vst [vmem:[%s157 + $0x4] sm:$0xf] %v392
      %405 = vst [vmem:[%s157 + $0x8] sm:$0xf] %v395
      %406 = vst [vmem:[%s157 + $0xc] sm:$0xf] %v398
      %s407 = smul.u32 4, %s17
      %p408 = scmp.lt.s32.totalorder %s16, 1
      %s409 = scalar_select %p408, %s16, 1
      %p410 = scmp.lt.s32.totalorder %s407, 3
      %s411 = scalar_select %p410, %s407, 3
      %s412 = smul.addr %s409, 4
      %s413 = sadd.s32 %s411, %s412
      %s414 = smul.addr %s413, 4
      %s415 = scalar_lea.vmem %s1, %s414
      // Predicated region
      $region25: #{scconv2d_pallas.6} parent=23 // pred_check
        %p416 = pneg %p72
      $region26: #{scconv2d_pallas.6} parent=23 // pred_check_branch
        %418 = sbr.rel (%p416) target = $region28
      $region27: #{scconv2d_pallas.6} parent=23 // pred_region
        %s419 = smul.u32 4, %s17
      $region28: #{scconv2d_pallas.6} parent=23 // pred_fallthru
        _
    $region24: #{scconv2d_pallas.6} parent=5 // pred_fallthru
      _
    %p420 = scmp.le.s32.totalorder 2, %s7
    // Predicated region
    $region29: #{scconv2d_pallas.6} parent=5 // pred_check
      %p421 = pneg %p420
    $region30: #{scconv2d_pallas.6} parent=5 // pred_check_branch
      %423 = sbr.rel (%p421) target = $region32
    $region31: #{scconv2d_pallas.6} parent=5 // pred_region
      %s424 = ssub.s32 %s7, 2
      // Predicated region
      $region33: #{scconv2d_pallas.6} parent=31 // pred_check
        %p425 = pneg %p78
      $region34: #{scconv2d_pallas.6} parent=31 // pred_check_branch
        %427 = sbr.rel (%p425) target = $region36
      $region35: #{scconv2d_pallas.6} parent=31 // pred_region
        %s428 = smul.u32 4, %s19
        %p429 = scmp.lt.s32.totalorder %s18, 1
        %s430 = scalar_select %p429, %s18, 1
        %p431 = scmp.lt.s32.totalorder %s428, 3
        %s432 = scalar_select %p431, %s428, 3
        %s433 = smul.addr %s430, 4
        %s434 = sadd.s32 %s432, %s433
        %s435 = smul.addr %s434, 4
        %s436 = scalar_lea.vmem %s1, %s435
      $region36: #{scconv2d_pallas.6} parent=31 // pred_fallthru
        _
    $region32: #{scconv2d_pallas.6} parent=5 // pred_fallthru
      _
  $region6: #{scconv2d_pallas.6} parent=0 // loop_footer
    %s11 = sadd.s32 1, %s7
  $region7: #{scconv2d_pallas.6} parent=0 // loop_footer_branch
    %6 = sbr.rel target = $region3
  $region8: #{scconv2d_pallas.6} parent=0 // loop_exit
    _

// kernel: scconv2d_pallas.7
$region0: #{scconv2d_pallas.7}
  #allocation0 [shape = 'u32[]', space=smem, size = 0x4, offset = 0x4, fixed_abs, tag = 'smem constant byte address 0x4 - core index']
  #allocation1 [shape = 'u32[144,128]{1,0:T(1,128)}', space=vmem, size = 0x12000, scoped, tag = 'internal scratch']
  %s0 = inlined_call_operand.vmem [shape: bf16[2,1,6,6,128], index: 0, kind: input, shape index: {}]
  %s1 = inlined_call_operand.vmem [shape: bf16[9,128,128], index: 1, kind: input, shape index: {}]
  %s2 = inlined_call_operand.vmem [shape: f32[2,4,4,128], index: 2, kind: output, shape index: {}]
  %s3 = sld [smem:[#allocation0]]
  $region41: #{scconv2d_pallas.7} parent=0
    _
  %s5 = ssub.s32 1, %s3
  %s6 = scalar_select 0, %s5, %s3
  loop: start=0, step=1, limit=6
  $region2: #{scconv2d_pallas.7} parent=0 // loop_pre_header
    _
  $region3: #{scconv2d_pallas.7} parent=0 // loop_header
    %s8 = sphi 0, %s12
    %p9 = scmp.ge.s32.totalorder %s8, 6
    %s15 = sphi 0, %s34
    %s16 = sphi 0, %s30
    %s17 = sphi 0, %s26
    %s18 = sphi 0, %s15
    %s19 = sphi 0, %s16
    %s20 = sphi 0, %s17
    %s21 = sphi 0, %s18
    %s22 = sphi 0, %s19
    %s23 = sphi 0, %s20
    %s37 = sphi 0, %s39
    %s40 = sphi 0, %s37
    %s41 = sphi 0, %s40
    %s57 = sphi 0, %s41
    %s63 = sphi 0, %s65
    %s66 = sphi 0, %s63
    %s67 = sphi 0, %s66
    %s83 = sphi 0, %s67
    %s93 = sphi 0, %s95
    %s96 = sphi 0, %s93
    %s97 = sphi 0, %s96
    %s113 = sphi 0, %s97
  $region4: #{scconv2d_pallas.7} parent=0 // loop_header_branch
    %11 = sbr.rel (%p9) target = $region8
  $region5: #{scconv2d_pallas.7} parent=0 // loop_body
    %s13 = ssub.s32 %s8, 1
    %s14 = ssub.s32 %s8, 2
    %s24 = sadd.s32 1, %s17
    %p25 = scmp.ge.s32.totalorder %s24, 2
    %s26 = scalar_select %p25, 0, %s24
    %s27 = sadd.s32 1, %s16
    %s28 = scalar_select %p25, %s27, %s16
    %p29 = scmp.ge.s32.totalorder %s28, 1
    %s30 = scalar_select %p29, 0, %s28
    %s31 = sadd.s32 1, %s15
    %s32 = scalar_select %p29, %s31, %s15
    %p33 = scmp.ge.s32.totalorder %s32, 2
    %s34 = scalar_select %p33, 0, %s32
    %s35 = ssub.s32 %s15, %s34
    %p36 = scmp.eq.s32.totalorder %s35, 0
    %s38 = sadd.s32 %s37, 1
    %s39 = scalar_select %p36, %s37, %s38
    %p42 = pneg %p36
    %p43 = scmp.eq.s32.totalorder %s8, 3
    %p44 = por %p42, %p43
    %p45 = scmp.ne.s32.totalorder %s37, %s40
    %p46 = scmp.eq.s32.totalorder %s8, 0
    %p47 = por %p45, %p46
    %p48 = scmp.ne.s32.totalorder %s37, %s40
    %p49 = scmp.eq.s32.totalorder %s13, 3
    %p50 = por %p48, %p49
    %p51 = scmp.ne.s32.totalorder %s40, %s41
    %p52 = scmp.eq.s32.totalorder %s13, 0
    %p53 = por %p51, %p52
    %p54 = scmp.ne.s32.totalorder %s40, %s41
    %p55 = scmp.eq.s32.totalorder %s14, 3
    %p56 = por %p54, %p55
    %p58 = scmp.ne.s32.totalorder %s41, %s57
    %p59 = scmp.eq.s32.totalorder %s14, 0
    %p60 = por %p58, %p59
    %s61 = ssub.s32 %s16, %s30
    %p62 = scmp.eq.s32.totalorder %s61, 0
    %s64 = sadd.s32 %s63, 1
    %s65 = scalar_select %p62, %s63, %s64
    %p68 = pneg %p62
    %p69 = scmp.eq.s32.totalorder %s8, 3
    %p70 = por %p68, %p69
    %p71 = scmp.ne.s32.totalorder %s63, %s66
    %p72 = scmp.eq.s32.totalorder %s8, 0
    %p73 = por %p71, %p72
    %p74 = scmp.ne.s32.totalorder %s63, %s66
    %p75 = scmp.eq.s32.totalorder %s13, 3
    %p76 = por %p74, %p75
    %p77 = scmp.ne.s32.totalorder %s66, %s67
    %p78 = scmp.eq.s32.totalorder %s13, 0
    %p79 = por %p77, %p78
    %p80 = scmp.ne.s32.totalorder %s66, %s67
    %p81 = scmp.eq.s32.totalorder %s14, 3
    %p82 = por %p80, %p81
    %p84 = scmp.ne.s32.totalorder %s67, %s83
    %p85 = scmp.eq.s32.totalorder %s14, 0
    %p86 = por %p84, %p85
    %s87 = ssub.s32 %s15, %s34
    %s88 = ssub.s32 %s17, %s26
    %s89 = sor.u32 %s87, %s88
    %s90 = ssub.s32 %s16, %s30
    %s91 = sor.u32 %s89, %s90
    %p92 = scmp.eq.s32.totalorder %s91, 0
    %s94 = sadd.s32 %s93, 1
    %s95 = scalar_select %p92, %s93, %s94
    %p98 = pneg %p92
    %p99 = scmp.eq.s32.totalorder %s8, 3
    %p100 = por %p98, %p99
    %p101 = scmp.ne.s32.totalorder %s93, %s96
    %p102 = scmp.eq.s32.totalorder %s8, 0
    %p103 = por %p101, %p102
    %p104 = scmp.ne.s32.totalorder %s93, %s96
    %p105 = scmp.eq.s32.totalorder %s13, 3
    %p106 = por %p104, %p105
    %p107 = scmp.ne.s32.totalorder %s96, %s97
    %p108 = scmp.eq.s32.totalorder %s13, 0
    %p109 = por %p107, %p108
    %p110 = scmp.ne.s32.totalorder %s96, %s97
    %p111 = scmp.eq.s32.totalorder %s14, 3
    %p112 = por %p110, %p111
    %p114 = scmp.ne.s32.totalorder %s97, %s113
    %p115 = scmp.eq.s32.totalorder %s14, 0
    %p116 = por %p114, %p115
    %p117 = scmp.le.s32.totalorder 1, %s8
    %p118 = scmp.lt.s32.totalorder %s8, 5
    %p119 = pnand %p117, %p118
    %p120 = pneg %p119
    // Predicated region
    $region9: #{scconv2d_pallas.7} parent=5 // pred_check
      _
    $region10: #{scconv2d_pallas.7} parent=5 // pred_check_branch
      %122 = sbr.rel (%p119) target = $region12
    $region11: #{scconv2d_pallas.7} parent=5 // pred_region
      %s123 = ssub.s32 %s8, 1
      // Predicated region
      $region13: #{scconv2d_pallas.7} parent=11 // pred_check
        %p124 = pneg %p79
      $region14: #{scconv2d_pallas.7} parent=11 // pred_check_branch
        %126 = sbr.rel (%p124) target = $region16
      $region15: #{scconv2d_pallas.7} parent=11 // pred_region
        %p127 = scmp.lt.s32.totalorder %s19, 0
        %s128 = scalar_select %p127, %s19, 0
        %s129 = smul.addr %s128, 4
        %s130 = scalar_lea.vmem %s1, %s129
      $region16: #{scconv2d_pallas.7} parent=11 // pred_fallthru
        _
    $region12: #{scconv2d_pallas.7} parent=5 // pred_fallthru
      _
    %p131 = scmp.lt.s32.totalorder %s8, 4
    // Predicated region
    $region17: #{scconv2d_pallas.7} parent=5 // pred_check
      %p132 = pneg %p131
    $region18: #{scconv2d_pallas.7} parent=5 // pred_check_branch
      %134 = sbr.rel (%p132) target = $region20
    $region19: #{scconv2d_pallas.7} parent=5 // pred_region
      // Predicated region
      $region21: #{scconv2d_pallas.7} parent=19 // pred_check
        %p135 = pneg %p47
      $region22: #{scconv2d_pallas.7} parent=19 // pred_check_branch
        %137 = sbr.rel (%p135) target = $region24
      $region23: #{scconv2d_pallas.7} parent=19 // pred_region
        %p138 = scmp.lt.s32.totalorder %s15, 1
        %s139 = scalar_select %p138, %s15, 1
        %s140 = smul.addr %s139, 6
        %s141 = smul.addr %s140, 4
        %s142 = scalar_lea.vmem %s0, %s141
      $region24: #{scconv2d_pallas.7} parent=19 // pred_fallthru
        _
    $region20: #{scconv2d_pallas.7} parent=5 // pred_fallthru
      _
    %p143 = scmp.le.s32.totalorder 1, %s8
    %p144 = scmp.lt.s32.totalorder %s8, 5
    %p145 = pnand %p143, %p144
    %p146 = pneg %p145
    // Predicated region
    $region25: #{scconv2d_pallas.7} parent=5 // pred_check
      _
    $region26: #{scconv2d_pallas.7} parent=5 // pred_check_branch
      %148 = sbr.rel (%p145) target = $region28
    $region27: #{scconv2d_pallas.7} parent=5 // pred_region
      %s149 = ssub.s32 %s8, 1
      %p150 = scmp.lt.s32.totalorder %s18, 1
      %s151 = scalar_select %p150, %s18, 1
      %s152 = smul.addr %s151, 6
      %s153 = smul.addr %s152, 4
      %s154 = scalar_lea.vmem %s0, %s153
      %p155 = pneg %p53
      %p156 = pneg %p50
      %p157 = scmp.lt.s32.totalorder %s19, 0
      %s158 = scalar_select %p157, %s19, 0
      %s159 = smul.addr %s158, 4
      %s160 = scalar_lea.vmem %s1, %s159
      %p161 = pneg %p79
      %p162 = pneg %p76
      %p163 = pneg %p109
      %p164 = pneg %p106
      %s165 = smul.u32 2, %s20
      %p166 = scmp.lt.s32.totalorder %s18, 1
      %s167 = scalar_select %p166, %s18, 1
      %p168 = scmp.lt.s32.totalorder %s165, 3
      %s169 = scalar_select %p168, %s165, 3
      %p170 = scmp.lt.s32.totalorder %s19, 0
      %s171 = scalar_select %p170, %s19, 0
      %s172 = sadd.s32 %s171, %s169
      %s173 = smul.addr %s167, 4
      %s174 = sadd.s32 %s172, %s173
      %s175 = smul.addr %s174, 4
      %s176 = scalar_lea.vmem %s2, %s175
      %p177 = scmp.lt.s32.totalorder %s18, 1
      %s178 = scalar_select %p177, %s18, 1
      %s179 = smul.addr %s178, 6
      %s180 = smul.addr %s179, 4
      %s181 = scalar_lea.vmem %s0, %s180
      %p182 = scmp.lt.s32.totalorder %s19, 0
      %s183 = scalar_select %p182, %s19, 0
      %s184 = smul.addr %s183, 4
      %s185 = scalar_lea.vmem %s1, %s184
      %s186 = smul.u32 2, %s20
      %p187 = scmp.lt.s32.totalorder %s18, 1
      %s188 = scalar_select %p187, %s18, 1
      %p189 = scmp.lt.s32.totalorder %s186, 3
      %s190 = scalar_select %p189, %s186, 3
      %p191 = scmp.lt.s32.totalorder %s19, 0
      %s192 = scalar_select %p191, %s19, 0
      %s193 = sadd.s32 %s192, %s190
      %s194 = smul.addr %s188, 4
      %s195 = sadd.s32 %s193, %s194
      %s196 = smul.addr %s195, 4
      %s197 = scalar_lea.vmem %s2, %s196
      %s198 = smul.u32 2, %s20
      %s200 = smul.u32 %s20, 2
      %s201 = smul.addr %s200, 4
      %s202 = scalar_lea.vmem %s181, %s201
      %v203 = vld [vmem:[%s202] sm:$0x3]
      %v204 = vld [vmem:[%s202 + $0x4] sm:$0x3]
      %v205 = vld [vmem:[%s185] sm:$0xf]
      %v206 = vld [vmem:[%s185 + $0x4] sm:$0xf]
      %v207 = vld [vmem:[%s185 + $0x8] sm:$0xf]
      %v208 = vld [vmem:[%s185 + $0xc] sm:$0xf]
      %v209 = vld [vmem:[%s185 + $0x10] sm:$0xf]
      %v210 = vld [vmem:[%s185 + $0x14] sm:$0xf]
      %v211 = vld [vmem:[%s185 + $0x18] sm:$0xf]
      %v212 = vld [vmem:[%s185 + $0x1c] sm:$0xf]
      %v213 = vld [vmem:[%s185 + $0x20] sm:$0xf]
      %v214 = vld [vmem:[%s185 + $0x24] sm:$0xf]
      %v215 = vld [vmem:[%s185 + $0x28] sm:$0xf]
      %v216 = vld [vmem:[%s185 + $0x2c] sm:$0xf]
      %v217 = vld [vmem:[%s185 + $0x30] sm:$0xf]
      %v218 = vld [vmem:[%s185 + $0x34] sm:$0xf]
      %v219 = vld [vmem:[%s185 + $0x38] sm:$0xf]
      %v220 = vld [vmem:[%s185 + $0x3c] sm:$0xf]
      %v221 = vld [vmem:[%s202] sm:$0x7]
      %v222 = vld [vmem:[%s202 + $0x4] sm:$0x7]
      %v226 = vunpack.c.l.s4 1983009808
      %v227 = vunpack.c.0.s8 %v226
      %v228 = vlaneseq
      %v229 = vshrl.u32 %v228, 7
      %v230 = vsub.s32 %v227, %v229
      %v231 = vrot.slane %v221, %v230
      %v232 = vcombine.high %v231, %v231
      %v234 = vunpack.c.l.s4 1983009808
      %v235 = vunpack.c.0.s8 %v234
      %v236 = vlaneseq
      %v237 = vshrl.u32 %v236, 7
      %v238 = vsub.s32 %v235, %v237
      %v239 = vrot.slane %v222, %v238
      %v240 = vcombine.high %v239, %v239
      %vm241 = vsmask.f32 1280
      %vm242 = vsmask.f32 3336
      %vm243 = vmor %vm241, %vm242
      %vm244 = vsmask.f32 5392
      %vm245 = vmor %vm243, %vm244
      %vm246 = vsmask.f32 7448
      %vm247 = vmor %vm245, %vm246
      %v249 = vshrl.u32 %v231, 16
      %v251 = vrot.slane %v249, 6
      %v252 = vshll.u32 %v231, 16
      %v254 = vrot.slane %v252, 7
      %v255 = vor.u32 %v251, %v254
      %v256 = vrot.slane %v255, 2
      %v258 = vshll.u32 %v232, 16
      %v260 = vrot.slane %v258, 7
      %v261 = vsel %vm247, %v256, %v260
      %v263 = vshrl.u32 %v239, 16
      %v265 = vrot.slane %v263, 6
      %v266 = vshll.u32 %v239, 16
      %v268 = vrot.slane %v266, 7
      %v269 = vor.u32 %v265, %v268
      %v270 = vrot.slane %v269, 2
      %v272 = vshll.u32 %v240, 16
      %v274 = vrot.slane %v272, 7
      %v275 = vsel %vm247, %v270, %v274
      %s276 = scalar_lea.vmem %s185, 64
      %v277 = vld [vmem:[%s276] sm:$0xf]
      %v278 = vld [vmem:[%s276 + $0x4] sm:$0xf]
      %v279 = vld [vmem:[%s276 + $0x8] sm:$0xf]
      %v280 = vld [vmem:[%s276 + $0xc] sm:$0xf]
      %v281 = vld [vmem:[%s276 + $0x10] sm:$0xf]
      %v282 = vld [vmem:[%s276 + $0x14] sm:$0xf]
      %v283 = vld [vmem:[%s276 + $0x18] sm:$0xf]
      %v284 = vld [vmem:[%s276 + $0x1c] sm:$0xf]
      %v285 = vld [vmem:[%s276 + $0x20] sm:$0xf]
      %v286 = vld [vmem:[%s276 + $0x24] sm:$0xf]
      %v287 = vld [vmem:[%s276 + $0x28] sm:$0xf]
      %v288 = vld [vmem:[%s276 + $0x2c] sm:$0xf]
      %v289 = vld [vmem:[%s276 + $0x30] sm:$0xf]
      %v290 = vld [vmem:[%s276 + $0x34] sm:$0xf]
      %v291 = vld [vmem:[%s276 + $0x38] sm:$0xf]
      %v292 = vld [vmem:[%s276 + $0x3c] sm:$0xf]
      %v293 = vcombine.low %v261, %v275
      %v295 = vunpack.c.l.s4 1983009808
      %v296 = vunpack.c.0.s8 %v295
      %v297 = vlaneseq
      %v298 = vshrl.u32 %v297, 7
      %v299 = vsub.s32 %v296, %v298
      %v300 = vrot.slane %v293, %v299
      %v318 = vunpack.c.l.b16 %v277
      %v319 = vunpack.c.l.b16 %v278
      %v320 = vunpack.c.l.b16 %v279
      %v321 = vunpack.c.l.b16 %v280
      %v322 = vunpack.c.l.b16 %v281
      %v323 = vunpack.c.l.b16 %v282
      %v324 = vunpack.c.l.b16 %v283
      %v325 = vunpack.c.l.b16 %v284
      %v326 = vunpack.c.l.b16 %v285
      %v327 = vunpack.c.l.b16 %v286
      %v328 = vunpack.c.l.b16 %v287
      %v329 = vunpack.c.l.b16 %v288
      %v330 = vunpack.c.l.b16 %v289
      %v331 = vunpack.c.l.b16 %v290
      %v332 = vunpack.c.l.b16 %v291
      %v333 = vunpack.c.l.b16 %v292
      %v334 = vpack.c.b16 %v319, %v318
      %v335 = vpack.c.b16 %v321, %v320
      %v336 = vpack.c.b16 %v323, %v322
      %v337 = vpack.c.b16 %v325, %v324
      %v338 = vpack.c.b16 %v327, %v326
      %v339 = vpack.c.b16 %v329, %v328
      %v340 = vpack.c.b16 %v331, %v330
      %v341 = vpack.c.b16 %v333, %v332
      %350 = vmatprep.subr.bf16.mxu0 0
      %351 = vmatpush1.bf16.msra.mxu0 %v334
      %352 = vmatprep.subr.bf16.mxu0 0
      %353 = vmatpush1.bf16.msra.mxu0 %v335
      %354 = vmatprep.subr.bf16.mxu0 0
      %355 = vmatpush1.bf16.msra.mxu0 %v336
      %356 = vmatprep.subr.bf16.mxu0 0
      %357 = vmatpush1.bf16.msra.mxu0 %v337
      %358 = vmatprep.subr.bf16.mxu0 0
      %359 = vmatpush1.bf16.msra.mxu0 %v338
      %360 = vmatprep.subr.bf16.mxu0 0
      %361 = vmatpush1.bf16.msra.mxu0 %v339
      %362 = vmatprep.subr.bf16.mxu0 0
      %363 = vmatpush1.bf16.msra.mxu0 %v340
      %364 = vmatprep.subr.bf16.mxu0 0
      %365 = vmatpush1.bf16.msra.mxu0 %v341
      %366 = vmatprep.subr.bf16.mxu0 0
      %367 = vmatpush1.bf16.msra.mxu0 0
      %368 = vmatprep.subr.bf16.mxu0 0
      %369 = vmatpush1.bf16.msra.mxu0 0
      %370 = vmatprep.subr.bf16.mxu0 0
      %371 = vmatpush1.bf16.msra.mxu0 0
      %372 = vmatprep.subr.bf16.mxu0 0
      %373 = vmatpush1.bf16.msra.mxu0 0
      %374 = vmatprep.subr.bf16.mxu0 0
      %375 = vmatpush1.bf16.msra.mxu0 0
      %376 = vmatprep.subr.bf16.mxu0 0
      %377 = vmatpush1.bf16.msra.mxu0 0
      %378 = vmatprep.subr.bf16.mxu0 0
      %379 = vmatpush1.bf16.msra.mxu0 0
      %380 = vmatprep.subr.bf16.mxu0 0
      %381 = vmatpush1.bf16.msra.mxu0 0
      %382 = vmatprep.mubr.bf16.mxu0 0
      %383 = vmatmul.mubr.bf16.gmra.mrb[0].mxu0 %v300
      %v384 = vpop.f32.mrb[0].mxu0
      %v385 = vadd.f32 0.0, %v384
      %v386 = vpop.f32.mrb[0].mxu0
      %v387 = vpop.f32.mrb[0].mxu0
      %v388 = vpop.f32.mrb[0].mxu0
      %389 = vdwg.mxu0
      %v392 = vcombine.low %v203, %v204
      %v394 = vunpack.c.l.s4 1983009808
      %v395 = vunpack.c.0.s8 %v394
      %v396 = vlaneseq
      %v397 = vshrl.u32 %v396, 7
      %v398 = vsub.s32 %v395, %v397
      %v399 = vrot.slane %v392, %v398
      %v417 = vunpack.c.l.b16 %v205
      %v418 = vunpack.c.l.b16 %v206
      %v419 = vunpack.c.l.b16 %v207
      %v420 = vunpack.c.l.b16 %v208
      %v421 = vunpack.c.l.b16 %v209
      %v422 = vunpack.c.l.b16 %v210
      %v423 = vunpack.c.l.b16 %v211
      %v424 = vunpack.c.l.b16 %v212
      %v425 = vunpack.c.l.b16 %v213
      %v426 = vunpack.c.l.b16 %v214
      %v427 = vunpack.c.l.b16 %v215
      %v428 = vunpack.c.l.b16 %v216
      %v429 = vunpack.c.l.b16 %v217
      %v430 = vunpack.c.l.b16 %v218
      %v431 = vunpack.c.l.b16 %v219
      %v432 = vunpack.c.l.b16 %v220
      %v433 = vpack.c.b16 %v418, %v417
      %v434 = vpack.c.b16 %v420, %v419
      %v435 = vpack.c.b16 %v422, %v421
      %v436 = vpack.c.b16 %v424, %v423
      %v437 = vpack.c.b16 %v426, %v425
      %v438 = vpack.c.b16 %v428, %v427
      %v439 = vpack.c.b16 %v430, %v429
      %v440 = vpack.c.b16 %v432, %v431
      %449 = vmatprep.subr.bf16.mxu0 0
      %450 = vmatpush1.bf16.msra.mxu0 %v433
      %451 = vmatprep.subr.bf16.mxu0 0
      %452 = vmatpush1.bf16.msra.mxu0 %v434
      %453 = vmatprep.subr.bf16.mxu0 0
      %454 = vmatpush1.bf16.msra.mxu0 %v435
      %455 = vmatprep.subr.bf16.mxu0 0
      %456 = vmatpush1.bf16.msra.mxu0 %v436
      %457 = vmatprep.subr.bf16.mxu0 0
      %458 = vmatpush1.bf16.msra.mxu0 %v437
      %459 = vmatprep.subr.bf16.mxu0 0
      %460 = vmatpush1.bf16.msra.mxu0 %v438
      %461 = vmatprep.subr.bf16.mxu0 0
      %462 = vmatpush1.bf16.msra.mxu0 %v439
      %463 = vmatprep.subr.bf16.mxu0 0
      %464 = vmatpush1.bf16.msra.mxu0 %v440
      %465 = vmatprep.subr.bf16.mxu0 0
      %466 = vmatpush1.bf16.msra.mxu0 0
      %467 = vmatprep.subr.bf16.mxu0 0
      %468 = vmatpush1.bf16.msra.mxu0 0
      %469 = vmatprep.subr.bf16.mxu0 0
      %470 = vmatpush1.bf16.msra.mxu0 0
      %471 = vmatprep.subr.bf16.mxu0 0
      %472 = vmatpush1.bf16.msra.mxu0 0
      %473 = vmatprep.subr.bf16.mxu0 0
      %474 = vmatpush1.bf16.msra.mxu0 0
      %475 = vmatprep.subr.bf16.mxu0 0
      %476 = vmatpush1.bf16.msra.mxu0 0
      %477 = vmatprep.subr.bf16.mxu0 0
      %478 = vmatpush1.bf16.msra.mxu0 0
      %479 = vmatprep.subr.bf16.mxu0 0
      %480 = vmatpush1.bf16.msra.mxu0 0
      %481 = vmatprep.mubr.bf16.mxu0 0
      %482 = vmatmul.mubr.bf16.gmra.mrb[0].mxu0 %v399
      %v483 = vpop.f32.mrb[0].mxu0
      %v484 = vadd.f32 %v385, %v483
      %v485 = vpop.f32.mrb[0].mxu0
      %v486 = vpop.f32.mrb[0].mxu0
      %v487 = vpop.f32.mrb[0].mxu0
      %488 = vdwg.mxu0
      %v489 = vld [vmem:[%s202] sm:$0x6]
      %v490 = vld [vmem:[%s202 + $0x4] sm:$0x6]
      %v494 = vunpack.c.l.s4 1983009808
      %v495 = vunpack.c.0.s8 %v494
      %v496 = vlaneseq
      %v497 = vshrl.u32 %v496, 7
      %v498 = vsub.s32 %v495, %v497
      %v499 = vrot.slane %v489, %v498
      %v500 = vcombine.high %v499, %v499
      %v502 = vunpack.c.l.s4 1983009808
      %v503 = vunpack.c.0.s8 %v502
      %v504 = vlaneseq
      %v505 = vshrl.u32 %v504, 7
      %v506 = vsub.s32 %v503, %v505
      %v507 = vrot.slane %v490, %v506
      %v508 = vcombine.high %v507, %v507
      %vm509 = vcmask 1040384
      %vm510 = vcmask 1042434
      %vm511 = vmor %vm509, %vm510
      %vm512 = vcmask 1044484
      %vm513 = vmor %vm511, %vm512
      %vm514 = vcmask 1046534
      %vm515 = vmor %vm513, %vm514
      %v516 = vrot.slane %v499, 7
      %v517 = vrot.slane %v516, 2
      %v518 = vrot.slane %v500, 7
      %v519 = vsel %vm515, %v517, %v518
      %v520 = vrot.slane %v507, 7
      %v521 = vrot.slane %v520, 2
      %v522 = vrot.slane %v508, 7
      %v523 = vsel %vm515, %v521, %v522
      %s524 = scalar_lea.vmem %s185, 128
      %v525 = vld [vmem:[%s524] sm:$0xf]
      %v526 = vld [vmem:[%s524 + $0x4] sm:$0xf]
      %v527 = vld [vmem:[%s524 + $0x8] sm:$0xf]
      %v528 = vld [vmem:[%s524 + $0xc] sm:$0xf]
      %v529 = vld [vmem:[%s524 + $0x10] sm:$0xf]
      %v530 = vld [vmem:[%s524 + $0x14] sm:$0xf]
      %v531 = vld [vmem:[%s524 + $0x18] sm:$0xf]
      %v532 = vld [vmem:[%s524 + $0x1c] sm:$0xf]
      %v533 = vld [vmem:[%s524 + $0x20] sm:$0xf]
      %v534 = vld [vmem:[%s524 + $0x24] sm:$0xf]
      %v535 = vld [vmem:[%s524 + $0x28] sm:$0xf]
      %v536 = vld [vmem:[%s524 + $0x2c] sm:$0xf]
      %v537 = vld [vmem:[%s524 + $0x30] sm:$0xf]
      %v538 = vld [vmem:[%s524 + $0x34] sm:$0xf]
      %v539 = vld [vmem:[%s524 + $0x38] sm:$0xf]
      %v540 = vld [vmem:[%s524 + $0x3c] sm:$0xf]
      %v541 = vcombine.low %v519, %v523
      %v543 = vunpack.c.l.s4 1983009808
      %v544 = vunpack.c.0.s8 %v543
      %v545 = vlaneseq
      %v546 = vshrl.u32 %v545, 7
      %v547 = vsub.s32 %v544, %v546
      %v548 = vrot.slane %v541, %v547
      %v566 = vunpack.c.l.b16 %v525
      %v567 = vunpack.c.l.b16 %v526
      %v568 = vunpack.c.l.b16 %v527
      %v569 = vunpack.c.l.b16 %v528
      %v570 = vunpack.c.l.b16 %v529
      %v571 = vunpack.c.l.b16 %v530
      %v572 = vunpack.c.l.b16 %v531
      %v573 = vunpack.c.l.b16 %v532
      %v574 = vunpack.c.l.b16 %v533
      %v575 = vunpack.c.l.b16 %v534
      %v576 = vunpack.c.l.b16 %v535
      %v577 = vunpack.c.l.b16 %v536
      %v578 = vunpack.c.l.b16 %v537
      %v579 = vunpack.c.l.b16 %v538
      %v580 = vunpack.c.l.b16 %v539
      %v581 = vunpack.c.l.b16 %v540
      %v582 = vpack.c.b16 %v567, %v566
      %v583 = vpack.c.b16 %v569, %v568
      %v584 = vpack.c.b16 %v571, %v570
      %v585 = vpack.c.b16 %v573, %v572
      %v586 = vpack.c.b16 %v575, %v574
      %v587 = vpack.c.b16 %v577, %v576
      %v588 = vpack.c.b16 %v579, %v578
      %v589 = vpack.c.b16 %v581, %v580
      %598 = vmatprep.subr.bf16.mxu0 0
      %599 = vmatpush1.bf16.msra.mxu0 %v582
      %600 = vmatprep.subr.bf16.mxu0 0
      %601 = vmatpush1.bf16.msra.mxu0 %v583
      %602 = vmatprep.subr.bf16.mxu0 0
      %603 = vmatpush1.bf16.msra.mxu0 %v584
      %604 = vmatprep.subr.bf16.mxu0 0
      %605 = vmatpush1.bf16.msra.mxu0 %v585
      %606 = vmatprep.subr.bf16.mxu0 0
      %607 = vmatpush1.bf16.msra.mxu0 %v586
      %608 = vmatprep.subr.bf16.mxu0 0
      %609 = vmatpush1.bf16.msra.mxu0 %v587
      %610 = vmatprep.subr.bf16.mxu0 0
      %611 = vmatpush1.bf16.msra.mxu0 %v588
      %612 = vmatprep.subr.bf16.mxu0 0
      %613 = vmatpush1.bf16.msra.mxu0 %v589
      %614 = vmatprep.subr.bf16.mxu0 0
      %615 = vmatpush1.bf16.msra.mxu0 0
      %616 = vmatprep.subr.bf16.mxu0 0
      %617 = vmatpush1.bf16.msra.mxu0 0
      %618 = vmatprep.subr.bf16.mxu0 0
      %619 = vmatpush1.bf16.msra.mxu0 0
      %620 = vmatprep.subr.bf16.mxu0 0
      %621 = vmatpush1.bf16.msra.mxu0 0
      %622 = vmatprep.subr.bf16.mxu0 0
      %623 = vmatpush1.bf16.msra.mxu0 0
      %624 = vmatprep.subr.bf16.mxu0 0
      %625 = vmatpush1.bf16.msra.mxu0 0
      %626 = vmatprep.subr.bf16.mxu0 0
      %627 = vmatpush1.bf16.msra.mxu0 0
      %628 = vmatprep.subr.bf16.mxu0 0
      %629 = vmatpush1.bf16.msra.mxu0 0
      %630 = vmatprep.mubr.bf16.mxu0 0
      %631 = vmatmul.mubr.bf16.gmra.mrb[0].mxu0 %v548
      %v632 = vpop.f32.mrb[0].mxu0
      %v633 = vadd.f32 0.0, %v632
      %v634 = vpop.f32.mrb[0].mxu0
      %v635 = vpop.f32.mrb[0].mxu0
      %v636 = vpop.f32.mrb[0].mxu0
      %637 = vdwg.mxu0
      %v638 = vadd.f32 %v484, %v633
      %s639 = sadd.s32 %s200, 1
      %s640 = smul.addr %s639, 4
      %s641 = scalar_lea.vmem %s181, %s640
      %v642 = vld [vmem:[%s641] sm:$0x3]
      %v643 = vld [vmem:[%s641 + $0x4] sm:$0x3]
      %s644 = scalar_lea.vmem %s185, 192
      %v645 = vld [vmem:[%s644] sm:$0xf]
      %v646 = vld [vmem:[%s644 + $0x4] sm:$0xf]
      %v647 = vld [vmem:[%s644 + $0x8] sm:$0xf]
      %v648 = vld [vmem:[%s644 + $0xc] sm:$0xf]
      %v649 = vld [vmem:[%s644 + $0x10] sm:$0xf]
      %v650 = vld [vmem:[%s644 + $0x14] sm:$0xf]
      %v651 = vld [vmem:[%s644 + $0x18] sm:$0xf]
      %v652 = vld [vmem:[%s644 + $0x1c] sm:$0xf]
      %v653 = vld [vmem:[%s644 + $0x20] sm:$0xf]
      %v654 = vld [vmem:[%s644 + $0x24] sm:$0xf]
      %v655 = vld [vmem:[%s644 + $0x28] sm:$0xf]
      %v656 = vld [vmem:[%s644 + $0x2c] sm:$0xf]
      %v657 = vld [vmem:[%s644 + $0x30] sm:$0xf]
      %v658 = vld [vmem:[%s644 + $0x34] sm:$0xf]
      %v659 = vld [vmem:[%s644 + $0x38] sm:$0xf]
      %v660 = vld [vmem:[%s644 + $0x3c] sm:$0xf]
      %v663 = vcombine.low %v642, %v643
      %v665 = vunpack.c.l.s4 1983009808
      %v666 = vunpack.c.0.s8 %v665
      %v667 = vlaneseq
      %v668 = vshrl.u32 %v667, 7
      %v669 = vsub.s32 %v666, %v668
      %v670 = vrot.slane %v663, %v669
      %v688 = vunpack.c.l.b16 %v645
      %v689 = vunpack.c.l.b16 %v646
      %v690 = vunpack.c.l.b16 %v647
      %v691 = vunpack.c.l.b16 %v648
      %v692 = vunpack.c.l.b16 %v649
      %v693 = vunpack.c.l.b16 %v650
      %v694 = vunpack.c.l.b16 %v651
      %v695 = vunpack.c.l.b16 %v652
      %v696 = vunpack.c.l.b16 %v653
      %v697 = vunpack.c.l.b16 %v654
      %v698 = vunpack.c.l.b16 %v655
      %v699 = vunpack.c.l.b16 %v656
      %v700 = vunpack.c.l.b16 %v657
      %v701 = vunpack.c.l.b16 %v658
      %v702 = vunpack.c.l.b16 %v659
      %v703 = vunpack.c.l.b16 %v660
      %v704 = vpack.c.b16 %v689, %v688
      %v705 = vpack.c.b16 %v691, %v690
      %v706 = vpack.c.b16 %v693, %v692
      %v707 = vpack.c.b16 %v695, %v694
      %v708 = vpack.c.b16 %v697, %v696
      %v709 = vpack.c.b16 %v699, %v698
      %v710 = vpack.c.b16 %v701, %v700
      %v711 = vpack.c.b16 %v703, %v702
      %720 = vmatprep.subr.bf16.mxu0 0
      %721 = vmatpush1.bf16.msra.mxu0 %v704
      %722 = vmatprep.subr.bf16.mxu0 0
      %723 = vmatpush1.bf16.msra.mxu0 %v705
      %724 = vmatprep.subr.bf16.mxu0 0
      %725 = vmatpush1.bf16.msra.mxu0 %v706
      %726 = vmatprep.subr.bf16.mxu0 0
      %727 = vmatpush1.bf16.msra.mxu0 %v707
      %728 = vmatprep.subr.bf16.mxu0 0
      %729 = vmatpush1.bf16.msra.mxu0 %v708
      %730 = vmatprep.subr.bf16.mxu0 0
      %731 = vmatpush1.bf16.msra.mxu0 %v709
      %732 = vmatprep.subr.bf16.mxu0 0
      %733 = vmatpush1.bf16.msra.mxu0 %v710
      %734 = vmatprep.subr.bf16.mxu0 0
      %735 = vmatpush1.bf16.msra.mxu0 %v711
      %736 = vmatprep.subr.bf16.mxu0 0
      %737 = vmatpush1.bf16.msra.mxu0 0
      %738 = vmatprep.subr.bf16.mxu0 0
      %739 = vmatpush1.bf16.msra.mxu0 0
      %740 = vmatprep.subr.bf16.mxu0 0
      %741 = vmatpush1.bf16.msra.mxu0 0
      %742 = vmatprep.subr.bf16.mxu0 0
      %743 = vmatpush1.bf16.msra.mxu0 0
      %744 = vmatprep.subr.bf16.mxu0 0
      %745 = vmatpush1.bf16.msra.mxu0 0
      %746 = vmatprep.subr.bf16.mxu0 0
      %747 = vmatpush1.bf16.msra.mxu0 0
      %748 = vmatprep.subr.bf16.mxu0 0
      %749 = vmatpush1.bf16.msra.mxu0 0
      %750 = vmatprep.subr.bf16.mxu0 0
      %751 = vmatpush1.bf16.msra.mxu0 0
      %752 = vmatprep.mubr.bf16.mxu0 0
      %753 = vmatmul.mubr.bf16.gmra.mrb[0].mxu0 %v670
      %v754 = vpop.f32.mrb[0].mxu0
      %v755 = vadd.f32 0.0, %v754
      %v756 = vpop.f32.mrb[0].mxu0
      %v757 = vpop.f32.mrb[0].mxu0
      %v758 = vpop.f32.mrb[0].mxu0
      %759 = vdwg.mxu0
      %v760 = vadd.f32 %v638, %v755
      %v761 = vld [vmem:[%s641] sm:$0x7]
      %v762 = vld [vmem:[%s641 + $0x4] sm:$0x7]
      %v766 = vunpack.c.l.s4 1983009808
      %v767 = vunpack.c.0.s8 %v766
      %v768 = vlaneseq
      %v769 = vshrl.u32 %v768, 7
      %v770 = vsub.s32 %v767, %v769
      %v771 = vrot.slane %v761, %v770
      %v772 = vcombine.high %v771, %v771
      %v774 = vunpack.c.l.s4 1983009808
      %v775 = vunpack.c.0.s8 %v774
      %v776 = vlaneseq
      %v777 = vshrl.u32 %v776, 7
      %v778 = vsub.s32 %v775, %v777
      %v779 = vrot.slane %v762, %v778
      %v780 = vcombine.high %v779, %v779
      %v782 = vshrl.u32 %v771, 16
      %v784 = vrot.slane %v782, 6
      %v785 = vshll.u32 %v771, 16
      %v787 = vrot.slane %v785, 7
      %v788 = vor.u32 %v784, %v787
      %v789 = vrot.slane %v788, 2
      %v791 = vshll.u32 %v772, 16
      %v793 = vrot.slane %v791, 7
      %v794 = vsel %vm247, %v789, %v793
      %v796 = vshrl.u32 %v779, 16
      %v798 = vrot.slane %v796, 6
      %v799 = vshll.u32 %v779, 16
      %v801 = vrot.slane %v799, 7
      %v802 = vor.u32 %v798, %v801
      %v803 = vrot.slane %v802, 2
      %v805 = vshll.u32 %v780, 16
      %v807 = vrot.slane %v805, 7
      %v808 = vsel %vm247, %v803, %v807
      %s809 = scalar_lea.vmem %s185, 256
      %v810 = vld [vmem:[%s809] sm:$0xf]
      %v811 = vld [vmem:[%s809 + $0x4] sm:$0xf]
      %v812 = vld [vmem:[%s809 + $0x8] sm:$0xf]
      %v813 = vld [vmem:[%s809 + $0xc] sm:$0xf]
      %v814 = vld [vmem:[%s809 + $0x10] sm:$0xf]
      %v815 = vld [vmem:[%s809 + $0x14] sm:$0xf]
      %v816 = vld [vmem:[%s809 + $0x18] sm:$0xf]
      %v817 = vld [vmem:[%s809 + $0x1c] sm:$0xf]
      %v818 = vld [vmem:[%s809 + $0x20] sm:$0xf]
      %v819 = vld [vmem:[%s809 + $0x24] sm:$0xf]
      %v820 = vld [vmem:[%s809 + $0x28] sm:$0xf]
      %v821 = vld [vmem:[%s809 + $0x2c] sm:$0xf]
      %v822 = vld [vmem:[%s809 + $0x30] sm:$0xf]
      %v823 = vld [vmem:[%s809 + $0x34] sm:$0xf]
      %v824 = vld [vmem:[%s809 + $0x38] sm:$0xf]
      %v825 = vld [vmem:[%s809 + $0x3c] sm:$0xf]
      %v826 = vcombine.low %v794, %v808
      %v828 = vunpack.c.l.s4 1983009808
      %v829 = vunpack.c.0.s8 %v828
      %v830 = vlaneseq
      %v831 = vshrl.u32 %v830, 7
      %v832 = vsub.s32 %v829, %v831
      %v833 = vrot.slane %v826, %v832
      %v851 = vunpack.c.l.b16 %v810
      %v852 = vunpack.c.l.b16 %v811
      %v853 = vunpack.c.l.b16 %v812
      %v854 = vunpack.c.l.b16 %v813
      %v855 = vunpack.c.l.b16 %v814
      %v856 = vunpack.c.l.b16 %v815
      %v857 = vunpack.c.l.b16 %v816
      %v858 = vunpack.c.l.b16 %v817
      %v859 = vunpack.c.l.b16 %v818
      %v860 = vunpack.c.l.b16 %v819
      %v861 = vunpack.c.l.b16 %v820
      %v862 = vunpack.c.l.b16 %v821
      %v863 = vunpack.c.l.b16 %v822
      %v864 = vunpack.c.l.b16 %v823
      %v865 = vunpack.c.l.b16 %v824
      %v866 = vunpack.c.l.b16 %v825
      %v867 = vpack.c.b16 %v852, %v851
      %v868 = vpack.c.b16 %v854, %v853
      %v869 = vpack.c.b16 %v856, %v855
      %v870 = vpack.c.b16 %v858, %v857
      %v871 = vpack.c.b16 %v860, %v859
      %v872 = vpack.c.b16 %v862, %v861
      %v873 = vpack.c.b16 %v864, %v863
      %v874 = vpack.c.b16 %v866, %v865
      %883 = vmatprep.subr.bf16.mxu0 0
      %884 = vmatpush1.bf16.msra.mxu0 %v867
      %885 = vmatprep.subr.bf16.mxu0 0
      %886 = vmatpush1.bf16.msra.mxu0 %v868
      %887 = vmatprep.subr.bf16.mxu0 0
      %888 = vmatpush1.bf16.msra.mxu0 %v869
      %889 = vmatprep.subr.bf16.mxu0 0
      %890 = vmatpush1.bf16.msra.mxu0 %v870
      %891 = vmatprep.subr.bf16.mxu0 0
      %892 = vmatpush1.bf16.msra.mxu0 %v871
      %893 = vmatprep.subr.bf16.mxu0 0
      %894 = vmatpush1.bf16.msra.mxu0 %v872
      %895 = vmatprep.subr.bf16.mxu0 0
      %896 = vmatpush1.bf16.msra.mxu0 %v873
      %897 = vmatprep.subr.bf16.mxu0 0
      %898 = vmatpush1.bf16.msra.mxu0 %v874
      %899 = vmatprep.subr.bf16.mxu0 0
      %900 = vmatpush1.bf16.msra.mxu0 0
      %901 = vmatprep.subr.bf16.mxu0 0
      %902 = vmatpush1.bf16.msra.mxu0 0
      %903 = vmatprep.subr.bf16.mxu0 0
      %904 = vmatpush1.bf16.msra.mxu0 0
      %905 = vmatprep.subr.bf16.mxu0 0
      %906 = vmatpush1.bf16.msra.mxu0 0
      %907 = vmatprep.subr.bf16.mxu0 0
      %908 = vmatpush1.bf16.msra.mxu0 0
      %909 = vmatprep.subr.bf16.mxu0 0
      %910 = vmatpush1.bf16.msra.mxu0 0
      %911 = vmatprep.subr.bf16.mxu0 0
      %912 = vmatpush1.bf16.msra.mxu0 0
      %913 = vmatprep.subr.bf16.mxu0 0
      %914 = vmatpush1.bf16.msra.mxu0 0
      %915 = vmatprep.mubr.bf16.mxu0 0
      %916 = vmatmul.mubr.bf16.gmra.mrb[0].mxu0 %v833
      %v917 = vpop.f32.mrb[0].mxu0
      %v918 = vadd.f32 0.0, %v917
      %v919 = vpop.f32.mrb[0].mxu0
      %v920 = vpop.f32.mrb[0].mxu0
      %v921 = vpop.f32.mrb[0].mxu0
      %922 = vdwg.mxu0
      %v923 = vadd.f32 %v760, %v918
      %v924 = vld [vmem:[%s641] sm:$0x6]
      %v925 = vld [vmem:[%s641 + $0x4] sm:$0x6]
      %v929 = vunpack.c.l.s4 1983009808
      %v930 = vunpack.c.0.s8 %v929
      %v931 = vlaneseq
      %v932 = vshrl.u32 %v931, 7
      %v933 = vsub.s32 %v930, %v932
      %v934 = vrot.slane %v924, %v933
      %v935 = vcombine.high %v934, %v934
      %v937 = vunpack.c.l.s4 1983009808
      %v938 = vunpack.c.0.s8 %v937
      %v939 = vlaneseq
      %v940 = vshrl.u32 %v939, 7
      %v941 = vsub.s32 %v938, %v940
      %v942 = vrot.slane %v925, %v941
      %v943 = vcombine.high %v942, %v942
      %v944 = vrot.slane %v934, 7
      %v945 = vrot.slane %v944, 2
      %v946 = vrot.slane %v935, 7
      %v947 = vsel %vm515, %v945, %v946
      %v948 = vrot.slane %v942, 7
      %v949 = vrot.slane %v948, 2
      %v950 = vrot.slane %v943, 7
      %v951 = vsel %vm515, %v949, %v950
      %s952 = scalar_lea.vmem %s185, 320
      %v953 = vld [vmem:[%s952] sm:$0xf]
      %v954 = vld [vmem:[%s952 + $0x4] sm:$0xf]
      %v955 = vld [vmem:[%s952 + $0x8] sm:$0xf]
      %v956 = vld [vmem:[%s952 + $0xc] sm:$0xf]
      %v957 = vld [vmem:[%s952 + $0x10] sm:$0xf]
      %v958 = vld [vmem:[%s952 + $0x14] sm:$0xf]
      %v959 = vld [vmem:[%s952 + $0x18] sm:$0xf]
      %v960 = vld [vmem:[%s952 + $0x1c] sm:$0xf]
      %v961 = vld [vmem:[%s952 + $0x20] sm:$0xf]
      %v962 = vld [vmem:[%s952 + $0x24] sm:$0xf]
      %v963 = vld [vmem:[%s952 + $0x28] sm:$0xf]
      %v964 = vld [vmem:[%s952 + $0x2c] sm:$0xf]
      %v965 = vld [vmem:[%s952 + $0x30] sm:$0xf]
      %v966 = vld [vmem:[%s952 + $0x34] sm:$0xf]
      %v967 = vld [vmem:[%s952 + $0x38] sm:$0xf]
      %v968 = vld [vmem:[%s952 + $0x3c] sm:$0xf]
      %v969 = vcombine.low %v947, %v951
      %v971 = vunpack.c.l.s4 1983009808
      %v972 = vunpack.c.0.s8 %v971
      %v973 = vlaneseq
      %v974 = vshrl.u32 %v973, 7
      %v975 = vsub.s32 %v972, %v974
      %v976 = vrot.slane %v969, %v975
      %v994 = vunpack.c.l.b16 %v953
      %v995 = vunpack.c.l.b16 %v954
      %v996 = vunpack.c.l.b16 %v955
      %v997 = vunpack.c.l.b16 %v956
      %v998 = vunpack.c.l.b16 %v957
      %v999 = vunpack.c.l.b16 %v958
      %v1000 = vunpack.c.l.b16 %v959
      %v1001 = vunpack.c.l.b16 %v960
      %v1002 = vunpack.c.l.b16 %v961
      %v1003 = vunpack.c.l.b16 %v962
      %v1004 = vunpack.c.l.b16 %v963
      %v1005 = vunpack.c.l.b16 %v964
      %v1006 = vunpack.c.l.b16 %v965
      %v1007 = vunpack.c.l.b16 %v966
      %v1008 = vunpack.c.l.b16 %v967
      %v1009 = vunpack.c.l.b16 %v968
      %v1010 = vpack.c.b16 %v995, %v994
      %v1011 = vpack.c.b16 %v997, %v996
      %v1012 = vpack.c.b16 %v999, %v998
      %v1013 = vpack.c.b16 %v1001, %v1000
      %v1014 = vpack.c.b16 %v1003, %v1002
      %v1015 = vpack.c.b16 %v1005, %v1004
      %v1016 = vpack.c.b16 %v1007, %v1006
      %v1017 = vpack.c.b16 %v1009, %v1008
      %1026 = vmatprep.subr.bf16.mxu0 0
      %1027 = vmatpush1.bf16.msra.mxu0 %v1010
      %1028 = vmatprep.subr.bf16.mxu0 0
      %1029 = vmatpush1.bf16.msra.mxu0 %v1011
      %1030 = vmatprep.subr.bf16.mxu0 0
      %1031 = vmatpush1.bf16.msra.mxu0 %v1012
      %1032 = vmatprep.subr.bf16.mxu0 0
      %1033 = vmatpush1.bf16.msra.mxu0 %v1013
      %1034 = vmatprep.subr.bf16.mxu0 0
      %1035 = vmatpush1.bf16.msra.mxu0 %v1014
      %1036 = vmatprep.subr.bf16.mxu0 0
      %1037 = vmatpush1.bf16.msra.mxu0 %v1015
      %1038 = vmatprep.subr.bf16.mxu0 0
      %1039 = vmatpush1.bf16.msra.mxu0 %v1016
      %1040 = vmatprep.subr.bf16.mxu0 0
      %1041 = vmatpush1.bf16.msra.mxu0 %v1017
      %1042 = vmatprep.subr.bf16.mxu0 0
      %1043 = vmatpush1.bf16.msra.mxu0 0
      %1044 = vmatprep.subr.bf16.mxu0 0
      %1045 = vmatpush1.bf16.msra.mxu0 0
      %1046 = vmatprep.subr.bf16.mxu0 0
      %1047 = vmatpush1.bf16.msra.mxu0 0
      %1048 = vmatprep.subr.bf16.mxu0 0
      %1049 = vmatpush1.bf16.msra.mxu0 0
      %1050 = vmatprep.subr.bf16.mxu0 0
      %1051 = vmatpush1.bf16.msra.mxu0 0
      %1052 = vmatprep.subr.bf16.mxu0 0
      %1053 = vmatpush1.bf16.msra.mxu0 0
      %1054 = vmatprep.subr.bf16.mxu0 0
      %1055 = vmatpush1.bf16.msra.mxu0 0
      %1056 = vmatprep.subr.bf16.mxu0 0
      %1057 = vmatpush1.bf16.msra.mxu0 0
      %1058 = vmatprep.mubr.bf16.mxu0 0
      %1059 = vmatmul.mubr.bf16.gmra.mrb[0].mxu0 %v976
      %v1060 = vpop.f32.mrb[0].mxu0
      %v1061 = vadd.f32 0.0, %v1060
      %v1062 = vpop.f32.mrb[0].mxu0
      %v1063 = vpop.f32.mrb[0].mxu0
      %v1064 = vpop.f32.mrb[0].mxu0
      %1065 = vdwg.mxu0
      %v1066 = vadd.f32 %v923, %v1061
      %s1067 = sadd.s32 %s200, 2
      %s1068 = smul.addr %s1067, 4
      %s1069 = scalar_lea.vmem %s181, %s1068
      %v1070 = vld [vmem:[%s1069] sm:$0x3]
      %v1071 = vld [vmem:[%s1069 + $0x4] sm:$0x3]
      %s1072 = scalar_lea.vmem %s185, 384
      %v1073 = vld [vmem:[%s1072] sm:$0xf]
      %v1074 = vld [vmem:[%s1072 + $0x4] sm:$0xf]
      %v1075 = vld [vmem:[%s1072 + $0x8] sm:$0xf]
      %v1076 = vld [vmem:[%s1072 + $0xc] sm:$0xf]
      %v1077 = vld [vmem:[%s1072 + $0x10] sm:$0xf]
      %v1078 = vld [vmem:[%s1072 + $0x14] sm:$0xf]
      %v1079 = vld [vmem:[%s1072 + $0x18] sm:$0xf]
      %v1080 = vld [vmem:[%s1072 + $0x1c] sm:$0xf]
      %v1081 = vld [vmem:[%s1072 + $0x20] sm:$0xf]
      %v1082 = vld [vmem:[%s1072 + $0x24] sm:$0xf]
      %v1083 = vld [vmem:[%s1072 + $0x28] sm:$0xf]
      %v1084 = vld [vmem:[%s1072 + $0x2c] sm:$0xf]
      %v1085 = vld [vmem:[%s1072 + $0x30] sm:$0xf]
      %v1086 = vld [vmem:[%s1072 + $0x34] sm:$0xf]
      %v1087 = vld [vmem:[%s1072 + $0x38] sm:$0xf]
      %v1088 = vld [vmem:[%s1072 + $0x3c] sm:$0xf]
      %v1091 = vcombine.low %v1070, %v1071
      %v1093 = vunpack.c.l.s4 1983009808
      %v1094 = vunpack.c.0.s8 %v1093
      %v1095 = vlaneseq
      %v1096 = vshrl.u32 %v1095, 7
      %v1097 = vsub.s32 %v1094, %v1096
      %v1098 = vrot.slane %v1091, %v1097
      %v1116 = vunpack.c.l.b16 %v1073
      %v1117 = vunpack.c.l.b16 %v1074
      %v1118 = vunpack.c.l.b16 %v1075
      %v1119 = vunpack.c.l.b16 %v1076
      %v1120 = vunpack.c.l.b16 %v1077
      %v1121 = vunpack.c.l.b16 %v1078
      %v1122 = vunpack.c.l.b16 %v1079
      %v1123 = vunpack.c.l.b16 %v1080
      %v1124 = vunpack.c.l.b16 %v1081
      %v1125 = vunpack.c.l.b16 %v1082
      %v1126 = vunpack.c.l.b16 %v1083
      %v1127 = vunpack.c.l.b16 %v1084
      %v1128 = vunpack.c.l.b16 %v1085
      %v1129 = vunpack.c.l.b16 %v1086
      %v1130 = vunpack.c.l.b16 %v1087
      %v1131 = vunpack.c.l.b16 %v1088
      %v1132 = vpack.c.b16 %v1117, %v1116
      %v1133 = vpack.c.b16 %v1119, %v1118
      %v1134 = vpack.c.b16 %v1121, %v1120
      %v1135 = vpack.c.b16 %v1123, %v1122
      %v1136 = vpack.c.b16 %v1125, %v1124
      %v1137 = vpack.c.b16 %v1127, %v1126
      %v1138 = vpack.c.b16 %v1129, %v1128
      %v1139 = vpack.c.b16 %v1131, %v1130
      %1148 = vmatprep.subr.bf16.mxu0 0
      %1149 = vmatpush1.bf16.msra.mxu0 %v1132
      %1150 = vmatprep.subr.bf16.mxu0 0
      %1151 = vmatpush1.bf16.msra.mxu0 %v1133
      %1152 = vmatprep.subr.bf16.mxu0 0
      %1153 = vmatpush1.bf16.msra.mxu0 %v1134
      %1154 = vmatprep.subr.bf16.mxu0 0
      %1155 = vmatpush1.bf16.msra.mxu0 %v1135
      %1156 = vmatprep.subr.bf16.mxu0 0
      %1157 = vmatpush1.bf16.msra.mxu0 %v1136
      %1158 = vmatprep.subr.bf16.mxu0 0
      %1159 = vmatpush1.bf16.msra.mxu0 %v1137
      %1160 = vmatprep.subr.bf16.mxu0 0
      %1161 = vmatpush1.bf16.msra.mxu0 %v1138
      %1162 = vmatprep.subr.bf16.mxu0 0
      %1163 = vmatpush1.bf16.msra.mxu0 %v1139
      %1164 = vmatprep.subr.bf16.mxu0 0
      %1165 = vmatpush1.bf16.msra.mxu0 0
      %1166 = vmatprep.subr.bf16.mxu0 0
      %1167 = vmatpush1.bf16.msra.mxu0 0
      %1168 = vmatprep.subr.bf16.mxu0 0
      %1169 = vmatpush1.bf16.msra.mxu0 0
      %1170 = vmatprep.subr.bf16.mxu0 0
      %1171 = vmatpush1.bf16.msra.mxu0 0
      %1172 = vmatprep.subr.bf16.mxu0 0
      %1173 = vmatpush1.bf16.msra.mxu0 0
      %1174 = vmatprep.subr.bf16.mxu0 0
      %1175 = vmatpush1.bf16.msra.mxu0 0
      %1176 = vmatprep.subr.bf16.mxu0 0
      %1177 = vmatpush1.bf16.msra.mxu0 0
      %1178 = vmatprep.subr.bf16.mxu0 0
      %1179 = vmatpush1.bf16.msra.mxu0 0
      %1180 = vmatprep.mubr.bf16.mxu0 0
      %1181 = vmatmul.mubr.bf16.gmra.mrb[0].mxu0 %v1098
      %v1182 = vpop.f32.mrb[0].mxu0
      %v1183 = vadd.f32 0.0, %v1182
      %v1184 = vpop.f32.mrb[0].mxu0
      %v1185 = vpop.f32.mrb[0].mxu0
      %v1186 = vpop.f32.mrb[0].mxu0
      %1187 = vdwg.mxu0
      %v1188 = vadd.f32 %v1066, %v1183
      %v1189 = vld [vmem:[%s1069] sm:$0x7]
      %v1190 = vld [vmem:[%s1069 + $0x4] sm:$0x7]
      %v1194 = vunpack.c.l.s4 1983009808
      %v1195 = vunpack.c.0.s8 %v1194
      %v1196 = vlaneseq
      %v1197 = vshrl.u32 %v1196, 7
      %v1198 = vsub.s32 %v1195, %v1197
      %v1199 = vrot.slane %v1189, %v1198
      %v1200 = vcombine.high %v1199, %v1199
      %v1202 = vunpack.c.l.s4 1983009808
      %v1203 = vunpack.c.0.s8 %v1202
      %v1204 = vlaneseq
      %v1205 = vshrl.u32 %v1204, 7
      %v1206 = vsub.s32 %v1203, %v1205
      %v1207 = vrot.slane %v1190, %v1206
      %v1208 = vcombine.high %v1207, %v1207
      %v1210 = vshrl.u32 %v1199, 16
      %v1212 = vrot.slane %v1210, 6
      %v1213 = vshll.u32 %v1199, 16
      %v1215 = vrot.slane %v1213, 7
      %v1216 = vor.u32 %v1212, %v1215
      %v1217 = vrot.slane %v1216, 2
      %v1219 = vshll.u32 %v1200, 16
      %v1221 = vrot.slane %v1219, 7
      %v1222 = vsel %vm247, %v1217, %v1221
      %v1224 = vshrl.u32 %v1207, 16
      %v1226 = vrot.slane %v1224, 6
      %v1227 = vshll.u32 %v1207, 16
      %v1229 = vrot.slane %v1227, 7
      %v1230 = vor.u32 %v1226, %v1229
      %v1231 = vrot.slane %v1230, 2
      %v1233 = vshll.u32 %v1208, 16
      %v1235 = vrot.slane %v1233, 7
      %v1236 = vsel %vm247, %v1231, %v1235
      %s1237 = scalar_lea.vmem %s185, 448
      %v1238 = vld [vmem:[%s1237] sm:$0xf]
      %v1239 = vld [vmem:[%s1237 + $0x4] sm:$0xf]
      %v1240 = vld [vmem:[%s1237 + $0x8] sm:$0xf]
      %v1241 = vld [vmem:[%s1237 + $0xc] sm:$0xf]
      %v1242 = vld [vmem:[%s1237 + $0x10] sm:$0xf]
      %v1243 = vld [vmem:[%s1237 + $0x14] sm:$0xf]
      %v1244 = vld [vmem:[%s1237 + $0x18] sm:$0xf]
      %v1245 = vld [vmem:[%s1237 + $0x1c] sm:$0xf]
      %v1246 = vld [vmem:[%s1237 + $0x20] sm:$0xf]
      %v1247 = vld [vmem:[%s1237 + $0x24] sm:$0xf]
      %v1248 = vld [vmem:[%s1237 + $0x28] sm:$0xf]
      %v1249 = vld [vmem:[%s1237 + $0x2c] sm:$0xf]
      %v1250 = vld [vmem:[%s1237 + $0x30] sm:$0xf]
      %v1251 = vld [vmem:[%s1237 + $0x34] sm:$0xf]
      %v1252 = vld [vmem:[%s1237 + $0x38] sm:$0xf]
      %v1253 = vld [vmem:[%s1237 + $0x3c] sm:$0xf]
      %v1254 = vcombine.low %v1222, %v1236
      %v1256 = vunpack.c.l.s4 1983009808
      %v1257 = vunpack.c.0.s8 %v1256
      %v1258 = vlaneseq
      %v1259 = vshrl.u32 %v1258, 7
      %v1260 = vsub.s32 %v1257, %v1259
      %v1261 = vrot.slane %v1254, %v1260
      %v1279 = vunpack.c.l.b16 %v1238
      %v1280 = vunpack.c.l.b16 %v1239
      %v1281 = vunpack.c.l.b16 %v1240
      %v1282 = vunpack.c.l.b16 %v1241
      %v1283 = vunpack.c.l.b16 %v1242
      %v1284 = vunpack.c.l.b16 %v1243
      %v1285 = vunpack.c.l.b16 %v1244
      %v1286 = vunpack.c.l.b16 %v1245
      %v1287 = vunpack.c.l.b16 %v1246
      %v1288 = vunpack.c.l.b16 %v1247
      %v1289 = vunpack.c.l.b16 %v1248
      %v1290 = vunpack.c.l.b16 %v1249
      %v1291 = vunpack.c.l.b16 %v1250
      %v1292 = vunpack.c.l.b16 %v1251
      %v1293 = vunpack.c.l.b16 %v1252
      %v1294 = vunpack.c.l.b16 %v1253
      %v1295 = vpack.c.b16 %v1280, %v1279
      %v1296 = vpack.c.b16 %v1282, %v1281
      %v1297 = vpack.c.b16 %v1284, %v1283
      %v1298 = vpack.c.b16 %v1286, %v1285
      %v1299 = vpack.c.b16 %v1288, %v1287
      %v1300 = vpack.c.b16 %v1290, %v1289
      %v1301 = vpack.c.b16 %v1292, %v1291
      %v1302 = vpack.c.b16 %v1294, %v1293
      %1311 = vmatprep.subr.bf16.mxu0 0
      %1312 = vmatpush1.bf16.msra.mxu0 %v1295
      %1313 = vmatprep.subr.bf16.mxu0 0
      %1314 = vmatpush1.bf16.msra.mxu0 %v1296
      %1315 = vmatprep.subr.bf16.mxu0 0
      %1316 = vmatpush1.bf16.msra.mxu0 %v1297
      %1317 = vmatprep.subr.bf16.mxu0 0
      %1318 = vmatpush1.bf16.msra.mxu0 %v1298
      %1319 = vmatprep.subr.bf16.mxu0 0
      %1320 = vmatpush1.bf16.msra.mxu0 %v1299
      %1321 = vmatprep.subr.bf16.mxu0 0
      %1322 = vmatpush1.bf16.msra.mxu0 %v1300
      %1323 = vmatprep.subr.bf16.mxu0 0
      %1324 = vmatpush1.bf16.msra.mxu0 %v1301
      %1325 = vmatprep.subr.bf16.mxu0 0
      %1326 = vmatpush1.bf16.msra.mxu0 %v1302
      %1327 = vmatprep.subr.bf16.mxu0 0
      %1328 = vmatpush1.bf16.msra.mxu0 0
      %1329 = vmatprep.subr.bf16.mxu0 0
      %1330 = vmatpush1.bf16.msra.mxu0 0
      %1331 = vmatprep.subr.bf16.mxu0 0
      %1332 = vmatpush1.bf16.msra.mxu0 0
      %1333 = vmatprep.subr.bf16.mxu0 0
      %1334 = vmatpush1.bf16.msra.mxu0 0
      %1335 = vmatprep.subr.bf16.mxu0 0
      %1336 = vmatpush1.bf16.msra.mxu0 0
      %1337 = vmatprep.subr.bf16.mxu0 0
      %1338 = vmatpush1.bf16.msra.mxu0 0
      %1339 = vmatprep.subr.bf16.mxu0 0
      %1340 = vmatpush1.bf16.msra.mxu0 0
      %1341 = vmatprep.subr.bf16.mxu0 0
      %1342 = vmatpush1.bf16.msra.mxu0 0
      %1343 = vmatprep.mubr.bf16.mxu0 0
      %1344 = vmatmul.mubr.bf16.gmra.mrb[0].mxu0 %v1261
      %v1345 = vpop.f32.mrb[0].mxu0
      %v1346 = vadd.f32 0.0, %v1345
      %v1347 = vpop.f32.mrb[0].mxu0
      %v1348 = vpop.f32.mrb[0].mxu0
      %v1349 = vpop.f32.mrb[0].mxu0
      %1350 = vdwg.mxu0
      %v1351 = vadd.f32 %v1188, %v1346
      %v1352 = vld [vmem:[%s1069] sm:$0x6]
      %v1353 = vld [vmem:[%s1069 + $0x4] sm:$0x6]
      %v1357 = vunpack.c.l.s4 1983009808
      %v1358 = vunpack.c.0.s8 %v1357
      %v1359 = vlaneseq
      %v1360 = vshrl.u32 %v1359, 7
      %v1361 = vsub.s32 %v1358, %v1360
      %v1362 = vrot.slane %v1352, %v1361
      %v1363 = vcombine.high %v1362, %v1362
      %v1365 = vunpack.c.l.s4 1983009808
      %v1366 = vunpack.c.0.s8 %v1365
      %v1367 = vlaneseq
      %v1368 = vshrl.u32 %v1367, 7
      %v1369 = vsub.s32 %v1366, %v1368
      %v1370 = vrot.slane %v1353, %v1369
      %v1371 = vcombine.high %v1370, %v1370
      %v1372 = vrot.slane %v1362, 7
      %v1373 = vrot.slane %v1372, 2
      %v1374 = vrot.slane %v1363, 7
      %v1375 = vsel %vm515, %v1373, %v1374
      %v1376 = vrot.slane %v1370, 7
      %v1377 = vrot.slane %v1376, 2
      %v1378 = vrot.slane %v1371, 7
      %v1379 = vsel %vm515, %v1377, %v1378
      %s1380 = scalar_lea.vmem %s185, 512
      %v1381 = vld [vmem:[%s1380] sm:$0xf]
      %v1382 = vld [vmem:[%s1380 + $0x4] sm:$0xf]
      %v1383 = vld [vmem:[%s1380 + $0x8] sm:$0xf]
      %v1384 = vld [vmem:[%s1380 + $0xc] sm:$0xf]
      %v1385 = vld [vmem:[%s1380 + $0x10] sm:$0xf]
      %v1386 = vld [vmem:[%s1380 + $0x14] sm:$0xf]
      %v1387 = vld [vmem:[%s1380 + $0x18] sm:$0xf]
      %v1388 = vld [vmem:[%s1380 + $0x1c] sm:$0xf]
      %v1389 = vld [vmem:[%s1380 + $0x20] sm:$0xf]
      %v1390 = vld [vmem:[%s1380 + $0x24] sm:$0xf]
      %v1391 = vld [vmem:[%s1380 + $0x28] sm:$0xf]
      %v1392 = vld [vmem:[%s1380 + $0x2c] sm:$0xf]
      %v1393 = vld [vmem:[%s1380 + $0x30] sm:$0xf]
      %v1394 = vld [vmem:[%s1380 + $0x34] sm:$0xf]
      %v1395 = vld [vmem:[%s1380 + $0x38] sm:$0xf]
      %v1396 = vld [vmem:[%s1380 + $0x3c] sm:$0xf]
      %v1397 = vcombine.low %v1375, %v1379
      %v1399 = vunpack.c.l.s4 1983009808
      %v1400 = vunpack.c.0.s8 %v1399
      %v1401 = vlaneseq
      %v1402 = vshrl.u32 %v1401, 7
      %v1403 = vsub.s32 %v1400, %v1402
      %v1404 = vrot.slane %v1397, %v1403
      %v1422 = vunpack.c.l.b16 %v1381
      %v1423 = vunpack.c.l.b16 %v1382
      %v1424 = vunpack.c.l.b16 %v1383
      %v1425 = vunpack.c.l.b16 %v1384
      %v1426 = vunpack.c.l.b16 %v1385
      %v1427 = vunpack.c.l.b16 %v1386
      %v1428 = vunpack.c.l.b16 %v1387
      %v1429 = vunpack.c.l.b16 %v1388
      %v1430 = vunpack.c.l.b16 %v1389
      %v1431 = vunpack.c.l.b16 %v1390
      %v1432 = vunpack.c.l.b16 %v1391
      %v1433 = vunpack.c.l.b16 %v1392
      %v1434 = vunpack.c.l.b16 %v1393
      %v1435 = vunpack.c.l.b16 %v1394
      %v1436 = vunpack.c.l.b16 %v1395
      %v1437 = vunpack.c.l.b16 %v1396
      %v1438 = vpack.c.b16 %v1423, %v1422
      %v1439 = vpack.c.b16 %v1425, %v1424
      %v1440 = vpack.c.b16 %v1427, %v1426
      %v1441 = vpack.c.b16 %v1429, %v1428
      %v1442 = vpack.c.b16 %v1431, %v1430
      %v1443 = vpack.c.b16 %v1433, %v1432
      %v1444 = vpack.c.b16 %v1435, %v1434
      %v1445 = vpack.c.b16 %v1437, %v1436
      %1454 = vmatprep.subr.bf16.mxu0 0
      %1455 = vmatpush1.bf16.msra.mxu0 %v1438
      %1456 = vmatprep.subr.bf16.mxu0 0
      %1457 = vmatpush1.bf16.msra.mxu0 %v1439
      %1458 = vmatprep.subr.bf16.mxu0 0
      %1459 = vmatpush1.bf16.msra.mxu0 %v1440
      %1460 = vmatprep.subr.bf16.mxu0 0
      %1461 = vmatpush1.bf16.msra.mxu0 %v1441
      %1462 = vmatprep.subr.bf16.mxu0 0
      %1463 = vmatpush1.bf16.msra.mxu0 %v1442
      %1464 = vmatprep.subr.bf16.mxu0 0
      %1465 = vmatpush1.bf16.msra.mxu0 %v1443
      %1466 = vmatprep.subr.bf16.mxu0 0
      %1467 = vmatpush1.bf16.msra.mxu0 %v1444
      %1468 = vmatprep.subr.bf16.mxu0 0
      %1469 = vmatpush1.bf16.msra.mxu0 %v1445
      %1470 = vmatprep.subr.bf16.mxu0 0
      %1471 = vmatpush1.bf16.msra.mxu0 0
      %1472 = vmatprep.subr.bf16.mxu0 0
      %1473 = vmatpush1.bf16.msra.mxu0 0
      %1474 = vmatprep.subr.bf16.mxu0 0
      %1475 = vmatpush1.bf16.msra.mxu0 0
      %1476 = vmatprep.subr.bf16.mxu0 0
      %1477 = vmatpush1.bf16.msra.mxu0 0
      %1478 = vmatprep.subr.bf16.mxu0 0
      %1479 = vmatpush1.bf16.msra.mxu0 0
      %1480 = vmatprep.subr.bf16.mxu0 0
      %1481 = vmatpush1.bf16.msra.mxu0 0
      %1482 = vmatprep.subr.bf16.mxu0 0
      %1483 = vmatpush1.bf16.msra.mxu0 0
      %1484 = vmatprep.subr.bf16.mxu0 0
      %1485 = vmatpush1.bf16.msra.mxu0 0
      %1486 = vmatprep.mubr.bf16.mxu0 0
      %1487 = vmatmul.mubr.bf16.gmra.mrb[0].mxu0 %v1404
      %v1488 = vpop.f32.mrb[0].mxu0
      %v1489 = vadd.f32 0.0, %v1488
      %v1490 = vpop.f32.mrb[0].mxu0
      %v1491 = vpop.f32.mrb[0].mxu0
      %v1492 = vpop.f32.mrb[0].mxu0
      %1493 = vdwg.mxu0
      %v1494 = vadd.f32 %v1351, %v1489
      %v1496 = vcombine.high %v1494, %v1494
      %1498 = vst [vmem:[%s197] sm:$0xf] %v1494
      %1499 = vst [vmem:[%s197 + $0x4] sm:$0xf] %v1496
      %s1500 = smul.u32 2, %s20
      %p1501 = scmp.lt.s32.totalorder %s18, 1
      %s1502 = scalar_select %p1501, %s18, 1
      %p1503 = scmp.lt.s32.totalorder %s1500, 3
      %s1504 = scalar_select %p1503, %s1500, 3
      %p1505 = scmp.lt.s32.totalorder %s19, 0
      %s1506 = scalar_select %p1505, %s19, 0
      %s1507 = sadd.s32 %s1506, %s1504
      %s1508 = smul.addr %s1502, 4
      %s1509 = sadd.s32 %s1507, %s1508
      %s1510 = smul.addr %s1509, 4
      %s1511 = scalar_lea.vmem %s2, %s1510
      // Predicated region
      $region29: #{scconv2d_pallas.7} parent=27 // pred_check
        %p1512 = pneg %p106
      $region30: #{scconv2d_pallas.7} parent=27 // pred_check_branch
        %1514 = sbr.rel (%p1512) target = $region32
      $region31: #{scconv2d_pallas.7} parent=27 // pred_region
        %s1515 = smul.u32 2, %s20
      $region32: #{scconv2d_pallas.7} parent=27 // pred_fallthru
        _
    $region28: #{scconv2d_pallas.7} parent=5 // pred_fallthru
      _
    %p1516 = scmp.le.s32.totalorder 2, %s8
    // Predicated region
    $region33: #{scconv2d_pallas.7} parent=5 // pred_check
      %p1517 = pneg %p1516
    $region34: #{scconv2d_pallas.7} parent=5 // pred_check_branch
      %1519 = sbr.rel (%p1517) target = $region36
    $region35: #{scconv2d_pallas.7} parent=5 // pred_region
      %s1520 = ssub.s32 %s8, 2
      // Predicated region
      $region37: #{scconv2d_pallas.7} parent=35 // pred_check
        %p1521 = pneg %p112
      $region38: #{scconv2d_pallas.7} parent=35 // pred_check_branch
        %1523 = sbr.rel (%p1521) target = $region40
      $region39: #{scconv2d_pallas.7} parent=35 // pred_region
        %s1524 = smul.u32 2, %s23
        %p1525 = scmp.lt.s32.totalorder %s21, 1
        %s1526 = scalar_select %p1525, %s21, 1
        %p1527 = scmp.lt.s32.totalorder %s1524, 3
        %s1528 = scalar_select %p1527, %s1524, 3
        %p1529 = scmp.lt.s32.totalorder %s22, 0
        %s1530 = scalar_select %p1529, %s22, 0
        %s1531 = sadd.s32 %s1530, %s1528
        %s1532 = smul.addr %s1526, 4
        %s1533 = sadd.s32 %s1531, %s1532
        %s1534 = smul.addr %s1533, 4
        %s1535 = scalar_lea.vmem %s2, %s1534
      $region40: #{scconv2d_pallas.7} parent=35 // pred_fallthru
        _
    $region36: #{scconv2d_pallas.7} parent=5 // pred_fallthru
      _
  $region6: #{scconv2d_pallas.7} parent=0 // loop_footer
    %s12 = sadd.s32 1, %s8
  $region7: #{scconv2d_pallas.7} parent=0 // loop_footer_branch
    %7 = sbr.rel target = $region3
  $region8: #{scconv2d_pallas.7} parent=0 // loop_exit
    _

// kernel: scconv2d_pallas.8
$region0: #{scconv2d_pallas.8}
  #allocation0 [shape = 'u32[]', space=smem, size = 0x4, offset = 0x4, fixed_abs, tag = 'smem constant byte address 0x4 - core index']
  #allocation1 [shape = 'u32[144,128]{1,0:T(1,128)}', space=vmem, size = 0x12000, scoped, tag = 'internal scratch']
  %s0 = inlined_call_operand.vmem [shape: bf16[2,18,18,128], index: 0, kind: input, shape index: {}]
  %s1 = inlined_call_operand.vmem [shape: f32[2,4,4,128], index: 1, kind: input, shape index: {}]
  %s2 = inlined_call_operand.vmem [shape: bf16[9,128,128], index: 2, kind: input, shape index: {}]
  %s3 = inlined_call_operand.vmem [shape: bf16[2,16,16,128], index: 3, kind: output, shape index: {}]
  %s4 = sld [smem:[#allocation0]]
  $region45: #{scconv2d_pallas.8} parent=0
    _
  %s6 = ssub.s32 1, %s4
  %s7 = scalar_select 0, %s6, %s4
  loop: start=0, step=1, limit=6
  $region2: #{scconv2d_pallas.8} parent=0 // loop_pre_header
    _
  $region3: #{scconv2d_pallas.8} parent=0 // loop_header
    %s9 = sphi 0, %s13
    %p10 = scmp.ge.s32.totalorder %s9, 6
    %s16 = sphi 0, %s35
    %s17 = sphi 0, %s31
    %s18 = sphi 0, %s27
    %s19 = sphi 0, %s16
    %s20 = sphi 0, %s17
    %s21 = sphi 0, %s18
    %s22 = sphi 0, %s19
    %s23 = sphi 0, %s20
    %s24 = sphi 0, %s21
    %s38 = sphi 0, %s40
    %s41 = sphi 0, %s38
    %s42 = sphi 0, %s41
    %s58 = sphi 0, %s42
    %s68 = sphi 0, %s70
    %s71 = sphi 0, %s68
    %s72 = sphi 0, %s71
    %s88 = sphi 0, %s72
    %s94 = sphi 0, %s96
    %s97 = sphi 0, %s94
    %s98 = sphi 0, %s97
    %s114 = sphi 0, %s98
    %s124 = sphi 0, %s126
    %s127 = sphi 0, %s124
    %s128 = sphi 0, %s127
    %s144 = sphi 0, %s128
  $region4: #{scconv2d_pallas.8} parent=0 // loop_header_branch
    %12 = sbr.rel (%p10) target = $region8
  $region5: #{scconv2d_pallas.8} parent=0 // loop_body
    %s14 = ssub.s32 %s9, 1
    %s15 = ssub.s32 %s9, 2
    %s25 = sadd.s32 1, %s18
    %p26 = scmp.ge.s32.totalorder %s25, 2
    %s27 = scalar_select %p26, 0, %s25
    %s28 = sadd.s32 1, %s17
    %s29 = scalar_select %p26, %s28, %s17
    %p30 = scmp.ge.s32.totalorder %s29, 1
    %s31 = scalar_select %p30, 0, %s29
    %s32 = sadd.s32 1, %s16
    %s33 = scalar_select %p30, %s32, %s16
    %p34 = scmp.ge.s32.totalorder %s33, 2
    %s35 = scalar_select %p34, 0, %s33
    %s36 = ssub.s32 %s16, %s35
    %p37 = scmp.eq.s32.totalorder %s36, 0
    %s39 = sadd.s32 %s38, 1
    %s40 = scalar_select %p37, %s38, %s39
    %p43 = pneg %p37
    %p44 = scmp.eq.s32.totalorder %s9, 3
    %p45 = por %p43, %p44
    %p46 = scmp.ne.s32.totalorder %s38, %s41
    %p47 = scmp.eq.s32.totalorder %s9, 0
    %p48 = por %p46, %p47
    %p49 = scmp.ne.s32.totalorder %s38, %s41
    %p50 = scmp.eq.s32.totalorder %s14, 3
    %p51 = por %p49, %p50
    %p52 = scmp.ne.s32.totalorder %s41, %s42
    %p53 = scmp.eq.s32.totalorder %s14, 0
    %p54 = por %p52, %p53
    %p55 = scmp.ne.s32.totalorder %s41, %s42
    %p56 = scmp.eq.s32.totalorder %s15, 3
    %p57 = por %p55, %p56
    %p59 = scmp.ne.s32.totalorder %s42, %s58
    %p60 = scmp.eq.s32.totalorder %s15, 0
    %p61 = por %p59, %p60
    %s62 = ssub.s32 %s16, %s35
    %s63 = ssub.s32 %s18, %s27
    %s64 = sor.u32 %s62, %s63
    %s65 = ssub.s32 %s17, %s31
    %s66 = sor.u32 %s64, %s65
    %p67 = scmp.eq.s32.totalorder %s66, 0
    %s69 = sadd.s32 %s68, 1
    %s70 = scalar_select %p67, %s68, %s69
    %p73 = pneg %p67
    %p74 = scmp.eq.s32.totalorder %s9, 3
    %p75 = por %p73, %p74
    %p76 = scmp.ne.s32.totalorder %s68, %s71
    %p77 = scmp.eq.s32.totalorder %s9, 0
    %p78 = por %p76, %p77
    %p79 = scmp.ne.s32.totalorder %s68, %s71
    %p80 = scmp.eq.s32.totalorder %s14, 3
    %p81 = por %p79, %p80
    %p82 = scmp.ne.s32.totalorder %s71, %s72
    %p83 = scmp.eq.s32.totalorder %s14, 0
    %p84 = por %p82, %p83
    %p85 = scmp.ne.s32.totalorder %s71, %s72
    %p86 = scmp.eq.s32.totalorder %s15, 3
    %p87 = por %p85, %p86
    %p89 = scmp.ne.s32.totalorder %s72, %s88
    %p90 = scmp.eq.s32.totalorder %s15, 0
    %p91 = por %p89, %p90
    %s92 = ssub.s32 %s17, %s31
    %p93 = scmp.eq.s32.totalorder %s92, 0
    %s95 = sadd.s32 %s94, 1
    %s96 = scalar_select %p93, %s94, %s95
    %p99 = pneg %p93
    %p100 = scmp.eq.s32.totalorder %s9, 3
    %p101 = por %p99, %p100
    %p102 = scmp.ne.s32.totalorder %s94, %s97
    %p103 = scmp.eq.s32.totalorder %s9, 0
    %p104 = por %p102, %p103
    %p105 = scmp.ne.s32.totalorder %s94, %s97
    %p106 = scmp.eq.s32.totalorder %s14, 3
    %p107 = por %p105, %p106
    %p108 = scmp.ne.s32.totalorder %s97, %s98
    %p109 = scmp.eq.s32.totalorder %s14, 0
    %p110 = por %p108, %p109
    %p111 = scmp.ne.s32.totalorder %s97, %s98
    %p112 = scmp.eq.s32.totalorder %s15, 3
    %p113 = por %p111, %p112
    %p115 = scmp.ne.s32.totalorder %s98, %s114
    %p116 = scmp.eq.s32.totalorder %s15, 0
    %p117 = por %p115, %p116
    %s118 = ssub.s32 %s16, %s35
    %s119 = ssub.s32 %s18, %s27
    %s120 = sor.u32 %s118, %s119
    %s121 = ssub.s32 %s17, %s31
    %s122 = sor.u32 %s120, %s121
    %p123 = scmp.eq.s32.totalorder %s122, 0
    %s125 = sadd.s32 %s124, 1
    %s126 = scalar_select %p123, %s124, %s125
    %p129 = pneg %p123
    %p130 = scmp.eq.s32.totalorder %s9, 3
    %p131 = por %p129, %p130
    %p132 = scmp.ne.s32.totalorder %s124, %s127
    %p133 = scmp.eq.s32.totalorder %s9, 0
    %p134 = por %p132, %p133
    %p135 = scmp.ne.s32.totalorder %s124, %s127
    %p136 = scmp.eq.s32.totalorder %s14, 3
    %p137 = por %p135, %p136
    %p138 = scmp.ne.s32.totalorder %s127, %s128
    %p139 = scmp.eq.s32.totalorder %s14, 0
    %p140 = por %p138, %p139
    %p141 = scmp.ne.s32.totalorder %s127, %s128
    %p142 = scmp.eq.s32.totalorder %s15, 3
    %p143 = por %p141, %p142
    %p145 = scmp.ne.s32.totalorder %s128, %s144
    %p146 = scmp.eq.s32.totalorder %s15, 0
    %p147 = por %p145, %p146
    %p148 = scmp.le.s32.totalorder 1, %s9
    %p149 = scmp.lt.s32.totalorder %s9, 5
    %p150 = pnand %p148, %p149
    %p151 = pneg %p150
    // Predicated region
    $region9: #{scconv2d_pallas.8} parent=5 // pred_check
      _
    $region10: #{scconv2d_pallas.8} parent=5 // pred_check_branch
      %153 = sbr.rel (%p150) target = $region12
    $region11: #{scconv2d_pallas.8} parent=5 // pred_region
      %s154 = ssub.s32 %s9, 1
      // Predicated region
      $region13: #{scconv2d_pallas.8} parent=11 // pred_check
        %p155 = pneg %p110
      $region14: #{scconv2d_pallas.8} parent=11 // pred_check_branch
        %157 = sbr.rel (%p155) target = $region16
      $region15: #{scconv2d_pallas.8} parent=11 // pred_region
        %p158 = scmp.lt.s32.totalorder %s20, 0
        %s159 = scalar_select %p158, %s20, 0
        %s160 = smul.addr %s159, 4
        %s161 = scalar_lea.vmem %s2, %s160
      $region16: #{scconv2d_pallas.8} parent=11 // pred_fallthru
        _
    $region12: #{scconv2d_pallas.8} parent=5 // pred_fallthru
      _
    %p162 = scmp.lt.s32.totalorder %s9, 4
    // Predicated region
    $region17: #{scconv2d_pallas.8} parent=5 // pred_check
      %p163 = pneg %p162
    $region18: #{scconv2d_pallas.8} parent=5 // pred_check_branch
      %165 = sbr.rel (%p163) target = $region20
    $region19: #{scconv2d_pallas.8} parent=5 // pred_region
      // Predicated region
      $region21: #{scconv2d_pallas.8} parent=19 // pred_check
        %p166 = pneg %p48
      $region22: #{scconv2d_pallas.8} parent=19 // pred_check_branch
        %168 = sbr.rel (%p166) target = $region24
      $region23: #{scconv2d_pallas.8} parent=19 // pred_region
        %p169 = scmp.lt.s32.totalorder %s16, 1
        %s170 = scalar_select %p169, %s16, 1
        %s171 = smul.addr %s170, 54
        %s172 = smul.addr %s171, 4
        %s173 = scalar_lea.vmem %s0, %s172
      $region24: #{scconv2d_pallas.8} parent=19 // pred_fallthru
        _
      // Predicated region
      $region25: #{scconv2d_pallas.8} parent=19 // pred_check
        %p174 = pneg %p78
      $region26: #{scconv2d_pallas.8} parent=19 // pred_check_branch
        %176 = sbr.rel (%p174) target = $region28
      $region27: #{scconv2d_pallas.8} parent=19 // pred_region
        %s177 = smul.u32 2, %s18
        %p178 = scmp.lt.s32.totalorder %s16, 1
        %s179 = scalar_select %p178, %s16, 1
        %p180 = scmp.lt.s32.totalorder %s177, 3
        %s181 = scalar_select %p180, %s177, 3
        %p182 = scmp.lt.s32.totalorder %s17, 0
        %s183 = scalar_select %p182, %s17, 0
        %s184 = sadd.s32 %s183, %s181
        %s185 = smul.addr %s179, 4
        %s186 = sadd.s32 %s184, %s185
        %s187 = smul.addr %s186, 4
        %s188 = scalar_lea.vmem %s1, %s187
        %s189 = smul.u32 2, %s18
      $region28: #{scconv2d_pallas.8} parent=19 // pred_fallthru
        _
    $region20: #{scconv2d_pallas.8} parent=5 // pred_fallthru
      _
    %p190 = scmp.le.s32.totalorder 1, %s9
    %p191 = scmp.lt.s32.totalorder %s9, 5
    %p192 = pnand %p190, %p191
    %p193 = pneg %p192
    // Predicated region
    $region29: #{scconv2d_pallas.8} parent=5 // pred_check
      _
    $region30: #{scconv2d_pallas.8} parent=5 // pred_check_branch
      %195 = sbr.rel (%p192) target = $region32
    $region31: #{scconv2d_pallas.8} parent=5 // pred_region
      %s196 = ssub.s32 %s9, 1
      %p197 = scmp.lt.s32.totalorder %s19, 1
      %s198 = scalar_select %p197, %s19, 1
      %s199 = smul.addr %s198, 54
      %s200 = smul.addr %s199, 4
      %s201 = scalar_lea.vmem %s0, %s200
      %p202 = pneg %p54
      %p203 = pneg %p51
      %s204 = smul.u32 2, %s21
      %p205 = scmp.lt.s32.totalorder %s19, 1
      %s206 = scalar_select %p205, %s19, 1
      %p207 = scmp.lt.s32.totalorder %s204, 3
      %s208 = scalar_select %p207, %s204, 3
      %p209 = scmp.lt.s32.totalorder %s20, 0
      %s210 = scalar_select %p209, %s20, 0
      %s211 = sadd.s32 %s210, %s208
      %s212 = smul.addr %s206, 4
      %s213 = sadd.s32 %s211, %s212
      %s214 = smul.addr %s213, 4
      %s215 = scalar_lea.vmem %s1, %s214
      %p216 = pneg %p84
      %p217 = pneg %p81
      %p218 = scmp.lt.s32.totalorder %s20, 0
      %s219 = scalar_select %p218, %s20, 0
      %s220 = smul.addr %s219, 4
      %s221 = scalar_lea.vmem %s2, %s220
      %p222 = pneg %p110
      %p223 = pneg %p107
      %p224 = pneg %p140
      %p225 = pneg %p137
      %s226 = smul.u32 8, %s21
      %p227 = scmp.lt.s32.totalorder %s19, 1
      %s228 = scalar_select %p227, %s19, 1
      %p229 = scmp.lt.s32.totalorder %s226, 15
      %s230 = scalar_select %p229, %s226, 15
      %p231 = scmp.lt.s32.totalorder %s20, 0
      %s232 = scalar_select %p231, %s20, 0
      %s233 = smul.addr %s230, 2
      %s234 = sadd.s32 %s232, %s233
      %s235 = smul.addr %s228, 32
      %s236 = sadd.s32 %s234, %s235
      %s237 = smul.addr %s236, 4
      %s238 = scalar_lea.vmem %s3, %s237
      %p239 = scmp.lt.s32.totalorder %s19, 1
      %s240 = scalar_select %p239, %s19, 1
      %s241 = smul.addr %s240, 54
      %s242 = smul.addr %s241, 4
      %s243 = scalar_lea.vmem %s0, %s242
      %s244 = smul.u32 2, %s21
      %p245 = scmp.lt.s32.totalorder %s19, 1
      %s246 = scalar_select %p245, %s19, 1
      %p247 = scmp.lt.s32.totalorder %s244, 3
      %s248 = scalar_select %p247, %s244, 3
      %p249 = scmp.lt.s32.totalorder %s20, 0
      %s250 = scalar_select %p249, %s20, 0
      %s251 = sadd.s32 %s250, %s248
      %s252 = smul.addr %s246, 4
      %s253 = sadd.s32 %s251, %s252
      %s254 = smul.addr %s253, 4
      %s255 = scalar_lea.vmem %s1, %s254
      %s256 = smul.u32 2, %s21
      %p257 = scmp.lt.s32.totalorder %s20, 0
      %s258 = scalar_select %p257, %s20, 0
      %s259 = smul.addr %s258, 4
      %s260 = scalar_lea.vmem %s2, %s259
      %s261 = smul.u32 8, %s21
      %p262 = scmp.lt.s32.totalorder %s19, 1
      %s263 = scalar_select %p262, %s19, 1
      %p264 = scmp.lt.s32.totalorder %s261, 15
      %s265 = scalar_select %p264, %s261, 15
      %p266 = scmp.lt.s32.totalorder %s20, 0
      %s267 = scalar_select %p266, %s20, 0
      %s268 = smul.addr %s265, 2
      %s269 = sadd.s32 %s267, %s268
      %s270 = smul.addr %s263, 32
      %s271 = sadd.s32 %s269, %s270
      %s272 = smul.addr %s271, 4
      %s273 = scalar_lea.vmem %s3, %s272
      %s274 = smul.u32 8, %s21
      %s276 = smul.u32 %s21, 8
      %s277 = smul.u32 %s276, 3
      %s278 = smul.addr %s277, 4
      %s279 = scalar_lea.vmem %s243, %s278
      %v280 = vld [vmem:[%s279] sm:$0xf]
      %v281 = vld [vmem:[%s279 + $0x4] sm:$0xf]
      %v282 = vld [vmem:[%s279 + $0xc] sm:$0xf]
      %v283 = vld [vmem:[%s279 + $0x10] sm:$0xf]
      %v284 = vld [vmem:[%s279 + $0x18] sm:$0xf]
      %v285 = vld [vmem:[%s279 + $0x1c] sm:$0xf]
      %v286 = vld [vmem:[%s279 + $0x24] sm:$0xf]
      %v287 = vld [vmem:[%s279 + $0x28] sm:$0xf]
      %v288 = vld [vmem:[%s279 + $0x30] sm:$0xf]
      %v289 = vld [vmem:[%s279 + $0x34] sm:$0xf]
      %v290 = vld [vmem:[%s279 + $0x3c] sm:$0xf]
      %v291 = vld [vmem:[%s279 + $0x40] sm:$0xf]
      %v292 = vld [vmem:[%s279 + $0x48] sm:$0xf]
      %v293 = vld [vmem:[%s279 + $0x4c] sm:$0xf]
      %v294 = vld [vmem:[%s279 + $0x54] sm:$0xf]
      %v295 = vld [vmem:[%s279 + $0x58] sm:$0xf]
      %v296 = vld [vmem:[%s260] sm:$0xf]
      %v297 = vld [vmem:[%s260 + $0x4] sm:$0xf]
      %v298 = vld [vmem:[%s260 + $0x8] sm:$0xf]
      %v299 = vld [vmem:[%s260 + $0xc] sm:$0xf]
      %v300 = vld [vmem:[%s260 + $0x10] sm:$0xf]
      %v301 = vld [vmem:[%s260 + $0x14] sm:$0xf]
      %v302 = vld [vmem:[%s260 + $0x18] sm:$0xf]
      %v303 = vld [vmem:[%s260 + $0x1c] sm:$0xf]
      %v304 = vld [vmem:[%s260 + $0x20] sm:$0xf]
      %v305 = vld [vmem:[%s260 + $0x24] sm:$0xf]
      %v306 = vld [vmem:[%s260 + $0x28] sm:$0xf]
      %v307 = vld [vmem:[%s260 + $0x2c] sm:$0xf]
      %v308 = vld [vmem:[%s260 + $0x30] sm:$0xf]
      %v309 = vld [vmem:[%s260 + $0x34] sm:$0xf]
      %v310 = vld [vmem:[%s260 + $0x38] sm:$0xf]
      %v311 = vld [vmem:[%s260 + $0x3c] sm:$0xf]
      %v312 = vld [vmem:[%s279 + $0x8] sm:$0x1]
      %v313 = vld [vmem:[%s279 + $0x14] sm:$0x1]
      %v314 = vld [vmem:[%s279 + $0x20] sm:$0x1]
      %v315 = vld [vmem:[%s279 + $0x2c] sm:$0x1]
      %v316 = vld [vmem:[%s279 + $0x38] sm:$0x1]
      %v317 = vld [vmem:[%s279 + $0x44] sm:$0x1]
      %v318 = vld [vmem:[%s279 + $0x50] sm:$0x1]
      %v319 = vld [vmem:[%s279 + $0x5c] sm:$0x1]
      %vm320 = vsmask.f32 3328
      %vm321 = vsmask.f32 7440
      %vm322 = vmor %vm320, %vm321
      %v324 = vshrl.u32 %v280, 16
      %v326 = vrot.slane %v324, 4
      %v327 = vshll.u32 %v280, 16
      %v329 = vrot.slane %v327, 5
      %v330 = vor.u32 %v326, %v329
      %v331 = vrot.slane %v330, 4
      %v333 = vshll.u32 %v281, 16
      %v335 = vrot.slane %v333, 5
      %v336 = vsel %vm322, %v331, %v335
      %v337 = vshrl.u32 %v281, 16
      %v339 = vrot.slane %v337, 4
      %v340 = vor.u32 %v339, %v335
      %v341 = vrot.slane %v340, 4
      %v343 = vshll.u32 %v312, 16
      %v345 = vrot.slane %v343, 5
      %v346 = vsel %vm322, %v341, %v345
      %v348 = vshrl.u32 %v282, 16
      %v350 = vrot.slane %v348, 4
      %v351 = vshll.u32 %v282, 16
      %v353 = vrot.slane %v351, 5
      %v354 = vor.u32 %v350, %v353
      %v355 = vrot.slane %v354, 4
      %v357 = vshll.u32 %v283, 16
      %v359 = vrot.slane %v357, 5
      %v360 = vsel %vm322, %v355, %v359
      %v361 = vshrl.u32 %v283, 16
      %v363 = vrot.slane %v361, 4
      %v364 = vor.u32 %v363, %v359
      %v365 = vrot.slane %v364, 4
      %v367 = vshll.u32 %v313, 16
      %v369 = vrot.slane %v367, 5
      %v370 = vsel %vm322, %v365, %v369
      %v372 = vshrl.u32 %v284, 16
      %v374 = vrot.slane %v372, 4
      %v375 = vshll.u32 %v284, 16
      %v377 = vrot.slane %v375, 5
      %v378 = vor.u32 %v374, %v377
      %v379 = vrot.slane %v378, 4
      %v381 = vshll.u32 %v285, 16
      %v383 = vrot.slane %v381, 5
      %v384 = vsel %vm322, %v379, %v383
      %v385 = vshrl.u32 %v285, 16
      %v387 = vrot.slane %v385, 4
      %v388 = vor.u32 %v387, %v383
      %v389 = vrot.slane %v388, 4
      %v391 = vshll.u32 %v314, 16
      %v393 = vrot.slane %v391, 5
      %v394 = vsel %vm322, %v389, %v393
      %v396 = vshrl.u32 %v286, 16
      %v398 = vrot.slane %v396, 4
      %v399 = vshll.u32 %v286, 16
      %v401 = vrot.slane %v399, 5
      %v402 = vor.u32 %v398, %v401
      %v403 = vrot.slane %v402, 4
      %v405 = vshll.u32 %v287, 16
      %v407 = vrot.slane %v405, 5
      %v408 = vsel %vm322, %v403, %v407
      %v409 = vshrl.u32 %v287, 16
      %v411 = vrot.slane %v409, 4
      %v412 = vor.u32 %v411, %v407
      %v413 = vrot.slane %v412, 4
      %v415 = vshll.u32 %v315, 16
      %v417 = vrot.slane %v415, 5
      %v418 = vsel %vm322, %v413, %v417
      %v420 = vshrl.u32 %v288, 16
      %v422 = vrot.slane %v420, 4
      %v423 = vshll.u32 %v288, 16
      %v425 = vrot.slane %v423, 5
      %v426 = vor.u32 %v422, %v425
      %v427 = vrot.slane %v426, 4
      %v429 = vshll.u32 %v289, 16
      %v431 = vrot.slane %v429, 5
      %v432 = vsel %vm322, %v427, %v431
      %v433 = vshrl.u32 %v289, 16
      %v435 = vrot.slane %v433, 4
      %v436 = vor.u32 %v435, %v431
      %v437 = vrot.slane %v436, 4
      %v439 = vshll.u32 %v316, 16
      %v441 = vrot.slane %v439, 5
      %v442 = vsel %vm322, %v437, %v441
      %v444 = vshrl.u32 %v290, 16
      %v446 = vrot.slane %v444, 4
      %v447 = vshll.u32 %v290, 16
      %v449 = vrot.slane %v447, 5
      %v450 = vor.u32 %v446, %v449
      %v451 = vrot.slane %v450, 4
      %v453 = vshll.u32 %v291, 16
      %v455 = vrot.slane %v453, 5
      %v456 = vsel %vm322, %v451, %v455
      %v457 = vshrl.u32 %v291, 16
      %v459 = vrot.slane %v457, 4
      %v460 = vor.u32 %v459, %v455
      %v461 = vrot.slane %v460, 4
      %v463 = vshll.u32 %v317, 16
      %v465 = vrot.slane %v463, 5
      %v466 = vsel %vm322, %v461, %v465
      %v468 = vshrl.u32 %v292, 16
      %v470 = vrot.slane %v468, 4
      %v471 = vshll.u32 %v292, 16
      %v473 = vrot.slane %v471, 5
      %v474 = vor.u32 %v470, %v473
      %v475 = vrot.slane %v474, 4
      %v477 = vshll.u32 %v293, 16
      %v479 = vrot.slane %v477, 5
      %v480 = vsel %vm322, %v475, %v479
      %v481 = vshrl.u32 %v293, 16
      %v483 = vrot.slane %v481, 4
      %v484 = vor.u32 %v483, %v479
      %v485 = vrot.slane %v484, 4
      %v487 = vshll.u32 %v318, 16
      %v489 = vrot.slane %v487, 5
      %v490 = vsel %vm322, %v485, %v489
      %v492 = vshrl.u32 %v294, 16
      %v494 = vrot.slane %v492, 4
      %v495 = vshll.u32 %v294, 16
      %v497 = vrot.slane %v495, 5
      %v498 = vor.u32 %v494, %v497
      %v499 = vrot.slane %v498, 4
      %v501 = vshll.u32 %v295, 16
      %v503 = vrot.slane %v501, 5
      %v504 = vsel %vm322, %v499, %v503
      %v505 = vshrl.u32 %v295, 16
      %v507 = vrot.slane %v505, 4
      %v508 = vor.u32 %v507, %v503
      %v509 = vrot.slane %v508, 4
      %v511 = vshll.u32 %v319, 16
      %v513 = vrot.slane %v511, 5
      %v514 = vsel %vm322, %v509, %v513
      %s515 = scalar_lea.vmem %s260, 64
      %v516 = vld [vmem:[%s515] sm:$0xf]
      %v517 = vld [vmem:[%s515 + $0x4] sm:$0xf]
      %v518 = vld [vmem:[%s515 + $0x8] sm:$0xf]
      %v519 = vld [vmem:[%s515 + $0xc] sm:$0xf]
      %v520 = vld [vmem:[%s515 + $0x10] sm:$0xf]
      %v521 = vld [vmem:[%s515 + $0x14] sm:$0xf]
      %v522 = vld [vmem:[%s515 + $0x18] sm:$0xf]
      %v523 = vld [vmem:[%s515 + $0x1c] sm:$0xf]
      %v524 = vld [vmem:[%s515 + $0x20] sm:$0xf]
      %v525 = vld [vmem:[%s515 + $0x24] sm:$0xf]
      %v526 = vld [vmem:[%s515 + $0x28] sm:$0xf]
      %v527 = vld [vmem:[%s515 + $0x2c] sm:$0xf]
      %v528 = vld [vmem:[%s515 + $0x30] sm:$0xf]
      %v529 = vld [vmem:[%s515 + $0x34] sm:$0xf]
      %v530 = vld [vmem:[%s515 + $0x38] sm:$0xf]
      %v531 = vld [vmem:[%s515 + $0x3c] sm:$0xf]
      %v532 = vunpack.c.l.b16 %v336
      %v533 = vunpack.c.l.b16 %v346
      %v534 = vunpack.c.l.b16 %v360
      %v535 = vunpack.c.l.b16 %v370
      %v536 = vunpack.c.l.b16 %v384
      %v537 = vunpack.c.l.b16 %v394
      %v538 = vunpack.c.l.b16 %v408
      %v539 = vunpack.c.l.b16 %v418
      %v540 = vunpack.c.l.b16 %v432
      %v541 = vunpack.c.l.b16 %v442
      %v542 = vunpack.c.l.b16 %v456
      %v543 = vunpack.c.l.b16 %v466
      %v544 = vunpack.c.l.b16 %v480
      %v545 = vunpack.c.l.b16 %v490
      %v546 = vunpack.c.l.b16 %v504
      %v547 = vunpack.c.l.b16 %v514
      %v548 = vpack.c.b16 %v533, %v532
      %v549 = vpack.c.b16 %v535, %v534
      %v550 = vpack.c.b16 %v537, %v536
      %v551 = vpack.c.b16 %v539, %v538
      %v552 = vpack.c.b16 %v541, %v540
      %v553 = vpack.c.b16 %v543, %v542
      %v554 = vpack.c.b16 %v545, %v544
      %v555 = vpack.c.b16 %v547, %v546
      %v580 = vunpack.c.l.b16 %v516
      %v581 = vunpack.c.l.b16 %v517
      %v582 = vunpack.c.l.b16 %v518
      %v583 = vunpack.c.l.b16 %v519
      %v584 = vunpack.c.l.b16 %v520
      %v585 = vunpack.c.l.b16 %v521
      %v586 = vunpack.c.l.b16 %v522
      %v587 = vunpack.c.l.b16 %v523
      %v588 = vunpack.c.l.b16 %v524
      %v589 = vunpack.c.l.b16 %v525
      %v590 = vunpack.c.l.b16 %v526
      %v591 = vunpack.c.l.b16 %v527
      %v592 = vunpack.c.l.b16 %v528
      %v593 = vunpack.c.l.b16 %v529
      %v594 = vunpack.c.l.b16 %v530
      %v595 = vunpack.c.l.b16 %v531
      %v596 = vpack.c.b16 %v581, %v580
      %v597 = vpack.c.b16 %v583, %v582
      %v598 = vpack.c.b16 %v585, %v584
      %v599 = vpack.c.b16 %v587, %v586
      %v600 = vpack.c.b16 %v589, %v588
      %v601 = vpack.c.b16 %v591, %v590
      %v602 = vpack.c.b16 %v593, %v592
      %v603 = vpack.c.b16 %v595, %v594
      %612 = vmatprep.subr.bf16.mxu0 0
      %613 = vmatpush1.bf16.msra.mxu0 %v596
      %614 = vmatprep.subr.bf16.mxu0 0
      %615 = vmatpush1.bf16.msra.mxu0 %v597
      %616 = vmatprep.subr.bf16.mxu0 0
      %617 = vmatpush1.bf16.msra.mxu0 %v598
      %618 = vmatprep.subr.bf16.mxu0 0
      %619 = vmatpush1.bf16.msra.mxu0 %v599
      %620 = vmatprep.subr.bf16.mxu0 0
      %621 = vmatpush1.bf16.msra.mxu0 %v600
      %622 = vmatprep.subr.bf16.mxu0 0
      %623 = vmatpush1.bf16.msra.mxu0 %v601
      %624 = vmatprep.subr.bf16.mxu0 0
      %625 = vmatpush1.bf16.msra.mxu0 %v602
      %626 = vmatprep.subr.bf16.mxu0 0
      %627 = vmatpush1.bf16.msra.mxu0 %v603
      %628 = vmatprep.subr.bf16.mxu0 0
      %629 = vmatpush1.bf16.msra.mxu0 0
      %630 = vmatprep.subr.bf16.mxu0 0
      %631 = vmatpush1.bf16.msra.mxu0 0
      %632 = vmatprep.subr.bf16.mxu0 0
      %633 = vmatpush1.bf16.msra.mxu0 0
      %634 = vmatprep.subr.bf16.mxu0 0
      %635 = vmatpush1.bf16.msra.mxu0 0
      %636 = vmatprep.subr.bf16.mxu0 0
      %637 = vmatpush1.bf16.msra.mxu0 0
      %638 = vmatprep.subr.bf16.mxu0 0
      %639 = vmatpush1.bf16.msra.mxu0 0
      %640 = vmatprep.subr.bf16.mxu0 0
      %641 = vmatpush1.bf16.msra.mxu0 0
      %642 = vmatprep.subr.bf16.mxu0 0
      %643 = vmatpush1.bf16.msra.mxu0 0
      %644 = vmatprep.mubr.bf16.mxu0 0
      %645 = vmatmul.mubr.bf16.gmra.mrb[0].mxu0 %v548
      %v646 = vpop.f32.mrb[0].mxu0
      %v647 = vadd.f32 0.0, %v646
      %v648 = vpop.f32.mrb[0].mxu0
      %v649 = vpop.f32.mrb[0].mxu0
      %v650 = vadd.f32 0.0, %v649
      %v651 = vpop.f32.mrb[0].mxu0
      %652 = vmatprep.mubr.bf16.mxu0 0
      %653 = vmatmul.mubr.bf16.gmra.mrb[0].mxu0 %v549
      %v654 = vpop.f32.mrb[0].mxu0
      %v655 = vadd.f32 0.0, %v654
      %v656 = vpop.f32.mrb[0].mxu0
      %v657 = vpop.f32.mrb[0].mxu0
      %v658 = vadd.f32 0.0, %v657
      %v659 = vpop.f32.mrb[0].mxu0
      %660 = vmatprep.mubr.bf16.mxu0 0
      %661 = vmatmul.mubr.bf16.gmra.mrb[0].mxu0 %v550
      %v662 = vpop.f32.mrb[0].mxu0
      %v663 = vadd.f32 0.0, %v662
      %v664 = vpop.f32.mrb[0].mxu0
      %v665 = vpop.f32.mrb[0].mxu0
      %v666 = vadd.f32 0.0, %v665
      %v667 = vpop.f32.mrb[0].mxu0
      %668 = vmatprep.mubr.bf16.mxu0 0
      %669 = vmatmul.mubr.bf16.gmra.mrb[0].mxu0 %v551
      %v670 = vpop.f32.mrb[0].mxu0
      %v671 = vadd.f32 0.0, %v670
      %v672 = vpop.f32.mrb[0].mxu0
      %v673 = vpop.f32.mrb[0].mxu0
      %v674 = vadd.f32 0.0, %v673
      %v675 = vpop.f32.mrb[0].mxu0
      %676 = vmatprep.mubr.bf16.mxu0 0
      %677 = vmatmul.mubr.bf16.gmra.mrb[0].mxu0 %v552
      %v678 = vpop.f32.mrb[0].mxu0
      %v679 = vadd.f32 0.0, %v678
      %v680 = vpop.f32.mrb[0].mxu0
      %v681 = vpop.f32.mrb[0].mxu0
      %v682 = vadd.f32 0.0, %v681
      %v683 = vpop.f32.mrb[0].mxu0
      %684 = vmatprep.mubr.bf16.mxu0 0
      %685 = vmatmul.mubr.bf16.gmra.mrb[0].mxu0 %v553
      %v686 = vpop.f32.mrb[0].mxu0
      %v687 = vadd.f32 0.0, %v686
      %v688 = vpop.f32.mrb[0].mxu0
      %v689 = vpop.f32.mrb[0].mxu0
      %v690 = vadd.f32 0.0, %v689
      %v691 = vpop.f32.mrb[0].mxu0
      %692 = vmatprep.mubr.bf16.mxu0 0
      %693 = vmatmul.mubr.bf16.gmra.mrb[0].mxu0 %v554
      %v694 = vpop.f32.mrb[0].mxu0
      %v695 = vadd.f32 0.0, %v694
      %v696 = vpop.f32.mrb[0].mxu0
      %v697 = vpop.f32.mrb[0].mxu0
      %v698 = vadd.f32 0.0, %v697
      %v699 = vpop.f32.mrb[0].mxu0
      %700 = vmatprep.mubr.bf16.mxu0 0
      %701 = vmatmul.mubr.bf16.gmra.mrb[0].mxu0 %v555
      %v702 = vpop.f32.mrb[0].mxu0
      %v703 = vadd.f32 0.0, %v702
      %v704 = vpop.f32.mrb[0].mxu0
      %v705 = vpop.f32.mrb[0].mxu0
      %v706 = vadd.f32 0.0, %v705
      %v707 = vpop.f32.mrb[0].mxu0
      %708 = vdwg.mxu0
      %v725 = vunpack.c.l.b16 %v280
      %v726 = vunpack.c.l.b16 %v281
      %v727 = vunpack.c.l.b16 %v282
      %v728 = vunpack.c.l.b16 %v283
      %v729 = vunpack.c.l.b16 %v284
      %v730 = vunpack.c.l.b16 %v285
      %v731 = vunpack.c.l.b16 %v286
      %v732 = vunpack.c.l.b16 %v287
      %v733 = vunpack.c.l.b16 %v288
      %v734 = vunpack.c.l.b16 %v289
      %v735 = vunpack.c.l.b16 %v290
      %v736 = vunpack.c.l.b16 %v291
      %v737 = vunpack.c.l.b16 %v292
      %v738 = vunpack.c.l.b16 %v293
      %v739 = vunpack.c.l.b16 %v294
      %v740 = vunpack.c.l.b16 %v295
      %v741 = vpack.c.b16 %v726, %v725
      %v742 = vpack.c.b16 %v728, %v727
      %v743 = vpack.c.b16 %v730, %v729
      %v744 = vpack.c.b16 %v732, %v731
      %v745 = vpack.c.b16 %v734, %v733
      %v746 = vpack.c.b16 %v736, %v735
      %v747 = vpack.c.b16 %v738, %v737
      %v748 = vpack.c.b16 %v740, %v739
      %v773 = vunpack.c.l.b16 %v296
      %v774 = vunpack.c.l.b16 %v297
      %v775 = vunpack.c.l.b16 %v298
      %v776 = vunpack.c.l.b16 %v299
      %v777 = vunpack.c.l.b16 %v300
      %v778 = vunpack.c.l.b16 %v301
      %v779 = vunpack.c.l.b16 %v302
      %v780 = vunpack.c.l.b16 %v303
      %v781 = vunpack.c.l.b16 %v304
      %v782 = vunpack.c.l.b16 %v305
      %v783 = vunpack.c.l.b16 %v306
      %v784 = vunpack.c.l.b16 %v307
      %v785 = vunpack.c.l.b16 %v308
      %v786 = vunpack.c.l.b16 %v309
      %v787 = vunpack.c.l.b16 %v310
      %v788 = vunpack.c.l.b16 %v311
      %v789 = vpack.c.b16 %v774, %v773
      %v790 = vpack.c.b16 %v776, %v775
      %v791 = vpack.c.b16 %v778, %v777
      %v792 = vpack.c.b16 %v780, %v779
      %v793 = vpack.c.b16 %v782, %v781
      %v794 = vpack.c.b16 %v784, %v783
      %v795 = vpack.c.b16 %v786, %v785
      %v796 = vpack.c.b16 %v788, %v787
      %805 = vmatprep.subr.bf16.mxu0 0
      %806 = vmatpush1.bf16.msra.mxu0 %v789
      %807 = vmatprep.subr.bf16.mxu0 0
      %808 = vmatpush1.bf16.msra.mxu0 %v790
      %809 = vmatprep.subr.bf16.mxu0 0
      %810 = vmatpush1.bf16.msra.mxu0 %v791
      %811 = vmatprep.subr.bf16.mxu0 0
      %812 = vmatpush1.bf16.msra.mxu0 %v792
      %813 = vmatprep.subr.bf16.mxu0 0
      %814 = vmatpush1.bf16.msra.mxu0 %v793
      %815 = vmatprep.subr.bf16.mxu0 0
      %816 = vmatpush1.bf16.msra.mxu0 %v794
      %817 = vmatprep.subr.bf16.mxu0 0
      %818 = vmatpush1.bf16.msra.mxu0 %v795
      %819 = vmatprep.subr.bf16.mxu0 0
      %820 = vmatpush1.bf16.msra.mxu0 %v796
      %821 = vmatprep.subr.bf16.mxu0 0
      %822 = vmatpush1.bf16.msra.mxu0 0
      %823 = vmatprep.subr.bf16.mxu0 0
      %824 = vmatpush1.bf16.msra.mxu0 0
      %825 = vmatprep.subr.bf16.mxu0 0
      %826 = vmatpush1.bf16.msra.mxu0 0
      %827 = vmatprep.subr.bf16.mxu0 0
      %828 = vmatpush1.bf16.msra.mxu0 0
      %829 = vmatprep.subr.bf16.mxu0 0
      %830 = vmatpush1.bf16.msra.mxu0 0
      %831 = vmatprep.subr.bf16.mxu0 0
      %832 = vmatpush1.bf16.msra.mxu0 0
      %833 = vmatprep.subr.bf16.mxu0 0
      %834 = vmatpush1.bf16.msra.mxu0 0
      %835 = vmatprep.subr.bf16.mxu0 0
      %836 = vmatpush1.bf16.msra.mxu0 0
      %837 = vmatprep.mubr.bf16.mxu0 0
      %838 = vmatmul.mubr.bf16.gmra.mrb[0].mxu0 %v741
      %v839 = vpop.f32.mrb[0].mxu0
      %v840 = vadd.f32 %v647, %v839
      %v841 = vpop.f32.mrb[0].mxu0
      %v842 = vpop.f32.mrb[0].mxu0
      %v843 = vadd.f32 %v650, %v842
      %v844 = vpop.f32.mrb[0].mxu0
      %845 = vmatprep.mubr.bf16.mxu0 0
      %846 = vmatmul.mubr.bf16.gmra.mrb[0].mxu0 %v742
      %v847 = vpop.f32.mrb[0].mxu0
      %v848 = vadd.f32 %v655, %v847
      %v849 = vpop.f32.mrb[0].mxu0
      %v850 = vpop.f32.mrb[0].mxu0
      %v851 = vadd.f32 %v658, %v850
      %v852 = vpop.f32.mrb[0].mxu0
      %853 = vmatprep.mubr.bf16.mxu0 0
      %854 = vmatmul.mubr.bf16.gmra.mrb[0].mxu0 %v743
      %v855 = vpop.f32.mrb[0].mxu0
      %v856 = vadd.f32 %v663, %v855
      %v857 = vpop.f32.mrb[0].mxu0
      %v858 = vpop.f32.mrb[0].mxu0
      %v859 = vadd.f32 %v666, %v858
      %v860 = vpop.f32.mrb[0].mxu0
      %861 = vmatprep.mubr.bf16.mxu0 0
      %862 = vmatmul.mubr.bf16.gmra.mrb[0].mxu0 %v744
      %v863 = vpop.f32.mrb[0].mxu0
      %v864 = vadd.f32 %v671, %v863
      %v865 = vpop.f32.mrb[0].mxu0
      %v866 = vpop.f32.mrb[0].mxu0
      %v867 = vadd.f32 %v674, %v866
      %v868 = vpop.f32.mrb[0].mxu0
      %869 = vmatprep.mubr.bf16.mxu0 0
      %870 = vmatmul.mubr.bf16.gmra.mrb[0].mxu0 %v745
      %v871 = vpop.f32.mrb[0].mxu0
      %v872 = vadd.f32 %v679, %v871
      %v873 = vpop.f32.mrb[0].mxu0
      %v874 = vpop.f32.mrb[0].mxu0
      %v875 = vadd.f32 %v682, %v874
      %v876 = vpop.f32.mrb[0].mxu0
      %877 = vmatprep.mubr.bf16.mxu0 0
      %878 = vmatmul.mubr.bf16.gmra.mrb[0].mxu0 %v746
      %v879 = vpop.f32.mrb[0].mxu0
      %v880 = vadd.f32 %v687, %v879
      %v881 = vpop.f32.mrb[0].mxu0
      %v882 = vpop.f32.mrb[0].mxu0
      %v883 = vadd.f32 %v690, %v882
      %v884 = vpop.f32.mrb[0].mxu0
      %885 = vmatprep.mubr.bf16.mxu0 0
      %886 = vmatmul.mubr.bf16.gmra.mrb[0].mxu0 %v747
      %v887 = vpop.f32.mrb[0].mxu0
      %v888 = vadd.f32 %v695, %v887
      %v889 = vpop.f32.mrb[0].mxu0
      %v890 = vpop.f32.mrb[0].mxu0
      %v891 = vadd.f32 %v698, %v890
      %v892 = vpop.f32.mrb[0].mxu0
      %893 = vmatprep.mubr.bf16.mxu0 0
      %894 = vmatmul.mubr.bf16.gmra.mrb[0].mxu0 %v748
      %v895 = vpop.f32.mrb[0].mxu0
      %v896 = vadd.f32 %v703, %v895
      %v897 = vpop.f32.mrb[0].mxu0
      %v898 = vpop.f32.mrb[0].mxu0
      %v899 = vadd.f32 %v706, %v898
      %v900 = vpop.f32.mrb[0].mxu0
      %901 = vdwg.mxu0
      %v902 = vld [vmem:[%s279] sm:$0xe]
      %v903 = vld [vmem:[%s279 + $0xc] sm:$0xe]
      %v904 = vld [vmem:[%s279 + $0x18] sm:$0xe]
      %v905 = vld [vmem:[%s279 + $0x24] sm:$0xe]
      %v906 = vld [vmem:[%s279 + $0x30] sm:$0xe]
      %v907 = vld [vmem:[%s279 + $0x3c] sm:$0xe]
      %v908 = vld [vmem:[%s279 + $0x48] sm:$0xe]
      %v909 = vld [vmem:[%s279 + $0x54] sm:$0xe]
      %vm926 = vcmask 1042432
      %vm927 = vcmask 1046532
      %vm928 = vmor %vm926, %vm927
      %v929 = vrot.slane %v902, 5
      %v930 = vrot.slane %v929, 4
      %v931 = vrot.slane %v281, 5
      %v932 = vsel %vm928, %v930, %v931
      %v933 = vrot.slane %v931, 4
      %v934 = vrot.slane %v312, 5
      %v935 = vsel %vm928, %v933, %v934
      %v936 = vrot.slane %v903, 5
      %v937 = vrot.slane %v936, 4
      %v938 = vrot.slane %v283, 5
      %v939 = vsel %vm928, %v937, %v938
      %v940 = vrot.slane %v938, 4
      %v941 = vrot.slane %v313, 5
      %v942 = vsel %vm928, %v940, %v941
      %v943 = vrot.slane %v904, 5
      %v944 = vrot.slane %v943, 4
      %v945 = vrot.slane %v285, 5
      %v946 = vsel %vm928, %v944, %v945
      %v947 = vrot.slane %v945, 4
      %v948 = vrot.slane %v314, 5
      %v949 = vsel %vm928, %v947, %v948
      %v950 = vrot.slane %v905, 5
      %v951 = vrot.slane %v950, 4
      %v952 = vrot.slane %v287, 5
      %v953 = vsel %vm928, %v951, %v952
      %v954 = vrot.slane %v952, 4
      %v955 = vrot.slane %v315, 5
      %v956 = vsel %vm928, %v954, %v955
      %v957 = vrot.slane %v906, 5
      %v958 = vrot.slane %v957, 4
      %v959 = vrot.slane %v289, 5
      %v960 = vsel %vm928, %v958, %v959
      %v961 = vrot.slane %v959, 4
      %v962 = vrot.slane %v316, 5
      %v963 = vsel %vm928, %v961, %v962
      %v964 = vrot.slane %v907, 5
      %v965 = vrot.slane %v964, 4
      %v966 = vrot.slane %v291, 5
      %v967 = vsel %vm928, %v965, %v966
      %v968 = vrot.slane %v966, 4
      %v969 = vrot.slane %v317, 5
      %v970 = vsel %vm928, %v968, %v969
      %v971 = vrot.slane %v908, 5
      %v972 = vrot.slane %v971, 4
      %v973 = vrot.slane %v293, 5
      %v974 = vsel %vm928, %v972, %v973
      %v975 = vrot.slane %v973, 4
      %v976 = vrot.slane %v318, 5
      %v977 = vsel %vm928, %v975, %v976
      %v978 = vrot.slane %v909, 5
      %v979 = vrot.slane %v978, 4
      %v980 = vrot.slane %v295, 5
      %v981 = vsel %vm928, %v979, %v980
      %v982 = vrot.slane %v980, 4
      %v983 = vrot.slane %v319, 5
      %v984 = vsel %vm928, %v982, %v983
      %s985 = scalar_lea.vmem %s260, 128
      %v986 = vld [vmem:[%s985] sm:$0xf]
      %v987 = vld [vmem:[%s985 + $0x4] sm:$0xf]
      %v988 = vld [vmem:[%s985 + $0x8] sm:$0xf]
      %v989 = vld [vmem:[%s985 + $0xc] sm:$0xf]
      %v990 = vld [vmem:[%s985 + $0x10] sm:$0xf]
      %v991 = vld [vmem:[%s985 + $0x14] sm:$0xf]
      %v992 = vld [vmem:[%s985 + $0x18] sm:$0xf]
      %v993 = vld [vmem:[%s985 + $0x1c] sm:$0xf]
      %v994 = vld [vmem:[%s985 + $0x20] sm:$0xf]
      %v995 = vld [vmem:[%s985 + $0x24] sm:$0xf]
      %v996 = vld [vmem:[%s985 + $0x28] sm:$0xf]
      %v997 = vld [vmem:[%s985 + $0x2c] sm:$0xf]
      %v998 = vld [vmem:[%s985 + $0x30] sm:$0xf]
      %v999 = vld [vmem:[%s985 + $0x34] sm:$0xf]
      %v1000 = vld [vmem:[%s985 + $0x38] sm:$0xf]
      %v1001 = vld [vmem:[%s985 + $0x3c] sm:$0xf]
      %v1002 = vunpack.c.l.b16 %v932
      %v1003 = vunpack.c.l.b16 %v935
      %v1004 = vunpack.c.l.b16 %v939
      %v1005 = vunpack.c.l.b16 %v942
      %v1006 = vunpack.c.l.b16 %v946
      %v1007 = vunpack.c.l.b16 %v949
      %v1008 = vunpack.c.l.b16 %v953
      %v1009 = vunpack.c.l.b16 %v956
      %v1010 = vunpack.c.l.b16 %v960
      %v1011 = vunpack.c.l.b16 %v963
      %v1012 = vunpack.c.l.b16 %v967
      %v1013 = vunpack.c.l.b16 %v970
      %v1014 = vunpack.c.l.b16 %v974
      %v1015 = vunpack.c.l.b16 %v977
      %v1016 = vunpack.c.l.b16 %v981
      %v1017 = vunpack.c.l.b16 %v984
      %v1018 = vpack.c.b16 %v1003, %v1002
      %v1019 = vpack.c.b16 %v1005, %v1004
      %v1020 = vpack.c.b16 %v1007, %v1006
      %v1021 = vpack.c.b16 %v1009, %v1008
      %v1022 = vpack.c.b16 %v1011, %v1010
      %v1023 = vpack.c.b16 %v1013, %v1012
      %v1024 = vpack.c.b16 %v1015, %v1014
      %v1025 = vpack.c.b16 %v1017, %v1016
      %v1050 = vunpack.c.l.b16 %v986
      %v1051 = vunpack.c.l.b16 %v987
      %v1052 = vunpack.c.l.b16 %v988
      %v1053 = vunpack.c.l.b16 %v989
      %v1054 = vunpack.c.l.b16 %v990
      %v1055 = vunpack.c.l.b16 %v991
      %v1056 = vunpack.c.l.b16 %v992
      %v1057 = vunpack.c.l.b16 %v993
      %v1058 = vunpack.c.l.b16 %v994
      %v1059 = vunpack.c.l.b16 %v995
      %v1060 = vunpack.c.l.b16 %v996
      %v1061 = vunpack.c.l.b16 %v997
      %v1062 = vunpack.c.l.b16 %v998
      %v1063 = vunpack.c.l.b16 %v999
      %v1064 = vunpack.c.l.b16 %v1000
      %v1065 = vunpack.c.l.b16 %v1001
      %v1066 = vpack.c.b16 %v1051, %v1050
      %v1067 = vpack.c.b16 %v1053, %v1052
      %v1068 = vpack.c.b16 %v1055, %v1054
      %v1069 = vpack.c.b16 %v1057, %v1056
      %v1070 = vpack.c.b16 %v1059, %v1058
      %v1071 = vpack.c.b16 %v1061, %v1060
      %v1072 = vpack.c.b16 %v1063, %v1062
      %v1073 = vpack.c.b16 %v1065, %v1064
      %1082 = vmatprep.subr.bf16.mxu0 0
      %1083 = vmatpush1.bf16.msra.mxu0 %v1066
      %1084 = vmatprep.subr.bf16.mxu0 0
      %1085 = vmatpush1.bf16.msra.mxu0 %v1067
      %1086 = vmatprep.subr.bf16.mxu0 0
      %1087 = vmatpush1.bf16.msra.mxu0 %v1068
      %1088 = vmatprep.subr.bf16.mxu0 0
      %1089 = vmatpush1.bf16.msra.mxu0 %v1069
      %1090 = vmatprep.subr.bf16.mxu0 0
      %1091 = vmatpush1.bf16.msra.mxu0 %v1070
      %1092 = vmatprep.subr.bf16.mxu0 0
      %1093 = vmatpush1.bf16.msra.mxu0 %v1071
      %1094 = vmatprep.subr.bf16.mxu0 0
      %1095 = vmatpush1.bf16.msra.mxu0 %v1072
      %1096 = vmatprep.subr.bf16.mxu0 0
      %1097 = vmatpush1.bf16.msra.mxu0 %v1073
      %1098 = vmatprep.subr.bf16.mxu0 0
      %1099 = vmatpush1.bf16.msra.mxu0 0
      %1100 = vmatprep.subr.bf16.mxu0 0
      %1101 = vmatpush1.bf16.msra.mxu0 0
      %1102 = vmatprep.subr.bf16.mxu0 0
      %1103 = vmatpush1.bf16.msra.mxu0 0
      %1104 = vmatprep.subr.bf16.mxu0 0
      %1105 = vmatpush1.bf16.msra.mxu0 0
      %1106 = vmatprep.subr.bf16.mxu0 0
      %1107 = vmatpush1.bf16.msra.mxu0 0
      %1108 = vmatprep.subr.bf16.mxu0 0
      %1109 = vmatpush1.bf16.msra.mxu0 0
      %1110 = vmatprep.subr.bf16.mxu0 0
      %1111 = vmatpush1.bf16.msra.mxu0 0
      %1112 = vmatprep.subr.bf16.mxu0 0
      %1113 = vmatpush1.bf16.msra.mxu0 0
      %1114 = vmatprep.mubr.bf16.mxu0 0
      %1115 = vmatmul.mubr.bf16.gmra.mrb[0].mxu0 %v1018
      %v1116 = vpop.f32.mrb[0].mxu0
      %v1117 = vadd.f32 0.0, %v1116
      %v1118 = vpop.f32.mrb[0].mxu0
      %v1119 = vpop.f32.mrb[0].mxu0
      %v1120 = vadd.f32 0.0, %v1119
      %v1121 = vpop.f32.mrb[0].mxu0
      %1122 = vmatprep.mubr.bf16.mxu0 0
      %1123 = vmatmul.mubr.bf16.gmra.mrb[0].mxu0 %v1019
      %v1124 = vpop.f32.mrb[0].mxu0
      %v1125 = vadd.f32 0.0, %v1124
      %v1126 = vpop.f32.mrb[0].mxu0
      %v1127 = vpop.f32.mrb[0].mxu0
      %v1128 = vadd.f32 0.0, %v1127
      %v1129 = vpop.f32.mrb[0].mxu0
      %1130 = vmatprep.mubr.bf16.mxu0 0
      %1131 = vmatmul.mubr.bf16.gmra.mrb[0].mxu0 %v1020
      %v1132 = vpop.f32.mrb[0].mxu0
      %v1133 = vadd.f32 0.0, %v1132
      %v1134 = vpop.f32.mrb[0].mxu0
      %v1135 = vpop.f32.mrb[0].mxu0
      %v1136 = vadd.f32 0.0, %v1135
      %v1137 = vpop.f32.mrb[0].mxu0
      %1138 = vmatprep.mubr.bf16.mxu0 0
      %1139 = vmatmul.mubr.bf16.gmra.mrb[0].mxu0 %v1021
      %v1140 = vpop.f32.mrb[0].mxu0
      %v1141 = vadd.f32 0.0, %v1140
      %v1142 = vpop.f32.mrb[0].mxu0
      %v1143 = vpop.f32.mrb[0].mxu0
      %v1144 = vadd.f32 0.0, %v1143
      %v1145 = vpop.f32.mrb[0].mxu0
      %1146 = vmatprep.mubr.bf16.mxu0 0
      %1147 = vmatmul.mubr.bf16.gmra.mrb[0].mxu0 %v1022
      %v1148 = vpop.f32.mrb[0].mxu0
      %v1149 = vadd.f32 0.0, %v1148
      %v1150 = vpop.f32.mrb[0].mxu0
      %v1151 = vpop.f32.mrb[0].mxu0
      %v1152 = vadd.f32 0.0, %v1151
      %v1153 = vpop.f32.mrb[0].mxu0
      %1154 = vmatprep.mubr.bf16.mxu0 0
      %1155 = vmatmul.mubr.bf16.gmra.mrb[0].mxu0 %v1023
      %v1156 = vpop.f32.mrb[0].mxu0
      %v1157 = vadd.f32 0.0, %v1156
      %v1158 = vpop.f32.mrb[0].mxu0
      %v1159 = vpop.f32.mrb[0].mxu0
      %v1160 = vadd.f32 0.0, %v1159
      %v1161 = vpop.f32.mrb[0].mxu0
      %1162 = vmatprep.mubr.bf16.mxu0 0
      %1163 = vmatmul.mubr.bf16.gmra.mrb[0].mxu0 %v1024
      %v1164 = vpop.f32.mrb[0].mxu0
      %v1165 = vadd.f32 0.0, %v1164
      %v1166 = vpop.f32.mrb[0].mxu0
      %v1167 = vpop.f32.mrb[0].mxu0
      %v1168 = vadd.f32 0.0, %v1167
      %v1169 = vpop.f32.mrb[0].mxu0
      %1170 = vmatprep.mubr.bf16.mxu0 0
      %1171 = vmatmul.mubr.bf16.gmra.mrb[0].mxu0 %v1025
      %v1172 = vpop.f32.mrb[0].mxu0
      %v1173 = vadd.f32 0.0, %v1172
      %v1174 = vpop.f32.mrb[0].mxu0
      %v1175 = vpop.f32.mrb[0].mxu0
      %v1176 = vadd.f32 0.0, %v1175
      %v1177 = vpop.f32.mrb[0].mxu0
      %1178 = vdwg.mxu0
      %v1179 = vadd.f32 %v840, %v1117
      %v1180 = vadd.f32 %v843, %v1120
      %v1181 = vadd.f32 %v848, %v1125
      %v1182 = vadd.f32 %v851, %v1128
      %v1183 = vadd.f32 %v856, %v1133
      %v1184 = vadd.f32 %v859, %v1136
      %v1185 = vadd.f32 %v864, %v1141
      %v1186 = vadd.f32 %v867, %v1144
      %v1187 = vadd.f32 %v872, %v1149
      %v1188 = vadd.f32 %v875, %v1152
      %v1189 = vadd.f32 %v880, %v1157
      %v1190 = vadd.f32 %v883, %v1160
      %v1191 = vadd.f32 %v888, %v1165
      %v1192 = vadd.f32 %v891, %v1168
      %v1193 = vadd.f32 %v896, %v1173
      %v1194 = vadd.f32 %v899, %v1176
      %s1195 = sadd.s32 %s276, 1
      %s1196 = smul.u32 %s1195, 3
      %s1197 = smul.addr %s1196, 4
      %s1198 = scalar_lea.vmem %s243, %s1197
      %v1199 = vld [vmem:[%s1198] sm:$0xf]
      %v1200 = vld [vmem:[%s1198 + $0x4] sm:$0xf]
      %v1201 = vld [vmem:[%s1198 + $0xc] sm:$0xf]
      %v1202 = vld [vmem:[%s1198 + $0x10] sm:$0xf]
      %v1203 = vld [vmem:[%s1198 + $0x18] sm:$0xf]
      %v1204 = vld [vmem:[%s1198 + $0x1c] sm:$0xf]
      %v1205 = vld [vmem:[%s1198 + $0x24] sm:$0xf]
      %v1206 = vld [vmem:[%s1198 + $0x28] sm:$0xf]
      %v1207 = vld [vmem:[%s1198 + $0x30] sm:$0xf]
      %v1208 = vld [vmem:[%s1198 + $0x34] sm:$0xf]
      %v1209 = vld [vmem:[%s1198 + $0x3c] sm:$0xf]
      %v1210 = vld [vmem:[%s1198 + $0x40] sm:$0xf]
      %v1211 = vld [vmem:[%s1198 + $0x48] sm:$0xf]
      %v1212 = vld [vmem:[%s1198 + $0x4c] sm:$0xf]
      %v1213 = vld [vmem:[%s1198 + $0x54] sm:$0xf]
      %v1214 = vld [vmem:[%s1198 + $0x58] sm:$0xf]
      %s1215 = scalar_lea.vmem %s260, 192
      %v1216 = vld [vmem:[%s1215] sm:$0xf]
      %v1217 = vld [vmem:[%s1215 + $0x4] sm:$0xf]
      %v1218 = vld [vmem:[%s1215 + $0x8] sm:$0xf]
      %v1219 = vld [vmem:[%s1215 + $0xc] sm:$0xf]
      %v1220 = vld [vmem:[%s1215 + $0x10] sm:$0xf]
      %v1221 = vld [vmem:[%s1215 + $0x14] sm:$0xf]
      %v1222 = vld [vmem:[%s1215 + $0x18] sm:$0xf]
      %v1223 = vld [vmem:[%s1215 + $0x1c] sm:$0xf]
      %v1224 = vld [vmem:[%s1215 + $0x20] sm:$0xf]
      %v1225 = vld [vmem:[%s1215 + $0x24] sm:$0xf]
      %v1226 = vld [vmem:[%s1215 + $0x28] sm:$0xf]
      %v1227 = vld [vmem:[%s1215 + $0x2c] sm:$0xf]
      %v1228 = vld [vmem:[%s1215 + $0x30] sm:$0xf]
      %v1229 = vld [vmem:[%s1215 + $0x34] sm:$0xf]
      %v1230 = vld [vmem:[%s1215 + $0x38] sm:$0xf]
      %v1231 = vld [vmem:[%s1215 + $0x3c] sm:$0xf]
      %v1248 = vunpack.c.l.b16 %v1199
      %v1249 = vunpack.c.l.b16 %v1200
      %v1250 = vunpack.c.l.b16 %v1201
      %v1251 = vunpack.c.l.b16 %v1202
      %v1252 = vunpack.c.l.b16 %v1203
      %v1253 = vunpack.c.l.b16 %v1204
      %v1254 = vunpack.c.l.b16 %v1205
      %v1255 = vunpack.c.l.b16 %v1206
      %v1256 = vunpack.c.l.b16 %v1207
      %v1257 = vunpack.c.l.b16 %v1208
      %v1258 = vunpack.c.l.b16 %v1209
      %v1259 = vunpack.c.l.b16 %v1210
      %v1260 = vunpack.c.l.b16 %v1211
      %v1261 = vunpack.c.l.b16 %v1212
      %v1262 = vunpack.c.l.b16 %v1213
      %v1263 = vunpack.c.l.b16 %v1214
      %v1264 = vpack.c.b16 %v1249, %v1248
      %v1265 = vpack.c.b16 %v1251, %v1250
      %v1266 = vpack.c.b16 %v1253, %v1252
      %v1267 = vpack.c.b16 %v1255, %v1254
      %v1268 = vpack.c.b16 %v1257, %v1256
      %v1269 = vpack.c.b16 %v1259, %v1258
      %v1270 = vpack.c.b16 %v1261, %v1260
      %v1271 = vpack.c.b16 %v1263, %v1262
      %v1296 = vunpack.c.l.b16 %v1216
      %v1297 = vunpack.c.l.b16 %v1217
      %v1298 = vunpack.c.l.b16 %v1218
      %v1299 = vunpack.c.l.b16 %v1219
      %v1300 = vunpack.c.l.b16 %v1220
      %v1301 = vunpack.c.l.b16 %v1221
      %v1302 = vunpack.c.l.b16 %v1222
      %v1303 = vunpack.c.l.b16 %v1223
      %v1304 = vunpack.c.l.b16 %v1224
      %v1305 = vunpack.c.l.b16 %v1225
      %v1306 = vunpack.c.l.b16 %v1226
      %v1307 = vunpack.c.l.b16 %v1227
      %v1308 = vunpack.c.l.b16 %v1228
      %v1309 = vunpack.c.l.b16 %v1229
      %v1310 = vunpack.c.l.b16 %v1230
      %v1311 = vunpack.c.l.b16 %v1231
      %v1312 = vpack.c.b16 %v1297, %v1296
      %v1313 = vpack.c.b16 %v1299, %v1298
      %v1314 = vpack.c.b16 %v1301, %v1300
      %v1315 = vpack.c.b16 %v1303, %v1302
      %v1316 = vpack.c.b16 %v1305, %v1304
      %v1317 = vpack.c.b16 %v1307, %v1306
      %v1318 = vpack.c.b16 %v1309, %v1308
      %v1319 = vpack.c.b16 %v1311, %v1310
      %1328 = vmatprep.subr.bf16.mxu0 0
      %1329 = vmatpush1.bf16.msra.mxu0 %v1312
      %1330 = vmatprep.subr.bf16.mxu0 0
      %1331 = vmatpush1.bf16.msra.mxu0 %v1313
      %1332 = vmatprep.subr.bf16.mxu0 0
      %1333 = vmatpush1.bf16.msra.mxu0 %v1314
      %1334 = vmatprep.subr.bf16.mxu0 0
      %1335 = vmatpush1.bf16.msra.mxu0 %v1315
      %1336 = vmatprep.subr.bf16.mxu0 0
      %1337 = vmatpush1.bf16.msra.mxu0 %v1316
      %1338 = vmatprep.subr.bf16.mxu0 0
      %1339 = vmatpush1.bf16.msra.mxu0 %v1317
      %1340 = vmatprep.subr.bf16.mxu0 0
      %1341 = vmatpush1.bf16.msra.mxu0 %v1318
      %1342 = vmatprep.subr.bf16.mxu0 0
      %1343 = vmatpush1.bf16.msra.mxu0 %v1319
      %1344 = vmatprep.subr.bf16.mxu0 0
      %1345 = vmatpush1.bf16.msra.mxu0 0
      %1346 = vmatprep.subr.bf16.mxu0 0
      %1347 = vmatpush1.bf16.msra.mxu0 0
      %1348 = vmatprep.subr.bf16.mxu0 0
      %1349 = vmatpush1.bf16.msra.mxu0 0
      %1350 = vmatprep.subr.bf16.mxu0 0
      %1351 = vmatpush1.bf16.msra.mxu0 0
      %1352 = vmatprep.subr.bf16.mxu0 0
      %1353 = vmatpush1.bf16.msra.mxu0 0
      %1354 = vmatprep.subr.bf16.mxu0 0
      %1355 = vmatpush1.bf16.msra.mxu0 0
      %1356 = vmatprep.subr.bf16.mxu0 0
      %1357 = vmatpush1.bf16.msra.mxu0 0
      %1358 = vmatprep.subr.bf16.mxu0 0
      %1359 = vmatpush1.bf16.msra.mxu0 0
      %1360 = vmatprep.mubr.bf16.mxu0 0
      %1361 = vmatmul.mubr.bf16.gmra.mrb[0].mxu0 %v1264
      %v1362 = vpop.f32.mrb[0].mxu0
      %v1363 = vadd.f32 0.0, %v1362
      %v1364 = vpop.f32.mrb[0].mxu0
      %v1365 = vpop.f32.mrb[0].mxu0
      %v1366 = vadd.f32 0.0, %v1365
      %v1367 = vpop.f32.mrb[0].mxu0
      %1368 = vmatprep.mubr.bf16.mxu0 0
      %1369 = vmatmul.mubr.bf16.gmra.mrb[0].mxu0 %v1265
      %v1370 = vpop.f32.mrb[0].mxu0
      %v1371 = vadd.f32 0.0, %v1370
      %v1372 = vpop.f32.mrb[0].mxu0
      %v1373 = vpop.f32.mrb[0].mxu0
      %v1374 = vadd.f32 0.0, %v1373
      %v1375 = vpop.f32.mrb[0].mxu0
      %1376 = vmatprep.mubr.bf16.mxu0 0
      %1377 = vmatmul.mubr.bf16.gmra.mrb[0].mxu0 %v1266
      %v1378 = vpop.f32.mrb[0].mxu0
      %v1379 = vadd.f32 0.0, %v1378
      %v1380 = vpop.f32.mrb[0].mxu0
      %v1381 = vpop.f32.mrb[0].mxu0
      %v1382 = vadd.f32 0.0, %v1381
      %v1383 = vpop.f32.mrb[0].mxu0
      %1384 = vmatprep.mubr.bf16.mxu0 0
      %1385 = vmatmul.mubr.bf16.gmra.mrb[0].mxu0 %v1267
      %v1386 = vpop.f32.mrb[0].mxu0
      %v1387 = vadd.f32 0.0, %v1386
      %v1388 = vpop.f32.mrb[0].mxu0
      %v1389 = vpop.f32.mrb[0].mxu0
      %v1390 = vadd.f32 0.0, %v1389
      %v1391 = vpop.f32.mrb[0].mxu0
      %1392 = vmatprep.mubr.bf16.mxu0 0
      %1393 = vmatmul.mubr.bf16.gmra.mrb[0].mxu0 %v1268
      %v1394 = vpop.f32.mrb[0].mxu0
      %v1395 = vadd.f32 0.0, %v1394
      %v1396 = vpop.f32.mrb[0].mxu0
      %v1397 = vpop.f32.mrb[0].mxu0
      %v1398 = vadd.f32 0.0, %v1397
      %v1399 = vpop.f32.mrb[0].mxu0
      %1400 = vmatprep.mubr.bf16.mxu0 0
      %1401 = vmatmul.mubr.bf16.gmra.mrb[0].mxu0 %v1269
      %v1402 = vpop.f32.mrb[0].mxu0
      %v1403 = vadd.f32 0.0, %v1402
      %v1404 = vpop.f32.mrb[0].mxu0
      %v1405 = vpop.f32.mrb[0].mxu0
      %v1406 = vadd.f32 0.0, %v1405
      %v1407 = vpop.f32.mrb[0].mxu0
      %1408 = vmatprep.mubr.bf16.mxu0 0
      %1409 = vmatmul.mubr.bf16.gmra.mrb[0].mxu0 %v1270
      %v1410 = vpop.f32.mrb[0].mxu0
      %v1411 = vadd.f32 0.0, %v1410
      %v1412 = vpop.f32.mrb[0].mxu0
      %v1413 = vpop.f32.mrb[0].mxu0
      %v1414 = vadd.f32 0.0, %v1413
      %v1415 = vpop.f32.mrb[0].mxu0
      %1416 = vmatprep.mubr.bf16.mxu0 0
      %1417 = vmatmul.mubr.bf16.gmra.mrb[0].mxu0 %v1271
      %v1418 = vpop.f32.mrb[0].mxu0
      %v1419 = vadd.f32 0.0, %v1418
      %v1420 = vpop.f32.mrb[0].mxu0
      %v1421 = vpop.f32.mrb[0].mxu0
      %v1422 = vadd.f32 0.0, %v1421
      %v1423 = vpop.f32.mrb[0].mxu0
      %1424 = vdwg.mxu0
      %v1425 = vadd.f32 %v1179, %v1363
      %v1426 = vadd.f32 %v1180, %v1366
      %v1427 = vadd.f32 %v1181, %v1371
      %v1428 = vadd.f32 %v1182, %v1374
      %v1429 = vadd.f32 %v1183, %v1379
      %v1430 = vadd.f32 %v1184, %v1382
      %v1431 = vadd.f32 %v1185, %v1387
      %v1432 = vadd.f32 %v1186, %v1390
      %v1433 = vadd.f32 %v1187, %v1395
      %v1434 = vadd.f32 %v1188, %v1398
      %v1435 = vadd.f32 %v1189, %v1403
      %v1436 = vadd.f32 %v1190, %v1406
      %v1437 = vadd.f32 %v1191, %v1411
      %v1438 = vadd.f32 %v1192, %v1414
      %v1439 = vadd.f32 %v1193, %v1419
      %v1440 = vadd.f32 %v1194, %v1422
      %v1441 = vld [vmem:[%s1198] sm:$0xf]
      %v1442 = vld [vmem:[%s1198 + $0x4] sm:$0xf]
      %v1443 = vld [vmem:[%s1198 + $0x8] sm:$0x1]
      %v1444 = vld [vmem:[%s1198 + $0xc] sm:$0xf]
      %v1445 = vld [vmem:[%s1198 + $0x10] sm:$0xf]
      %v1446 = vld [vmem:[%s1198 + $0x14] sm:$0x1]
      %v1447 = vld [vmem:[%s1198 + $0x18] sm:$0xf]
      %v1448 = vld [vmem:[%s1198 + $0x1c] sm:$0xf]
      %v1449 = vld [vmem:[%s1198 + $0x20] sm:$0x1]
      %v1450 = vld [vmem:[%s1198 + $0x24] sm:$0xf]
      %v1451 = vld [vmem:[%s1198 + $0x28] sm:$0xf]
      %v1452 = vld [vmem:[%s1198 + $0x2c] sm:$0x1]
      %v1453 = vld [vmem:[%s1198 + $0x30] sm:$0xf]
      %v1454 = vld [vmem:[%s1198 + $0x34] sm:$0xf]
      %v1455 = vld [vmem:[%s1198 + $0x38] sm:$0x1]
      %v1456 = vld [vmem:[%s1198 + $0x3c] sm:$0xf]
      %v1457 = vld [vmem:[%s1198 + $0x40] sm:$0xf]
      %v1458 = vld [vmem:[%s1198 + $0x44] sm:$0x1]
      %v1459 = vld [vmem:[%s1198 + $0x48] sm:$0xf]
      %v1460 = vld [vmem:[%s1198 + $0x4c] sm:$0xf]
      %v1461 = vld [vmem:[%s1198 + $0x50] sm:$0x1]
      %v1462 = vld [vmem:[%s1198 + $0x54] sm:$0xf]
      %v1463 = vld [vmem:[%s1198 + $0x58] sm:$0xf]
      %v1464 = vld [vmem:[%s1198 + $0x5c] sm:$0x1]
      %v1466 = vshrl.u32 %v1441, 16
      %v1468 = vrot.slane %v1466, 4
      %v1469 = vshll.u32 %v1441, 16
      %v1471 = vrot.slane %v1469, 5
      %v1472 = vor.u32 %v1468, %v1471
      %v1473 = vrot.slane %v1472, 4
      %v1475 = vshll.u32 %v1442, 16
      %v1477 = vrot.slane %v1475, 5
      %v1478 = vsel %vm322, %v1473, %v1477
      %v1479 = vshrl.u32 %v1442, 16
      %v1481 = vrot.slane %v1479, 4
      %v1482 = vor.u32 %v1481, %v1477
      %v1483 = vrot.slane %v1482, 4
      %v1485 = vshll.u32 %v1443, 16
      %v1487 = vrot.slane %v1485, 5
      %v1488 = vsel %vm322, %v1483, %v1487
      %v1490 = vshrl.u32 %v1444, 16
      %v1492 = vrot.slane %v1490, 4
      %v1493 = vshll.u32 %v1444, 16
      %v1495 = vrot.slane %v1493, 5
      %v1496 = vor.u32 %v1492, %v1495
      %v1497 = vrot.slane %v1496, 4
      %v1499 = vshll.u32 %v1445, 16
      %v1501 = vrot.slane %v1499, 5
      %v1502 = vsel %vm322, %v1497, %v1501
      %v1503 = vshrl.u32 %v1445, 16
      %v1505 = vrot.slane %v1503, 4
      %v1506 = vor.u32 %v1505, %v1501
      %v1507 = vrot.slane %v1506, 4
      %v1509 = vshll.u32 %v1446, 16
      %v1511 = vrot.slane %v1509, 5
      %v1512 = vsel %vm322, %v1507, %v1511
      %v1514 = vshrl.u32 %v1447, 16
      %v1516 = vrot.slane %v1514, 4
      %v1517 = vshll.u32 %v1447, 16
      %v1519 = vrot.slane %v1517, 5
      %v1520 = vor.u32 %v1516, %v1519
      %v1521 = vrot.slane %v1520, 4
      %v1523 = vshll.u32 %v1448, 16
      %v1525 = vrot.slane %v1523, 5
      %v1526 = vsel %vm322, %v1521, %v1525
      %v1527 = vshrl.u32 %v1448, 16
      %v1529 = vrot.slane %v1527, 4
      %v1530 = vor.u32 %v1529, %v1525
      %v1531 = vrot.slane %v1530, 4
      %v1533 = vshll.u32 %v1449, 16
      %v1535 = vrot.slane %v1533, 5
      %v1536 = vsel %vm322, %v1531, %v1535
      %v1538 = vshrl.u32 %v1450, 16
      %v1540 = vrot.slane %v1538, 4
      %v1541 = vshll.u32 %v1450, 16
      %v1543 = vrot.slane %v1541, 5
      %v1544 = vor.u32 %v1540, %v1543
      %v1545 = vrot.slane %v1544, 4
      %v1547 = vshll.u32 %v1451, 16
      %v1549 = vrot.slane %v1547, 5
      %v1550 = vsel %vm322, %v1545, %v1549
      %v1551 = vshrl.u32 %v1451, 16
      %v1553 = vrot.slane %v1551, 4
      %v1554 = vor.u32 %v1553, %v1549
      %v1555 = vrot.slane %v1554, 4
      %v1557 = vshll.u32 %v1452, 16
      %v1559 = vrot.slane %v1557, 5
      %v1560 = vsel %vm322, %v1555, %v1559
      %v1562 = vshrl.u32 %v1453, 16
      %v1564 = vrot.slane %v1562, 4
      %v1565 = vshll.u32 %v1453, 16
      %v1567 = vrot.slane %v1565, 5
      %v1568 = vor.u32 %v1564, %v1567
      %v1569 = vrot.slane %v1568, 4
      %v1571 = vshll.u32 %v1454, 16
      %v1573 = vrot.slane %v1571, 5
      %v1574 = vsel %vm322, %v1569, %v1573
      %v1575 = vshrl.u32 %v1454, 16
      %v1577 = vrot.slane %v1575, 4
      %v1578 = vor.u32 %v1577, %v1573
      %v1579 = vrot.slane %v1578, 4
      %v1581 = vshll.u32 %v1455, 16
      %v1583 = vrot.slane %v1581, 5
      %v1584 = vsel %vm322, %v1579, %v1583
      %v1586 = vshrl.u32 %v1456, 16
      %v1588 = vrot.slane %v1586, 4
      %v1589 = vshll.u32 %v1456, 16
      %v1591 = vrot.slane %v1589, 5
      %v1592 = vor.u32 %v1588, %v1591
      %v1593 = vrot.slane %v1592, 4
      %v1595 = vshll.u32 %v1457, 16
      %v1597 = vrot.slane %v1595, 5
      %v1598 = vsel %vm322, %v1593, %v1597
      %v1599 = vshrl.u32 %v1457, 16
      %v1601 = vrot.slane %v1599, 4
      %v1602 = vor.u32 %v1601, %v1597
      %v1603 = vrot.slane %v1602, 4
      %v1605 = vshll.u32 %v1458, 16
      %v1607 = vrot.slane %v1605, 5
      %v1608 = vsel %vm322, %v1603, %v1607
      %v1610 = vshrl.u32 %v1459, 16
      %v1612 = vrot.slane %v1610, 4
      %v1613 = vshll.u32 %v1459, 16
      %v1615 = vrot.slane %v1613, 5
      %v1616 = vor.u32 %v1612, %v1615
      %v1617 = vrot.slane %v1616, 4
      %v1619 = vshll.u32 %v1460, 16
      %v1621 = vrot.slane %v1619, 5
      %v1622 = vsel %vm322, %v1617, %v1621
      %v1623 = vshrl.u32 %v1460, 16
      %v1625 = vrot.slane %v1623, 4
      %v1626 = vor.u32 %v1625, %v1621
      %v1627 = vrot.slane %v1626, 4
      %v1629 = vshll.u32 %v1461, 16
      %v1631 = vrot.slane %v1629, 5
      %v1632 = vsel %vm322, %v1627, %v1631
      %v1634 = vshrl.u32 %v1462, 16
      %v1636 = vrot.slane %v1634, 4
      %v1637 = vshll.u32 %v1462, 16
      %v1639 = vrot.slane %v1637, 5
      %v1640 = vor.u32 %v1636, %v1639
      %v1641 = vrot.slane %v1640, 4
      %v1643 = vshll.u32 %v1463, 16
      %v1645 = vrot.slane %v1643, 5
      %v1646 = vsel %vm322, %v1641, %v1645
      %v1647 = vshrl.u32 %v1463, 16
      %v1649 = vrot.slane %v1647, 4
      %v1650 = vor.u32 %v1649, %v1645
      %v1651 = vrot.slane %v1650, 4
      %v1653 = vshll.u32 %v1464, 16
      %v1655 = vrot.slane %v1653, 5
      %v1656 = vsel %vm322, %v1651, %v1655
      %s1657 = scalar_lea.vmem %s260, 256
      %v1658 = vld [vmem:[%s1657] sm:$0xf]
      %v1659 = vld [vmem:[%s1657 + $0x4] sm:$0xf]
      %v1660 = vld [vmem:[%s1657 + $0x8] sm:$0xf]
      %v1661 = vld [vmem:[%s1657 + $0xc] sm:$0xf]
      %v1662 = vld [vmem:[%s1657 + $0x10] sm:$0xf]
      %v1663 = vld [vmem:[%s1657 + $0x14] sm:$0xf]
      %v1664 = vld [vmem:[%s1657 + $0x18] sm:$0xf]
      %v1665 = vld [vmem:[%s1657 + $0x1c] sm:$0xf]
      %v1666 = vld [vmem:[%s1657 + $0x20] sm:$0xf]
      %v1667 = vld [vmem:[%s1657 + $0x24] sm:$0xf]
      %v1668 = vld [vmem:[%s1657 + $0x28] sm:$0xf]
      %v1669 = vld [vmem:[%s1657 + $0x2c] sm:$0xf]
      %v1670 = vld [vmem:[%s1657 + $0x30] sm:$0xf]
      %v1671 = vld [vmem:[%s1657 + $0x34] sm:$0xf]
      %v1672 = vld [vmem:[%s1657 + $0x38] sm:$0xf]
      %v1673 = vld [vmem:[%s1657 + $0x3c] sm:$0xf]
      %v1674 = vunpack.c.l.b16 %v1478
      %v1675 = vunpack.c.l.b16 %v1488
      %v1676 = vunpack.c.l.b16 %v1502
      %v1677 = vunpack.c.l.b16 %v1512
      %v1678 = vunpack.c.l.b16 %v1526
      %v1679 = vunpack.c.l.b16 %v1536
      %v1680 = vunpack.c.l.b16 %v1550
      %v1681 = vunpack.c.l.b16 %v1560
      %v1682 = vunpack.c.l.b16 %v1574
      %v1683 = vunpack.c.l.b16 %v1584
      %v1684 = vunpack.c.l.b16 %v1598
      %v1685 = vunpack.c.l.b16 %v1608
      %v1686 = vunpack.c.l.b16 %v1622
      %v1687 = vunpack.c.l.b16 %v1632
      %v1688 = vunpack.c.l.b16 %v1646
      %v1689 = vunpack.c.l.b16 %v1656
      %v1690 = vpack.c.b16 %v1675, %v1674
      %v1691 = vpack.c.b16 %v1677, %v1676
      %v1692 = vpack.c.b16 %v1679, %v1678
      %v1693 = vpack.c.b16 %v1681, %v1680
      %v1694 = vpack.c.b16 %v1683, %v1682
      %v1695 = vpack.c.b16 %v1685, %v1684
      %v1696 = vpack.c.b16 %v1687, %v1686
      %v1697 = vpack.c.b16 %v1689, %v1688
      %v1722 = vunpack.c.l.b16 %v1658
      %v1723 = vunpack.c.l.b16 %v1659
      %v1724 = vunpack.c.l.b16 %v1660
      %v1725 = vunpack.c.l.b16 %v1661
      %v1726 = vunpack.c.l.b16 %v1662
      %v1727 = vunpack.c.l.b16 %v1663
      %v1728 = vunpack.c.l.b16 %v1664
      %v1729 = vunpack.c.l.b16 %v1665
      %v1730 = vunpack.c.l.b16 %v1666
      %v1731 = vunpack.c.l.b16 %v1667
      %v1732 = vunpack.c.l.b16 %v1668
      %v1733 = vunpack.c.l.b16 %v1669
      %v1734 = vunpack.c.l.b16 %v1670
      %v1735 = vunpack.c.l.b16 %v1671
      %v1736 = vunpack.c.l.b16 %v1672
      %v1737 = vunpack.c.l.b16 %v1673
      %v1738 = vpack.c.b16 %v1723, %v1722
      %v1739 = vpack.c.b16 %v1725, %v1724
      %v1740 = vpack.c.b16 %v1727, %v1726
      %v1741 = vpack.c.b16 %v1729, %v1728
      %v1742 = vpack.c.b16 %v1731, %v1730
      %v1743 = vpack.c.b16 %v1733, %v1732
      %v1744 = vpack.c.b16 %v1735, %v1734
      %v1745 = vpack.c.b16 %v1737, %v1736
      %1754 = vmatprep.subr.bf16.mxu0 0
      %1755 = vmatpush1.bf16.msra.mxu0 %v1738
      %1756 = vmatprep.subr.bf16.mxu0 0
      %1757 = vmatpush1.bf16.msra.mxu0 %v1739
      %1758 = vmatprep.subr.bf16.mxu0 0
      %1759 = vmatpush1.bf16.msra.mxu0 %v1740
      %1760 = vmatprep.subr.bf16.mxu0 0
      %1761 = vmatpush1.bf16.msra.mxu0 %v1741
      %1762 = vmatprep.subr.bf16.mxu0 0
      %1763 = vmatpush1.bf16.msra.mxu0 %v1742
      %1764 = vmatprep.subr.bf16.mxu0 0
      %1765 = vmatpush1.bf16.msra.mxu0 %v1743
      %1766 = vmatprep.subr.bf16.mxu0 0
      %1767 = vmatpush1.bf16.msra.mxu0 %v1744
      %1768 = vmatprep.subr.bf16.mxu0 0
      %1769 = vmatpush1.bf16.msra.mxu0 %v1745
      %1770 = vmatprep.subr.bf16.mxu0 0
      %1771 = vmatpush1.bf16.msra.mxu0 0
      %1772 = vmatprep.subr.bf16.mxu0 0
      %1773 = vmatpush1.bf16.msra.mxu0 0
      %1774 = vmatprep.subr.bf16.mxu0 0
      %1775 = vmatpush1.bf16.msra.mxu0 0
      %1776 = vmatprep.subr.bf16.mxu0 0
      %1777 = vmatpush1.bf16.msra.mxu0 0
      %1778 = vmatprep.subr.bf16.mxu0 0
      %1779 = vmatpush1.bf16.msra.mxu0 0
      %1780 = vmatprep.subr.bf16.mxu0 0
      %1781 = vmatpush1.bf16.msra.mxu0 0
      %1782 = vmatprep.subr.bf16.mxu0 0
      %1783 = vmatpush1.bf16.msra.mxu0 0
      %1784 = vmatprep.subr.bf16.mxu0 0
      %1785 = vmatpush1.bf16.msra.mxu0 0
      %1786 = vmatprep.mubr.bf16.mxu0 0
      %1787 = vmatmul.mubr.bf16.gmra.mrb[0].mxu0 %v1690
      %v1788 = vpop.f32.mrb[0].mxu0
      %v1789 = vadd.f32 0.0, %v1788
      %v1790 = vpop.f32.mrb[0].mxu0
      %v1791 = vpop.f32.mrb[0].mxu0
      %v1792 = vadd.f32 0.0, %v1791
      %v1793 = vpop.f32.mrb[0].mxu0
      %1794 = vmatprep.mubr.bf16.mxu0 0
      %1795 = vmatmul.mubr.bf16.gmra.mrb[0].mxu0 %v1691
      %v1796 = vpop.f32.mrb[0].mxu0
      %v1797 = vadd.f32 0.0, %v1796
      %v1798 = vpop.f32.mrb[0].mxu0
      %v1799 = vpop.f32.mrb[0].mxu0
      %v1800 = vadd.f32 0.0, %v1799
      %v1801 = vpop.f32.mrb[0].mxu0
      %1802 = vmatprep.mubr.bf16.mxu0 0
      %1803 = vmatmul.mubr.bf16.gmra.mrb[0].mxu0 %v1692
      %v1804 = vpop.f32.mrb[0].mxu0
      %v1805 = vadd.f32 0.0, %v1804
      %v1806 = vpop.f32.mrb[0].mxu0
      %v1807 = vpop.f32.mrb[0].mxu0
      %v1808 = vadd.f32 0.0, %v1807
      %v1809 = vpop.f32.mrb[0].mxu0
      %1810 = vmatprep.mubr.bf16.mxu0 0
      %1811 = vmatmul.mubr.bf16.gmra.mrb[0].mxu0 %v1693
      %v1812 = vpop.f32.mrb[0].mxu0
      %v1813 = vadd.f32 0.0, %v1812
      %v1814 = vpop.f32.mrb[0].mxu0
      %v1815 = vpop.f32.mrb[0].mxu0
      %v1816 = vadd.f32 0.0, %v1815
      %v1817 = vpop.f32.mrb[0].mxu0
      %1818 = vmatprep.mubr.bf16.mxu0 0
      %1819 = vmatmul.mubr.bf16.gmra.mrb[0].mxu0 %v1694
      %v1820 = vpop.f32.mrb[0].mxu0
      %v1821 = vadd.f32 0.0, %v1820
      %v1822 = vpop.f32.mrb[0].mxu0
      %v1823 = vpop.f32.mrb[0].mxu0
      %v1824 = vadd.f32 0.0, %v1823
      %v1825 = vpop.f32.mrb[0].mxu0
      %1826 = vmatprep.mubr.bf16.mxu0 0
      %1827 = vmatmul.mubr.bf16.gmra.mrb[0].mxu0 %v1695
      %v1828 = vpop.f32.mrb[0].mxu0
      %v1829 = vadd.f32 0.0, %v1828
      %v1830 = vpop.f32.mrb[0].mxu0
      %v1831 = vpop.f32.mrb[0].mxu0
      %v1832 = vadd.f32 0.0, %v1831
      %v1833 = vpop.f32.mrb[0].mxu0
      %1834 = vmatprep.mubr.bf16.mxu0 0
      %1835 = vmatmul.mubr.bf16.gmra.mrb[0].mxu0 %v1696
      %v1836 = vpop.f32.mrb[0].mxu0
      %v1837 = vadd.f32 0.0, %v1836
      %v1838 = vpop.f32.mrb[0].mxu0
      %v1839 = vpop.f32.mrb[0].mxu0
      %v1840 = vadd.f32 0.0, %v1839
      %v1841 = vpop.f32.mrb[0].mxu0
      %1842 = vmatprep.mubr.bf16.mxu0 0
      %1843 = vmatmul.mubr.bf16.gmra.mrb[0].mxu0 %v1697
      %v1844 = vpop.f32.mrb[0].mxu0
      %v1845 = vadd.f32 0.0, %v1844
      %v1846 = vpop.f32.mrb[0].mxu0
      %v1847 = vpop.f32.mrb[0].mxu0
      %v1848 = vadd.f32 0.0, %v1847
      %v1849 = vpop.f32.mrb[0].mxu0
      %1850 = vdwg.mxu0
      %v1851 = vadd.f32 %v1425, %v1789
      %v1852 = vadd.f32 %v1426, %v1792
      %v1853 = vadd.f32 %v1427, %v1797
      %v1854 = vadd.f32 %v1428, %v1800
      %v1855 = vadd.f32 %v1429, %v1805
      %v1856 = vadd.f32 %v1430, %v1808
      %v1857 = vadd.f32 %v1431, %v1813
      %v1858 = vadd.f32 %v1432, %v1816
      %v1859 = vadd.f32 %v1433, %v1821
      %v1860 = vadd.f32 %v1434, %v1824
      %v1861 = vadd.f32 %v1435, %v1829
      %v1862 = vadd.f32 %v1436, %v1832
      %v1863 = vadd.f32 %v1437, %v1837
      %v1864 = vadd.f32 %v1438, %v1840
      %v1865 = vadd.f32 %v1439, %v1845
      %v1866 = vadd.f32 %v1440, %v1848
      %v1867 = vld [vmem:[%s1198] sm:$0xe]
      %v1868 = vld [vmem:[%s1198 + $0xc] sm:$0xe]
      %v1869 = vld [vmem:[%s1198 + $0x18] sm:$0xe]
      %v1870 = vld [vmem:[%s1198 + $0x24] sm:$0xe]
      %v1871 = vld [vmem:[%s1198 + $0x30] sm:$0xe]
      %v1872 = vld [vmem:[%s1198 + $0x3c] sm:$0xe]
      %v1873 = vld [vmem:[%s1198 + $0x48] sm:$0xe]
      %v1874 = vld [vmem:[%s1198 + $0x54] sm:$0xe]
      %v1899 = vrot.slane %v1867, 5
      %v1900 = vrot.slane %v1899, 4
      %v1901 = vrot.slane %v1442, 5
      %v1902 = vsel %vm928, %v1900, %v1901
      %v1903 = vrot.slane %v1901, 4
      %v1904 = vrot.slane %v1443, 5
      %v1905 = vsel %vm928, %v1903, %v1904
      %v1906 = vrot.slane %v1868, 5
      %v1907 = vrot.slane %v1906, 4
      %v1908 = vrot.slane %v1445, 5
      %v1909 = vsel %vm928, %v1907, %v1908
      %v1910 = vrot.slane %v1908, 4
      %v1911 = vrot.slane %v1446, 5
      %v1912 = vsel %vm928, %v1910, %v1911
      %v1913 = vrot.slane %v1869, 5
      %v1914 = vrot.slane %v1913, 4
      %v1915 = vrot.slane %v1448, 5
      %v1916 = vsel %vm928, %v1914, %v1915
      %v1917 = vrot.slane %v1915, 4
      %v1918 = vrot.slane %v1449, 5
      %v1919 = vsel %vm928, %v1917, %v1918
      %v1920 = vrot.slane %v1870, 5
      %v1921 = vrot.slane %v1920, 4
      %v1922 = vrot.slane %v1451, 5
      %v1923 = vsel %vm928, %v1921, %v1922
      %v1924 = vrot.slane %v1922, 4
      %v1925 = vrot.slane %v1452, 5
      %v1926 = vsel %vm928, %v1924, %v1925
      %v1927 = vrot.slane %v1871, 5
      %v1928 = vrot.slane %v1927, 4
      %v1929 = vrot.slane %v1454, 5
      %v1930 = vsel %vm928, %v1928, %v1929
      %v1931 = vrot.slane %v1929, 4
      %v1932 = vrot.slane %v1455, 5
      %v1933 = vsel %vm928, %v1931, %v1932
      %v1934 = vrot.slane %v1872, 5
      %v1935 = vrot.slane %v1934, 4
      %v1936 = vrot.slane %v1457, 5
      %v1937 = vsel %vm928, %v1935, %v1936
      %v1938 = vrot.slane %v1936, 4
      %v1939 = vrot.slane %v1458, 5
      %v1940 = vsel %vm928, %v1938, %v1939
      %v1941 = vrot.slane %v1873, 5
      %v1942 = vrot.slane %v1941, 4
      %v1943 = vrot.slane %v1460, 5
      %v1944 = vsel %vm928, %v1942, %v1943
      %v1945 = vrot.slane %v1943, 4
      %v1946 = vrot.slane %v1461, 5
      %v1947 = vsel %vm928, %v1945, %v1946
      %v1948 = vrot.slane %v1874, 5
      %v1949 = vrot.slane %v1948, 4
      %v1950 = vrot.slane %v1463, 5
      %v1951 = vsel %vm928, %v1949, %v1950
      %v1952 = vrot.slane %v1950, 4
      %v1953 = vrot.slane %v1464, 5
      %v1954 = vsel %vm928, %v1952, %v1953
      %s1955 = scalar_lea.vmem %s260, 320
      %v1956 = vld [vmem:[%s1955] sm:$0xf]
      %v1957 = vld [vmem:[%s1955 + $0x4] sm:$0xf]
      %v1958 = vld [vmem:[%s1955 + $0x8] sm:$0xf]
      %v1959 = vld [vmem:[%s1955 + $0xc] sm:$0xf]
      %v1960 = vld [vmem:[%s1955 + $0x10] sm:$0xf]
      %v1961 = vld [vmem:[%s1955 + $0x14] sm:$0xf]
      %v1962 = vld [vmem:[%s1955 + $0x18] sm:$0xf]
      %v1963 = vld [vmem:[%s1955 + $0x1c] sm:$0xf]
      %v1964 = vld [vmem:[%s1955 + $0x20] sm:$0xf]
      %v1965 = vld [vmem:[%s1955 + $0x24] sm:$0xf]
      %v1966 = vld [vmem:[%s1955 + $0x28] sm:$0xf]
      %v1967 = vld [vmem:[%s1955 + $0x2c] sm:$0xf]
      %v1968 = vld [vmem:[%s1955 + $0x30] sm:$0xf]
      %v1969 = vld [vmem:[%s1955 + $0x34] sm:$0xf]
      %v1970 = vld [vmem:[%s1955 + $0x38] sm:$0xf]
      %v1971 = vld [vmem:[%s1955 + $0x3c] sm:$0xf]
      %v1972 = vunpack.c.l.b16 %v1902
      %v1973 = vunpack.c.l.b16 %v1905
      %v1974 = vunpack.c.l.b16 %v1909
      %v1975 = vunpack.c.l.b16 %v1912
      %v1976 = vunpack.c.l.b16 %v1916
      %v1977 = vunpack.c.l.b16 %v1919
      %v1978 = vunpack.c.l.b16 %v1923
      %v1979 = vunpack.c.l.b16 %v1926
      %v1980 = vunpack.c.l.b16 %v1930
      %v1981 = vunpack.c.l.b16 %v1933
      %v1982 = vunpack.c.l.b16 %v1937
      %v1983 = vunpack.c.l.b16 %v1940
      %v1984 = vunpack.c.l.b16 %v1944
      %v1985 = vunpack.c.l.b16 %v1947
      %v1986 = vunpack.c.l.b16 %v1951
      %v1987 = vunpack.c.l.b16 %v1954
      %v1988 = vpack.c.b16 %v1973, %v1972
      %v1989 = vpack.c.b16 %v1975, %v1974
      %v1990 = vpack.c.b16 %v1977, %v1976
      %v1991 = vpack.c.b16 %v1979, %v1978
      %v1992 = vpack.c.b16 %v1981, %v1980
      %v1993 = vpack.c.b16 %v1983, %v1982
      %v1994 = vpack.c.b16 %v1985, %v1984
      %v1995 = vpack.c.b16 %v1987, %v1986
      %v2020 = vunpack.c.l.b16 %v1956
      %v2021 = vunpack.c.l.b16 %v1957
      %v2022 = vunpack.c.l.b16 %v1958
      %v2023 = vunpack.c.l.b16 %v1959
      %v2024 = vunpack.c.l.b16 %v1960
      %v2025 = vunpack.c.l.b16 %v1961
      %v2026 = vunpack.c.l.b16 %v1962
      %v2027 = vunpack.c.l.b16 %v1963
      %v2028 = vunpack.c.l.b16 %v1964
      %v2029 = vunpack.c.l.b16 %v1965
      %v2030 = vunpack.c.l.b16 %v1966
      %v2031 = vunpack.c.l.b16 %v1967
      %v2032 = vunpack.c.l.b16 %v1968
      %v2033 = vunpack.c.l.b16 %v1969
      %v2034 = vunpack.c.l.b16 %v1970
      %v2035 = vunpack.c.l.b16 %v1971
      %v2036 = vpack.c.b16 %v2021, %v2020
      %v2037 = vpack.c.b16 %v2023, %v2022
      %v2038 = vpack.c.b16 %v2025, %v2024
      %v2039 = vpack.c.b16 %v2027, %v2026
      %v2040 = vpack.c.b16 %v2029, %v2028
      %v2041 = vpack.c.b16 %v2031, %v2030
      %v2042 = vpack.c.b16 %v2033, %v2032
      %v2043 = vpack.c.b16 %v2035, %v2034
      %2052 = vmatprep.subr.bf16.mxu0 0
      %2053 = vmatpush1.bf16.msra.mxu0 %v2036
      %2054 = vmatprep.subr.bf16.mxu0 0
      %2055 = vmatpush1.bf16.msra.mxu0 %v2037
      %2056 = vmatprep.subr.bf16.mxu0 0
      %2057 = vmatpush1.bf16.msra.mxu0 %v2038
      %2058 = vmatprep.subr.bf16.mxu0 0
      %2059 = vmatpush1.bf16.msra.mxu0 %v2039
      %2060 = vmatprep.subr.bf16.mxu0 0
      %2061 = vmatpush1.bf16.msra.mxu0 %v2040
      %2062 = vmatprep.subr.bf16.mxu0 0
      %2063 = vmatpush1.bf16.msra.mxu0 %v2041
      %2064 = vmatprep.subr.bf16.mxu0 0
      %2065 = vmatpush1.bf16.msra.mxu0 %v2042
      %2066 = vmatprep.subr.bf16.mxu0 0
      %2067 = vmatpush1.bf16.msra.mxu0 %v2043
      %2068 = vmatprep.subr.bf16.mxu0 0
      %2069 = vmatpush1.bf16.msra.mxu0 0
      %2070 = vmatprep.subr.bf16.mxu0 0
      %2071 = vmatpush1.bf16.msra.mxu0 0
      %2072 = vmatprep.subr.bf16.mxu0 0
      %2073 = vmatpush1.bf16.msra.mxu0 0
      %2074 = vmatprep.subr.bf16.mxu0 0
      %2075 = vmatpush1.bf16.msra.mxu0 0
      %2076 = vmatprep.subr.bf16.mxu0 0
      %2077 = vmatpush1.bf16.msra.mxu0 0
      %2078 = vmatprep.subr.bf16.mxu0 0
      %2079 = vmatpush1.bf16.msra.mxu0 0
      %2080 = vmatprep.subr.bf16.mxu0 0
      %2081 = vmatpush1.bf16.msra.mxu0 0
      %2082 = vmatprep.subr.bf16.mxu0 0
      %2083 = vmatpush1.bf16.msra.mxu0 0
      %2084 = vmatprep.mubr.bf16.mxu0 0
      %2085 = vmatmul.mubr.bf16.gmra.mrb[0].mxu0 %v1988
      %v2086 = vpop.f32.mrb[0].mxu0
      %v2087 = vadd.f32 0.0, %v2086
      %v2088 = vpop.f32.mrb[0].mxu0
      %v2089 = vpop.f32.mrb[0].mxu0
      %v2090 = vadd.f32 0.0, %v2089
      %v2091 = vpop.f32.mrb[0].mxu0
      %2092 = vmatprep.mubr.bf16.mxu0 0
      %2093 = vmatmul.mubr.bf16.gmra.mrb[0].mxu0 %v1989
      %v2094 = vpop.f32.mrb[0].mxu0
      %v2095 = vadd.f32 0.0, %v2094
      %v2096 = vpop.f32.mrb[0].mxu0
      %v2097 = vpop.f32.mrb[0].mxu0
      %v2098 = vadd.f32 0.0, %v2097
      %v2099 = vpop.f32.mrb[0].mxu0
      %2100 = vmatprep.mubr.bf16.mxu0 0
      %2101 = vmatmul.mubr.bf16.gmra.mrb[0].mxu0 %v1990
      %v2102 = vpop.f32.mrb[0].mxu0
      %v2103 = vadd.f32 0.0, %v2102
      %v2104 = vpop.f32.mrb[0].mxu0
      %v2105 = vpop.f32.mrb[0].mxu0
      %v2106 = vadd.f32 0.0, %v2105
      %v2107 = vpop.f32.mrb[0].mxu0
      %2108 = vmatprep.mubr.bf16.mxu0 0
      %2109 = vmatmul.mubr.bf16.gmra.mrb[0].mxu0 %v1991
      %v2110 = vpop.f32.mrb[0].mxu0
      %v2111 = vadd.f32 0.0, %v2110
      %v2112 = vpop.f32.mrb[0].mxu0
      %v2113 = vpop.f32.mrb[0].mxu0
      %v2114 = vadd.f32 0.0, %v2113
      %v2115 = vpop.f32.mrb[0].mxu0
      %2116 = vmatprep.mubr.bf16.mxu0 0
      %2117 = vmatmul.mubr.bf16.gmra.mrb[0].mxu0 %v1992
      %v2118 = vpop.f32.mrb[0].mxu0
      %v2119 = vadd.f32 0.0, %v2118
      %v2120 = vpop.f32.mrb[0].mxu0
      %v2121 = vpop.f32.mrb[0].mxu0
      %v2122 = vadd.f32 0.0, %v2121
      %v2123 = vpop.f32.mrb[0].mxu0
      %2124 = vmatprep.mubr.bf16.mxu0 0
      %2125 = vmatmul.mubr.bf16.gmra.mrb[0].mxu0 %v1993
      %v2126 = vpop.f32.mrb[0].mxu0
      %v2127 = vadd.f32 0.0, %v2126
      %v2128 = vpop.f32.mrb[0].mxu0
      %v2129 = vpop.f32.mrb[0].mxu0
      %v2130 = vadd.f32 0.0, %v2129
      %v2131 = vpop.f32.mrb[0].mxu0
      %2132 = vmatprep.mubr.bf16.mxu0 0
      %2133 = vmatmul.mubr.bf16.gmra.mrb[0].mxu0 %v1994
      %v2134 = vpop.f32.mrb[0].mxu0
      %v2135 = vadd.f32 0.0, %v2134
      %v2136 = vpop.f32.mrb[0].mxu0
      %v2137 = vpop.f32.mrb[0].mxu0
      %v2138 = vadd.f32 0.0, %v2137
      %v2139 = vpop.f32.mrb[0].mxu0
      %2140 = vmatprep.mubr.bf16.mxu0 0
      %2141 = vmatmul.mubr.bf16.gmra.mrb[0].mxu0 %v1995
      %v2142 = vpop.f32.mrb[0].mxu0
      %v2143 = vadd.f32 0.0, %v2142
      %v2144 = vpop.f32.mrb[0].mxu0
      %v2145 = vpop.f32.mrb[0].mxu0
      %v2146 = vadd.f32 0.0, %v2145
      %v2147 = vpop.f32.mrb[0].mxu0
      %2148 = vdwg.mxu0
      %v2149 = vadd.f32 %v1851, %v2087
      %v2150 = vadd.f32 %v1852, %v2090
      %v2151 = vadd.f32 %v1853, %v2095
      %v2152 = vadd.f32 %v1854, %v2098
      %v2153 = vadd.f32 %v1855, %v2103
      %v2154 = vadd.f32 %v1856, %v2106
      %v2155 = vadd.f32 %v1857, %v2111
      %v2156 = vadd.f32 %v1858, %v2114
      %v2157 = vadd.f32 %v1859, %v2119
      %v2158 = vadd.f32 %v1860, %v2122
      %v2159 = vadd.f32 %v1861, %v2127
      %v2160 = vadd.f32 %v1862, %v2130
      %v2161 = vadd.f32 %v1863, %v2135
      %v2162 = vadd.f32 %v1864, %v2138
      %v2163 = vadd.f32 %v1865, %v2143
      %v2164 = vadd.f32 %v1866, %v2146
      %s2165 = sadd.s32 %s276, 2
      %s2166 = smul.u32 %s2165, 3
      %s2167 = smul.addr %s2166, 4
      %s2168 = scalar_lea.vmem %s243, %s2167
      %v2169 = vld [vmem:[%s2168] sm:$0xf]
      %v2170 = vld [vmem:[%s2168 + $0x4] sm:$0xf]
      %v2171 = vld [vmem:[%s2168 + $0xc] sm:$0xf]
      %v2172 = vld [vmem:[%s2168 + $0x10] sm:$0xf]
      %v2173 = vld [vmem:[%s2168 + $0x18] sm:$0xf]
      %v2174 = vld [vmem:[%s2168 + $0x1c] sm:$0xf]
      %v2175 = vld [vmem:[%s2168 + $0x24] sm:$0xf]
      %v2176 = vld [vmem:[%s2168 + $0x28] sm:$0xf]
      %v2177 = vld [vmem:[%s2168 + $0x30] sm:$0xf]
      %v2178 = vld [vmem:[%s2168 + $0x34] sm:$0xf]
      %v2179 = vld [vmem:[%s2168 + $0x3c] sm:$0xf]
      %v2180 = vld [vmem:[%s2168 + $0x40] sm:$0xf]
      %v2181 = vld [vmem:[%s2168 + $0x48] sm:$0xf]
      %v2182 = vld [vmem:[%s2168 + $0x4c] sm:$0xf]
      %v2183 = vld [vmem:[%s2168 + $0x54] sm:$0xf]
      %v2184 = vld [vmem:[%s2168 + $0x58] sm:$0xf]
      %s2185 = scalar_lea.vmem %s260, 384
      %v2186 = vld [vmem:[%s2185] sm:$0xf]
      %v2187 = vld [vmem:[%s2185 + $0x4] sm:$0xf]
      %v2188 = vld [vmem:[%s2185 + $0x8] sm:$0xf]
      %v2189 = vld [vmem:[%s2185 + $0xc] sm:$0xf]
      %v2190 = vld [vmem:[%s2185 + $0x10] sm:$0xf]
      %v2191 = vld [vmem:[%s2185 + $0x14] sm:$0xf]
      %v2192 = vld [vmem:[%s2185 + $0x18] sm:$0xf]
      %v2193 = vld [vmem:[%s2185 + $0x1c] sm:$0xf]
      %v2194 = vld [vmem:[%s2185 + $0x20] sm:$0xf]
      %v2195 = vld [vmem:[%s2185 + $0x24] sm:$0xf]
      %v2196 = vld [vmem:[%s2185 + $0x28] sm:$0xf]
      %v2197 = vld [vmem:[%s2185 + $0x2c] sm:$0xf]
      %v2198 = vld [vmem:[%s2185 + $0x30] sm:$0xf]
      %v2199 = vld [vmem:[%s2185 + $0x34] sm:$0xf]
      %v2200 = vld [vmem:[%s2185 + $0x38] sm:$0xf]
      %v2201 = vld [vmem:[%s2185 + $0x3c] sm:$0xf]
      %v2218 = vunpack.c.l.b16 %v2169
      %v2219 = vunpack.c.l.b16 %v2170
      %v2220 = vunpack.c.l.b16 %v2171
      %v2221 = vunpack.c.l.b16 %v2172
      %v2222 = vunpack.c.l.b16 %v2173
      %v2223 = vunpack.c.l.b16 %v2174
      %v2224 = vunpack.c.l.b16 %v2175
      %v2225 = vunpack.c.l.b16 %v2176
      %v2226 = vunpack.c.l.b16 %v2177
      %v2227 = vunpack.c.l.b16 %v2178
      %v2228 = vunpack.c.l.b16 %v2179
      %v2229 = vunpack.c.l.b16 %v2180
      %v2230 = vunpack.c.l.b16 %v2181
      %v2231 = vunpack.c.l.b16 %v2182
      %v2232 = vunpack.c.l.b16 %v2183
      %v2233 = vunpack.c.l.b16 %v2184
      %v2234 = vpack.c.b16 %v2219, %v2218
      %v2235 = vpack.c.b16 %v2221, %v2220
      %v2236 = vpack.c.b16 %v2223, %v2222
      %v2237 = vpack.c.b16 %v2225, %v2224
      %v2238 = vpack.c.b16 %v2227, %v2226
      %v2239 = vpack.c.b16 %v2229, %v2228
      %v2240 = vpack.c.b16 %v2231, %v2230
      %v2241 = vpack.c.b16 %v2233, %v2232
      %v2266 = vunpack.c.l.b16 %v2186
      %v2267 = vunpack.c.l.b16 %v2187
      %v2268 = vunpack.c.l.b16 %v2188
      %v2269 = vunpack.c.l.b16 %v2189
      %v2270 = vunpack.c.l.b16 %v2190
      %v2271 = vunpack.c.l.b16 %v2191
      %v2272 = vunpack.c.l.b16 %v2192
      %v2273 = vunpack.c.l.b16 %v2193
      %v2274 = vunpack.c.l.b16 %v2194
      %v2275 = vunpack.c.l.b16 %v2195
      %v2276 = vunpack.c.l.b16 %v2196
      %v2277 = vunpack.c.l.b16 %v2197
      %v2278 = vunpack.c.l.b16 %v2198
      %v2279 = vunpack.c.l.b16 %v2199
      %v2280 = vunpack.c.l.b16 %v2200
      %v2281 = vunpack.c.l.b16 %v2201
      %v2282 = vpack.c.b16 %v2267, %v2266
      %v2283 = vpack.c.b16 %v2269, %v2268
      %v2284 = vpack.c.b16 %v2271, %v2270
      %v2285 = vpack.c.b16 %v2273, %v2272
      %v2286 = vpack.c.b16 %v2275, %v2274
      %v2287 = vpack.c.b16 %v2277, %v2276
      %v2288 = vpack.c.b16 %v2279, %v2278
      %v2289 = vpack.c.b16 %v2281, %v2280
      %2298 = vmatprep.subr.bf16.mxu0 0
      %2299 = vmatpush1.bf16.msra.mxu0 %v2282
      %2300 = vmatprep.subr.bf16.mxu0 0
      %2301 = vmatpush1.bf16.msra.mxu0 %v2283
      %2302 = vmatprep.subr.bf16.mxu0 0
      %2303 = vmatpush1.bf16.msra.mxu0 %v2284
      %2304 = vmatprep.subr.bf16.mxu0 0
      %2305 = vmatpush1.bf16.msra.mxu0 %v2285
      %2306 = vmatprep.subr.bf16.mxu0 0
      %2307 = vmatpush1.bf16.msra.mxu0 %v2286
      %2308 = vmatprep.subr.bf16.mxu0 0
      %2309 = vmatpush1.bf16.msra.mxu0 %v2287
      %2310 = vmatprep.subr.bf16.mxu0 0
      %2311 = vmatpush1.bf16.msra.mxu0 %v2288
      %2312 = vmatprep.subr.bf16.mxu0 0
      %2313 = vmatpush1.bf16.msra.mxu0 %v2289
      %2314 = vmatprep.subr.bf16.mxu0 0
      %2315 = vmatpush1.bf16.msra.mxu0 0
      %2316 = vmatprep.subr.bf16.mxu0 0
      %2317 = vmatpush1.bf16.msra.mxu0 0
      %2318 = vmatprep.subr.bf16.mxu0 0
      %2319 = vmatpush1.bf16.msra.mxu0 0
      %2320 = vmatprep.subr.bf16.mxu0 0
      %2321 = vmatpush1.bf16.msra.mxu0 0
      %2322 = vmatprep.subr.bf16.mxu0 0
      %2323 = vmatpush1.bf16.msra.mxu0 0
      %2324 = vmatprep.subr.bf16.mxu0 0
      %2325 = vmatpush1.bf16.msra.mxu0 0
      %2326 = vmatprep.subr.bf16.mxu0 0
      %2327 = vmatpush1.bf16.msra.mxu0 0
      %2328 = vmatprep.subr.bf16.mxu0 0
      %2329 = vmatpush1.bf16.msra.mxu0 0
      %2330 = vmatprep.mubr.bf16.mxu0 0
      %2331 = vmatmul.mubr.bf16.gmra.mrb[0].mxu0 %v2234
      %v2332 = vpop.f32.mrb[0].mxu0
      %v2333 = vadd.f32 0.0, %v2332
      %v2334 = vpop.f32.mrb[0].mxu0
      %v2335 = vpop.f32.mrb[0].mxu0
      %v2336 = vadd.f32 0.0, %v2335
      %v2337 = vpop.f32.mrb[0].mxu0
      %2338 = vmatprep.mubr.bf16.mxu0 0
      %2339 = vmatmul.mubr.bf16.gmra.mrb[0].mxu0 %v2235
      %v2340 = vpop.f32.mrb[0].mxu0
      %v2341 = vadd.f32 0.0, %v2340
      %v2342 = vpop.f32.mrb[0].mxu0
      %v2343 = vpop.f32.mrb[0].mxu0
      %v2344 = vadd.f32 0.0, %v2343
      %v2345 = vpop.f32.mrb[0].mxu0
      %2346 = vmatprep.mubr.bf16.mxu0 0
      %2347 = vmatmul.mubr.bf16.gmra.mrb[0].mxu0 %v2236
      %v2348 = vpop.f32.mrb[0].mxu0
      %v2349 = vadd.f32 0.0, %v2348
      %v2350 = vpop.f32.mrb[0].mxu0
      %v2351 = vpop.f32.mrb[0].mxu0
      %v2352 = vadd.f32 0.0, %v2351
      %v2353 = vpop.f32.mrb[0].mxu0
      %2354 = vmatprep.mubr.bf16.mxu0 0
      %2355 = vmatmul.mubr.bf16.gmra.mrb[0].mxu0 %v2237
      %v2356 = vpop.f32.mrb[0].mxu0
      %v2357 = vadd.f32 0.0, %v2356
      %v2358 = vpop.f32.mrb[0].mxu0
      %v2359 = vpop.f32.mrb[0].mxu0
      %v2360 = vadd.f32 0.0, %v2359
      %v2361 = vpop.f32.mrb[0].mxu0
      %2362 = vmatprep.mubr.bf16.mxu0 0
      %2363 = vmatmul.mubr.bf16.gmra.mrb[0].mxu0 %v2238
      %v2364 = vpop.f32.mrb[0].mxu0
      %v2365 = vadd.f32 0.0, %v2364
      %v2366 = vpop.f32.mrb[0].mxu0
      %v2367 = vpop.f32.mrb[0].mxu0
      %v2368 = vadd.f32 0.0, %v2367
      %v2369 = vpop.f32.mrb[0].mxu0
      %2370 = vmatprep.mubr.bf16.mxu0 0
      %2371 = vmatmul.mubr.bf16.gmra.mrb[0].mxu0 %v2239
      %v2372 = vpop.f32.mrb[0].mxu0
      %v2373 = vadd.f32 0.0, %v2372
      %v2374 = vpop.f32.mrb[0].mxu0
      %v2375 = vpop.f32.mrb[0].mxu0
      %v2376 = vadd.f32 0.0, %v2375
      %v2377 = vpop.f32.mrb[0].mxu0
      %2378 = vmatprep.mubr.bf16.mxu0 0
      %2379 = vmatmul.mubr.bf16.gmra.mrb[0].mxu0 %v2240
      %v2380 = vpop.f32.mrb[0].mxu0
      %v2381 = vadd.f32 0.0, %v2380
      %v2382 = vpop.f32.mrb[0].mxu0
      %v2383 = vpop.f32.mrb[0].mxu0
      %v2384 = vadd.f32 0.0, %v2383
      %v2385 = vpop.f32.mrb[0].mxu0
      %2386 = vmatprep.mubr.bf16.mxu0 0
      %2387 = vmatmul.mubr.bf16.gmra.mrb[0].mxu0 %v2241
      %v2388 = vpop.f32.mrb[0].mxu0
      %v2389 = vadd.f32 0.0, %v2388
      %v2390 = vpop.f32.mrb[0].mxu0
      %v2391 = vpop.f32.mrb[0].mxu0
      %v2392 = vadd.f32 0.0, %v2391
      %v2393 = vpop.f32.mrb[0].mxu0
      %2394 = vdwg.mxu0
      %v2395 = vadd.f32 %v2149, %v2333
      %v2396 = vadd.f32 %v2150, %v2336
      %v2397 = vadd.f32 %v2151, %v2341
      %v2398 = vadd.f32 %v2152, %v2344
      %v2399 = vadd.f32 %v2153, %v2349
      %v2400 = vadd.f32 %v2154, %v2352
      %v2401 = vadd.f32 %v2155, %v2357
      %v2402 = vadd.f32 %v2156, %v2360
      %v2403 = vadd.f32 %v2157, %v2365
      %v2404 = vadd.f32 %v2158, %v2368
      %v2405 = vadd.f32 %v2159, %v2373
      %v2406 = vadd.f32 %v2160, %v2376
      %v2407 = vadd.f32 %v2161, %v2381
      %v2408 = vadd.f32 %v2162, %v2384
      %v2409 = vadd.f32 %v2163, %v2389
      %v2410 = vadd.f32 %v2164, %v2392
      %v2411 = vld [vmem:[%s2168] sm:$0xf]
      %v2412 = vld [vmem:[%s2168 + $0x4] sm:$0xf]
      %v2413 = vld [vmem:[%s2168 + $0x8] sm:$0x1]
      %v2414 = vld [vmem:[%s2168 + $0xc] sm:$0xf]
      %v2415 = vld [vmem:[%s2168 + $0x10] sm:$0xf]
      %v2416 = vld [vmem:[%s2168 + $0x14] sm:$0x1]
      %v2417 = vld [vmem:[%s2168 + $0x18] sm:$0xf]
      %v2418 = vld [vmem:[%s2168 + $0x1c] sm:$0xf]
      %v2419 = vld [vmem:[%s2168 + $0x20] sm:$0x1]
      %v2420 = vld [vmem:[%s2168 + $0x24] sm:$0xf]
      %v2421 = vld [vmem:[%s2168 + $0x28] sm:$0xf]
      %v2422 = vld [vmem:[%s2168 + $0x2c] sm:$0x1]
      %v2423 = vld [vmem:[%s2168 + $0x30] sm:$0xf]
      %v2424 = vld [vmem:[%s2168 + $0x34] sm:$0xf]
      %v2425 = vld [vmem:[%s2168 + $0x38] sm:$0x1]
      %v2426 = vld [vmem:[%s2168 + $0x3c] sm:$0xf]
      %v2427 = vld [vmem:[%s2168 + $0x40] sm:$0xf]
      %v2428 = vld [vmem:[%s2168 + $0x44] sm:$0x1]
      %v2429 = vld [vmem:[%s2168 + $0x48] sm:$0xf]
      %v2430 = vld [vmem:[%s2168 + $0x4c] sm:$0xf]
      %v2431 = vld [vmem:[%s2168 + $0x50] sm:$0x1]
      %v2432 = vld [vmem:[%s2168 + $0x54] sm:$0xf]
      %v2433 = vld [vmem:[%s2168 + $0x58] sm:$0xf]
      %v2434 = vld [vmem:[%s2168 + $0x5c] sm:$0x1]
      %v2436 = vshrl.u32 %v2411, 16
      %v2438 = vrot.slane %v2436, 4
      %v2439 = vshll.u32 %v2411, 16
      %v2441 = vrot.slane %v2439, 5
      %v2442 = vor.u32 %v2438, %v2441
      %v2443 = vrot.slane %v2442, 4
      %v2445 = vshll.u32 %v2412, 16
      %v2447 = vrot.slane %v2445, 5
      %v2448 = vsel %vm322, %v2443, %v2447
      %v2449 = vshrl.u32 %v2412, 16
      %v2451 = vrot.slane %v2449, 4
      %v2452 = vor.u32 %v2451, %v2447
      %v2453 = vrot.slane %v2452, 4
      %v2455 = vshll.u32 %v2413, 16
      %v2457 = vrot.slane %v2455, 5
      %v2458 = vsel %vm322, %v2453, %v2457
      %v2460 = vshrl.u32 %v2414, 16
      %v2462 = vrot.slane %v2460, 4
      %v2463 = vshll.u32 %v2414, 16
      %v2465 = vrot.slane %v2463, 5
      %v2466 = vor.u32 %v2462, %v2465
      %v2467 = vrot.slane %v2466, 4
      %v2469 = vshll.u32 %v2415, 16
      %v2471 = vrot.slane %v2469, 5
      %v2472 = vsel %vm322, %v2467, %v2471
      %v2473 = vshrl.u32 %v2415, 16
      %v2475 = vrot.slane %v2473, 4
      %v2476 = vor.u32 %v2475, %v2471
      %v2477 = vrot.slane %v2476, 4
      %v2479 = vshll.u32 %v2416, 16
      %v2481 = vrot.slane %v2479, 5
      %v2482 = vsel %vm322, %v2477, %v2481
      %v2484 = vshrl.u32 %v2417, 16
      %v2486 = vrot.slane %v2484, 4
      %v2487 = vshll.u32 %v2417, 16
      %v2489 = vrot.slane %v2487, 5
      %v2490 = vor.u32 %v2486, %v2489
      %v2491 = vrot.slane %v2490, 4
      %v2493 = vshll.u32 %v2418, 16
      %v2495 = vrot.slane %v2493, 5
      %v2496 = vsel %vm322, %v2491, %v2495
      %v2497 = vshrl.u32 %v2418, 16
      %v2499 = vrot.slane %v2497, 4
      %v2500 = vor.u32 %v2499, %v2495
      %v2501 = vrot.slane %v2500, 4
      %v2503 = vshll.u32 %v2419, 16
      %v2505 = vrot.slane %v2503, 5
      %v2506 = vsel %vm322, %v2501, %v2505
      %v2508 = vshrl.u32 %v2420, 16
      %v2510 = vrot.slane %v2508, 4
      %v2511 = vshll.u32 %v2420, 16
      %v2513 = vrot.slane %v2511, 5
      %v2514 = vor.u32 %v2510, %v2513
      %v2515 = vrot.slane %v2514, 4
      %v2517 = vshll.u32 %v2421, 16
      %v2519 = vrot.slane %v2517, 5
      %v2520 = vsel %vm322, %v2515, %v2519
      %v2521 = vshrl.u32 %v2421, 16
      %v2523 = vrot.slane %v2521, 4
      %v2524 = vor.u32 %v2523, %v2519
      %v2525 = vrot.slane %v2524, 4
      %v2527 = vshll.u32 %v2422, 16
      %v2529 = vrot.slane %v2527, 5
      %v2530 = vsel %vm322, %v2525, %v2529
      %v2532 = vshrl.u32 %v2423, 16
      %v2534 = vrot.slane %v2532, 4
      %v2535 = vshll.u32 %v2423, 16
      %v2537 = vrot.slane %v2535, 5
      %v2538 = vor.u32 %v2534, %v2537
      %v2539 = vrot.slane %v2538, 4
      %v2541 = vshll.u32 %v2424, 16
      %v2543 = vrot.slane %v2541, 5
      %v2544 = vsel %vm322, %v2539, %v2543
      %v2545 = vshrl.u32 %v2424, 16
      %v2547 = vrot.slane %v2545, 4
      %v2548 = vor.u32 %v2547, %v2543
      %v2549 = vrot.slane %v2548, 4
      %v2551 = vshll.u32 %v2425, 16
      %v2553 = vrot.slane %v2551, 5
      %v2554 = vsel %vm322, %v2549, %v2553
      %v2556 = vshrl.u32 %v2426, 16
      %v2558 = vrot.slane %v2556, 4
      %v2559 = vshll.u32 %v2426, 16
      %v2561 = vrot.slane %v2559, 5
      %v2562 = vor.u32 %v2558, %v2561
      %v2563 = vrot.slane %v2562, 4
      %v2565 = vshll.u32 %v2427, 16
      %v2567 = vrot.slane %v2565, 5
      %v2568 = vsel %vm322, %v2563, %v2567
      %v2569 = vshrl.u32 %v2427, 16
      %v2571 = vrot.slane %v2569, 4
      %v2572 = vor.u32 %v2571, %v2567
      %v2573 = vrot.slane %v2572, 4
      %v2575 = vshll.u32 %v2428, 16
      %v2577 = vrot.slane %v2575, 5
      %v2578 = vsel %vm322, %v2573, %v2577
      %v2580 = vshrl.u32 %v2429, 16
      %v2582 = vrot.slane %v2580, 4
      %v2583 = vshll.u32 %v2429, 16
      %v2585 = vrot.slane %v2583, 5
      %v2586 = vor.u32 %v2582, %v2585
      %v2587 = vrot.slane %v2586, 4
      %v2589 = vshll.u32 %v2430, 16
      %v2591 = vrot.slane %v2589, 5
      %v2592 = vsel %vm322, %v2587, %v2591
      %v2593 = vshrl.u32 %v2430, 16
      %v2595 = vrot.slane %v2593, 4
      %v2596 = vor.u32 %v2595, %v2591
      %v2597 = vrot.slane %v2596, 4
      %v2599 = vshll.u32 %v2431, 16
      %v2601 = vrot.slane %v2599, 5
      %v2602 = vsel %vm322, %v2597, %v2601
      %v2604 = vshrl.u32 %v2432, 16
      %v2606 = vrot.slane %v2604, 4
      %v2607 = vshll.u32 %v2432, 16
      %v2609 = vrot.slane %v2607, 5
      %v2610 = vor.u32 %v2606, %v2609
      %v2611 = vrot.slane %v2610, 4
      %v2613 = vshll.u32 %v2433, 16
      %v2615 = vrot.slane %v2613, 5
      %v2616 = vsel %vm322, %v2611, %v2615
      %v2617 = vshrl.u32 %v2433, 16
      %v2619 = vrot.slane %v2617, 4
      %v2620 = vor.u32 %v2619, %v2615
      %v2621 = vrot.slane %v2620, 4
      %v2623 = vshll.u32 %v2434, 16
      %v2625 = vrot.slane %v2623, 5
      %v2626 = vsel %vm322, %v2621, %v2625
      %s2627 = scalar_lea.vmem %s260, 448
      %v2628 = vld [vmem:[%s2627] sm:$0xf]
      %v2629 = vld [vmem:[%s2627 + $0x4] sm:$0xf]
      %v2630 = vld [vmem:[%s2627 + $0x8] sm:$0xf]
      %v2631 = vld [vmem:[%s2627 + $0xc] sm:$0xf]
      %v2632 = vld [vmem:[%s2627 + $0x10] sm:$0xf]
      %v2633 = vld [vmem:[%s2627 + $0x14] sm:$0xf]
      %v2634 = vld [vmem:[%s2627 + $0x18] sm:$0xf]
      %v2635 = vld [vmem:[%s2627 + $0x1c] sm:$0xf]
      %v2636 = vld [vmem:[%s2627 + $0x20] sm:$0xf]
      %v2637 = vld [vmem:[%s2627 + $0x24] sm:$0xf]
      %v2638 = vld [vmem:[%s2627 + $0x28] sm:$0xf]
      %v2639 = vld [vmem:[%s2627 + $0x2c] sm:$0xf]
      %v2640 = vld [vmem:[%s2627 + $0x30] sm:$0xf]
      %v2641 = vld [vmem:[%s2627 + $0x34] sm:$0xf]
      %v2642 = vld [vmem:[%s2627 + $0x38] sm:$0xf]
      %v2643 = vld [vmem:[%s2627 + $0x3c] sm:$0xf]
      %v2644 = vunpack.c.l.b16 %v2448
      %v2645 = vunpack.c.l.b16 %v2458
      %v2646 = vunpack.c.l.b16 %v2472
      %v2647 = vunpack.c.l.b16 %v2482
      %v2648 = vunpack.c.l.b16 %v2496
      %v2649 = vunpack.c.l.b16 %v2506
      %v2650 = vunpack.c.l.b16 %v2520
      %v2651 = vunpack.c.l.b16 %v2530
      %v2652 = vunpack.c.l.b16 %v2544
      %v2653 = vunpack.c.l.b16 %v2554
      %v2654 = vunpack.c.l.b16 %v2568
      %v2655 = vunpack.c.l.b16 %v2578
      %v2656 = vunpack.c.l.b16 %v2592
      %v2657 = vunpack.c.l.b16 %v2602
      %v2658 = vunpack.c.l.b16 %v2616
      %v2659 = vunpack.c.l.b16 %v2626
      %v2660 = vpack.c.b16 %v2645, %v2644
      %v2661 = vpack.c.b16 %v2647, %v2646
      %v2662 = vpack.c.b16 %v2649, %v2648
      %v2663 = vpack.c.b16 %v2651, %v2650
      %v2664 = vpack.c.b16 %v2653, %v2652
      %v2665 = vpack.c.b16 %v2655, %v2654
      %v2666 = vpack.c.b16 %v2657, %v2656
      %v2667 = vpack.c.b16 %v2659, %v2658
      %v2692 = vunpack.c.l.b16 %v2628
      %v2693 = vunpack.c.l.b16 %v2629
      %v2694 = vunpack.c.l.b16 %v2630
      %v2695 = vunpack.c.l.b16 %v2631
      %v2696 = vunpack.c.l.b16 %v2632
      %v2697 = vunpack.c.l.b16 %v2633
      %v2698 = vunpack.c.l.b16 %v2634
      %v2699 = vunpack.c.l.b16 %v2635
      %v2700 = vunpack.c.l.b16 %v2636
      %v2701 = vunpack.c.l.b16 %v2637
      %v2702 = vunpack.c.l.b16 %v2638
      %v2703 = vunpack.c.l.b16 %v2639
      %v2704 = vunpack.c.l.b16 %v2640
      %v2705 = vunpack.c.l.b16 %v2641
      %v2706 = vunpack.c.l.b16 %v2642
      %v2707 = vunpack.c.l.b16 %v2643
      %v2708 = vpack.c.b16 %v2693, %v2692
      %v2709 = vpack.c.b16 %v2695, %v2694
      %v2710 = vpack.c.b16 %v2697, %v2696
      %v2711 = vpack.c.b16 %v2699, %v2698
      %v2712 = vpack.c.b16 %v2701, %v2700
      %v2713 = vpack.c.b16 %v2703, %v2702
      %v2714 = vpack.c.b16 %v2705, %v2704
      %v2715 = vpack.c.b16 %v2707, %v2706
      %2724 = vmatprep.subr.bf16.mxu0 0
      %2725 = vmatpush1.bf16.msra.mxu0 %v2708
      %2726 = vmatprep.subr.bf16.mxu0 0
      %2727 = vmatpush1.bf16.msra.mxu0 %v2709
      %2728 = vmatprep.subr.bf16.mxu0 0
      %2729 = vmatpush1.bf16.msra.mxu0 %v2710
      %2730 = vmatprep.subr.bf16.mxu0 0
      %2731 = vmatpush1.bf16.msra.mxu0 %v2711
      %2732 = vmatprep.subr.bf16.mxu0 0
      %2733 = vmatpush1.bf16.msra.mxu0 %v2712
      %2734 = vmatprep.subr.bf16.mxu0 0
      %2735 = vmatpush1.bf16.msra.mxu0 %v2713
      %2736 = vmatprep.subr.bf16.mxu0 0
      %2737 = vmatpush1.bf16.msra.mxu0 %v2714
      %2738 = vmatprep.subr.bf16.mxu0 0
      %2739 = vmatpush1.bf16.msra.mxu0 %v2715
      %2740 = vmatprep.subr.bf16.mxu0 0
      %2741 = vmatpush1.bf16.msra.mxu0 0
      %2742 = vmatprep.subr.bf16.mxu0 0
      %2743 = vmatpush1.bf16.msra.mxu0 0
      %2744 = vmatprep.subr.bf16.mxu0 0
      %2745 = vmatpush1.bf16.msra.mxu0 0
      %2746 = vmatprep.subr.bf16.mxu0 0
      %2747 = vmatpush1.bf16.msra.mxu0 0
      %2748 = vmatprep.subr.bf16.mxu0 0
      %2749 = vmatpush1.bf16.msra.mxu0 0
      %2750 = vmatprep.subr.bf16.mxu0 0
      %2751 = vmatpush1.bf16.msra.mxu0 0
      %2752 = vmatprep.subr.bf16.mxu0 0
      %2753 = vmatpush1.bf16.msra.mxu0 0
      %2754 = vmatprep.subr.bf16.mxu0 0
      %2755 = vmatpush1.bf16.msra.mxu0 0
      %2756 = vmatprep.mubr.bf16.mxu0 0
      %2757 = vmatmul.mubr.bf16.gmra.mrb[0].mxu0 %v2660
      %v2758 = vpop.f32.mrb[0].mxu0
      %v2759 = vadd.f32 0.0, %v2758
      %v2760 = vpop.f32.mrb[0].mxu0
      %v2761 = vpop.f32.mrb[0].mxu0
      %v2762 = vadd.f32 0.0, %v2761
      %v2763 = vpop.f32.mrb[0].mxu0
      %2764 = vmatprep.mubr.bf16.mxu0 0
      %2765 = vmatmul.mubr.bf16.gmra.mrb[0].mxu0 %v2661
      %v2766 = vpop.f32.mrb[0].mxu0
      %v2767 = vadd.f32 0.0, %v2766
      %v2768 = vpop.f32.mrb[0].mxu0
      %v2769 = vpop.f32.mrb[0].mxu0
      %v2770 = vadd.f32 0.0, %v2769
      %v2771 = vpop.f32.mrb[0].mxu0
      %2772 = vmatprep.mubr.bf16.mxu0 0
      %2773 = vmatmul.mubr.bf16.gmra.mrb[0].mxu0 %v2662
      %v2774 = vpop.f32.mrb[0].mxu0
      %v2775 = vadd.f32 0.0, %v2774
      %v2776 = vpop.f32.mrb[0].mxu0
      %v2777 = vpop.f32.mrb[0].mxu0
      %v2778 = vadd.f32 0.0, %v2777
      %v2779 = vpop.f32.mrb[0].mxu0
      %2780 = vmatprep.mubr.bf16.mxu0 0
      %2781 = vmatmul.mubr.bf16.gmra.mrb[0].mxu0 %v2663
      %v2782 = vpop.f32.mrb[0].mxu0
      %v2783 = vadd.f32 0.0, %v2782
      %v2784 = vpop.f32.mrb[0].mxu0
      %v2785 = vpop.f32.mrb[0].mxu0
      %v2786 = vadd.f32 0.0, %v2785
      %v2787 = vpop.f32.mrb[0].mxu0
      %2788 = vmatprep.mubr.bf16.mxu0 0
      %2789 = vmatmul.mubr.bf16.gmra.mrb[0].mxu0 %v2664
      %v2790 = vpop.f32.mrb[0].mxu0
      %v2791 = vadd.f32 0.0, %v2790
      %v2792 = vpop.f32.mrb[0].mxu0
      %v2793 = vpop.f32.mrb[0].mxu0
      %v2794 = vadd.f32 0.0, %v2793
      %v2795 = vpop.f32.mrb[0].mxu0
      %2796 = vmatprep.mubr.bf16.mxu0 0
      %2797 = vmatmul.mubr.bf16.gmra.mrb[0].mxu0 %v2665
      %v2798 = vpop.f32.mrb[0].mxu0
      %v2799 = vadd.f32 0.0, %v2798
      %v2800 = vpop.f32.mrb[0].mxu0
      %v2801 = vpop.f32.mrb[0].mxu0
      %v2802 = vadd.f32 0.0, %v2801
      %v2803 = vpop.f32.mrb[0].mxu0
      %2804 = vmatprep.mubr.bf16.mxu0 0
      %2805 = vmatmul.mubr.bf16.gmra.mrb[0].mxu0 %v2666
      %v2806 = vpop.f32.mrb[0].mxu0
      %v2807 = vadd.f32 0.0, %v2806
      %v2808 = vpop.f32.mrb[0].mxu0
      %v2809 = vpop.f32.mrb[0].mxu0
      %v2810 = vadd.f32 0.0, %v2809
      %v2811 = vpop.f32.mrb[0].mxu0
      %2812 = vmatprep.mubr.bf16.mxu0 0
      %2813 = vmatmul.mubr.bf16.gmra.mrb[0].mxu0 %v2667
      %v2814 = vpop.f32.mrb[0].mxu0
      %v2815 = vadd.f32 0.0, %v2814
      %v2816 = vpop.f32.mrb[0].mxu0
      %v2817 = vpop.f32.mrb[0].mxu0
      %v2818 = vadd.f32 0.0, %v2817
      %v2819 = vpop.f32.mrb[0].mxu0
      %2820 = vdwg.mxu0
      %v2821 = vadd.f32 %v2395, %v2759
      %v2822 = vadd.f32 %v2396, %v2762
      %v2823 = vadd.f32 %v2397, %v2767
      %v2824 = vadd.f32 %v2398, %v2770
      %v2825 = vadd.f32 %v2399, %v2775
      %v2826 = vadd.f32 %v2400, %v2778
      %v2827 = vadd.f32 %v2401, %v2783
      %v2828 = vadd.f32 %v2402, %v2786
      %v2829 = vadd.f32 %v2403, %v2791
      %v2830 = vadd.f32 %v2404, %v2794
      %v2831 = vadd.f32 %v2405, %v2799
      %v2832 = vadd.f32 %v2406, %v2802
      %v2833 = vadd.f32 %v2407, %v2807
      %v2834 = vadd.f32 %v2408, %v2810
      %v2835 = vadd.f32 %v2409, %v2815
      %v2836 = vadd.f32 %v2410, %v2818
      %v2837 = vld [vmem:[%s2168] sm:$0xe]
      %v2838 = vld [vmem:[%s2168 + $0xc] sm:$0xe]
      %v2839 = vld [vmem:[%s2168 + $0x18] sm:$0xe]
      %v2840 = vld [vmem:[%s2168 + $0x24] sm:$0xe]
      %v2841 = vld [vmem:[%s2168 + $0x30] sm:$0xe]
      %v2842 = vld [vmem:[%s2168 + $0x3c] sm:$0xe]
      %v2843 = vld [vmem:[%s2168 + $0x48] sm:$0xe]
      %v2844 = vld [vmem:[%s2168 + $0x54] sm:$0xe]
      %v2869 = vrot.slane %v2837, 5
      %v2870 = vrot.slane %v2869, 4
      %v2871 = vrot.slane %v2412, 5
      %v2872 = vsel %vm928, %v2870, %v2871
      %v2873 = vrot.slane %v2871, 4
      %v2874 = vrot.slane %v2413, 5
      %v2875 = vsel %vm928, %v2873, %v2874
      %v2876 = vrot.slane %v2838, 5
      %v2877 = vrot.slane %v2876, 4
      %v2878 = vrot.slane %v2415, 5
      %v2879 = vsel %vm928, %v2877, %v2878
      %v2880 = vrot.slane %v2878, 4
      %v2881 = vrot.slane %v2416, 5
      %v2882 = vsel %vm928, %v2880, %v2881
      %v2883 = vrot.slane %v2839, 5
      %v2884 = vrot.slane %v2883, 4
      %v2885 = vrot.slane %v2418, 5
      %v2886 = vsel %vm928, %v2884, %v2885
      %v2887 = vrot.slane %v2885, 4
      %v2888 = vrot.slane %v2419, 5
      %v2889 = vsel %vm928, %v2887, %v2888
      %v2890 = vrot.slane %v2840, 5
      %v2891 = vrot.slane %v2890, 4
      %v2892 = vrot.slane %v2421, 5
      %v2893 = vsel %vm928, %v2891, %v2892
      %v2894 = vrot.slane %v2892, 4
      %v2895 = vrot.slane %v2422, 5
      %v2896 = vsel %vm928, %v2894, %v2895
      %v2897 = vrot.slane %v2841, 5
      %v2898 = vrot.slane %v2897, 4
      %v2899 = vrot.slane %v2424, 5
      %v2900 = vsel %vm928, %v2898, %v2899
      %v2901 = vrot.slane %v2899, 4
      %v2902 = vrot.slane %v2425, 5
      %v2903 = vsel %vm928, %v2901, %v2902
      %v2904 = vrot.slane %v2842, 5
      %v2905 = vrot.slane %v2904, 4
      %v2906 = vrot.slane %v2427, 5
      %v2907 = vsel %vm928, %v2905, %v2906
      %v2908 = vrot.slane %v2906, 4
      %v2909 = vrot.slane %v2428, 5
      %v2910 = vsel %vm928, %v2908, %v2909
      %v2911 = vrot.slane %v2843, 5
      %v2912 = vrot.slane %v2911, 4
      %v2913 = vrot.slane %v2430, 5
      %v2914 = vsel %vm928, %v2912, %v2913
      %v2915 = vrot.slane %v2913, 4
      %v2916 = vrot.slane %v2431, 5
      %v2917 = vsel %vm928, %v2915, %v2916
      %v2918 = vrot.slane %v2844, 5
      %v2919 = vrot.slane %v2918, 4
      %v2920 = vrot.slane %v2433, 5
      %v2921 = vsel %vm928, %v2919, %v2920
      %v2922 = vrot.slane %v2920, 4
      %v2923 = vrot.slane %v2434, 5
      %v2924 = vsel %vm928, %v2922, %v2923
      %s2925 = scalar_lea.vmem %s260, 512
      %v2926 = vld [vmem:[%s2925] sm:$0xf]
      %v2927 = vld [vmem:[%s2925 + $0x4] sm:$0xf]
      %v2928 = vld [vmem:[%s2925 + $0x8] sm:$0xf]
      %v2929 = vld [vmem:[%s2925 + $0xc] sm:$0xf]
      %v2930 = vld [vmem:[%s2925 + $0x10] sm:$0xf]
      %v2931 = vld [vmem:[%s2925 + $0x14] sm:$0xf]
      %v2932 = vld [vmem:[%s2925 + $0x18] sm:$0xf]
      %v2933 = vld [vmem:[%s2925 + $0x1c] sm:$0xf]
      %v2934 = vld [vmem:[%s2925 + $0x20] sm:$0xf]
      %v2935 = vld [vmem:[%s2925 + $0x24] sm:$0xf]
      %v2936 = vld [vmem:[%s2925 + $0x28] sm:$0xf]
      %v2937 = vld [vmem:[%s2925 + $0x2c] sm:$0xf]
      %v2938 = vld [vmem:[%s2925 + $0x30] sm:$0xf]
      %v2939 = vld [vmem:[%s2925 + $0x34] sm:$0xf]
      %v2940 = vld [vmem:[%s2925 + $0x38] sm:$0xf]
      %v2941 = vld [vmem:[%s2925 + $0x3c] sm:$0xf]
      %v2942 = vunpack.c.l.b16 %v2872
      %v2943 = vunpack.c.l.b16 %v2875
      %v2944 = vunpack.c.l.b16 %v2879
      %v2945 = vunpack.c.l.b16 %v2882
      %v2946 = vunpack.c.l.b16 %v2886
      %v2947 = vunpack.c.l.b16 %v2889
      %v2948 = vunpack.c.l.b16 %v2893
      %v2949 = vunpack.c.l.b16 %v2896
      %v2950 = vunpack.c.l.b16 %v2900
      %v2951 = vunpack.c.l.b16 %v2903
      %v2952 = vunpack.c.l.b16 %v2907
      %v2953 = vunpack.c.l.b16 %v2910
      %v2954 = vunpack.c.l.b16 %v2914
      %v2955 = vunpack.c.l.b16 %v2917
      %v2956 = vunpack.c.l.b16 %v2921
      %v2957 = vunpack.c.l.b16 %v2924
      %v2958 = vpack.c.b16 %v2943, %v2942
      %v2959 = vpack.c.b16 %v2945, %v2944
      %v2960 = vpack.c.b16 %v2947, %v2946
      %v2961 = vpack.c.b16 %v2949, %v2948
      %v2962 = vpack.c.b16 %v2951, %v2950
      %v2963 = vpack.c.b16 %v2953, %v2952
      %v2964 = vpack.c.b16 %v2955, %v2954
      %v2965 = vpack.c.b16 %v2957, %v2956
      %v2990 = vunpack.c.l.b16 %v2926
      %v2991 = vunpack.c.l.b16 %v2927
      %v2992 = vunpack.c.l.b16 %v2928
      %v2993 = vunpack.c.l.b16 %v2929
      %v2994 = vunpack.c.l.b16 %v2930
      %v2995 = vunpack.c.l.b16 %v2931
      %v2996 = vunpack.c.l.b16 %v2932
      %v2997 = vunpack.c.l.b16 %v2933
      %v2998 = vunpack.c.l.b16 %v2934
      %v2999 = vunpack.c.l.b16 %v2935
      %v3000 = vunpack.c.l.b16 %v2936
      %v3001 = vunpack.c.l.b16 %v2937
      %v3002 = vunpack.c.l.b16 %v2938
      %v3003 = vunpack.c.l.b16 %v2939
      %v3004 = vunpack.c.l.b16 %v2940
      %v3005 = vunpack.c.l.b16 %v2941
      %v3006 = vpack.c.b16 %v2991, %v2990
      %v3007 = vpack.c.b16 %v2993, %v2992
      %v3008 = vpack.c.b16 %v2995, %v2994
      %v3009 = vpack.c.b16 %v2997, %v2996
      %v3010 = vpack.c.b16 %v2999, %v2998
      %v3011 = vpack.c.b16 %v3001, %v3000
      %v3012 = vpack.c.b16 %v3003, %v3002
      %v3013 = vpack.c.b16 %v3005, %v3004
      %3022 = vmatprep.subr.bf16.mxu0 0
      %3023 = vmatpush1.bf16.msra.mxu0 %v3006
      %3024 = vmatprep.subr.bf16.mxu0 0
      %3025 = vmatpush1.bf16.msra.mxu0 %v3007
      %3026 = vmatprep.subr.bf16.mxu0 0
      %3027 = vmatpush1.bf16.msra.mxu0 %v3008
      %3028 = vmatprep.subr.bf16.mxu0 0
      %3029 = vmatpush1.bf16.msra.mxu0 %v3009
      %3030 = vmatprep.subr.bf16.mxu0 0
      %3031 = vmatpush1.bf16.msra.mxu0 %v3010
      %3032 = vmatprep.subr.bf16.mxu0 0
      %3033 = vmatpush1.bf16.msra.mxu0 %v3011
      %3034 = vmatprep.subr.bf16.mxu0 0
      %3035 = vmatpush1.bf16.msra.mxu0 %v3012
      %3036 = vmatprep.subr.bf16.mxu0 0
      %3037 = vmatpush1.bf16.msra.mxu0 %v3013
      %3038 = vmatprep.subr.bf16.mxu0 0
      %3039 = vmatpush1.bf16.msra.mxu0 0
      %3040 = vmatprep.subr.bf16.mxu0 0
      %3041 = vmatpush1.bf16.msra.mxu0 0
      %3042 = vmatprep.subr.bf16.mxu0 0
      %3043 = vmatpush1.bf16.msra.mxu0 0
      %3044 = vmatprep.subr.bf16.mxu0 0
      %3045 = vmatpush1.bf16.msra.mxu0 0
      %3046 = vmatprep.subr.bf16.mxu0 0
      %3047 = vmatpush1.bf16.msra.mxu0 0
      %3048 = vmatprep.subr.bf16.mxu0 0
      %3049 = vmatpush1.bf16.msra.mxu0 0
      %3050 = vmatprep.subr.bf16.mxu0 0
      %3051 = vmatpush1.bf16.msra.mxu0 0
      %3052 = vmatprep.subr.bf16.mxu0 0
      %3053 = vmatpush1.bf16.msra.mxu0 0
      %3054 = vmatprep.mubr.bf16.mxu0 0
      %3055 = vmatmul.mubr.bf16.gmra.mrb[0].mxu0 %v2958
      %v3056 = vpop.f32.mrb[0].mxu0
      %v3057 = vadd.f32 0.0, %v3056
      %v3058 = vpop.f32.mrb[0].mxu0
      %v3059 = vpop.f32.mrb[0].mxu0
      %v3060 = vadd.f32 0.0, %v3059
      %v3061 = vpop.f32.mrb[0].mxu0
      %3062 = vmatprep.mubr.bf16.mxu0 0
      %3063 = vmatmul.mubr.bf16.gmra.mrb[0].mxu0 %v2959
      %v3064 = vpop.f32.mrb[0].mxu0
      %v3065 = vadd.f32 0.0, %v3064
      %v3066 = vpop.f32.mrb[0].mxu0
      %v3067 = vpop.f32.mrb[0].mxu0
      %v3068 = vadd.f32 0.0, %v3067
      %v3069 = vpop.f32.mrb[0].mxu0
      %3070 = vmatprep.mubr.bf16.mxu0 0
      %3071 = vmatmul.mubr.bf16.gmra.mrb[0].mxu0 %v2960
      %v3072 = vpop.f32.mrb[0].mxu0
      %v3073 = vadd.f32 0.0, %v3072
      %v3074 = vpop.f32.mrb[0].mxu0
      %v3075 = vpop.f32.mrb[0].mxu0
      %v3076 = vadd.f32 0.0, %v3075
      %v3077 = vpop.f32.mrb[0].mxu0
      %3078 = vmatprep.mubr.bf16.mxu0 0
      %3079 = vmatmul.mubr.bf16.gmra.mrb[0].mxu0 %v2961
      %v3080 = vpop.f32.mrb[0].mxu0
      %v3081 = vadd.f32 0.0, %v3080
      %v3082 = vpop.f32.mrb[0].mxu0
      %v3083 = vpop.f32.mrb[0].mxu0
      %v3084 = vadd.f32 0.0, %v3083
      %v3085 = vpop.f32.mrb[0].mxu0
      %3086 = vmatprep.mubr.bf16.mxu0 0
      %3087 = vmatmul.mubr.bf16.gmra.mrb[0].mxu0 %v2962
      %v3088 = vpop.f32.mrb[0].mxu0
      %v3089 = vadd.f32 0.0, %v3088
      %v3090 = vpop.f32.mrb[0].mxu0
      %v3091 = vpop.f32.mrb[0].mxu0
      %v3092 = vadd.f32 0.0, %v3091
      %v3093 = vpop.f32.mrb[0].mxu0
      %3094 = vmatprep.mubr.bf16.mxu0 0
      %3095 = vmatmul.mubr.bf16.gmra.mrb[0].mxu0 %v2963
      %v3096 = vpop.f32.mrb[0].mxu0
      %v3097 = vadd.f32 0.0, %v3096
      %v3098 = vpop.f32.mrb[0].mxu0
      %v3099 = vpop.f32.mrb[0].mxu0
      %v3100 = vadd.f32 0.0, %v3099
      %v3101 = vpop.f32.mrb[0].mxu0
      %3102 = vmatprep.mubr.bf16.mxu0 0
      %3103 = vmatmul.mubr.bf16.gmra.mrb[0].mxu0 %v2964
      %v3104 = vpop.f32.mrb[0].mxu0
      %v3105 = vadd.f32 0.0, %v3104
      %v3106 = vpop.f32.mrb[0].mxu0
      %v3107 = vpop.f32.mrb[0].mxu0
      %v3108 = vadd.f32 0.0, %v3107
      %v3109 = vpop.f32.mrb[0].mxu0
      %3110 = vmatprep.mubr.bf16.mxu0 0
      %3111 = vmatmul.mubr.bf16.gmra.mrb[0].mxu0 %v2965
      %v3112 = vpop.f32.mrb[0].mxu0
      %v3113 = vadd.f32 0.0, %v3112
      %v3114 = vpop.f32.mrb[0].mxu0
      %v3115 = vpop.f32.mrb[0].mxu0
      %v3116 = vadd.f32 0.0, %v3115
      %v3117 = vpop.f32.mrb[0].mxu0
      %3118 = vdwg.mxu0
      %v3119 = vadd.f32 %v2821, %v3057
      %v3120 = vadd.f32 %v2822, %v3060
      %v3121 = vadd.f32 %v2823, %v3065
      %v3122 = vadd.f32 %v2824, %v3068
      %v3123 = vadd.f32 %v2825, %v3073
      %v3124 = vadd.f32 %v2826, %v3076
      %v3125 = vadd.f32 %v2827, %v3081
      %v3126 = vadd.f32 %v2828, %v3084
      %v3127 = vadd.f32 %v2829, %v3089
      %v3128 = vadd.f32 %v2830, %v3092
      %v3129 = vadd.f32 %v2831, %v3097
      %v3130 = vadd.f32 %v2832, %v3100
      %v3131 = vadd.f32 %v2833, %v3105
      %v3132 = vadd.f32 %v2834, %v3108
      %v3133 = vadd.f32 %v2835, %v3113
      %v3134 = vadd.f32 %v2836, %v3116
      %v3135 = vunpack.c.l.bf16 %v1441
      %v3136 = vunpack.c.l.bf16 %v1442
      %v3137 = vunpack.c.l.bf16 %v1443
      %v3138 = vunpack.c.l.bf16 %v1444
      %v3139 = vunpack.c.l.bf16 %v1445
      %v3140 = vunpack.c.l.bf16 %v1446
      %v3141 = vunpack.c.l.bf16 %v1447
      %v3142 = vunpack.c.l.bf16 %v1448
      %v3143 = vunpack.c.l.bf16 %v1449
      %v3144 = vunpack.c.l.bf16 %v1450
      %v3145 = vunpack.c.l.bf16 %v1451
      %v3146 = vunpack.c.l.bf16 %v1452
      %v3147 = vunpack.c.l.bf16 %v1453
      %v3148 = vunpack.c.l.bf16 %v1454
      %v3149 = vunpack.c.l.bf16 %v1455
      %v3150 = vunpack.c.l.bf16 %v1456
      %v3151 = vunpack.c.l.bf16 %v1457
      %v3152 = vunpack.c.l.bf16 %v1458
      %v3153 = vunpack.c.l.bf16 %v1459
      %v3154 = vunpack.c.l.bf16 %v1460
      %v3155 = vunpack.c.l.bf16 %v1461
      %v3156 = vunpack.c.l.bf16 %v1462
      %v3157 = vunpack.c.l.bf16 %v1463
      %v3158 = vunpack.c.l.bf16 %v1464
      %v3159 = vld [vmem:[%s255] sm:$0xf]
      %v3160 = vld [vmem:[%s255 + $0x4] sm:$0xf]
      %v3164 = vunpack.c.l.s4 1966171168
      %v3165 = vunpack.c.0.s8 %v3164
      %v3166 = vlaneseq
      %v3167 = vshrl.u32 %v3166, 7
      %v3168 = vsub.s32 %v3165, %v3167
      %v3169 = vrot.slane %v3159, %v3168
      %v3170 = vcombine.high %v3169, %v3169
      %v3172 = vunpack.c.l.s4 1966171168
      %v3173 = vunpack.c.0.s8 %v3172
      %v3174 = vlaneseq
      %v3175 = vshrl.u32 %v3174, 7
      %v3176 = vsub.s32 %v3173, %v3175
      %v3177 = vrot.slane %v3169, %v3176
      %v3179 = vunpack.c.l.s4 1966171168
      %v3180 = vunpack.c.0.s8 %v3179
      %v3181 = vlaneseq
      %v3182 = vshrl.u32 %v3181, 7
      %v3183 = vsub.s32 %v3180, %v3182
      %v3184 = vrot.slane %v3170, %v3183
      %v3185 = vcombine.high %v3177, %v3177
      %v3186 = vcombine.high %v3184, %v3184
      %v3188 = vunpack.c.l.s4 1966171168
      %v3189 = vunpack.c.0.s8 %v3188
      %v3190 = vlaneseq
      %v3191 = vshrl.u32 %v3190, 7
      %v3192 = vsub.s32 %v3189, %v3191
      %v3193 = vrot.slane %v3160, %v3192
      %v3194 = vcombine.high %v3193, %v3193
      %v3196 = vunpack.c.l.s4 1966171168
      %v3197 = vunpack.c.0.s8 %v3196
      %v3198 = vlaneseq
      %v3199 = vshrl.u32 %v3198, 7
      %v3200 = vsub.s32 %v3197, %v3199
      %v3201 = vrot.slane %v3193, %v3200
      %v3203 = vunpack.c.l.s4 1966171168
      %v3204 = vunpack.c.0.s8 %v3203
      %v3205 = vlaneseq
      %v3206 = vshrl.u32 %v3205, 7
      %v3207 = vsub.s32 %v3204, %v3206
      %v3208 = vrot.slane %v3194, %v3207
      %v3209 = vcombine.high %v3201, %v3201
      %v3210 = vcombine.high %v3208, %v3208
      %v3211 = vlaneseq
      %v3212 = vshrl.u32 %v3211, 7
      %v3213 = vsub.s32 0, %v3212
      %v3214 = vrot.slane %v3177, %v3213
      %v3215 = vlaneseq
      %v3216 = vshrl.u32 %v3215, 7
      %v3217 = vsub.s32 0, %v3216
      %v3218 = vrot.slane %v3184, %v3217
      %v3219 = vlaneseq
      %v3220 = vshrl.u32 %v3219, 7
      %v3221 = vsub.s32 0, %v3220
      %v3222 = vrot.slane %v3185, %v3221
      %v3223 = vlaneseq
      %v3224 = vshrl.u32 %v3223, 7
      %v3225 = vsub.s32 0, %v3224
      %v3226 = vrot.slane %v3186, %v3225
      %v3227 = vlaneseq
      %v3228 = vshrl.u32 %v3227, 7
      %v3229 = vsub.s32 0, %v3228
      %v3230 = vrot.slane %v3201, %v3229
      %v3231 = vlaneseq
      %v3232 = vshrl.u32 %v3231, 7
      %v3233 = vsub.s32 0, %v3232
      %v3234 = vrot.slane %v3208, %v3233
      %v3235 = vlaneseq
      %v3236 = vshrl.u32 %v3235, 7
      %v3237 = vsub.s32 0, %v3236
      %v3238 = vrot.slane %v3209, %v3237
      %v3239 = vlaneseq
      %v3240 = vshrl.u32 %v3239, 7
      %v3241 = vsub.s32 0, %v3240
      %v3242 = vrot.slane %v3210, %v3241
      %v3243 = vcombine.low %v3214, %v3218
      %v3244 = vcombine.low %v3222, %v3226
      %v3245 = vcombine.low %v3230, %v3234
      %v3246 = vcombine.low %v3238, %v3242
      %vm3247 = vcmask 1040384
      %v3248 = vrot.slane %v3243, 7
      %v3249 = vrot.slane %v3244, 7
      %v3250 = vsel %vm3247, %v3248, %v3249
      %v3251 = vrot.slane %v3245, 7
      %v3252 = vrot.slane %v3246, 7
      %v3253 = vsel %vm3247, %v3251, %v3252
      %v3260 = vadd.f32 %v3135, %v3248
      %v3261 = vadd.f32 %v3136, %v3250
      %v3262 = vadd.f32 %v3137, %v3249
      %v3263 = vadd.f32 %v3138, %v3248
      %v3264 = vadd.f32 %v3139, %v3250
      %v3265 = vadd.f32 %v3140, %v3249
      %v3266 = vadd.f32 %v3141, %v3248
      %v3267 = vadd.f32 %v3142, %v3250
      %v3268 = vadd.f32 %v3143, %v3249
      %v3269 = vadd.f32 %v3144, %v3248
      %v3270 = vadd.f32 %v3145, %v3250
      %v3271 = vadd.f32 %v3146, %v3249
      %v3272 = vadd.f32 %v3147, %v3251
      %v3273 = vadd.f32 %v3148, %v3253
      %v3274 = vadd.f32 %v3149, %v3252
      %v3275 = vadd.f32 %v3150, %v3251
      %v3276 = vadd.f32 %v3151, %v3253
      %v3277 = vadd.f32 %v3152, %v3252
      %v3278 = vadd.f32 %v3153, %v3251
      %v3279 = vadd.f32 %v3154, %v3253
      %v3280 = vadd.f32 %v3155, %v3252
      %v3281 = vadd.f32 %v3156, %v3251
      %v3282 = vadd.f32 %v3157, %v3253
      %v3283 = vadd.f32 %v3158, %v3252
      %v3284 = vxor.u32 %v3260, 2147483648
      %v3285 = vxor.u32 %v3261, 2147483648
      %v3286 = vxor.u32 %v3262, 2147483648
      %v3287 = vxor.u32 %v3263, 2147483648
      %v3288 = vxor.u32 %v3264, 2147483648
      %v3289 = vxor.u32 %v3265, 2147483648
      %v3290 = vxor.u32 %v3266, 2147483648
      %v3291 = vxor.u32 %v3267, 2147483648
      %v3292 = vxor.u32 %v3268, 2147483648
      %v3293 = vxor.u32 %v3269, 2147483648
      %v3294 = vxor.u32 %v3270, 2147483648
      %v3295 = vxor.u32 %v3271, 2147483648
      %v3296 = vxor.u32 %v3272, 2147483648
      %v3297 = vxor.u32 %v3273, 2147483648
      %v3298 = vxor.u32 %v3274, 2147483648
      %v3299 = vxor.u32 %v3275, 2147483648
      %v3300 = vxor.u32 %v3276, 2147483648
      %v3301 = vxor.u32 %v3277, 2147483648
      %v3302 = vxor.u32 %v3278, 2147483648
      %v3303 = vxor.u32 %v3279, 2147483648
      %v3304 = vxor.u32 %v3280, 2147483648
      %v3305 = vxor.u32 %v3281, 2147483648
      %v3306 = vxor.u32 %v3282, 2147483648
      %v3307 = vxor.u32 %v3283, 2147483648
      %v3308 = vmul.f32 %v3284, 1.442695
      %v3309 = vpow.pop %v3308
      %v3310 = vmul.f32 %v3285, 1.442695
      %v3311 = vpow.pop %v3310
      %v3312 = vmul.f32 %v3286, 1.442695
      %v3313 = vpow.pop %v3312
      %v3314 = vmul.f32 %v3287, 1.442695
      %v3315 = vpow.pop %v3314
      %v3316 = vmul.f32 %v3288, 1.442695
      %v3317 = vpow.pop %v3316
      %v3318 = vmul.f32 %v3289, 1.442695
      %v3319 = vpow.pop %v3318
      %v3320 = vmul.f32 %v3290, 1.442695
      %v3321 = vpow.pop %v3320
      %v3322 = vmul.f32 %v3291, 1.442695
      %v3323 = vpow.pop %v3322
      %v3324 = vmul.f32 %v3292, 1.442695
      %v3325 = vpow.pop %v3324
      %v3326 = vmul.f32 %v3293, 1.442695
      %v3327 = vpow.pop %v3326
      %v3328 = vmul.f32 %v3294, 1.442695
      %v3329 = vpow.pop %v3328
      %v3330 = vmul.f32 %v3295, 1.442695
      %v3331 = vpow.pop %v3330
      %v3332 = vmul.f32 %v3296, 1.442695
      %v3333 = vpow.pop %v3332
      %v3334 = vmul.f32 %v3297, 1.442695
      %v3335 = vpow.pop %v3334
      %v3336 = vmul.f32 %v3298, 1.442695
      %v3337 = vpow.pop %v3336
      %v3338 = vmul.f32 %v3299, 1.442695
      %v3339 = vpow.pop %v3338
      %v3340 = vmul.f32 %v3300, 1.442695
      %v3341 = vpow.pop %v3340
      %v3342 = vmul.f32 %v3301, 1.442695
      %v3343 = vpow.pop %v3342
      %v3344 = vmul.f32 %v3302, 1.442695
      %v3345 = vpow.pop %v3344
      %v3346 = vmul.f32 %v3303, 1.442695
      %v3347 = vpow.pop %v3346
      %v3348 = vmul.f32 %v3304, 1.442695
      %v3349 = vpow.pop %v3348
      %v3350 = vmul.f32 %v3305, 1.442695
      %v3351 = vpow.pop %v3350
      %v3352 = vmul.f32 %v3306, 1.442695
      %v3353 = vpow.pop %v3352
      %v3354 = vmul.f32 %v3307, 1.442695
      %v3355 = vpow.pop %v3354
      %v3356 = vadd.f32 %v3309, 1.0
      %v3357 = vadd.f32 %v3311, 1.0
      %v3358 = vadd.f32 %v3313, 1.0
      %v3359 = vadd.f32 %v3315, 1.0
      %v3360 = vadd.f32 %v3317, 1.0
      %v3361 = vadd.f32 %v3319, 1.0
      %v3362 = vadd.f32 %v3321, 1.0
      %v3363 = vadd.f32 %v3323, 1.0
      %v3364 = vadd.f32 %v3325, 1.0
      %v3365 = vadd.f32 %v3327, 1.0
      %v3366 = vadd.f32 %v3329, 1.0
      %v3367 = vadd.f32 %v3331, 1.0
      %v3368 = vadd.f32 %v3333, 1.0
      %v3369 = vadd.f32 %v3335, 1.0
      %v3370 = vadd.f32 %v3337, 1.0
      %v3371 = vadd.f32 %v3339, 1.0
      %v3372 = vadd.f32 %v3341, 1.0
      %v3373 = vadd.f32 %v3343, 1.0
      %v3374 = vadd.f32 %v3345, 1.0
      %v3375 = vadd.f32 %v3347, 1.0
      %v3376 = vadd.f32 %v3349, 1.0
      %v3377 = vadd.f32 %v3351, 1.0
      %v3378 = vadd.f32 %v3353, 1.0
      %v3379 = vadd.f32 %v3355, 1.0
      %v3380 = vrcp.pop %v3356
      %v3381 = vmul.f32 1.0, %v3380
      %v3382 = vrcp.pop %v3357
      %v3383 = vmul.f32 1.0, %v3382
      %v3384 = vrcp.pop %v3358
      %v3385 = vmul.f32 1.0, %v3384
      %v3386 = vrcp.pop %v3359
      %v3387 = vmul.f32 1.0, %v3386
      %v3388 = vrcp.pop %v3360
      %v3389 = vmul.f32 1.0, %v3388
      %v3390 = vrcp.pop %v3361
      %v3391 = vmul.f32 1.0, %v3390
      %v3392 = vrcp.pop %v3362
      %v3393 = vmul.f32 1.0, %v3392
      %v3394 = vrcp.pop %v3363
      %v3395 = vmul.f32 1.0, %v3394
      %v3396 = vrcp.pop %v3364
      %v3397 = vmul.f32 1.0, %v3396
      %v3398 = vrcp.pop %v3365
      %v3399 = vmul.f32 1.0, %v3398
      %v3400 = vrcp.pop %v3366
      %v3401 = vmul.f32 1.0, %v3400
      %v3402 = vrcp.pop %v3367
      %v3403 = vmul.f32 1.0, %v3402
      %v3404 = vrcp.pop %v3368
      %v3405 = vmul.f32 1.0, %v3404
      %v3406 = vrcp.pop %v3369
      %v3407 = vmul.f32 1.0, %v3406
      %v3408 = vrcp.pop %v3370
      %v3409 = vmul.f32 1.0, %v3408
      %v3410 = vrcp.pop %v3371
      %v3411 = vmul.f32 1.0, %v3410
      %v3412 = vrcp.pop %v3372
      %v3413 = vmul.f32 1.0, %v3412
      %v3414 = vrcp.pop %v3373
      %v3415 = vmul.f32 1.0, %v3414
      %v3416 = vrcp.pop %v3374
      %v3417 = vmul.f32 1.0, %v3416
      %v3418 = vrcp.pop %v3375
      %v3419 = vmul.f32 1.0, %v3418
      %v3420 = vrcp.pop %v3376
      %v3421 = vmul.f32 1.0, %v3420
      %v3422 = vrcp.pop %v3377
      %v3423 = vmul.f32 1.0, %v3422
      %v3424 = vrcp.pop %v3378
      %v3425 = vmul.f32 1.0, %v3424
      %v3426 = vrcp.pop %v3379
      %v3427 = vmul.f32 1.0, %v3426
      %vm3452 = vcmask 1046528
      %v3453 = vrot.slane %v3381, 1
      %v3454 = vrot.slane %v3383, 1
      %v3455 = vsel %vm3452, %v3453, %v3454
      %v3456 = vrot.slane %v3385, 1
      %v3457 = vsel %vm3452, %v3454, %v3456
      %v3458 = vrot.slane %v3387, 1
      %v3459 = vrot.slane %v3389, 1
      %v3460 = vsel %vm3452, %v3458, %v3459
      %v3461 = vrot.slane %v3391, 1
      %v3462 = vsel %vm3452, %v3459, %v3461
      %v3463 = vrot.slane %v3393, 1
      %v3464 = vrot.slane %v3395, 1
      %v3465 = vsel %vm3452, %v3463, %v3464
      %v3466 = vrot.slane %v3397, 1
      %v3467 = vsel %vm3452, %v3464, %v3466
      %v3468 = vrot.slane %v3399, 1
      %v3469 = vrot.slane %v3401, 1
      %v3470 = vsel %vm3452, %v3468, %v3469
      %v3471 = vrot.slane %v3403, 1
      %v3472 = vsel %vm3452, %v3469, %v3471
      %v3473 = vrot.slane %v3405, 1
      %v3474 = vrot.slane %v3407, 1
      %v3475 = vsel %vm3452, %v3473, %v3474
      %v3476 = vrot.slane %v3409, 1
      %v3477 = vsel %vm3452, %v3474, %v3476
      %v3478 = vrot.slane %v3411, 1
      %v3479 = vrot.slane %v3413, 1
      %v3480 = vsel %vm3452, %v3478, %v3479
      %v3481 = vrot.slane %v3415, 1
      %v3482 = vsel %vm3452, %v3479, %v3481
      %v3483 = vrot.slane %v3417, 1
      %v3484 = vrot.slane %v3419, 1
      %v3485 = vsel %vm3452, %v3483, %v3484
      %v3486 = vrot.slane %v3421, 1
      %v3487 = vsel %vm3452, %v3484, %v3486
      %v3488 = vrot.slane %v3423, 1
      %v3489 = vrot.slane %v3425, 1
      %v3490 = vsel %vm3452, %v3488, %v3489
      %v3491 = vrot.slane %v3427, 1
      %v3492 = vsel %vm3452, %v3489, %v3491
      %v3509 = vmul.f32 %v3119, %v3455
      %v3510 = vmul.f32 %v3120, %v3457
      %v3511 = vmul.f32 %v3121, %v3460
      %v3512 = vmul.f32 %v3122, %v3462
      %v3513 = vmul.f32 %v3123, %v3465
      %v3514 = vmul.f32 %v3124, %v3467
      %v3515 = vmul.f32 %v3125, %v3470
      %v3516 = vmul.f32 %v3126, %v3472
      %v3517 = vmul.f32 %v3127, %v3475
      %v3518 = vmul.f32 %v3128, %v3477
      %v3519 = vmul.f32 %v3129, %v3480
      %v3520 = vmul.f32 %v3130, %v3482
      %v3521 = vmul.f32 %v3131, %v3485
      %v3522 = vmul.f32 %v3132, %v3487
      %v3523 = vmul.f32 %v3133, %v3490
      %v3524 = vmul.f32 %v3134, %v3492
      %v3525 = vpack.c.bf16 %v3510, %v3509
      %v3526 = vpack.c.bf16 %v3512, %v3511
      %v3527 = vpack.c.bf16 %v3514, %v3513
      %v3528 = vpack.c.bf16 %v3516, %v3515
      %v3529 = vpack.c.bf16 %v3518, %v3517
      %v3530 = vpack.c.bf16 %v3520, %v3519
      %v3531 = vpack.c.bf16 %v3522, %v3521
      %v3532 = vpack.c.bf16 %v3524, %v3523
      %v3541 = vunpack.c.l.b16 %v3525
      %v3542 = vunpack.c.h.b16 %v3525
      %v3543 = vunpack.c.l.b16 %v3526
      %v3544 = vunpack.c.h.b16 %v3526
      %v3545 = vunpack.c.l.b16 %v3527
      %v3546 = vunpack.c.h.b16 %v3527
      %v3547 = vunpack.c.l.b16 %v3528
      %v3548 = vunpack.c.h.b16 %v3528
      %v3549 = vunpack.c.l.b16 %v3529
      %v3550 = vunpack.c.h.b16 %v3529
      %v3551 = vunpack.c.l.b16 %v3530
      %v3552 = vunpack.c.h.b16 %v3530
      %v3553 = vunpack.c.l.b16 %v3531
      %v3554 = vunpack.c.h.b16 %v3531
      %v3555 = vunpack.c.l.b16 %v3532
      %v3556 = vunpack.c.h.b16 %v3532
      %v3557 = vpack.c.b16 %v3541, %v3541
      %v3558 = vpack.c.b16 %v3542, %v3542
      %v3559 = vpack.c.b16 %v3543, %v3543
      %v3560 = vpack.c.b16 %v3544, %v3544
      %v3561 = vpack.c.b16 %v3545, %v3545
      %v3562 = vpack.c.b16 %v3546, %v3546
      %v3563 = vpack.c.b16 %v3547, %v3547
      %v3564 = vpack.c.b16 %v3548, %v3548
      %v3565 = vpack.c.b16 %v3549, %v3549
      %v3566 = vpack.c.b16 %v3550, %v3550
      %v3567 = vpack.c.b16 %v3551, %v3551
      %v3568 = vpack.c.b16 %v3552, %v3552
      %v3569 = vpack.c.b16 %v3553, %v3553
      %v3570 = vpack.c.b16 %v3554, %v3554
      %v3571 = vpack.c.b16 %v3555, %v3555
      %v3572 = vpack.c.b16 %v3556, %v3556
      %3589 = vst [vmem:[%s273] sm:$0xf] %v3557
      %3590 = vst [vmem:[%s273 + $0x4] sm:$0xf] %v3558
      %3591 = vst [vmem:[%s273 + $0x8] sm:$0xf] %v3559
      %3592 = vst [vmem:[%s273 + $0xc] sm:$0xf] %v3560
      %3593 = vst [vmem:[%s273 + $0x10] sm:$0xf] %v3561
      %3594 = vst [vmem:[%s273 + $0x14] sm:$0xf] %v3562
      %3595 = vst [vmem:[%s273 + $0x18] sm:$0xf] %v3563
      %3596 = vst [vmem:[%s273 + $0x1c] sm:$0xf] %v3564
      %3597 = vst [vmem:[%s273 + $0x20] sm:$0xf] %v3565
      %3598 = vst [vmem:[%s273 + $0x24] sm:$0xf] %v3566
      %3599 = vst [vmem:[%s273 + $0x28] sm:$0xf] %v3567
      %3600 = vst [vmem:[%s273 + $0x2c] sm:$0xf] %v3568
      %3601 = vst [vmem:[%s273 + $0x30] sm:$0xf] %v3569
      %3602 = vst [vmem:[%s273 + $0x34] sm:$0xf] %v3570
      %3603 = vst [vmem:[%s273 + $0x38] sm:$0xf] %v3571
      %3604 = vst [vmem:[%s273 + $0x3c] sm:$0xf] %v3572
      %s3605 = smul.u32 8, %s21
      %p3606 = scmp.lt.s32.totalorder %s19, 1
      %s3607 = scalar_select %p3606, %s19, 1
      %p3608 = scmp.lt.s32.totalorder %s3605, 15
      %s3609 = scalar_select %p3608, %s3605, 15
      %p3610 = scmp.lt.s32.totalorder %s20, 0
      %s3611 = scalar_select %p3610, %s20, 0
      %s3612 = smul.addr %s3609, 2
      %s3613 = sadd.s32 %s3611, %s3612
      %s3614 = smul.addr %s3607, 32
      %s3615 = sadd.s32 %s3613, %s3614
      %s3616 = smul.addr %s3615, 4
      %s3617 = scalar_lea.vmem %s3, %s3616
      // Predicated region
      $region33: #{scconv2d_pallas.8} parent=31 // pred_check
        %p3618 = pneg %p137
      $region34: #{scconv2d_pallas.8} parent=31 // pred_check_branch
        %3620 = sbr.rel (%p3618) target = $region36
      $region35: #{scconv2d_pallas.8} parent=31 // pred_region
        %s3621 = smul.u32 8, %s21
      $region36: #{scconv2d_pallas.8} parent=31 // pred_fallthru
        _
    $region32: #{scconv2d_pallas.8} parent=5 // pred_fallthru
      _
    %p3622 = scmp.le.s32.totalorder 2, %s9
    // Predicated region
    $region37: #{scconv2d_pallas.8} parent=5 // pred_check
      %p3623 = pneg %p3622
    $region38: #{scconv2d_pallas.8} parent=5 // pred_check_branch
      %3625 = sbr.rel (%p3623) target = $region40
    $region39: #{scconv2d_pallas.8} parent=5 // pred_region
      %s3626 = ssub.s32 %s9, 2
      // Predicated region
      $region41: #{scconv2d_pallas.8} parent=39 // pred_check
        %p3627 = pneg %p143
      $region42: #{scconv2d_pallas.8} parent=39 // pred_check_branch
        %3629 = sbr.rel (%p3627) target = $region44
      $region43: #{scconv2d_pallas.8} parent=39 // pred_region
        %s3630 = smul.u32 8, %s24
        %p3631 = scmp.lt.s32.totalorder %s22, 1
        %s3632 = scalar_select %p3631, %s22, 1
        %p3633 = scmp.lt.s32.totalorder %s3630, 15
        %s3634 = scalar_select %p3633, %s3630, 15
        %p3635 = scmp.lt.s32.totalorder %s23, 0
        %s3636 = scalar_select %p3635, %s23, 0
        %s3637 = smul.addr %s3634, 2
        %s3638 = sadd.s32 %s3636, %s3637
        %s3639 = smul.addr %s3632, 32
        %s3640 = sadd.s32 %s3638, %s3639
        %s3641 = smul.addr %s3640, 4
        %s3642 = scalar_lea.vmem %s3, %s3641
      $region44: #{scconv2d_pallas.8} parent=39 // pred_fallthru
        _
    $region40: #{scconv2d_pallas.8} parent=5 // pred_fallthru
      _
  $region6: #{scconv2d_pallas.8} parent=0 // loop_footer
    %s13 = sadd.s32 1, %s9
  $region7: #{scconv2d_pallas.8} parent=0 // loop_footer_branch
    %8 = sbr.rel target = $region3
  $region8: #{scconv2d_pallas.8} parent=0 // loop_exit
    _

// kernel: scconv2d_pallas.9
$region0: #{scconv2d_pallas.9}
  #allocation0 [shape = 'u32[]', space=smem, size = 0x4, offset = 0x4, fixed_abs, tag = 'smem constant byte address 0x4 - core index']
  #allocation1 [shape = 'u32[144,128]{1,0:T(1,128)}', space=vmem, size = 0x12000, scoped, tag = 'internal scratch']
  %s0 = inlined_call_operand.vmem [shape: bf16[2,1,18,18,128], index: 0, kind: input, shape index: {}]
  %s1 = inlined_call_operand.vmem [shape: bf16[9,128,128], index: 1, kind: input, shape index: {}]
  %s2 = inlined_call_operand.vmem [shape: f32[2,16,16,128], index: 2, kind: output, shape index: {}]
  %s3 = sld [smem:[#allocation0]]
  $region41: #{scconv2d_pallas.9} parent=0
    _
  %s5 = ssub.s32 1, %s3
  %s6 = scalar_select 0, %s5, %s3
  loop: start=0, step=1, limit=6
  $region2: #{scconv2d_pallas.9} parent=0 // loop_pre_header
    _
  $region3: #{scconv2d_pallas.9} parent=0 // loop_header
    %s8 = sphi 0, %s12
    %p9 = scmp.ge.s32.totalorder %s8, 6
    %s15 = sphi 0, %s34
    %s16 = sphi 0, %s30
    %s17 = sphi 0, %s26
    %s18 = sphi 0, %s15
    %s19 = sphi 0, %s16
    %s20 = sphi 0, %s17
    %s21 = sphi 0, %s18
    %s22 = sphi 0, %s19
    %s23 = sphi 0, %s20
    %s37 = sphi 0, %s39
    %s40 = sphi 0, %s37
    %s41 = sphi 0, %s40
    %s57 = sphi 0, %s41
    %s63 = sphi 0, %s65
    %s66 = sphi 0, %s63
    %s67 = sphi 0, %s66
    %s83 = sphi 0, %s67
    %s93 = sphi 0, %s95
    %s96 = sphi 0, %s93
    %s97 = sphi 0, %s96
    %s113 = sphi 0, %s97
  $region4: #{scconv2d_pallas.9} parent=0 // loop_header_branch
    %11 = sbr.rel (%p9) target = $region8
  $region5: #{scconv2d_pallas.9} parent=0 // loop_body
    %s13 = ssub.s32 %s8, 1
    %s14 = ssub.s32 %s8, 2
    %s24 = sadd.s32 1, %s17
    %p25 = scmp.ge.s32.totalorder %s24, 2
    %s26 = scalar_select %p25, 0, %s24
    %s27 = sadd.s32 1, %s16
    %s28 = scalar_select %p25, %s27, %s16
    %p29 = scmp.ge.s32.totalorder %s28, 1
    %s30 = scalar_select %p29, 0, %s28
    %s31 = sadd.s32 1, %s15
    %s32 = scalar_select %p29, %s31, %s15
    %p33 = scmp.ge.s32.totalorder %s32, 2
    %s34 = scalar_select %p33, 0, %s32
    %s35 = ssub.s32 %s15, %s34
    %p36 = scmp.eq.s32.totalorder %s35, 0
    %s38 = sadd.s32 %s37, 1
    %s39 = scalar_select %p36, %s37, %s38
    %p42 = pneg %p36
    %p43 = scmp.eq.s32.totalorder %s8, 3
    %p44 = por %p42, %p43
    %p45 = scmp.ne.s32.totalorder %s37, %s40
    %p46 = scmp.eq.s32.totalorder %s8, 0
    %p47 = por %p45, %p46
    %p48 = scmp.ne.s32.totalorder %s37, %s40
    %p49 = scmp.eq.s32.totalorder %s13, 3
    %p50 = por %p48, %p49
    %p51 = scmp.ne.s32.totalorder %s40, %s41
    %p52 = scmp.eq.s32.totalorder %s13, 0
    %p53 = por %p51, %p52
    %p54 = scmp.ne.s32.totalorder %s40, %s41
    %p55 = scmp.eq.s32.totalorder %s14, 3
    %p56 = por %p54, %p55
    %p58 = scmp.ne.s32.totalorder %s41, %s57
    %p59 = scmp.eq.s32.totalorder %s14, 0
    %p60 = por %p58, %p59
    %s61 = ssub.s32 %s16, %s30
    %p62 = scmp.eq.s32.totalorder %s61, 0
    %s64 = sadd.s32 %s63, 1
    %s65 = scalar_select %p62, %s63, %s64
    %p68 = pneg %p62
    %p69 = scmp.eq.s32.totalorder %s8, 3
    %p70 = por %p68, %p69
    %p71 = scmp.ne.s32.totalorder %s63, %s66
    %p72 = scmp.eq.s32.totalorder %s8, 0
    %p73 = por %p71, %p72
    %p74 = scmp.ne.s32.totalorder %s63, %s66
    %p75 = scmp.eq.s32.totalorder %s13, 3
    %p76 = por %p74, %p75
    %p77 = scmp.ne.s32.totalorder %s66, %s67
    %p78 = scmp.eq.s32.totalorder %s13, 0
    %p79 = por %p77, %p78
    %p80 = scmp.ne.s32.totalorder %s66, %s67
    %p81 = scmp.eq.s32.totalorder %s14, 3
    %p82 = por %p80, %p81
    %p84 = scmp.ne.s32.totalorder %s67, %s83
    %p85 = scmp.eq.s32.totalorder %s14, 0
    %p86 = por %p84, %p85
    %s87 = ssub.s32 %s15, %s34
    %s88 = ssub.s32 %s17, %s26
    %s89 = sor.u32 %s87, %s88
    %s90 = ssub.s32 %s16, %s30
    %s91 = sor.u32 %s89, %s90
    %p92 = scmp.eq.s32.totalorder %s91, 0
    %s94 = sadd.s32 %s93, 1
    %s95 = scalar_select %p92, %s93, %s94
    %p98 = pneg %p92
    %p99 = scmp.eq.s32.totalorder %s8, 3
    %p100 = por %p98, %p99
    %p101 = scmp.ne.s32.totalorder %s93, %s96
    %p102 = scmp.eq.s32.totalorder %s8, 0
    %p103 = por %p101, %p102
    %p104 = scmp.ne.s32.totalorder %s93, %s96
    %p105 = scmp.eq.s32.totalorder %s13, 3
    %p106 = por %p104, %p105
    %p107 = scmp.ne.s32.totalorder %s96, %s97
    %p108 = scmp.eq.s32.totalorder %s13, 0
    %p109 = por %p107, %p108
    %p110 = scmp.ne.s32.totalorder %s96, %s97
    %p111 = scmp.eq.s32.totalorder %s14, 3
    %p112 = por %p110, %p111
    %p114 = scmp.ne.s32.totalorder %s97, %s113
    %p115 = scmp.eq.s32.totalorder %s14, 0
    %p116 = por %p114, %p115
    %p117 = scmp.le.s32.totalorder 1, %s8
    %p118 = scmp.lt.s32.totalorder %s8, 5
    %p119 = pnand %p117, %p118
    %p120 = pneg %p119
    // Predicated region
    $region9: #{scconv2d_pallas.9} parent=5 // pred_check
      _
    $region10: #{scconv2d_pallas.9} parent=5 // pred_check_branch
      %122 = sbr.rel (%p119) target = $region12
    $region11: #{scconv2d_pallas.9} parent=5 // pred_region
      %s123 = ssub.s32 %s8, 1
      // Predicated region
      $region13: #{scconv2d_pallas.9} parent=11 // pred_check
        %p124 = pneg %p79
      $region14: #{scconv2d_pallas.9} parent=11 // pred_check_branch
        %126 = sbr.rel (%p124) target = $region16
      $region15: #{scconv2d_pallas.9} parent=11 // pred_region
        %p127 = scmp.lt.s32.totalorder %s19, 0
        %s128 = scalar_select %p127, %s19, 0
        %s129 = smul.addr %s128, 4
        %s130 = scalar_lea.vmem %s1, %s129
      $region16: #{scconv2d_pallas.9} parent=11 // pred_fallthru
        _
    $region12: #{scconv2d_pallas.9} parent=5 // pred_fallthru
      _
    %p131 = scmp.lt.s32.totalorder %s8, 4
    // Predicated region
    $region17: #{scconv2d_pallas.9} parent=5 // pred_check
      %p132 = pneg %p131
    $region18: #{scconv2d_pallas.9} parent=5 // pred_check_branch
      %134 = sbr.rel (%p132) target = $region20
    $region19: #{scconv2d_pallas.9} parent=5 // pred_region
      // Predicated region
      $region21: #{scconv2d_pallas.9} parent=19 // pred_check
        %p135 = pneg %p47
      $region22: #{scconv2d_pallas.9} parent=19 // pred_check_branch
        %137 = sbr.rel (%p135) target = $region24
      $region23: #{scconv2d_pallas.9} parent=19 // pred_region
        %p138 = scmp.lt.s32.totalorder %s15, 1
        %s139 = scalar_select %p138, %s15, 1
        %s140 = smul.addr %s139, 54
        %s141 = smul.addr %s140, 4
        %s142 = scalar_lea.vmem %s0, %s141
      $region24: #{scconv2d_pallas.9} parent=19 // pred_fallthru
        _
    $region20: #{scconv2d_pallas.9} parent=5 // pred_fallthru
      _
    %p143 = scmp.le.s32.totalorder 1, %s8
    %p144 = scmp.lt.s32.totalorder %s8, 5
    %p145 = pnand %p143, %p144
    %p146 = pneg %p145
    // Predicated region
    $region25: #{scconv2d_pallas.9} parent=5 // pred_check
      _
    $region26: #{scconv2d_pallas.9} parent=5 // pred_check_branch
      %148 = sbr.rel (%p145) target = $region28
    $region27: #{scconv2d_pallas.9} parent=5 // pred_region
      %s149 = ssub.s32 %s8, 1
      %p150 = scmp.lt.s32.totalorder %s18, 1
      %s151 = scalar_select %p150, %s18, 1
      %s152 = smul.addr %s151, 54
      %s153 = smul.addr %s152, 4
      %s154 = scalar_lea.vmem %s0, %s153
      %p155 = pneg %p53
      %p156 = pneg %p50
      %p157 = scmp.lt.s32.totalorder %s19, 0
      %s158 = scalar_select %p157, %s19, 0
      %s159 = smul.addr %s158, 4
      %s160 = scalar_lea.vmem %s1, %s159
      %p161 = pneg %p79
      %p162 = pneg %p76
      %p163 = pneg %p109
      %p164 = pneg %p106
      %s165 = smul.u32 8, %s20
      %p166 = scmp.lt.s32.totalorder %s18, 1
      %s167 = scalar_select %p166, %s18, 1
      %p168 = scmp.lt.s32.totalorder %s165, 15
      %s169 = scalar_select %p168, %s165, 15
      %p170 = scmp.lt.s32.totalorder %s19, 0
      %s171 = scalar_select %p170, %s19, 0
      %s172 = smul.addr %s169, 2
      %s173 = sadd.s32 %s171, %s172
      %s174 = smul.addr %s167, 32
      %s175 = sadd.s32 %s173, %s174
      %s176 = smul.addr %s175, 8
      %s177 = scalar_lea.vmem %s2, %s176
      %p178 = scmp.lt.s32.totalorder %s18, 1
      %s179 = scalar_select %p178, %s18, 1
      %s180 = smul.addr %s179, 54
      %s181 = smul.addr %s180, 4
      %s182 = scalar_lea.vmem %s0, %s181
      %p183 = scmp.lt.s32.totalorder %s19, 0
      %s184 = scalar_select %p183, %s19, 0
      %s185 = smul.addr %s184, 4
      %s186 = scalar_lea.vmem %s1, %s185
      %s187 = smul.u32 8, %s20
      %p188 = scmp.lt.s32.totalorder %s18, 1
      %s189 = scalar_select %p188, %s18, 1
      %p190 = scmp.lt.s32.totalorder %s187, 15
      %s191 = scalar_select %p190, %s187, 15
      %p192 = scmp.lt.s32.totalorder %s19, 0
      %s193 = scalar_select %p192, %s19, 0
      %s194 = smul.addr %s191, 2
      %s195 = sadd.s32 %s193, %s194
      %s196 = smul.addr %s189, 32
      %s197 = sadd.s32 %s195, %s196
      %s198 = smul.addr %s197, 8
      %s199 = scalar_lea.vmem %s2, %s198
      %s200 = smul.u32 8, %s20
      %s202 = smul.u32 %s20, 8
      %s203 = smul.u32 %s202, 3
      %s204 = smul.addr %s203, 4
      %s205 = scalar_lea.vmem %s182, %s204
      %v206 = vld [vmem:[%s205] sm:$0xf]
      %v207 = vld [vmem:[%s205 + $0x4] sm:$0xf]
      %v208 = vld [vmem:[%s205 + $0xc] sm:$0xf]
      %v209 = vld [vmem:[%s205 + $0x10] sm:$0xf]
      %v210 = vld [vmem:[%s205 + $0x18] sm:$0xf]
      %v211 = vld [vmem:[%s205 + $0x1c] sm:$0xf]
      %v212 = vld [vmem:[%s205 + $0x24] sm:$0xf]
      %v213 = vld [vmem:[%s205 + $0x28] sm:$0xf]
      %v214 = vld [vmem:[%s205 + $0x30] sm:$0xf]
      %v215 = vld [vmem:[%s205 + $0x34] sm:$0xf]
      %v216 = vld [vmem:[%s205 + $0x3c] sm:$0xf]
      %v217 = vld [vmem:[%s205 + $0x40] sm:$0xf]
      %v218 = vld [vmem:[%s205 + $0x48] sm:$0xf]
      %v219 = vld [vmem:[%s205 + $0x4c] sm:$0xf]
      %v220 = vld [vmem:[%s205 + $0x54] sm:$0xf]
      %v221 = vld [vmem:[%s205 + $0x58] sm:$0xf]
      %v222 = vld [vmem:[%s186] sm:$0xf]
      %v223 = vld [vmem:[%s186 + $0x4] sm:$0xf]
      %v224 = vld [vmem:[%s186 + $0x8] sm:$0xf]
      %v225 = vld [vmem:[%s186 + $0xc] sm:$0xf]
      %v226 = vld [vmem:[%s186 + $0x10] sm:$0xf]
      %v227 = vld [vmem:[%s186 + $0x14] sm:$0xf]
      %v228 = vld [vmem:[%s186 + $0x18] sm:$0xf]
      %v229 = vld [vmem:[%s186 + $0x1c] sm:$0xf]
      %v230 = vld [vmem:[%s186 + $0x20] sm:$0xf]
      %v231 = vld [vmem:[%s186 + $0x24] sm:$0xf]
      %v232 = vld [vmem:[%s186 + $0x28] sm:$0xf]
      %v233 = vld [vmem:[%s186 + $0x2c] sm:$0xf]
      %v234 = vld [vmem:[%s186 + $0x30] sm:$0xf]
      %v235 = vld [vmem:[%s186 + $0x34] sm:$0xf]
      %v236 = vld [vmem:[%s186 + $0x38] sm:$0xf]
      %v237 = vld [vmem:[%s186 + $0x3c] sm:$0xf]
      %v238 = vld [vmem:[%s205 + $0x8] sm:$0x1]
      %v239 = vld [vmem:[%s205 + $0x14] sm:$0x1]
      %v240 = vld [vmem:[%s205 + $0x20] sm:$0x1]
      %v241 = vld [vmem:[%s205 + $0x2c] sm:$0x1]
      %v242 = vld [vmem:[%s205 + $0x38] sm:$0x1]
      %v243 = vld [vmem:[%s205 + $0x44] sm:$0x1]
      %v244 = vld [vmem:[%s205 + $0x50] sm:$0x1]
      %v245 = vld [vmem:[%s205 + $0x5c] sm:$0x1]
      %vm246 = vsmask.f32 3328
      %vm247 = vsmask.f32 7440
      %vm248 = vmor %vm246, %vm247
      %v250 = vshrl.u32 %v206, 16
      %v252 = vrot.slane %v250, 4
      %v253 = vshll.u32 %v206, 16
      %v255 = vrot.slane %v253, 5
      %v256 = vor.u32 %v252, %v255
      %v257 = vrot.slane %v256, 4
      %v259 = vshll.u32 %v207, 16
      %v261 = vrot.slane %v259, 5
      %v262 = vsel %vm248, %v257, %v261
      %v263 = vshrl.u32 %v207, 16
      %v265 = vrot.slane %v263, 4
      %v266 = vor.u32 %v265, %v261
      %v267 = vrot.slane %v266, 4
      %v269 = vshll.u32 %v238, 16
      %v271 = vrot.slane %v269, 5
      %v272 = vsel %vm248, %v267, %v271
      %v274 = vshrl.u32 %v208, 16
      %v276 = vrot.slane %v274, 4
      %v277 = vshll.u32 %v208, 16
      %v279 = vrot.slane %v277, 5
      %v280 = vor.u32 %v276, %v279
      %v281 = vrot.slane %v280, 4
      %v283 = vshll.u32 %v209, 16
      %v285 = vrot.slane %v283, 5
      %v286 = vsel %vm248, %v281, %v285
      %v287 = vshrl.u32 %v209, 16
      %v289 = vrot.slane %v287, 4
      %v290 = vor.u32 %v289, %v285
      %v291 = vrot.slane %v290, 4
      %v293 = vshll.u32 %v239, 16
      %v295 = vrot.slane %v293, 5
      %v296 = vsel %vm248, %v291, %v295
      %v298 = vshrl.u32 %v210, 16
      %v300 = vrot.slane %v298, 4
      %v301 = vshll.u32 %v210, 16
      %v303 = vrot.slane %v301, 5
      %v304 = vor.u32 %v300, %v303
      %v305 = vrot.slane %v304, 4
      %v307 = vshll.u32 %v211, 16
      %v309 = vrot.slane %v307, 5
      %v310 = vsel %vm248, %v305, %v309
      %v311 = vshrl.u32 %v211, 16
      %v313 = vrot.slane %v311, 4
      %v314 = vor.u32 %v313, %v309
      %v315 = vrot.slane %v314, 4
      %v317 = vshll.u32 %v240, 16
      %v319 = vrot.slane %v317, 5
      %v320 = vsel %vm248, %v315, %v319
      %v322 = vshrl.u32 %v212, 16
      %v324 = vrot.slane %v322, 4
      %v325 = vshll.u32 %v212, 16
      %v327 = vrot.slane %v325, 5
      %v328 = vor.u32 %v324, %v327
      %v329 = vrot.slane %v328, 4
      %v331 = vshll.u32 %v213, 16
      %v333 = vrot.slane %v331, 5
      %v334 = vsel %vm248, %v329, %v333
      %v335 = vshrl.u32 %v213, 16
      %v337 = vrot.slane %v335, 4
      %v338 = vor.u32 %v337, %v333
      %v339 = vrot.slane %v338, 4
      %v341 = vshll.u32 %v241, 16
      %v343 = vrot.slane %v341, 5
      %v344 = vsel %vm248, %v339, %v343
      %v346 = vshrl.u32 %v214, 16
      %v348 = vrot.slane %v346, 4
      %v349 = vshll.u32 %v214, 16
      %v351 = vrot.slane %v349, 5
      %v352 = vor.u32 %v348, %v351
      %v353 = vrot.slane %v352, 4
      %v355 = vshll.u32 %v215, 16
      %v357 = vrot.slane %v355, 5
      %v358 = vsel %vm248, %v353, %v357
      %v359 = vshrl.u32 %v215, 16
      %v361 = vrot.slane %v359, 4
      %v362 = vor.u32 %v361, %v357
      %v363 = vrot.slane %v362, 4
      %v365 = vshll.u32 %v242, 16
      %v367 = vrot.slane %v365, 5
      %v368 = vsel %vm248, %v363, %v367
      %v370 = vshrl.u32 %v216, 16
      %v372 = vrot.slane %v370, 4
      %v373 = vshll.u32 %v216, 16
      %v375 = vrot.slane %v373, 5
      %v376 = vor.u32 %v372, %v375
      %v377 = vrot.slane %v376, 4
      %v379 = vshll.u32 %v217, 16
      %v381 = vrot.slane %v379, 5
      %v382 = vsel %vm248, %v377, %v381
      %v383 = vshrl.u32 %v217, 16
      %v385 = vrot.slane %v383, 4
      %v386 = vor.u32 %v385, %v381
      %v387 = vrot.slane %v386, 4
      %v389 = vshll.u32 %v243, 16
      %v391 = vrot.slane %v389, 5
      %v392 = vsel %vm248, %v387, %v391
      %v394 = vshrl.u32 %v218, 16
      %v396 = vrot.slane %v394, 4
      %v397 = vshll.u32 %v218, 16
      %v399 = vrot.slane %v397, 5
      %v400 = vor.u32 %v396, %v399
      %v401 = vrot.slane %v400, 4
      %v403 = vshll.u32 %v219, 16
      %v405 = vrot.slane %v403, 5
      %v406 = vsel %vm248, %v401, %v405
      %v407 = vshrl.u32 %v219, 16
      %v409 = vrot.slane %v407, 4
      %v410 = vor.u32 %v409, %v405
      %v411 = vrot.slane %v410, 4
      %v413 = vshll.u32 %v244, 16
      %v415 = vrot.slane %v413, 5
      %v416 = vsel %vm248, %v411, %v415
      %v418 = vshrl.u32 %v220, 16
      %v420 = vrot.slane %v418, 4
      %v421 = vshll.u32 %v220, 16
      %v423 = vrot.slane %v421, 5
      %v424 = vor.u32 %v420, %v423
      %v425 = vrot.slane %v424, 4
      %v427 = vshll.u32 %v221, 16
      %v429 = vrot.slane %v427, 5
      %v430 = vsel %vm248, %v425, %v429
      %v431 = vshrl.u32 %v221, 16
      %v433 = vrot.slane %v431, 4
      %v434 = vor.u32 %v433, %v429
      %v435 = vrot.slane %v434, 4
      %v437 = vshll.u32 %v245, 16
      %v439 = vrot.slane %v437, 5
      %v440 = vsel %vm248, %v435, %v439
      %s441 = scalar_lea.vmem %s186, 64
      %v442 = vld [vmem:[%s441] sm:$0xf]
      %v443 = vld [vmem:[%s441 + $0x4] sm:$0xf]
      %v444 = vld [vmem:[%s441 + $0x8] sm:$0xf]
      %v445 = vld [vmem:[%s441 + $0xc] sm:$0xf]
      %v446 = vld [vmem:[%s441 + $0x10] sm:$0xf]
      %v447 = vld [vmem:[%s441 + $0x14] sm:$0xf]
      %v448 = vld [vmem:[%s441 + $0x18] sm:$0xf]
      %v449 = vld [vmem:[%s441 + $0x1c] sm:$0xf]
      %v450 = vld [vmem:[%s441 + $0x20] sm:$0xf]
      %v451 = vld [vmem:[%s441 + $0x24] sm:$0xf]
      %v452 = vld [vmem:[%s441 + $0x28] sm:$0xf]
      %v453 = vld [vmem:[%s441 + $0x2c] sm:$0xf]
      %v454 = vld [vmem:[%s441 + $0x30] sm:$0xf]
      %v455 = vld [vmem:[%s441 + $0x34] sm:$0xf]
      %v456 = vld [vmem:[%s441 + $0x38] sm:$0xf]
      %v457 = vld [vmem:[%s441 + $0x3c] sm:$0xf]
      %v458 = vunpack.c.l.b16 %v262
      %v459 = vunpack.c.l.b16 %v272
      %v460 = vunpack.c.l.b16 %v286
      %v461 = vunpack.c.l.b16 %v296
      %v462 = vunpack.c.l.b16 %v310
      %v463 = vunpack.c.l.b16 %v320
      %v464 = vunpack.c.l.b16 %v334
      %v465 = vunpack.c.l.b16 %v344
      %v466 = vunpack.c.l.b16 %v358
      %v467 = vunpack.c.l.b16 %v368
      %v468 = vunpack.c.l.b16 %v382
      %v469 = vunpack.c.l.b16 %v392
      %v470 = vunpack.c.l.b16 %v406
      %v471 = vunpack.c.l.b16 %v416
      %v472 = vunpack.c.l.b16 %v430
      %v473 = vunpack.c.l.b16 %v440
      %v474 = vpack.c.b16 %v459, %v458
      %v475 = vpack.c.b16 %v461, %v460
      %v476 = vpack.c.b16 %v463, %v462
      %v477 = vpack.c.b16 %v465, %v464
      %v478 = vpack.c.b16 %v467, %v466
      %v479 = vpack.c.b16 %v469, %v468
      %v480 = vpack.c.b16 %v471, %v470
      %v481 = vpack.c.b16 %v473, %v472
      %v506 = vunpack.c.l.b16 %v442
      %v507 = vunpack.c.l.b16 %v443
      %v508 = vunpack.c.l.b16 %v444
      %v509 = vunpack.c.l.b16 %v445
      %v510 = vunpack.c.l.b16 %v446
      %v511 = vunpack.c.l.b16 %v447
      %v512 = vunpack.c.l.b16 %v448
      %v513 = vunpack.c.l.b16 %v449
      %v514 = vunpack.c.l.b16 %v450
      %v515 = vunpack.c.l.b16 %v451
      %v516 = vunpack.c.l.b16 %v452
      %v517 = vunpack.c.l.b16 %v453
      %v518 = vunpack.c.l.b16 %v454
      %v519 = vunpack.c.l.b16 %v455
      %v520 = vunpack.c.l.b16 %v456
      %v521 = vunpack.c.l.b16 %v457
      %v522 = vpack.c.b16 %v507, %v506
      %v523 = vpack.c.b16 %v509, %v508
      %v524 = vpack.c.b16 %v511, %v510
      %v525 = vpack.c.b16 %v513, %v512
      %v526 = vpack.c.b16 %v515, %v514
      %v527 = vpack.c.b16 %v517, %v516
      %v528 = vpack.c.b16 %v519, %v518
      %v529 = vpack.c.b16 %v521, %v520
      %538 = vmatprep.subr.bf16.mxu0 0
      %539 = vmatpush1.bf16.msra.mxu0 %v522
      %540 = vmatprep.subr.bf16.mxu0 0
      %541 = vmatpush1.bf16.msra.mxu0 %v523
      %542 = vmatprep.subr.bf16.mxu0 0
      %543 = vmatpush1.bf16.msra.mxu0 %v524
      %544 = vmatprep.subr.bf16.mxu0 0
      %545 = vmatpush1.bf16.msra.mxu0 %v525
      %546 = vmatprep.subr.bf16.mxu0 0
      %547 = vmatpush1.bf16.msra.mxu0 %v526
      %548 = vmatprep.subr.bf16.mxu0 0
      %549 = vmatpush1.bf16.msra.mxu0 %v527
      %550 = vmatprep.subr.bf16.mxu0 0
      %551 = vmatpush1.bf16.msra.mxu0 %v528
      %552 = vmatprep.subr.bf16.mxu0 0
      %553 = vmatpush1.bf16.msra.mxu0 %v529
      %554 = vmatprep.subr.bf16.mxu0 0
      %555 = vmatpush1.bf16.msra.mxu0 0
      %556 = vmatprep.subr.bf16.mxu0 0
      %557 = vmatpush1.bf16.msra.mxu0 0
      %558 = vmatprep.subr.bf16.mxu0 0
      %559 = vmatpush1.bf16.msra.mxu0 0
      %560 = vmatprep.subr.bf16.mxu0 0
      %561 = vmatpush1.bf16.msra.mxu0 0
      %562 = vmatprep.subr.bf16.mxu0 0
      %563 = vmatpush1.bf16.msra.mxu0 0
      %564 = vmatprep.subr.bf16.mxu0 0
      %565 = vmatpush1.bf16.msra.mxu0 0
      %566 = vmatprep.subr.bf16.mxu0 0
      %567 = vmatpush1.bf16.msra.mxu0 0
      %568 = vmatprep.subr.bf16.mxu0 0
      %569 = vmatpush1.bf16.msra.mxu0 0
      %570 = vmatprep.mubr.bf16.mxu0 0
      %571 = vmatmul.mubr.bf16.gmra.mrb[0].mxu0 %v474
      %v572 = vpop.f32.mrb[0].mxu0
      %v573 = vadd.f32 0.0, %v572
      %v574 = vpop.f32.mrb[0].mxu0
      %v575 = vpop.f32.mrb[0].mxu0
      %v576 = vadd.f32 0.0, %v575
      %v577 = vpop.f32.mrb[0].mxu0
      %578 = vmatprep.mubr.bf16.mxu0 0
      %579 = vmatmul.mubr.bf16.gmra.mrb[0].mxu0 %v475
      %v580 = vpop.f32.mrb[0].mxu0
      %v581 = vadd.f32 0.0, %v580
      %v582 = vpop.f32.mrb[0].mxu0
      %v583 = vpop.f32.mrb[0].mxu0
      %v584 = vadd.f32 0.0, %v583
      %v585 = vpop.f32.mrb[0].mxu0
      %586 = vmatprep.mubr.bf16.mxu0 0
      %587 = vmatmul.mubr.bf16.gmra.mrb[0].mxu0 %v476
      %v588 = vpop.f32.mrb[0].mxu0
      %v589 = vadd.f32 0.0, %v588
      %v590 = vpop.f32.mrb[0].mxu0
      %v591 = vpop.f32.mrb[0].mxu0
      %v592 = vadd.f32 0.0, %v591
      %v593 = vpop.f32.mrb[0].mxu0
      %594 = vmatprep.mubr.bf16.mxu0 0
      %595 = vmatmul.mubr.bf16.gmra.mrb[0].mxu0 %v477
      %v596 = vpop.f32.mrb[0].mxu0
      %v597 = vadd.f32 0.0, %v596
      %v598 = vpop.f32.mrb[0].mxu0
      %v599 = vpop.f32.mrb[0].mxu0
      %v600 = vadd.f32 0.0, %v599
      %v601 = vpop.f32.mrb[0].mxu0
      %602 = vmatprep.mubr.bf16.mxu0 0
      %603 = vmatmul.mubr.bf16.gmra.mrb[0].mxu0 %v478
      %v604 = vpop.f32.mrb[0].mxu0
      %v605 = vadd.f32 0.0, %v604
      %v606 = vpop.f32.mrb[0].mxu0
      %v607 = vpop.f32.mrb[0].mxu0
      %v608 = vadd.f32 0.0, %v607
      %v609 = vpop.f32.mrb[0].mxu0
      %610 = vmatprep.mubr.bf16.mxu0 0
      %611 = vmatmul.mubr.bf16.gmra.mrb[0].mxu0 %v479
      %v612 = vpop.f32.mrb[0].mxu0
      %v613 = vadd.f32 0.0, %v612
      %v614 = vpop.f32.mrb[0].mxu0
      %v615 = vpop.f32.mrb[0].mxu0
      %v616 = vadd.f32 0.0, %v615
      %v617 = vpop.f32.mrb[0].mxu0
      %618 = vmatprep.mubr.bf16.mxu0 0
      %619 = vmatmul.mubr.bf16.gmra.mrb[0].mxu0 %v480
      %v620 = vpop.f32.mrb[0].mxu0
      %v621 = vadd.f32 0.0, %v620
      %v622 = vpop.f32.mrb[0].mxu0
      %v623 = vpop.f32.mrb[0].mxu0
      %v624 = vadd.f32 0.0, %v623
      %v625 = vpop.f32.mrb[0].mxu0
      %626 = vmatprep.mubr.bf16.mxu0 0
      %627 = vmatmul.mubr.bf16.gmra.mrb[0].mxu0 %v481
      %v628 = vpop.f32.mrb[0].mxu0
      %v629 = vadd.f32 0.0, %v628
      %v630 = vpop.f32.mrb[0].mxu0
      %v631 = vpop.f32.mrb[0].mxu0
      %v632 = vadd.f32 0.0, %v631
      %v633 = vpop.f32.mrb[0].mxu0
      %634 = vdwg.mxu0
      %v651 = vunpack.c.l.b16 %v206
      %v652 = vunpack.c.l.b16 %v207
      %v653 = vunpack.c.l.b16 %v208
      %v654 = vunpack.c.l.b16 %v209
      %v655 = vunpack.c.l.b16 %v210
      %v656 = vunpack.c.l.b16 %v211
      %v657 = vunpack.c.l.b16 %v212
      %v658 = vunpack.c.l.b16 %v213
      %v659 = vunpack.c.l.b16 %v214
      %v660 = vunpack.c.l.b16 %v215
      %v661 = vunpack.c.l.b16 %v216
      %v662 = vunpack.c.l.b16 %v217
      %v663 = vunpack.c.l.b16 %v218
      %v664 = vunpack.c.l.b16 %v219
      %v665 = vunpack.c.l.b16 %v220
      %v666 = vunpack.c.l.b16 %v221
      %v667 = vpack.c.b16 %v652, %v651
      %v668 = vpack.c.b16 %v654, %v653
      %v669 = vpack.c.b16 %v656, %v655
      %v670 = vpack.c.b16 %v658, %v657
      %v671 = vpack.c.b16 %v660, %v659
      %v672 = vpack.c.b16 %v662, %v661
      %v673 = vpack.c.b16 %v664, %v663
      %v674 = vpack.c.b16 %v666, %v665
      %v699 = vunpack.c.l.b16 %v222
      %v700 = vunpack.c.l.b16 %v223
      %v701 = vunpack.c.l.b16 %v224
      %v702 = vunpack.c.l.b16 %v225
      %v703 = vunpack.c.l.b16 %v226
      %v704 = vunpack.c.l.b16 %v227
      %v705 = vunpack.c.l.b16 %v228
      %v706 = vunpack.c.l.b16 %v229
      %v707 = vunpack.c.l.b16 %v230
      %v708 = vunpack.c.l.b16 %v231
      %v709 = vunpack.c.l.b16 %v232
      %v710 = vunpack.c.l.b16 %v233
      %v711 = vunpack.c.l.b16 %v234
      %v712 = vunpack.c.l.b16 %v235
      %v713 = vunpack.c.l.b16 %v236
      %v714 = vunpack.c.l.b16 %v237
      %v715 = vpack.c.b16 %v700, %v699
      %v716 = vpack.c.b16 %v702, %v701
      %v717 = vpack.c.b16 %v704, %v703
      %v718 = vpack.c.b16 %v706, %v705
      %v719 = vpack.c.b16 %v708, %v707
      %v720 = vpack.c.b16 %v710, %v709
      %v721 = vpack.c.b16 %v712, %v711
      %v722 = vpack.c.b16 %v714, %v713
      %731 = vmatprep.subr.bf16.mxu0 0
      %732 = vmatpush1.bf16.msra.mxu0 %v715
      %733 = vmatprep.subr.bf16.mxu0 0
      %734 = vmatpush1.bf16.msra.mxu0 %v716
      %735 = vmatprep.subr.bf16.mxu0 0
      %736 = vmatpush1.bf16.msra.mxu0 %v717
      %737 = vmatprep.subr.bf16.mxu0 0
      %738 = vmatpush1.bf16.msra.mxu0 %v718
      %739 = vmatprep.subr.bf16.mxu0 0
      %740 = vmatpush1.bf16.msra.mxu0 %v719
      %741 = vmatprep.subr.bf16.mxu0 0
      %742 = vmatpush1.bf16.msra.mxu0 %v720
      %743 = vmatprep.subr.bf16.mxu0 0
      %744 = vmatpush1.bf16.msra.mxu0 %v721
      %745 = vmatprep.subr.bf16.mxu0 0
      %746 = vmatpush1.bf16.msra.mxu0 %v722
      %747 = vmatprep.subr.bf16.mxu0 0
      %748 = vmatpush1.bf16.msra.mxu0 0
      %749 = vmatprep.subr.bf16.mxu0 0
      %750 = vmatpush1.bf16.msra.mxu0 0
      %751 = vmatprep.subr.bf16.mxu0 0
      %752 = vmatpush1.bf16.msra.mxu0 0
      %753 = vmatprep.subr.bf16.mxu0 0
      %754 = vmatpush1.bf16.msra.mxu0 0
      %755 = vmatprep.subr.bf16.mxu0 0
      %756 = vmatpush1.bf16.msra.mxu0 0
      %757 = vmatprep.subr.bf16.mxu0 0
      %758 = vmatpush1.bf16.msra.mxu0 0
      %759 = vmatprep.subr.bf16.mxu0 0
      %760 = vmatpush1.bf16.msra.mxu0 0
      %761 = vmatprep.subr.bf16.mxu0 0
      %762 = vmatpush1.bf16.msra.mxu0 0
      %763 = vmatprep.mubr.bf16.mxu0 0
      %764 = vmatmul.mubr.bf16.gmra.mrb[0].mxu0 %v667
      %v765 = vpop.f32.mrb[0].mxu0
      %v766 = vadd.f32 %v573, %v765
      %v767 = vpop.f32.mrb[0].mxu0
      %v768 = vpop.f32.mrb[0].mxu0
      %v769 = vadd.f32 %v576, %v768
      %v770 = vpop.f32.mrb[0].mxu0
      %771 = vmatprep.mubr.bf16.mxu0 0
      %772 = vmatmul.mubr.bf16.gmra.mrb[0].mxu0 %v668
      %v773 = vpop.f32.mrb[0].mxu0
      %v774 = vadd.f32 %v581, %v773
      %v775 = vpop.f32.mrb[0].mxu0
      %v776 = vpop.f32.mrb[0].mxu0
      %v777 = vadd.f32 %v584, %v776
      %v778 = vpop.f32.mrb[0].mxu0
      %779 = vmatprep.mubr.bf16.mxu0 0
      %780 = vmatmul.mubr.bf16.gmra.mrb[0].mxu0 %v669
      %v781 = vpop.f32.mrb[0].mxu0
      %v782 = vadd.f32 %v589, %v781
      %v783 = vpop.f32.mrb[0].mxu0
      %v784 = vpop.f32.mrb[0].mxu0
      %v785 = vadd.f32 %v592, %v784
      %v786 = vpop.f32.mrb[0].mxu0
      %787 = vmatprep.mubr.bf16.mxu0 0
      %788 = vmatmul.mubr.bf16.gmra.mrb[0].mxu0 %v670
      %v789 = vpop.f32.mrb[0].mxu0
      %v790 = vadd.f32 %v597, %v789
      %v791 = vpop.f32.mrb[0].mxu0
      %v792 = vpop.f32.mrb[0].mxu0
      %v793 = vadd.f32 %v600, %v792
      %v794 = vpop.f32.mrb[0].mxu0
      %795 = vmatprep.mubr.bf16.mxu0 0
      %796 = vmatmul.mubr.bf16.gmra.mrb[0].mxu0 %v671
      %v797 = vpop.f32.mrb[0].mxu0
      %v798 = vadd.f32 %v605, %v797
      %v799 = vpop.f32.mrb[0].mxu0
      %v800 = vpop.f32.mrb[0].mxu0
      %v801 = vadd.f32 %v608, %v800
      %v802 = vpop.f32.mrb[0].mxu0
      %803 = vmatprep.mubr.bf16.mxu0 0
      %804 = vmatmul.mubr.bf16.gmra.mrb[0].mxu0 %v672
      %v805 = vpop.f32.mrb[0].mxu0
      %v806 = vadd.f32 %v613, %v805
      %v807 = vpop.f32.mrb[0].mxu0
      %v808 = vpop.f32.mrb[0].mxu0
      %v809 = vadd.f32 %v616, %v808
      %v810 = vpop.f32.mrb[0].mxu0
      %811 = vmatprep.mubr.bf16.mxu0 0
      %812 = vmatmul.mubr.bf16.gmra.mrb[0].mxu0 %v673
      %v813 = vpop.f32.mrb[0].mxu0
      %v814 = vadd.f32 %v621, %v813
      %v815 = vpop.f32.mrb[0].mxu0
      %v816 = vpop.f32.mrb[0].mxu0
      %v817 = vadd.f32 %v624, %v816
      %v818 = vpop.f32.mrb[0].mxu0
      %819 = vmatprep.mubr.bf16.mxu0 0
      %820 = vmatmul.mubr.bf16.gmra.mrb[0].mxu0 %v674
      %v821 = vpop.f32.mrb[0].mxu0
      %v822 = vadd.f32 %v629, %v821
      %v823 = vpop.f32.mrb[0].mxu0
      %v824 = vpop.f32.mrb[0].mxu0
      %v825 = vadd.f32 %v632, %v824
      %v826 = vpop.f32.mrb[0].mxu0
      %827 = vdwg.mxu0
      %v828 = vld [vmem:[%s205] sm:$0xe]
      %v829 = vld [vmem:[%s205 + $0xc] sm:$0xe]
      %v830 = vld [vmem:[%s205 + $0x18] sm:$0xe]
      %v831 = vld [vmem:[%s205 + $0x24] sm:$0xe]
      %v832 = vld [vmem:[%s205 + $0x30] sm:$0xe]
      %v833 = vld [vmem:[%s205 + $0x3c] sm:$0xe]
      %v834 = vld [vmem:[%s205 + $0x48] sm:$0xe]
      %v835 = vld [vmem:[%s205 + $0x54] sm:$0xe]
      %vm852 = vcmask 1042432
      %vm853 = vcmask 1046532
      %vm854 = vmor %vm852, %vm853
      %v855 = vrot.slane %v828, 5
      %v856 = vrot.slane %v855, 4
      %v857 = vrot.slane %v207, 5
      %v858 = vsel %vm854, %v856, %v857
      %v859 = vrot.slane %v857, 4
      %v860 = vrot.slane %v238, 5
      %v861 = vsel %vm854, %v859, %v860
      %v862 = vrot.slane %v829, 5
      %v863 = vrot.slane %v862, 4
      %v864 = vrot.slane %v209, 5
      %v865 = vsel %vm854, %v863, %v864
      %v866 = vrot.slane %v864, 4
      %v867 = vrot.slane %v239, 5
      %v868 = vsel %vm854, %v866, %v867
      %v869 = vrot.slane %v830, 5
      %v870 = vrot.slane %v869, 4
      %v871 = vrot.slane %v211, 5
      %v872 = vsel %vm854, %v870, %v871
      %v873 = vrot.slane %v871, 4
      %v874 = vrot.slane %v240, 5
      %v875 = vsel %vm854, %v873, %v874
      %v876 = vrot.slane %v831, 5
      %v877 = vrot.slane %v876, 4
      %v878 = vrot.slane %v213, 5
      %v879 = vsel %vm854, %v877, %v878
      %v880 = vrot.slane %v878, 4
      %v881 = vrot.slane %v241, 5
      %v882 = vsel %vm854, %v880, %v881
      %v883 = vrot.slane %v832, 5
      %v884 = vrot.slane %v883, 4
      %v885 = vrot.slane %v215, 5
      %v886 = vsel %vm854, %v884, %v885
      %v887 = vrot.slane %v885, 4
      %v888 = vrot.slane %v242, 5
      %v889 = vsel %vm854, %v887, %v888
      %v890 = vrot.slane %v833, 5
      %v891 = vrot.slane %v890, 4
      %v892 = vrot.slane %v217, 5
      %v893 = vsel %vm854, %v891, %v892
      %v894 = vrot.slane %v892, 4
      %v895 = vrot.slane %v243, 5
      %v896 = vsel %vm854, %v894, %v895
      %v897 = vrot.slane %v834, 5
      %v898 = vrot.slane %v897, 4
      %v899 = vrot.slane %v219, 5
      %v900 = vsel %vm854, %v898, %v899
      %v901 = vrot.slane %v899, 4
      %v902 = vrot.slane %v244, 5
      %v903 = vsel %vm854, %v901, %v902
      %v904 = vrot.slane %v835, 5
      %v905 = vrot.slane %v904, 4
      %v906 = vrot.slane %v221, 5
      %v907 = vsel %vm854, %v905, %v906
      %v908 = vrot.slane %v906, 4
      %v909 = vrot.slane %v245, 5
      %v910 = vsel %vm854, %v908, %v909
      %s911 = scalar_lea.vmem %s186, 128
      %v912 = vld [vmem:[%s911] sm:$0xf]
      %v913 = vld [vmem:[%s911 + $0x4] sm:$0xf]
      %v914 = vld [vmem:[%s911 + $0x8] sm:$0xf]
      %v915 = vld [vmem:[%s911 + $0xc] sm:$0xf]
      %v916 = vld [vmem:[%s911 + $0x10] sm:$0xf]
      %v917 = vld [vmem:[%s911 + $0x14] sm:$0xf]
      %v918 = vld [vmem:[%s911 + $0x18] sm:$0xf]
      %v919 = vld [vmem:[%s911 + $0x1c] sm:$0xf]
      %v920 = vld [vmem:[%s911 + $0x20] sm:$0xf]
      %v921 = vld [vmem:[%s911 + $0x24] sm:$0xf]
      %v922 = vld [vmem:[%s911 + $0x28] sm:$0xf]
      %v923 = vld [vmem:[%s911 + $0x2c] sm:$0xf]
      %v924 = vld [vmem:[%s911 + $0x30] sm:$0xf]
      %v925 = vld [vmem:[%s911 + $0x34] sm:$0xf]
      %v926 = vld [vmem:[%s911 + $0x38] sm:$0xf]
      %v927 = vld [vmem:[%s911 + $0x3c] sm:$0xf]
      %v928 = vunpack.c.l.b16 %v858
      %v929 = vunpack.c.l.b16 %v861
      %v930 = vunpack.c.l.b16 %v865
      %v931 = vunpack.c.l.b16 %v868
      %v932 = vunpack.c.l.b16 %v872
      %v933 = vunpack.c.l.b16 %v875
      %v934 = vunpack.c.l.b16 %v879
      %v935 = vunpack.c.l.b16 %v882
      %v936 = vunpack.c.l.b16 %v886
      %v937 = vunpack.c.l.b16 %v889
      %v938 = vunpack.c.l.b16 %v893
      %v939 = vunpack.c.l.b16 %v896
      %v940 = vunpack.c.l.b16 %v900
      %v941 = vunpack.c.l.b16 %v903
      %v942 = vunpack.c.l.b16 %v907
      %v943 = vunpack.c.l.b16 %v910
      %v944 = vpack.c.b16 %v929, %v928
      %v945 = vpack.c.b16 %v931, %v930
      %v946 = vpack.c.b16 %v933, %v932
      %v947 = vpack.c.b16 %v935, %v934
      %v948 = vpack.c.b16 %v937, %v936
      %v949 = vpack.c.b16 %v939, %v938
      %v950 = vpack.c.b16 %v941, %v940
      %v951 = vpack.c.b16 %v943, %v942
      %v976 = vunpack.c.l.b16 %v912
      %v977 = vunpack.c.l.b16 %v913
      %v978 = vunpack.c.l.b16 %v914
      %v979 = vunpack.c.l.b16 %v915
      %v980 = vunpack.c.l.b16 %v916
      %v981 = vunpack.c.l.b16 %v917
      %v982 = vunpack.c.l.b16 %v918
      %v983 = vunpack.c.l.b16 %v919
      %v984 = vunpack.c.l.b16 %v920
      %v985 = vunpack.c.l.b16 %v921
      %v986 = vunpack.c.l.b16 %v922
      %v987 = vunpack.c.l.b16 %v923
      %v988 = vunpack.c.l.b16 %v924
      %v989 = vunpack.c.l.b16 %v925
      %v990 = vunpack.c.l.b16 %v926
      %v991 = vunpack.c.l.b16 %v927
      %v992 = vpack.c.b16 %v977, %v976
      %v993 = vpack.c.b16 %v979, %v978
      %v994 = vpack.c.b16 %v981, %v980
      %v995 = vpack.c.b16 %v983, %v982
      %v996 = vpack.c.b16 %v985, %v984
      %v997 = vpack.c.b16 %v987, %v986
      %v998 = vpack.c.b16 %v989, %v988
      %v999 = vpack.c.b16 %v991, %v990
      %1008 = vmatprep.subr.bf16.mxu0 0
      %1009 = vmatpush1.bf16.msra.mxu0 %v992
      %1010 = vmatprep.subr.bf16.mxu0 0
      %1011 = vmatpush1.bf16.msra.mxu0 %v993
      %1012 = vmatprep.subr.bf16.mxu0 0
      %1013 = vmatpush1.bf16.msra.mxu0 %v994
      %1014 = vmatprep.subr.bf16.mxu0 0
      %1015 = vmatpush1.bf16.msra.mxu0 %v995
      %1016 = vmatprep.subr.bf16.mxu0 0
      %1017 = vmatpush1.bf16.msra.mxu0 %v996
      %1018 = vmatprep.subr.bf16.mxu0 0
      %1019 = vmatpush1.bf16.msra.mxu0 %v997
      %1020 = vmatprep.subr.bf16.mxu0 0
      %1021 = vmatpush1.bf16.msra.mxu0 %v998
      %1022 = vmatprep.subr.bf16.mxu0 0
      %1023 = vmatpush1.bf16.msra.mxu0 %v999
      %1024 = vmatprep.subr.bf16.mxu0 0
      %1025 = vmatpush1.bf16.msra.mxu0 0
      %1026 = vmatprep.subr.bf16.mxu0 0
      %1027 = vmatpush1.bf16.msra.mxu0 0
      %1028 = vmatprep.subr.bf16.mxu0 0
      %1029 = vmatpush1.bf16.msra.mxu0 0
      %1030 = vmatprep.subr.bf16.mxu0 0
      %1031 = vmatpush1.bf16.msra.mxu0 0
      %1032 = vmatprep.subr.bf16.mxu0 0
      %1033 = vmatpush1.bf16.msra.mxu0 0
      %1034 = vmatprep.subr.bf16.mxu0 0
      %1035 = vmatpush1.bf16.msra.mxu0 0
      %1036 = vmatprep.subr.bf16.mxu0 0
      %1037 = vmatpush1.bf16.msra.mxu0 0
      %1038 = vmatprep.subr.bf16.mxu0 0
      %1039 = vmatpush1.bf16.msra.mxu0 0
      %1040 = vmatprep.mubr.bf16.mxu0 0
      %1041 = vmatmul.mubr.bf16.gmra.mrb[0].mxu0 %v944
      %v1042 = vpop.f32.mrb[0].mxu0
      %v1043 = vadd.f32 0.0, %v1042
      %v1044 = vpop.f32.mrb[0].mxu0
      %v1045 = vpop.f32.mrb[0].mxu0
      %v1046 = vadd.f32 0.0, %v1045
      %v1047 = vpop.f32.mrb[0].mxu0
      %1048 = vmatprep.mubr.bf16.mxu0 0
      %1049 = vmatmul.mubr.bf16.gmra.mrb[0].mxu0 %v945
      %v1050 = vpop.f32.mrb[0].mxu0
      %v1051 = vadd.f32 0.0, %v1050
      %v1052 = vpop.f32.mrb[0].mxu0
      %v1053 = vpop.f32.mrb[0].mxu0
      %v1054 = vadd.f32 0.0, %v1053
      %v1055 = vpop.f32.mrb[0].mxu0
      %1056 = vmatprep.mubr.bf16.mxu0 0
      %1057 = vmatmul.mubr.bf16.gmra.mrb[0].mxu0 %v946
      %v1058 = vpop.f32.mrb[0].mxu0
      %v1059 = vadd.f32 0.0, %v1058
      %v1060 = vpop.f32.mrb[0].mxu0
      %v1061 = vpop.f32.mrb[0].mxu0
      %v1062 = vadd.f32 0.0, %v1061
      %v1063 = vpop.f32.mrb[0].mxu0
      %1064 = vmatprep.mubr.bf16.mxu0 0
      %1065 = vmatmul.mubr.bf16.gmra.mrb[0].mxu0 %v947
      %v1066 = vpop.f32.mrb[0].mxu0
      %v1067 = vadd.f32 0.0, %v1066
      %v1068 = vpop.f32.mrb[0].mxu0
      %v1069 = vpop.f32.mrb[0].mxu0
      %v1070 = vadd.f32 0.0, %v1069
      %v1071 = vpop.f32.mrb[0].mxu0
      %1072 = vmatprep.mubr.bf16.mxu0 0
      %1073 = vmatmul.mubr.bf16.gmra.mrb[0].mxu0 %v948
      %v1074 = vpop.f32.mrb[0].mxu0
      %v1075 = vadd.f32 0.0, %v1074
      %v1076 = vpop.f32.mrb[0].mxu0
      %v1077 = vpop.f32.mrb[0].mxu0
      %v1078 = vadd.f32 0.0, %v1077
      %v1079 = vpop.f32.mrb[0].mxu0
      %1080 = vmatprep.mubr.bf16.mxu0 0
      %1081 = vmatmul.mubr.bf16.gmra.mrb[0].mxu0 %v949
      %v1082 = vpop.f32.mrb[0].mxu0
      %v1083 = vadd.f32 0.0, %v1082
      %v1084 = vpop.f32.mrb[0].mxu0
      %v1085 = vpop.f32.mrb[0].mxu0
      %v1086 = vadd.f32 0.0, %v1085
      %v1087 = vpop.f32.mrb[0].mxu0
      %1088 = vmatprep.mubr.bf16.mxu0 0
      %1089 = vmatmul.mubr.bf16.gmra.mrb[0].mxu0 %v950
      %v1090 = vpop.f32.mrb[0].mxu0
      %v1091 = vadd.f32 0.0, %v1090
      %v1092 = vpop.f32.mrb[0].mxu0
      %v1093 = vpop.f32.mrb[0].mxu0
      %v1094 = vadd.f32 0.0, %v1093
      %v1095 = vpop.f32.mrb[0].mxu0
      %1096 = vmatprep.mubr.bf16.mxu0 0
      %1097 = vmatmul.mubr.bf16.gmra.mrb[0].mxu0 %v951
      %v1098 = vpop.f32.mrb[0].mxu0
      %v1099 = vadd.f32 0.0, %v1098
      %v1100 = vpop.f32.mrb[0].mxu0
      %v1101 = vpop.f32.mrb[0].mxu0
      %v1102 = vadd.f32 0.0, %v1101
      %v1103 = vpop.f32.mrb[0].mxu0
      %1104 = vdwg.mxu0
      %v1105 = vadd.f32 %v766, %v1043
      %v1106 = vadd.f32 %v769, %v1046
      %v1107 = vadd.f32 %v774, %v1051
      %v1108 = vadd.f32 %v777, %v1054
      %v1109 = vadd.f32 %v782, %v1059
      %v1110 = vadd.f32 %v785, %v1062
      %v1111 = vadd.f32 %v790, %v1067
      %v1112 = vadd.f32 %v793, %v1070
      %v1113 = vadd.f32 %v798, %v1075
      %v1114 = vadd.f32 %v801, %v1078
      %v1115 = vadd.f32 %v806, %v1083
      %v1116 = vadd.f32 %v809, %v1086
      %v1117 = vadd.f32 %v814, %v1091
      %v1118 = vadd.f32 %v817, %v1094
      %v1119 = vadd.f32 %v822, %v1099
      %v1120 = vadd.f32 %v825, %v1102
      %s1121 = sadd.s32 %s202, 1
      %s1122 = smul.u32 %s1121, 3
      %s1123 = smul.addr %s1122, 4
      %s1124 = scalar_lea.vmem %s182, %s1123
      %v1125 = vld [vmem:[%s1124] sm:$0xf]
      %v1126 = vld [vmem:[%s1124 + $0x4] sm:$0xf]
      %v1127 = vld [vmem:[%s1124 + $0xc] sm:$0xf]
      %v1128 = vld [vmem:[%s1124 + $0x10] sm:$0xf]
      %v1129 = vld [vmem:[%s1124 + $0x18] sm:$0xf]
      %v1130 = vld [vmem:[%s1124 + $0x1c] sm:$0xf]
      %v1131 = vld [vmem:[%s1124 + $0x24] sm:$0xf]
      %v1132 = vld [vmem:[%s1124 + $0x28] sm:$0xf]
      %v1133 = vld [vmem:[%s1124 + $0x30] sm:$0xf]
      %v1134 = vld [vmem:[%s1124 + $0x34] sm:$0xf]
      %v1135 = vld [vmem:[%s1124 + $0x3c] sm:$0xf]
      %v1136 = vld [vmem:[%s1124 + $0x40] sm:$0xf]
      %v1137 = vld [vmem:[%s1124 + $0x48] sm:$0xf]
      %v1138 = vld [vmem:[%s1124 + $0x4c] sm:$0xf]
      %v1139 = vld [vmem:[%s1124 + $0x54] sm:$0xf]
      %v1140 = vld [vmem:[%s1124 + $0x58] sm:$0xf]
      %s1141 = scalar_lea.vmem %s186, 192
      %v1142 = vld [vmem:[%s1141] sm:$0xf]
      %v1143 = vld [vmem:[%s1141 + $0x4] sm:$0xf]
      %v1144 = vld [vmem:[%s1141 + $0x8] sm:$0xf]
      %v1145 = vld [vmem:[%s1141 + $0xc] sm:$0xf]
      %v1146 = vld [vmem:[%s1141 + $0x10] sm:$0xf]
      %v1147 = vld [vmem:[%s1141 + $0x14] sm:$0xf]
      %v1148 = vld [vmem:[%s1141 + $0x18] sm:$0xf]
      %v1149 = vld [vmem:[%s1141 + $0x1c] sm:$0xf]
      %v1150 = vld [vmem:[%s1141 + $0x20] sm:$0xf]
      %v1151 = vld [vmem:[%s1141 + $0x24] sm:$0xf]
      %v1152 = vld [vmem:[%s1141 + $0x28] sm:$0xf]
      %v1153 = vld [vmem:[%s1141 + $0x2c] sm:$0xf]
      %v1154 = vld [vmem:[%s1141 + $0x30] sm:$0xf]
      %v1155 = vld [vmem:[%s1141 + $0x34] sm:$0xf]
      %v1156 = vld [vmem:[%s1141 + $0x38] sm:$0xf]
      %v1157 = vld [vmem:[%s1141 + $0x3c] sm:$0xf]
      %v1174 = vunpack.c.l.b16 %v1125
      %v1175 = vunpack.c.l.b16 %v1126
      %v1176 = vunpack.c.l.b16 %v1127
      %v1177 = vunpack.c.l.b16 %v1128
      %v1178 = vunpack.c.l.b16 %v1129
      %v1179 = vunpack.c.l.b16 %v1130
      %v1180 = vunpack.c.l.b16 %v1131
      %v1181 = vunpack.c.l.b16 %v1132
      %v1182 = vunpack.c.l.b16 %v1133
      %v1183 = vunpack.c.l.b16 %v1134
      %v1184 = vunpack.c.l.b16 %v1135
      %v1185 = vunpack.c.l.b16 %v1136
      %v1186 = vunpack.c.l.b16 %v1137
      %v1187 = vunpack.c.l.b16 %v1138
      %v1188 = vunpack.c.l.b16 %v1139
      %v1189 = vunpack.c.l.b16 %v1140
      %v1190 = vpack.c.b16 %v1175, %v1174
      %v1191 = vpack.c.b16 %v1177, %v1176
      %v1192 = vpack.c.b16 %v1179, %v1178
      %v1193 = vpack.c.b16 %v1181, %v1180
      %v1194 = vpack.c.b16 %v1183, %v1182
      %v1195 = vpack.c.b16 %v1185, %v1184
      %v1196 = vpack.c.b16 %v1187, %v1186
      %v1197 = vpack.c.b16 %v1189, %v1188
      %v1222 = vunpack.c.l.b16 %v1142
      %v1223 = vunpack.c.l.b16 %v1143
      %v1224 = vunpack.c.l.b16 %v1144
      %v1225 = vunpack.c.l.b16 %v1145
      %v1226 = vunpack.c.l.b16 %v1146
      %v1227 = vunpack.c.l.b16 %v1147
      %v1228 = vunpack.c.l.b16 %v1148
      %v1229 = vunpack.c.l.b16 %v1149
      %v1230 = vunpack.c.l.b16 %v1150
      %v1231 = vunpack.c.l.b16 %v1151
      %v1232 = vunpack.c.l.b16 %v1152
      %v1233 = vunpack.c.l.b16 %v1153
      %v1234 = vunpack.c.l.b16 %v1154
      %v1235 = vunpack.c.l.b16 %v1155
      %v1236 = vunpack.c.l.b16 %v1156
      %v1237 = vunpack.c.l.b16 %v1157
      %v1238 = vpack.c.b16 %v1223, %v1222
      %v1239 = vpack.c.b16 %v1225, %v1224
      %v1240 = vpack.c.b16 %v1227, %v1226
      %v1241 = vpack.c.b16 %v1229, %v1228
      %v1242 = vpack.c.b16 %v1231, %v1230
      %v1243 = vpack.c.b16 %v1233, %v1232
      %v1244 = vpack.c.b16 %v1235, %v1234
      %v1245 = vpack.c.b16 %v1237, %v1236
      %1254 = vmatprep.subr.bf16.mxu0 0
      %1255 = vmatpush1.bf16.msra.mxu0 %v1238
      %1256 = vmatprep.subr.bf16.mxu0 0
      %1257 = vmatpush1.bf16.msra.mxu0 %v1239
      %1258 = vmatprep.subr.bf16.mxu0 0
      %1259 = vmatpush1.bf16.msra.mxu0 %v1240
      %1260 = vmatprep.subr.bf16.mxu0 0
      %1261 = vmatpush1.bf16.msra.mxu0 %v1241
      %1262 = vmatprep.subr.bf16.mxu0 0
      %1263 = vmatpush1.bf16.msra.mxu0 %v1242
      %1264 = vmatprep.subr.bf16.mxu0 0
      %1265 = vmatpush1.bf16.msra.mxu0 %v1243
      %1266 = vmatprep.subr.bf16.mxu0 0
      %1267 = vmatpush1.bf16.msra.mxu0 %v1244
      %1268 = vmatprep.subr.bf16.mxu0 0
      %1269 = vmatpush1.bf16.msra.mxu0 %v1245
      %1270 = vmatprep.subr.bf16.mxu0 0
      %1271 = vmatpush1.bf16.msra.mxu0 0
      %1272 = vmatprep.subr.bf16.mxu0 0
      %1273 = vmatpush1.bf16.msra.mxu0 0
      %1274 = vmatprep.subr.bf16.mxu0 0
      %1275 = vmatpush1.bf16.msra.mxu0 0
      %1276 = vmatprep.subr.bf16.mxu0 0
      %1277 = vmatpush1.bf16.msra.mxu0 0
      %1278 = vmatprep.subr.bf16.mxu0 0
      %1279 = vmatpush1.bf16.msra.mxu0 0
      %1280 = vmatprep.subr.bf16.mxu0 0
      %1281 = vmatpush1.bf16.msra.mxu0 0
      %1282 = vmatprep.subr.bf16.mxu0 0
      %1283 = vmatpush1.bf16.msra.mxu0 0
      %1284 = vmatprep.subr.bf16.mxu0 0
      %1285 = vmatpush1.bf16.msra.mxu0 0
      %1286 = vmatprep.mubr.bf16.mxu0 0
      %1287 = vmatmul.mubr.bf16.gmra.mrb[0].mxu0 %v1190
      %v1288 = vpop.f32.mrb[0].mxu0
      %v1289 = vadd.f32 0.0, %v1288
      %v1290 = vpop.f32.mrb[0].mxu0
      %v1291 = vpop.f32.mrb[0].mxu0
      %v1292 = vadd.f32 0.0, %v1291
      %v1293 = vpop.f32.mrb[0].mxu0
      %1294 = vmatprep.mubr.bf16.mxu0 0
      %1295 = vmatmul.mubr.bf16.gmra.mrb[0].mxu0 %v1191
      %v1296 = vpop.f32.mrb[0].mxu0
      %v1297 = vadd.f32 0.0, %v1296
      %v1298 = vpop.f32.mrb[0].mxu0
      %v1299 = vpop.f32.mrb[0].mxu0
      %v1300 = vadd.f32 0.0, %v1299
      %v1301 = vpop.f32.mrb[0].mxu0
      %1302 = vmatprep.mubr.bf16.mxu0 0
      %1303 = vmatmul.mubr.bf16.gmra.mrb[0].mxu0 %v1192
      %v1304 = vpop.f32.mrb[0].mxu0
      %v1305 = vadd.f32 0.0, %v1304
      %v1306 = vpop.f32.mrb[0].mxu0
      %v1307 = vpop.f32.mrb[0].mxu0
      %v1308 = vadd.f32 0.0, %v1307
      %v1309 = vpop.f32.mrb[0].mxu0
      %1310 = vmatprep.mubr.bf16.mxu0 0
      %1311 = vmatmul.mubr.bf16.gmra.mrb[0].mxu0 %v1193
      %v1312 = vpop.f32.mrb[0].mxu0
      %v1313 = vadd.f32 0.0, %v1312
      %v1314 = vpop.f32.mrb[0].mxu0
      %v1315 = vpop.f32.mrb[0].mxu0
      %v1316 = vadd.f32 0.0, %v1315
      %v1317 = vpop.f32.mrb[0].mxu0
      %1318 = vmatprep.mubr.bf16.mxu0 0
      %1319 = vmatmul.mubr.bf16.gmra.mrb[0].mxu0 %v1194
      %v1320 = vpop.f32.mrb[0].mxu0
      %v1321 = vadd.f32 0.0, %v1320
      %v1322 = vpop.f32.mrb[0].mxu0
      %v1323 = vpop.f32.mrb[0].mxu0
      %v1324 = vadd.f32 0.0, %v1323
      %v1325 = vpop.f32.mrb[0].mxu0
      %1326 = vmatprep.mubr.bf16.mxu0 0
      %1327 = vmatmul.mubr.bf16.gmra.mrb[0].mxu0 %v1195
      %v1328 = vpop.f32.mrb[0].mxu0
      %v1329 = vadd.f32 0.0, %v1328
      %v1330 = vpop.f32.mrb[0].mxu0
      %v1331 = vpop.f32.mrb[0].mxu0
      %v1332 = vadd.f32 0.0, %v1331
      %v1333 = vpop.f32.mrb[0].mxu0
      %1334 = vmatprep.mubr.bf16.mxu0 0
      %1335 = vmatmul.mubr.bf16.gmra.mrb[0].mxu0 %v1196
      %v1336 = vpop.f32.mrb[0].mxu0
      %v1337 = vadd.f32 0.0, %v1336
      %v1338 = vpop.f32.mrb[0].mxu0
      %v1339 = vpop.f32.mrb[0].mxu0
      %v1340 = vadd.f32 0.0, %v1339
      %v1341 = vpop.f32.mrb[0].mxu0
      %1342 = vmatprep.mubr.bf16.mxu0 0
      %1343 = vmatmul.mubr.bf16.gmra.mrb[0].mxu0 %v1197
      %v1344 = vpop.f32.mrb[0].mxu0
      %v1345 = vadd.f32 0.0, %v1344
      %v1346 = vpop.f32.mrb[0].mxu0
      %v1347 = vpop.f32.mrb[0].mxu0
      %v1348 = vadd.f32 0.0, %v1347
      %v1349 = vpop.f32.mrb[0].mxu0
      %1350 = vdwg.mxu0
      %v1351 = vadd.f32 %v1105, %v1289
      %v1352 = vadd.f32 %v1106, %v1292
      %v1353 = vadd.f32 %v1107, %v1297
      %v1354 = vadd.f32 %v1108, %v1300
      %v1355 = vadd.f32 %v1109, %v1305
      %v1356 = vadd.f32 %v1110, %v1308
      %v1357 = vadd.f32 %v1111, %v1313
      %v1358 = vadd.f32 %v1112, %v1316
      %v1359 = vadd.f32 %v1113, %v1321
      %v1360 = vadd.f32 %v1114, %v1324
      %v1361 = vadd.f32 %v1115, %v1329
      %v1362 = vadd.f32 %v1116, %v1332
      %v1363 = vadd.f32 %v1117, %v1337
      %v1364 = vadd.f32 %v1118, %v1340
      %v1365 = vadd.f32 %v1119, %v1345
      %v1366 = vadd.f32 %v1120, %v1348
      %v1367 = vld [vmem:[%s1124] sm:$0xf]
      %v1368 = vld [vmem:[%s1124 + $0x4] sm:$0xf]
      %v1369 = vld [vmem:[%s1124 + $0x8] sm:$0x1]
      %v1370 = vld [vmem:[%s1124 + $0xc] sm:$0xf]
      %v1371 = vld [vmem:[%s1124 + $0x10] sm:$0xf]
      %v1372 = vld [vmem:[%s1124 + $0x14] sm:$0x1]
      %v1373 = vld [vmem:[%s1124 + $0x18] sm:$0xf]
      %v1374 = vld [vmem:[%s1124 + $0x1c] sm:$0xf]
      %v1375 = vld [vmem:[%s1124 + $0x20] sm:$0x1]
      %v1376 = vld [vmem:[%s1124 + $0x24] sm:$0xf]
      %v1377 = vld [vmem:[%s1124 + $0x28] sm:$0xf]
      %v1378 = vld [vmem:[%s1124 + $0x2c] sm:$0x1]
      %v1379 = vld [vmem:[%s1124 + $0x30] sm:$0xf]
      %v1380 = vld [vmem:[%s1124 + $0x34] sm:$0xf]
      %v1381 = vld [vmem:[%s1124 + $0x38] sm:$0x1]
      %v1382 = vld [vmem:[%s1124 + $0x3c] sm:$0xf]
      %v1383 = vld [vmem:[%s1124 + $0x40] sm:$0xf]
      %v1384 = vld [vmem:[%s1124 + $0x44] sm:$0x1]
      %v1385 = vld [vmem:[%s1124 + $0x48] sm:$0xf]
      %v1386 = vld [vmem:[%s1124 + $0x4c] sm:$0xf]
      %v1387 = vld [vmem:[%s1124 + $0x50] sm:$0x1]
      %v1388 = vld [vmem:[%s1124 + $0x54] sm:$0xf]
      %v1389 = vld [vmem:[%s1124 + $0x58] sm:$0xf]
      %v1390 = vld [vmem:[%s1124 + $0x5c] sm:$0x1]
      %v1392 = vshrl.u32 %v1367, 16
      %v1394 = vrot.slane %v1392, 4
      %v1395 = vshll.u32 %v1367, 16
      %v1397 = vrot.slane %v1395, 5
      %v1398 = vor.u32 %v1394, %v1397
      %v1399 = vrot.slane %v1398, 4
      %v1401 = vshll.u32 %v1368, 16
      %v1403 = vrot.slane %v1401, 5
      %v1404 = vsel %vm248, %v1399, %v1403
      %v1405 = vshrl.u32 %v1368, 16
      %v1407 = vrot.slane %v1405, 4
      %v1408 = vor.u32 %v1407, %v1403
      %v1409 = vrot.slane %v1408, 4
      %v1411 = vshll.u32 %v1369, 16
      %v1413 = vrot.slane %v1411, 5
      %v1414 = vsel %vm248, %v1409, %v1413
      %v1416 = vshrl.u32 %v1370, 16
      %v1418 = vrot.slane %v1416, 4
      %v1419 = vshll.u32 %v1370, 16
      %v1421 = vrot.slane %v1419, 5
      %v1422 = vor.u32 %v1418, %v1421
      %v1423 = vrot.slane %v1422, 4
      %v1425 = vshll.u32 %v1371, 16
      %v1427 = vrot.slane %v1425, 5
      %v1428 = vsel %vm248, %v1423, %v1427
      %v1429 = vshrl.u32 %v1371, 16
      %v1431 = vrot.slane %v1429, 4
      %v1432 = vor.u32 %v1431, %v1427
      %v1433 = vrot.slane %v1432, 4
      %v1435 = vshll.u32 %v1372, 16
      %v1437 = vrot.slane %v1435, 5
      %v1438 = vsel %vm248, %v1433, %v1437
      %v1440 = vshrl.u32 %v1373, 16
      %v1442 = vrot.slane %v1440, 4
      %v1443 = vshll.u32 %v1373, 16
      %v1445 = vrot.slane %v1443, 5
      %v1446 = vor.u32 %v1442, %v1445
      %v1447 = vrot.slane %v1446, 4
      %v1449 = vshll.u32 %v1374, 16
      %v1451 = vrot.slane %v1449, 5
      %v1452 = vsel %vm248, %v1447, %v1451
      %v1453 = vshrl.u32 %v1374, 16
      %v1455 = vrot.slane %v1453, 4
      %v1456 = vor.u32 %v1455, %v1451
      %v1457 = vrot.slane %v1456, 4
      %v1459 = vshll.u32 %v1375, 16
      %v1461 = vrot.slane %v1459, 5
      %v1462 = vsel %vm248, %v1457, %v1461
      %v1464 = vshrl.u32 %v1376, 16
      %v1466 = vrot.slane %v1464, 4
      %v1467 = vshll.u32 %v1376, 16
      %v1469 = vrot.slane %v1467, 5
      %v1470 = vor.u32 %v1466, %v1469
      %v1471 = vrot.slane %v1470, 4
      %v1473 = vshll.u32 %v1377, 16
      %v1475 = vrot.slane %v1473, 5
      %v1476 = vsel %vm248, %v1471, %v1475
      %v1477 = vshrl.u32 %v1377, 16
      %v1479 = vrot.slane %v1477, 4
      %v1480 = vor.u32 %v1479, %v1475
      %v1481 = vrot.slane %v1480, 4
      %v1483 = vshll.u32 %v1378, 16
      %v1485 = vrot.slane %v1483, 5
      %v1486 = vsel %vm248, %v1481, %v1485
      %v1488 = vshrl.u32 %v1379, 16
      %v1490 = vrot.slane %v1488, 4
      %v1491 = vshll.u32 %v1379, 16
      %v1493 = vrot.slane %v1491, 5
      %v1494 = vor.u32 %v1490, %v1493
      %v1495 = vrot.slane %v1494, 4
      %v1497 = vshll.u32 %v1380, 16
      %v1499 = vrot.slane %v1497, 5
      %v1500 = vsel %vm248, %v1495, %v1499
      %v1501 = vshrl.u32 %v1380, 16
      %v1503 = vrot.slane %v1501, 4
      %v1504 = vor.u32 %v1503, %v1499
      %v1505 = vrot.slane %v1504, 4
      %v1507 = vshll.u32 %v1381, 16
      %v1509 = vrot.slane %v1507, 5
      %v1510 = vsel %vm248, %v1505, %v1509
      %v1512 = vshrl.u32 %v1382, 16
      %v1514 = vrot.slane %v1512, 4
      %v1515 = vshll.u32 %v1382, 16
      %v1517 = vrot.slane %v1515, 5
      %v1518 = vor.u32 %v1514, %v1517
      %v1519 = vrot.slane %v1518, 4
      %v1521 = vshll.u32 %v1383, 16
      %v1523 = vrot.slane %v1521, 5
      %v1524 = vsel %vm248, %v1519, %v1523
      %v1525 = vshrl.u32 %v1383, 16
      %v1527 = vrot.slane %v1525, 4
      %v1528 = vor.u32 %v1527, %v1523
      %v1529 = vrot.slane %v1528, 4
      %v1531 = vshll.u32 %v1384, 16
      %v1533 = vrot.slane %v1531, 5
      %v1534 = vsel %vm248, %v1529, %v1533
      %v1536 = vshrl.u32 %v1385, 16
      %v1538 = vrot.slane %v1536, 4
      %v1539 = vshll.u32 %v1385, 16
      %v1541 = vrot.slane %v1539, 5
      %v1542 = vor.u32 %v1538, %v1541
      %v1543 = vrot.slane %v1542, 4
      %v1545 = vshll.u32 %v1386, 16
      %v1547 = vrot.slane %v1545, 5
      %v1548 = vsel %vm248, %v1543, %v1547
      %v1549 = vshrl.u32 %v1386, 16
      %v1551 = vrot.slane %v1549, 4
      %v1552 = vor.u32 %v1551, %v1547
      %v1553 = vrot.slane %v1552, 4
      %v1555 = vshll.u32 %v1387, 16
      %v1557 = vrot.slane %v1555, 5
      %v1558 = vsel %vm248, %v1553, %v1557
      %v1560 = vshrl.u32 %v1388, 16
      %v1562 = vrot.slane %v1560, 4
      %v1563 = vshll.u32 %v1388, 16
      %v1565 = vrot.slane %v1563, 5
      %v1566 = vor.u32 %v1562, %v1565
      %v1567 = vrot.slane %v1566, 4
      %v1569 = vshll.u32 %v1389, 16
      %v1571 = vrot.slane %v1569, 5
      %v1572 = vsel %vm248, %v1567, %v1571
      %v1573 = vshrl.u32 %v1389, 16
      %v1575 = vrot.slane %v1573, 4
      %v1576 = vor.u32 %v1575, %v1571
      %v1577 = vrot.slane %v1576, 4
      %v1579 = vshll.u32 %v1390, 16
      %v1581 = vrot.slane %v1579, 5
      %v1582 = vsel %vm248, %v1577, %v1581
      %s1583 = scalar_lea.vmem %s186, 256
      %v1584 = vld [vmem:[%s1583] sm:$0xf]
      %v1585 = vld [vmem:[%s1583 + $0x4] sm:$0xf]
      %v1586 = vld [vmem:[%s1583 + $0x8] sm:$0xf]
      %v1587 = vld [vmem:[%s1583 + $0xc] sm:$0xf]
      %v1588 = vld [vmem:[%s1583 + $0x10] sm:$0xf]
      %v1589 = vld [vmem:[%s1583 + $0x14] sm:$0xf]
      %v1590 = vld [vmem:[%s1583 + $0x18] sm:$0xf]
      %v1591 = vld [vmem:[%s1583 + $0x1c] sm:$0xf]
      %v1592 = vld [vmem:[%s1583 + $0x20] sm:$0xf]
      %v1593 = vld [vmem:[%s1583 + $0x24] sm:$0xf]
      %v1594 = vld [vmem:[%s1583 + $0x28] sm:$0xf]
      %v1595 = vld [vmem:[%s1583 + $0x2c] sm:$0xf]
      %v1596 = vld [vmem:[%s1583 + $0x30] sm:$0xf]
      %v1597 = vld [vmem:[%s1583 + $0x34] sm:$0xf]
      %v1598 = vld [vmem:[%s1583 + $0x38] sm:$0xf]
      %v1599 = vld [vmem:[%s1583 + $0x3c] sm:$0xf]
      %v1600 = vunpack.c.l.b16 %v1404
      %v1601 = vunpack.c.l.b16 %v1414
      %v1602 = vunpack.c.l.b16 %v1428
      %v1603 = vunpack.c.l.b16 %v1438
      %v1604 = vunpack.c.l.b16 %v1452
      %v1605 = vunpack.c.l.b16 %v1462
      %v1606 = vunpack.c.l.b16 %v1476
      %v1607 = vunpack.c.l.b16 %v1486
      %v1608 = vunpack.c.l.b16 %v1500
      %v1609 = vunpack.c.l.b16 %v1510
      %v1610 = vunpack.c.l.b16 %v1524
      %v1611 = vunpack.c.l.b16 %v1534
      %v1612 = vunpack.c.l.b16 %v1548
      %v1613 = vunpack.c.l.b16 %v1558
      %v1614 = vunpack.c.l.b16 %v1572
      %v1615 = vunpack.c.l.b16 %v1582
      %v1616 = vpack.c.b16 %v1601, %v1600
      %v1617 = vpack.c.b16 %v1603, %v1602
      %v1618 = vpack.c.b16 %v1605, %v1604
      %v1619 = vpack.c.b16 %v1607, %v1606
      %v1620 = vpack.c.b16 %v1609, %v1608
      %v1621 = vpack.c.b16 %v1611, %v1610
      %v1622 = vpack.c.b16 %v1613, %v1612
      %v1623 = vpack.c.b16 %v1615, %v1614
      %v1648 = vunpack.c.l.b16 %v1584
      %v1649 = vunpack.c.l.b16 %v1585
      %v1650 = vunpack.c.l.b16 %v1586
      %v1651 = vunpack.c.l.b16 %v1587
      %v1652 = vunpack.c.l.b16 %v1588
      %v1653 = vunpack.c.l.b16 %v1589
      %v1654 = vunpack.c.l.b16 %v1590
      %v1655 = vunpack.c.l.b16 %v1591
      %v1656 = vunpack.c.l.b16 %v1592
      %v1657 = vunpack.c.l.b16 %v1593
      %v1658 = vunpack.c.l.b16 %v1594
      %v1659 = vunpack.c.l.b16 %v1595
      %v1660 = vunpack.c.l.b16 %v1596
      %v1661 = vunpack.c.l.b16 %v1597
      %v1662 = vunpack.c.l.b16 %v1598
      %v1663 = vunpack.c.l.b16 %v1599
      %v1664 = vpack.c.b16 %v1649, %v1648
      %v1665 = vpack.c.b16 %v1651, %v1650
      %v1666 = vpack.c.b16 %v1653, %v1652
      %v1667 = vpack.c.b16 %v1655, %v1654
      %v1668 = vpack.c.b16 %v1657, %v1656
      %v1669 = vpack.c.b16 %v1659, %v1658
      %v1670 = vpack.c.b16 %v1661, %v1660
      %v1671 = vpack.c.b16 %v1663, %v1662
      %1680 = vmatprep.subr.bf16.mxu0 0
      %1681 = vmatpush1.bf16.msra.mxu0 %v1664
      %1682 = vmatprep.subr.bf16.mxu0 0
      %1683 = vmatpush1.bf16.msra.mxu0 %v1665
      %1684 = vmatprep.subr.bf16.mxu0 0
      %1685 = vmatpush1.bf16.msra.mxu0 %v1666
      %1686 = vmatprep.subr.bf16.mxu0 0
      %1687 = vmatpush1.bf16.msra.mxu0 %v1667
      %1688 = vmatprep.subr.bf16.mxu0 0
      %1689 = vmatpush1.bf16.msra.mxu0 %v1668
      %1690 = vmatprep.subr.bf16.mxu0 0
      %1691 = vmatpush1.bf16.msra.mxu0 %v1669
      %1692 = vmatprep.subr.bf16.mxu0 0
      %1693 = vmatpush1.bf16.msra.mxu0 %v1670
      %1694 = vmatprep.subr.bf16.mxu0 0
      %1695 = vmatpush1.bf16.msra.mxu0 %v1671
      %1696 = vmatprep.subr.bf16.mxu0 0
      %1697 = vmatpush1.bf16.msra.mxu0 0
      %1698 = vmatprep.subr.bf16.mxu0 0
      %1699 = vmatpush1.bf16.msra.mxu0 0
      %1700 = vmatprep.subr.bf16.mxu0 0
      %1701 = vmatpush1.bf16.msra.mxu0 0
      %1702 = vmatprep.subr.bf16.mxu0 0
      %1703 = vmatpush1.bf16.msra.mxu0 0
      %1704 = vmatprep.subr.bf16.mxu0 0
      %1705 = vmatpush1.bf16.msra.mxu0 0
      %1706 = vmatprep.subr.bf16.mxu0 0
      %1707 = vmatpush1.bf16.msra.mxu0 0
      %1708 = vmatprep.subr.bf16.mxu0 0
      %1709 = vmatpush1.bf16.msra.mxu0 0
      %1710 = vmatprep.subr.bf16.mxu0 0
      %1711 = vmatpush1.bf16.msra.mxu0 0
      %1712 = vmatprep.mubr.bf16.mxu0 0
      %1713 = vmatmul.mubr.bf16.gmra.mrb[0].mxu0 %v1616
      %v1714 = vpop.f32.mrb[0].mxu0
      %v1715 = vadd.f32 0.0, %v1714
      %v1716 = vpop.f32.mrb[0].mxu0
      %v1717 = vpop.f32.mrb[0].mxu0
      %v1718 = vadd.f32 0.0, %v1717
      %v1719 = vpop.f32.mrb[0].mxu0
      %1720 = vmatprep.mubr.bf16.mxu0 0
      %1721 = vmatmul.mubr.bf16.gmra.mrb[0].mxu0 %v1617
      %v1722 = vpop.f32.mrb[0].mxu0
      %v1723 = vadd.f32 0.0, %v1722
      %v1724 = vpop.f32.mrb[0].mxu0
      %v1725 = vpop.f32.mrb[0].mxu0
      %v1726 = vadd.f32 0.0, %v1725
      %v1727 = vpop.f32.mrb[0].mxu0
      %1728 = vmatprep.mubr.bf16.mxu0 0
      %1729 = vmatmul.mubr.bf16.gmra.mrb[0].mxu0 %v1618
      %v1730 = vpop.f32.mrb[0].mxu0
      %v1731 = vadd.f32 0.0, %v1730
      %v1732 = vpop.f32.mrb[0].mxu0
      %v1733 = vpop.f32.mrb[0].mxu0
      %v1734 = vadd.f32 0.0, %v1733
      %v1735 = vpop.f32.mrb[0].mxu0
      %1736 = vmatprep.mubr.bf16.mxu0 0
      %1737 = vmatmul.mubr.bf16.gmra.mrb[0].mxu0 %v1619
      %v1738 = vpop.f32.mrb[0].mxu0
      %v1739 = vadd.f32 0.0, %v1738
      %v1740 = vpop.f32.mrb[0].mxu0
      %v1741 = vpop.f32.mrb[0].mxu0
      %v1742 = vadd.f32 0.0, %v1741
      %v1743 = vpop.f32.mrb[0].mxu0
      %1744 = vmatprep.mubr.bf16.mxu0 0
      %1745 = vmatmul.mubr.bf16.gmra.mrb[0].mxu0 %v1620
      %v1746 = vpop.f32.mrb[0].mxu0
      %v1747 = vadd.f32 0.0, %v1746
      %v1748 = vpop.f32.mrb[0].mxu0
      %v1749 = vpop.f32.mrb[0].mxu0
      %v1750 = vadd.f32 0.0, %v1749
      %v1751 = vpop.f32.mrb[0].mxu0
      %1752 = vmatprep.mubr.bf16.mxu0 0
      %1753 = vmatmul.mubr.bf16.gmra.mrb[0].mxu0 %v1621
      %v1754 = vpop.f32.mrb[0].mxu0
      %v1755 = vadd.f32 0.0, %v1754
      %v1756 = vpop.f32.mrb[0].mxu0
      %v1757 = vpop.f32.mrb[0].mxu0
      %v1758 = vadd.f32 0.0, %v1757
      %v1759 = vpop.f32.mrb[0].mxu0
      %1760 = vmatprep.mubr.bf16.mxu0 0
      %1761 = vmatmul.mubr.bf16.gmra.mrb[0].mxu0 %v1622
      %v1762 = vpop.f32.mrb[0].mxu0
      %v1763 = vadd.f32 0.0, %v1762
      %v1764 = vpop.f32.mrb[0].mxu0
      %v1765 = vpop.f32.mrb[0].mxu0
      %v1766 = vadd.f32 0.0, %v1765
      %v1767 = vpop.f32.mrb[0].mxu0
      %1768 = vmatprep.mubr.bf16.mxu0 0
      %1769 = vmatmul.mubr.bf16.gmra.mrb[0].mxu0 %v1623
      %v1770 = vpop.f32.mrb[0].mxu0
      %v1771 = vadd.f32 0.0, %v1770
      %v1772 = vpop.f32.mrb[0].mxu0
      %v1773 = vpop.f32.mrb[0].mxu0
      %v1774 = vadd.f32 0.0, %v1773
      %v1775 = vpop.f32.mrb[0].mxu0
      %1776 = vdwg.mxu0
      %v1777 = vadd.f32 %v1351, %v1715
      %v1778 = vadd.f32 %v1352, %v1718
      %v1779 = vadd.f32 %v1353, %v1723
      %v1780 = vadd.f32 %v1354, %v1726
      %v1781 = vadd.f32 %v1355, %v1731
      %v1782 = vadd.f32 %v1356, %v1734
      %v1783 = vadd.f32 %v1357, %v1739
      %v1784 = vadd.f32 %v1358, %v1742
      %v1785 = vadd.f32 %v1359, %v1747
      %v1786 = vadd.f32 %v1360, %v1750
      %v1787 = vadd.f32 %v1361, %v1755
      %v1788 = vadd.f32 %v1362, %v1758
      %v1789 = vadd.f32 %v1363, %v1763
      %v1790 = vadd.f32 %v1364, %v1766
      %v1791 = vadd.f32 %v1365, %v1771
      %v1792 = vadd.f32 %v1366, %v1774
      %v1793 = vld [vmem:[%s1124] sm:$0xe]
      %v1794 = vld [vmem:[%s1124 + $0xc] sm:$0xe]
      %v1795 = vld [vmem:[%s1124 + $0x18] sm:$0xe]
      %v1796 = vld [vmem:[%s1124 + $0x24] sm:$0xe]
      %v1797 = vld [vmem:[%s1124 + $0x30] sm:$0xe]
      %v1798 = vld [vmem:[%s1124 + $0x3c] sm:$0xe]
      %v1799 = vld [vmem:[%s1124 + $0x48] sm:$0xe]
      %v1800 = vld [vmem:[%s1124 + $0x54] sm:$0xe]
      %v1825 = vrot.slane %v1793, 5
      %v1826 = vrot.slane %v1825, 4
      %v1827 = vrot.slane %v1368, 5
      %v1828 = vsel %vm854, %v1826, %v1827
      %v1829 = vrot.slane %v1827, 4
      %v1830 = vrot.slane %v1369, 5
      %v1831 = vsel %vm854, %v1829, %v1830
      %v1832 = vrot.slane %v1794, 5
      %v1833 = vrot.slane %v1832, 4
      %v1834 = vrot.slane %v1371, 5
      %v1835 = vsel %vm854, %v1833, %v1834
      %v1836 = vrot.slane %v1834, 4
      %v1837 = vrot.slane %v1372, 5
      %v1838 = vsel %vm854, %v1836, %v1837
      %v1839 = vrot.slane %v1795, 5
      %v1840 = vrot.slane %v1839, 4
      %v1841 = vrot.slane %v1374, 5
      %v1842 = vsel %vm854, %v1840, %v1841
      %v1843 = vrot.slane %v1841, 4
      %v1844 = vrot.slane %v1375, 5
      %v1845 = vsel %vm854, %v1843, %v1844
      %v1846 = vrot.slane %v1796, 5
      %v1847 = vrot.slane %v1846, 4
      %v1848 = vrot.slane %v1377, 5
      %v1849 = vsel %vm854, %v1847, %v1848
      %v1850 = vrot.slane %v1848, 4
      %v1851 = vrot.slane %v1378, 5
      %v1852 = vsel %vm854, %v1850, %v1851
      %v1853 = vrot.slane %v1797, 5
      %v1854 = vrot.slane %v1853, 4
      %v1855 = vrot.slane %v1380, 5
      %v1856 = vsel %vm854, %v1854, %v1855
      %v1857 = vrot.slane %v1855, 4
      %v1858 = vrot.slane %v1381, 5
      %v1859 = vsel %vm854, %v1857, %v1858
      %v1860 = vrot.slane %v1798, 5
      %v1861 = vrot.slane %v1860, 4
      %v1862 = vrot.slane %v1383, 5
      %v1863 = vsel %vm854, %v1861, %v1862
      %v1864 = vrot.slane %v1862, 4
      %v1865 = vrot.slane %v1384, 5
      %v1866 = vsel %vm854, %v1864, %v1865
      %v1867 = vrot.slane %v1799, 5
      %v1868 = vrot.slane %v1867, 4
      %v1869 = vrot.slane %v1386, 5
      %v1870 = vsel %vm854, %v1868, %v1869
      %v1871 = vrot.slane %v1869, 4
      %v1872 = vrot.slane %v1387, 5
      %v1873 = vsel %vm854, %v1871, %v1872
      %v1874 = vrot.slane %v1800, 5
      %v1875 = vrot.slane %v1874, 4
      %v1876 = vrot.slane %v1389, 5
      %v1877 = vsel %vm854, %v1875, %v1876
      %v1878 = vrot.slane %v1876, 4
      %v1879 = vrot.slane %v1390, 5
      %v1880 = vsel %vm854, %v1878, %v1879
      %s1881 = scalar_lea.vmem %s186, 320
      %v1882 = vld [vmem:[%s1881] sm:$0xf]
      %v1883 = vld [vmem:[%s1881 + $0x4] sm:$0xf]
      %v1884 = vld [vmem:[%s1881 + $0x8] sm:$0xf]
      %v1885 = vld [vmem:[%s1881 + $0xc] sm:$0xf]
      %v1886 = vld [vmem:[%s1881 + $0x10] sm:$0xf]
      %v1887 = vld [vmem:[%s1881 + $0x14] sm:$0xf]
      %v1888 = vld [vmem:[%s1881 + $0x18] sm:$0xf]
      %v1889 = vld [vmem:[%s1881 + $0x1c] sm:$0xf]
      %v1890 = vld [vmem:[%s1881 + $0x20] sm:$0xf]
      %v1891 = vld [vmem:[%s1881 + $0x24] sm:$0xf]
      %v1892 = vld [vmem:[%s1881 + $0x28] sm:$0xf]
      %v1893 = vld [vmem:[%s1881 + $0x2c] sm:$0xf]
      %v1894 = vld [vmem:[%s1881 + $0x30] sm:$0xf]
      %v1895 = vld [vmem:[%s1881 + $0x34] sm:$0xf]
      %v1896 = vld [vmem:[%s1881 + $0x38] sm:$0xf]
      %v1897 = vld [vmem:[%s1881 + $0x3c] sm:$0xf]
      %v1898 = vunpack.c.l.b16 %v1828
      %v1899 = vunpack.c.l.b16 %v1831
      %v1900 = vunpack.c.l.b16 %v1835
      %v1901 = vunpack.c.l.b16 %v1838
      %v1902 = vunpack.c.l.b16 %v1842
      %v1903 = vunpack.c.l.b16 %v1845
      %v1904 = vunpack.c.l.b16 %v1849
      %v1905 = vunpack.c.l.b16 %v1852
      %v1906 = vunpack.c.l.b16 %v1856
      %v1907 = vunpack.c.l.b16 %v1859
      %v1908 = vunpack.c.l.b16 %v1863
      %v1909 = vunpack.c.l.b16 %v1866
      %v1910 = vunpack.c.l.b16 %v1870
      %v1911 = vunpack.c.l.b16 %v1873
      %v1912 = vunpack.c.l.b16 %v1877
      %v1913 = vunpack.c.l.b16 %v1880
      %v1914 = vpack.c.b16 %v1899, %v1898
      %v1915 = vpack.c.b16 %v1901, %v1900
      %v1916 = vpack.c.b16 %v1903, %v1902
      %v1917 = vpack.c.b16 %v1905, %v1904
      %v1918 = vpack.c.b16 %v1907, %v1906
      %v1919 = vpack.c.b16 %v1909, %v1908
      %v1920 = vpack.c.b16 %v1911, %v1910
      %v1921 = vpack.c.b16 %v1913, %v1912
      %v1946 = vunpack.c.l.b16 %v1882
      %v1947 = vunpack.c.l.b16 %v1883
      %v1948 = vunpack.c.l.b16 %v1884
      %v1949 = vunpack.c.l.b16 %v1885
      %v1950 = vunpack.c.l.b16 %v1886
      %v1951 = vunpack.c.l.b16 %v1887
      %v1952 = vunpack.c.l.b16 %v1888
      %v1953 = vunpack.c.l.b16 %v1889
      %v1954 = vunpack.c.l.b16 %v1890
      %v1955 = vunpack.c.l.b16 %v1891
      %v1956 = vunpack.c.l.b16 %v1892
      %v1957 = vunpack.c.l.b16 %v1893
      %v1958 = vunpack.c.l.b16 %v1894
      %v1959 = vunpack.c.l.b16 %v1895
      %v1960 = vunpack.c.l.b16 %v1896
      %v1961 = vunpack.c.l.b16 %v1897
      %v1962 = vpack.c.b16 %v1947, %v1946
      %v1963 = vpack.c.b16 %v1949, %v1948
      %v1964 = vpack.c.b16 %v1951, %v1950
      %v1965 = vpack.c.b16 %v1953, %v1952
      %v1966 = vpack.c.b16 %v1955, %v1954
      %v1967 = vpack.c.b16 %v1957, %v1956
      %v1968 = vpack.c.b16 %v1959, %v1958
      %v1969 = vpack.c.b16 %v1961, %v1960
      %1978 = vmatprep.subr.bf16.mxu0 0
      %1979 = vmatpush1.bf16.msra.mxu0 %v1962
      %1980 = vmatprep.subr.bf16.mxu0 0
      %1981 = vmatpush1.bf16.msra.mxu0 %v1963
      %1982 = vmatprep.subr.bf16.mxu0 0
      %1983 = vmatpush1.bf16.msra.mxu0 %v1964
      %1984 = vmatprep.subr.bf16.mxu0 0
      %1985 = vmatpush1.bf16.msra.mxu0 %v1965
      %1986 = vmatprep.subr.bf16.mxu0 0
      %1987 = vmatpush1.bf16.msra.mxu0 %v1966
      %1988 = vmatprep.subr.bf16.mxu0 0
      %1989 = vmatpush1.bf16.msra.mxu0 %v1967
      %1990 = vmatprep.subr.bf16.mxu0 0
      %1991 = vmatpush1.bf16.msra.mxu0 %v1968
      %1992 = vmatprep.subr.bf16.mxu0 0
      %1993 = vmatpush1.bf16.msra.mxu0 %v1969
      %1994 = vmatprep.subr.bf16.mxu0 0
      %1995 = vmatpush1.bf16.msra.mxu0 0
      %1996 = vmatprep.subr.bf16.mxu0 0
      %1997 = vmatpush1.bf16.msra.mxu0 0
      %1998 = vmatprep.subr.bf16.mxu0 0
      %1999 = vmatpush1.bf16.msra.mxu0 0
      %2000 = vmatprep.subr.bf16.mxu0 0
      %2001 = vmatpush1.bf16.msra.mxu0 0
      %2002 = vmatprep.subr.bf16.mxu0 0
      %2003 = vmatpush1.bf16.msra.mxu0 0
      %2004 = vmatprep.subr.bf16.mxu0 0
      %2005 = vmatpush1.bf16.msra.mxu0 0
      %2006 = vmatprep.subr.bf16.mxu0 0
      %2007 = vmatpush1.bf16.msra.mxu0 0
      %2008 = vmatprep.subr.bf16.mxu0 0
      %2009 = vmatpush1.bf16.msra.mxu0 0
      %2010 = vmatprep.mubr.bf16.mxu0 0
      %2011 = vmatmul.mubr.bf16.gmra.mrb[0].mxu0 %v1914
      %v2012 = vpop.f32.mrb[0].mxu0
      %v2013 = vadd.f32 0.0, %v2012
      %v2014 = vpop.f32.mrb[0].mxu0
      %v2015 = vpop.f32.mrb[0].mxu0
      %v2016 = vadd.f32 0.0, %v2015
      %v2017 = vpop.f32.mrb[0].mxu0
      %2018 = vmatprep.mubr.bf16.mxu0 0
      %2019 = vmatmul.mubr.bf16.gmra.mrb[0].mxu0 %v1915
      %v2020 = vpop.f32.mrb[0].mxu0
      %v2021 = vadd.f32 0.0, %v2020
      %v2022 = vpop.f32.mrb[0].mxu0
      %v2023 = vpop.f32.mrb[0].mxu0
      %v2024 = vadd.f32 0.0, %v2023
      %v2025 = vpop.f32.mrb[0].mxu0
      %2026 = vmatprep.mubr.bf16.mxu0 0
      %2027 = vmatmul.mubr.bf16.gmra.mrb[0].mxu0 %v1916
      %v2028 = vpop.f32.mrb[0].mxu0
      %v2029 = vadd.f32 0.0, %v2028
      %v2030 = vpop.f32.mrb[0].mxu0
      %v2031 = vpop.f32.mrb[0].mxu0
      %v2032 = vadd.f32 0.0, %v2031
      %v2033 = vpop.f32.mrb[0].mxu0
      %2034 = vmatprep.mubr.bf16.mxu0 0
      %2035 = vmatmul.mubr.bf16.gmra.mrb[0].mxu0 %v1917
      %v2036 = vpop.f32.mrb[0].mxu0
      %v2037 = vadd.f32 0.0, %v2036
      %v2038 = vpop.f32.mrb[0].mxu0
      %v2039 = vpop.f32.mrb[0].mxu0
      %v2040 = vadd.f32 0.0, %v2039
      %v2041 = vpop.f32.mrb[0].mxu0
      %2042 = vmatprep.mubr.bf16.mxu0 0
      %2043 = vmatmul.mubr.bf16.gmra.mrb[0].mxu0 %v1918
      %v2044 = vpop.f32.mrb[0].mxu0
      %v2045 = vadd.f32 0.0, %v2044
      %v2046 = vpop.f32.mrb[0].mxu0
      %v2047 = vpop.f32.mrb[0].mxu0
      %v2048 = vadd.f32 0.0, %v2047
      %v2049 = vpop.f32.mrb[0].mxu0
      %2050 = vmatprep.mubr.bf16.mxu0 0
      %2051 = vmatmul.mubr.bf16.gmra.mrb[0].mxu0 %v1919
      %v2052 = vpop.f32.mrb[0].mxu0
      %v2053 = vadd.f32 0.0, %v2052
      %v2054 = vpop.f32.mrb[0].mxu0
      %v2055 = vpop.f32.mrb[0].mxu0
      %v2056 = vadd.f32 0.0, %v2055
      %v2057 = vpop.f32.mrb[0].mxu0
      %2058 = vmatprep.mubr.bf16.mxu0 0
      %2059 = vmatmul.mubr.bf16.gmra.mrb[0].mxu0 %v1920
      %v2060 = vpop.f32.mrb[0].mxu0
      %v2061 = vadd.f32 0.0, %v2060
      %v2062 = vpop.f32.mrb[0].mxu0
      %v2063 = vpop.f32.mrb[0].mxu0
      %v2064 = vadd.f32 0.0, %v2063
      %v2065 = vpop.f32.mrb[0].mxu0
      %2066 = vmatprep.mubr.bf16.mxu0 0
      %2067 = vmatmul.mubr.bf16.gmra.mrb[0].mxu0 %v1921
      %v2068 = vpop.f32.mrb[0].mxu0
      %v2069 = vadd.f32 0.0, %v2068
      %v2070 = vpop.f32.mrb[0].mxu0
      %v2071 = vpop.f32.mrb[0].mxu0
      %v2072 = vadd.f32 0.0, %v2071
      %v2073 = vpop.f32.mrb[0].mxu0
      %2074 = vdwg.mxu0
      %v2075 = vadd.f32 %v1777, %v2013
      %v2076 = vadd.f32 %v1778, %v2016
      %v2077 = vadd.f32 %v1779, %v2021
      %v2078 = vadd.f32 %v1780, %v2024
      %v2079 = vadd.f32 %v1781, %v2029
      %v2080 = vadd.f32 %v1782, %v2032
      %v2081 = vadd.f32 %v1783, %v2037
      %v2082 = vadd.f32 %v1784, %v2040
      %v2083 = vadd.f32 %v1785, %v2045
      %v2084 = vadd.f32 %v1786, %v2048
      %v2085 = vadd.f32 %v1787, %v2053
      %v2086 = vadd.f32 %v1788, %v2056
      %v2087 = vadd.f32 %v1789, %v2061
      %v2088 = vadd.f32 %v1790, %v2064
      %v2089 = vadd.f32 %v1791, %v2069
      %v2090 = vadd.f32 %v1792, %v2072
      %s2091 = sadd.s32 %s202, 2
      %s2092 = smul.u32 %s2091, 3
      %s2093 = smul.addr %s2092, 4
      %s2094 = scalar_lea.vmem %s182, %s2093
      %v2095 = vld [vmem:[%s2094] sm:$0xf]
      %v2096 = vld [vmem:[%s2094 + $0x4] sm:$0xf]
      %v2097 = vld [vmem:[%s2094 + $0xc] sm:$0xf]
      %v2098 = vld [vmem:[%s2094 + $0x10] sm:$0xf]
      %v2099 = vld [vmem:[%s2094 + $0x18] sm:$0xf]
      %v2100 = vld [vmem:[%s2094 + $0x1c] sm:$0xf]
      %v2101 = vld [vmem:[%s2094 + $0x24] sm:$0xf]
      %v2102 = vld [vmem:[%s2094 + $0x28] sm:$0xf]
      %v2103 = vld [vmem:[%s2094 + $0x30] sm:$0xf]
      %v2104 = vld [vmem:[%s2094 + $0x34] sm:$0xf]
      %v2105 = vld [vmem:[%s2094 + $0x3c] sm:$0xf]
      %v2106 = vld [vmem:[%s2094 + $0x40] sm:$0xf]
      %v2107 = vld [vmem:[%s2094 + $0x48] sm:$0xf]
      %v2108 = vld [vmem:[%s2094 + $0x4c] sm:$0xf]
      %v2109 = vld [vmem:[%s2094 + $0x54] sm:$0xf]
      %v2110 = vld [vmem:[%s2094 + $0x58] sm:$0xf]
      %s2111 = scalar_lea.vmem %s186, 384
      %v2112 = vld [vmem:[%s2111] sm:$0xf]
      %v2113 = vld [vmem:[%s2111 + $0x4] sm:$0xf]
      %v2114 = vld [vmem:[%s2111 + $0x8] sm:$0xf]
      %v2115 = vld [vmem:[%s2111 + $0xc] sm:$0xf]
      %v2116 = vld [vmem:[%s2111 + $0x10] sm:$0xf]
      %v2117 = vld [vmem:[%s2111 + $0x14] sm:$0xf]
      %v2118 = vld [vmem:[%s2111 + $0x18] sm:$0xf]
      %v2119 = vld [vmem:[%s2111 + $0x1c] sm:$0xf]
      %v2120 = vld [vmem:[%s2111 + $0x20] sm:$0xf]
      %v2121 = vld [vmem:[%s2111 + $0x24] sm:$0xf]
      %v2122 = vld [vmem:[%s2111 + $0x28] sm:$0xf]
      %v2123 = vld [vmem:[%s2111 + $0x2c] sm:$0xf]
      %v2124 = vld [vmem:[%s2111 + $0x30] sm:$0xf]
      %v2125 = vld [vmem:[%s2111 + $0x34] sm:$0xf]
      %v2126 = vld [vmem:[%s2111 + $0x38] sm:$0xf]
      %v2127 = vld [vmem:[%s2111 + $0x3c] sm:$0xf]
      %v2144 = vunpack.c.l.b16 %v2095
      %v2145 = vunpack.c.l.b16 %v2096
      %v2146 = vunpack.c.l.b16 %v2097
      %v2147 = vunpack.c.l.b16 %v2098
      %v2148 = vunpack.c.l.b16 %v2099
      %v2149 = vunpack.c.l.b16 %v2100
      %v2150 = vunpack.c.l.b16 %v2101
      %v2151 = vunpack.c.l.b16 %v2102
      %v2152 = vunpack.c.l.b16 %v2103
      %v2153 = vunpack.c.l.b16 %v2104
      %v2154 = vunpack.c.l.b16 %v2105
      %v2155 = vunpack.c.l.b16 %v2106
      %v2156 = vunpack.c.l.b16 %v2107
      %v2157 = vunpack.c.l.b16 %v2108
      %v2158 = vunpack.c.l.b16 %v2109
      %v2159 = vunpack.c.l.b16 %v2110
      %v2160 = vpack.c.b16 %v2145, %v2144
      %v2161 = vpack.c.b16 %v2147, %v2146
      %v2162 = vpack.c.b16 %v2149, %v2148
      %v2163 = vpack.c.b16 %v2151, %v2150
      %v2164 = vpack.c.b16 %v2153, %v2152
      %v2165 = vpack.c.b16 %v2155, %v2154
      %v2166 = vpack.c.b16 %v2157, %v2156
      %v2167 = vpack.c.b16 %v2159, %v2158
      %v2192 = vunpack.c.l.b16 %v2112
      %v2193 = vunpack.c.l.b16 %v2113
      %v2194 = vunpack.c.l.b16 %v2114
      %v2195 = vunpack.c.l.b16 %v2115
      %v2196 = vunpack.c.l.b16 %v2116
      %v2197 = vunpack.c.l.b16 %v2117
      %v2198 = vunpack.c.l.b16 %v2118
      %v2199 = vunpack.c.l.b16 %v2119
      %v2200 = vunpack.c.l.b16 %v2120
      %v2201 = vunpack.c.l.b16 %v2121
      %v2202 = vunpack.c.l.b16 %v2122
      %v2203 = vunpack.c.l.b16 %v2123
      %v2204 = vunpack.c.l.b16 %v2124
      %v2205 = vunpack.c.l.b16 %v2125
      %v2206 = vunpack.c.l.b16 %v2126
      %v2207 = vunpack.c.l.b16 %v2127
      %v2208 = vpack.c.b16 %v2193, %v2192
      %v2209 = vpack.c.b16 %v2195, %v2194
      %v2210 = vpack.c.b16 %v2197, %v2196
      %v2211 = vpack.c.b16 %v2199, %v2198
      %v2212 = vpack.c.b16 %v2201, %v2200
      %v2213 = vpack.c.b16 %v2203, %v2202
      %v2214 = vpack.c.b16 %v2205, %v2204
      %v2215 = vpack.c.b16 %v2207, %v2206
      %2224 = vmatprep.subr.bf16.mxu0 0
      %2225 = vmatpush1.bf16.msra.mxu0 %v2208
      %2226 = vmatprep.subr.bf16.mxu0 0
      %2227 = vmatpush1.bf16.msra.mxu0 %v2209
      %2228 = vmatprep.subr.bf16.mxu0 0
      %2229 = vmatpush1.bf16.msra.mxu0 %v2210
      %2230 = vmatprep.subr.bf16.mxu0 0
      %2231 = vmatpush1.bf16.msra.mxu0 %v2211
      %2232 = vmatprep.subr.bf16.mxu0 0
      %2233 = vmatpush1.bf16.msra.mxu0 %v2212
      %2234 = vmatprep.subr.bf16.mxu0 0
      %2235 = vmatpush1.bf16.msra.mxu0 %v2213
      %2236 = vmatprep.subr.bf16.mxu0 0
      %2237 = vmatpush1.bf16.msra.mxu0 %v2214
      %2238 = vmatprep.subr.bf16.mxu0 0
      %2239 = vmatpush1.bf16.msra.mxu0 %v2215
      %2240 = vmatprep.subr.bf16.mxu0 0
      %2241 = vmatpush1.bf16.msra.mxu0 0
      %2242 = vmatprep.subr.bf16.mxu0 0
      %2243 = vmatpush1.bf16.msra.mxu0 0
      %2244 = vmatprep.subr.bf16.mxu0 0
      %2245 = vmatpush1.bf16.msra.mxu0 0
      %2246 = vmatprep.subr.bf16.mxu0 0
      %2247 = vmatpush1.bf16.msra.mxu0 0
      %2248 = vmatprep.subr.bf16.mxu0 0
      %2249 = vmatpush1.bf16.msra.mxu0 0
      %2250 = vmatprep.subr.bf16.mxu0 0
      %2251 = vmatpush1.bf16.msra.mxu0 0
      %2252 = vmatprep.subr.bf16.mxu0 0
      %2253 = vmatpush1.bf16.msra.mxu0 0
      %2254 = vmatprep.subr.bf16.mxu0 0
      %2255 = vmatpush1.bf16.msra.mxu0 0
      %2256 = vmatprep.mubr.bf16.mxu0 0
      %2257 = vmatmul.mubr.bf16.gmra.mrb[0].mxu0 %v2160
      %v2258 = vpop.f32.mrb[0].mxu0
      %v2259 = vadd.f32 0.0, %v2258
      %v2260 = vpop.f32.mrb[0].mxu0
      %v2261 = vpop.f32.mrb[0].mxu0
      %v2262 = vadd.f32 0.0, %v2261
      %v2263 = vpop.f32.mrb[0].mxu0
      %2264 = vmatprep.mubr.bf16.mxu0 0
      %2265 = vmatmul.mubr.bf16.gmra.mrb[0].mxu0 %v2161
      %v2266 = vpop.f32.mrb[0].mxu0
      %v2267 = vadd.f32 0.0, %v2266
      %v2268 = vpop.f32.mrb[0].mxu0
      %v2269 = vpop.f32.mrb[0].mxu0
      %v2270 = vadd.f32 0.0, %v2269
      %v2271 = vpop.f32.mrb[0].mxu0
      %2272 = vmatprep.mubr.bf16.mxu0 0
      %2273 = vmatmul.mubr.bf16.gmra.mrb[0].mxu0 %v2162
      %v2274 = vpop.f32.mrb[0].mxu0
      %v2275 = vadd.f32 0.0, %v2274
      %v2276 = vpop.f32.mrb[0].mxu0
      %v2277 = vpop.f32.mrb[0].mxu0
      %v2278 = vadd.f32 0.0, %v2277
      %v2279 = vpop.f32.mrb[0].mxu0
      %2280 = vmatprep.mubr.bf16.mxu0 0
      %2281 = vmatmul.mubr.bf16.gmra.mrb[0].mxu0 %v2163
      %v2282 = vpop.f32.mrb[0].mxu0
      %v2283 = vadd.f32 0.0, %v2282
      %v2284 = vpop.f32.mrb[0].mxu0
      %v2285 = vpop.f32.mrb[0].mxu0
      %v2286 = vadd.f32 0.0, %v2285
      %v2287 = vpop.f32.mrb[0].mxu0
      %2288 = vmatprep.mubr.bf16.mxu0 0
      %2289 = vmatmul.mubr.bf16.gmra.mrb[0].mxu0 %v2164
      %v2290 = vpop.f32.mrb[0].mxu0
      %v2291 = vadd.f32 0.0, %v2290
      %v2292 = vpop.f32.mrb[0].mxu0
      %v2293 = vpop.f32.mrb[0].mxu0
      %v2294 = vadd.f32 0.0, %v2293
      %v2295 = vpop.f32.mrb[0].mxu0
      %2296 = vmatprep.mubr.bf16.mxu0 0
      %2297 = vmatmul.mubr.bf16.gmra.mrb[0].mxu0 %v2165
      %v2298 = vpop.f32.mrb[0].mxu0
      %v2299 = vadd.f32 0.0, %v2298
      %v2300 = vpop.f32.mrb[0].mxu0
      %v2301 = vpop.f32.mrb[0].mxu0
      %v2302 = vadd.f32 0.0, %v2301
      %v2303 = vpop.f32.mrb[0].mxu0
      %2304 = vmatprep.mubr.bf16.mxu0 0
      %2305 = vmatmul.mubr.bf16.gmra.mrb[0].mxu0 %v2166
      %v2306 = vpop.f32.mrb[0].mxu0
      %v2307 = vadd.f32 0.0, %v2306
      %v2308 = vpop.f32.mrb[0].mxu0
      %v2309 = vpop.f32.mrb[0].mxu0
      %v2310 = vadd.f32 0.0, %v2309
      %v2311 = vpop.f32.mrb[0].mxu0
      %2312 = vmatprep.mubr.bf16.mxu0 0
      %2313 = vmatmul.mubr.bf16.gmra.mrb[0].mxu0 %v2167
      %v2314 = vpop.f32.mrb[0].mxu0
      %v2315 = vadd.f32 0.0, %v2314
      %v2316 = vpop.f32.mrb[0].mxu0
      %v2317 = vpop.f32.mrb[0].mxu0
      %v2318 = vadd.f32 0.0, %v2317
      %v2319 = vpop.f32.mrb[0].mxu0
      %2320 = vdwg.mxu0
      %v2321 = vadd.f32 %v2075, %v2259
      %v2322 = vadd.f32 %v2076, %v2262
      %v2323 = vadd.f32 %v2077, %v2267
      %v2324 = vadd.f32 %v2078, %v2270
      %v2325 = vadd.f32 %v2079, %v2275
      %v2326 = vadd.f32 %v2080, %v2278
      %v2327 = vadd.f32 %v2081, %v2283
      %v2328 = vadd.f32 %v2082, %v2286
      %v2329 = vadd.f32 %v2083, %v2291
      %v2330 = vadd.f32 %v2084, %v2294
      %v2331 = vadd.f32 %v2085, %v2299
      %v2332 = vadd.f32 %v2086, %v2302
      %v2333 = vadd.f32 %v2087, %v2307
      %v2334 = vadd.f32 %v2088, %v2310
      %v2335 = vadd.f32 %v2089, %v2315
      %v2336 = vadd.f32 %v2090, %v2318
      %v2337 = vld [vmem:[%s2094] sm:$0xf]
      %v2338 = vld [vmem:[%s2094 + $0x4] sm:$0xf]
      %v2339 = vld [vmem:[%s2094 + $0x8] sm:$0x1]
      %v2340 = vld [vmem:[%s2094 + $0xc] sm:$0xf]
      %v2341 = vld [vmem:[%s2094 + $0x10] sm:$0xf]
      %v2342 = vld [vmem:[%s2094 + $0x14] sm:$0x1]
      %v2343 = vld [vmem:[%s2094 + $0x18] sm:$0xf]
      %v2344 = vld [vmem:[%s2094 + $0x1c] sm:$0xf]
      %v2345 = vld [vmem:[%s2094 + $0x20] sm:$0x1]
      %v2346 = vld [vmem:[%s2094 + $0x24] sm:$0xf]
      %v2347 = vld [vmem:[%s2094 + $0x28] sm:$0xf]
      %v2348 = vld [vmem:[%s2094 + $0x2c] sm:$0x1]
      %v2349 = vld [vmem:[%s2094 + $0x30] sm:$0xf]
      %v2350 = vld [vmem:[%s2094 + $0x34] sm:$0xf]
      %v2351 = vld [vmem:[%s2094 + $0x38] sm:$0x1]
      %v2352 = vld [vmem:[%s2094 + $0x3c] sm:$0xf]
      %v2353 = vld [vmem:[%s2094 + $0x40] sm:$0xf]
      %v2354 = vld [vmem:[%s2094 + $0x44] sm:$0x1]
      %v2355 = vld [vmem:[%s2094 + $0x48] sm:$0xf]
      %v2356 = vld [vmem:[%s2094 + $0x4c] sm:$0xf]
      %v2357 = vld [vmem:[%s2094 + $0x50] sm:$0x1]
      %v2358 = vld [vmem:[%s2094 + $0x54] sm:$0xf]
      %v2359 = vld [vmem:[%s2094 + $0x58] sm:$0xf]
      %v2360 = vld [vmem:[%s2094 + $0x5c] sm:$0x1]
      %v2362 = vshrl.u32 %v2337, 16
      %v2364 = vrot.slane %v2362, 4
      %v2365 = vshll.u32 %v2337, 16
      %v2367 = vrot.slane %v2365, 5
      %v2368 = vor.u32 %v2364, %v2367
      %v2369 = vrot.slane %v2368, 4
      %v2371 = vshll.u32 %v2338, 16
      %v2373 = vrot.slane %v2371, 5
      %v2374 = vsel %vm248, %v2369, %v2373
      %v2375 = vshrl.u32 %v2338, 16
      %v2377 = vrot.slane %v2375, 4
      %v2378 = vor.u32 %v2377, %v2373
      %v2379 = vrot.slane %v2378, 4
      %v2381 = vshll.u32 %v2339, 16
      %v2383 = vrot.slane %v2381, 5
      %v2384 = vsel %vm248, %v2379, %v2383
      %v2386 = vshrl.u32 %v2340, 16
      %v2388 = vrot.slane %v2386, 4
      %v2389 = vshll.u32 %v2340, 16
      %v2391 = vrot.slane %v2389, 5
      %v2392 = vor.u32 %v2388, %v2391
      %v2393 = vrot.slane %v2392, 4
      %v2395 = vshll.u32 %v2341, 16
      %v2397 = vrot.slane %v2395, 5
      %v2398 = vsel %vm248, %v2393, %v2397
      %v2399 = vshrl.u32 %v2341, 16
      %v2401 = vrot.slane %v2399, 4
      %v2402 = vor.u32 %v2401, %v2397
      %v2403 = vrot.slane %v2402, 4
      %v2405 = vshll.u32 %v2342, 16
      %v2407 = vrot.slane %v2405, 5
      %v2408 = vsel %vm248, %v2403, %v2407
      %v2410 = vshrl.u32 %v2343, 16
      %v2412 = vrot.slane %v2410, 4
      %v2413 = vshll.u32 %v2343, 16
      %v2415 = vrot.slane %v2413, 5
      %v2416 = vor.u32 %v2412, %v2415
      %v2417 = vrot.slane %v2416, 4
      %v2419 = vshll.u32 %v2344, 16
      %v2421 = vrot.slane %v2419, 5
      %v2422 = vsel %vm248, %v2417, %v2421
      %v2423 = vshrl.u32 %v2344, 16
      %v2425 = vrot.slane %v2423, 4
      %v2426 = vor.u32 %v2425, %v2421
      %v2427 = vrot.slane %v2426, 4
      %v2429 = vshll.u32 %v2345, 16
      %v2431 = vrot.slane %v2429, 5
      %v2432 = vsel %vm248, %v2427, %v2431
      %v2434 = vshrl.u32 %v2346, 16
      %v2436 = vrot.slane %v2434, 4
      %v2437 = vshll.u32 %v2346, 16
      %v2439 = vrot.slane %v2437, 5
      %v2440 = vor.u32 %v2436, %v2439
      %v2441 = vrot.slane %v2440, 4
      %v2443 = vshll.u32 %v2347, 16
      %v2445 = vrot.slane %v2443, 5
      %v2446 = vsel %vm248, %v2441, %v2445
      %v2447 = vshrl.u32 %v2347, 16
      %v2449 = vrot.slane %v2447, 4
      %v2450 = vor.u32 %v2449, %v2445
      %v2451 = vrot.slane %v2450, 4
      %v2453 = vshll.u32 %v2348, 16
      %v2455 = vrot.slane %v2453, 5
      %v2456 = vsel %vm248, %v2451, %v2455
      %v2458 = vshrl.u32 %v2349, 16
      %v2460 = vrot.slane %v2458, 4
      %v2461 = vshll.u32 %v2349, 16
      %v2463 = vrot.slane %v2461, 5
      %v2464 = vor.u32 %v2460, %v2463
      %v2465 = vrot.slane %v2464, 4
      %v2467 = vshll.u32 %v2350, 16
      %v2469 = vrot.slane %v2467, 5
      %v2470 = vsel %vm248, %v2465, %v2469
      %v2471 = vshrl.u32 %v2350, 16
      %v2473 = vrot.slane %v2471, 4
      %v2474 = vor.u32 %v2473, %v2469
      %v2475 = vrot.slane %v2474, 4
      %v2477 = vshll.u32 %v2351, 16
      %v2479 = vrot.slane %v2477, 5
      %v2480 = vsel %vm248, %v2475, %v2479
      %v2482 = vshrl.u32 %v2352, 16
      %v2484 = vrot.slane %v2482, 4
      %v2485 = vshll.u32 %v2352, 16
      %v2487 = vrot.slane %v2485, 5
      %v2488 = vor.u32 %v2484, %v2487
      %v2489 = vrot.slane %v2488, 4
      %v2491 = vshll.u32 %v2353, 16
      %v2493 = vrot.slane %v2491, 5
      %v2494 = vsel %vm248, %v2489, %v2493
      %v2495 = vshrl.u32 %v2353, 16
      %v2497 = vrot.slane %v2495, 4
      %v2498 = vor.u32 %v2497, %v2493
      %v2499 = vrot.slane %v2498, 4
      %v2501 = vshll.u32 %v2354, 16
      %v2503 = vrot.slane %v2501, 5
      %v2504 = vsel %vm248, %v2499, %v2503
      %v2506 = vshrl.u32 %v2355, 16
      %v2508 = vrot.slane %v2506, 4
      %v2509 = vshll.u32 %v2355, 16
      %v2511 = vrot.slane %v2509, 5
      %v2512 = vor.u32 %v2508, %v2511
      %v2513 = vrot.slane %v2512, 4
      %v2515 = vshll.u32 %v2356, 16
      %v2517 = vrot.slane %v2515, 5
      %v2518 = vsel %vm248, %v2513, %v2517
      %v2519 = vshrl.u32 %v2356, 16
      %v2521 = vrot.slane %v2519, 4
      %v2522 = vor.u32 %v2521, %v2517
      %v2523 = vrot.slane %v2522, 4
      %v2525 = vshll.u32 %v2357, 16
      %v2527 = vrot.slane %v2525, 5
      %v2528 = vsel %vm248, %v2523, %v2527
      %v2530 = vshrl.u32 %v2358, 16
      %v2532 = vrot.slane %v2530, 4
      %v2533 = vshll.u32 %v2358, 16
      %v2535 = vrot.slane %v2533, 5
      %v2536 = vor.u32 %v2532, %v2535
      %v2537 = vrot.slane %v2536, 4
      %v2539 = vshll.u32 %v2359, 16
      %v2541 = vrot.slane %v2539, 5
      %v2542 = vsel %vm248, %v2537, %v2541
      %v2543 = vshrl.u32 %v2359, 16
      %v2545 = vrot.slane %v2543, 4
      %v2546 = vor.u32 %v2545, %v2541
      %v2547 = vrot.slane %v2546, 4
      %v2549 = vshll.u32 %v2360, 16
      %v2551 = vrot.slane %v2549, 5
      %v2552 = vsel %vm248, %v2547, %v2551
      %s2553 = scalar_lea.vmem %s186, 448
      %v2554 = vld [vmem:[%s2553] sm:$0xf]
      %v2555 = vld [vmem:[%s2553 + $0x4] sm:$0xf]
      %v2556 = vld [vmem:[%s2553 + $0x8] sm:$0xf]
      %v2557 = vld [vmem:[%s2553 + $0xc] sm:$0xf]
      %v2558 = vld [vmem:[%s2553 + $0x10] sm:$0xf]
      %v2559 = vld [vmem:[%s2553 + $0x14] sm:$0xf]
      %v2560 = vld [vmem:[%s2553 + $0x18] sm:$0xf]
      %v2561 = vld [vmem:[%s2553 + $0x1c] sm:$0xf]
      %v2562 = vld [vmem:[%s2553 + $0x20] sm:$0xf]
      %v2563 = vld [vmem:[%s2553 + $0x24] sm:$0xf]
      %v2564 = vld [vmem:[%s2553 + $0x28] sm:$0xf]
      %v2565 = vld [vmem:[%s2553 + $0x2c] sm:$0xf]
      %v2566 = vld [vmem:[%s2553 + $0x30] sm:$0xf]
      %v2567 = vld [vmem:[%s2553 + $0x34] sm:$0xf]
      %v2568 = vld [vmem:[%s2553 + $0x38] sm:$0xf]
      %v2569 = vld [vmem:[%s2553 + $0x3c] sm:$0xf]
      %v2570 = vunpack.c.l.b16 %v2374
      %v2571 = vunpack.c.l.b16 %v2384
      %v2572 = vunpack.c.l.b16 %v2398
      %v2573 = vunpack.c.l.b16 %v2408
      %v2574 = vunpack.c.l.b16 %v2422
      %v2575 = vunpack.c.l.b16 %v2432
      %v2576 = vunpack.c.l.b16 %v2446
      %v2577 = vunpack.c.l.b16 %v2456
      %v2578 = vunpack.c.l.b16 %v2470
      %v2579 = vunpack.c.l.b16 %v2480
      %v2580 = vunpack.c.l.b16 %v2494
      %v2581 = vunpack.c.l.b16 %v2504
      %v2582 = vunpack.c.l.b16 %v2518
      %v2583 = vunpack.c.l.b16 %v2528
      %v2584 = vunpack.c.l.b16 %v2542
      %v2585 = vunpack.c.l.b16 %v2552
      %v2586 = vpack.c.b16 %v2571, %v2570
      %v2587 = vpack.c.b16 %v2573, %v2572
      %v2588 = vpack.c.b16 %v2575, %v2574
      %v2589 = vpack.c.b16 %v2577, %v2576
      %v2590 = vpack.c.b16 %v2579, %v2578
      %v2591 = vpack.c.b16 %v2581, %v2580
      %v2592 = vpack.c.b16 %v2583, %v2582
      %v2593 = vpack.c.b16 %v2585, %v2584
      %v2618 = vunpack.c.l.b16 %v2554
      %v2619 = vunpack.c.l.b16 %v2555
      %v2620 = vunpack.c.l.b16 %v2556
      %v2621 = vunpack.c.l.b16 %v2557
      %v2622 = vunpack.c.l.b16 %v2558
      %v2623 = vunpack.c.l.b16 %v2559
      %v2624 = vunpack.c.l.b16 %v2560
      %v2625 = vunpack.c.l.b16 %v2561
      %v2626 = vunpack.c.l.b16 %v2562
      %v2627 = vunpack.c.l.b16 %v2563
      %v2628 = vunpack.c.l.b16 %v2564
      %v2629 = vunpack.c.l.b16 %v2565
      %v2630 = vunpack.c.l.b16 %v2566
      %v2631 = vunpack.c.l.b16 %v2567
      %v2632 = vunpack.c.l.b16 %v2568
      %v2633 = vunpack.c.l.b16 %v2569
      %v2634 = vpack.c.b16 %v2619, %v2618
      %v2635 = vpack.c.b16 %v2621, %v2620
      %v2636 = vpack.c.b16 %v2623, %v2622
      %v2637 = vpack.c.b16 %v2625, %v2624
      %v2638 = vpack.c.b16 %v2627, %v2626
      %v2639 = vpack.c.b16 %v2629, %v2628
      %v2640 = vpack.c.b16 %v2631, %v2630
      %v2641 = vpack.c.b16 %v2633, %v2632
      %2650 = vmatprep.subr.bf16.mxu0 0
      %2651 = vmatpush1.bf16.msra.mxu0 %v2634
      %2652 = vmatprep.subr.bf16.mxu0 0
      %2653 = vmatpush1.bf16.msra.mxu0 %v2635
      %2654 = vmatprep.subr.bf16.mxu0 0
      %2655 = vmatpush1.bf16.msra.mxu0 %v2636
      %2656 = vmatprep.subr.bf16.mxu0 0
      %2657 = vmatpush1.bf16.msra.mxu0 %v2637
      %2658 = vmatprep.subr.bf16.mxu0 0
      %2659 = vmatpush1.bf16.msra.mxu0 %v2638
      %2660 = vmatprep.subr.bf16.mxu0 0
      %2661 = vmatpush1.bf16.msra.mxu0 %v2639
      %2662 = vmatprep.subr.bf16.mxu0 0
      %2663 = vmatpush1.bf16.msra.mxu0 %v2640
      %2664 = vmatprep.subr.bf16.mxu0 0
      %2665 = vmatpush1.bf16.msra.mxu0 %v2641
      %2666 = vmatprep.subr.bf16.mxu0 0
      %2667 = vmatpush1.bf16.msra.mxu0 0
      %2668 = vmatprep.subr.bf16.mxu0 0
      %2669 = vmatpush1.bf16.msra.mxu0 0
      %2670 = vmatprep.subr.bf16.mxu0 0
      %2671 = vmatpush1.bf16.msra.mxu0 0
      %2672 = vmatprep.subr.bf16.mxu0 0
      %2673 = vmatpush1.bf16.msra.mxu0 0
      %2674 = vmatprep.subr.bf16.mxu0 0
      %2675 = vmatpush1.bf16.msra.mxu0 0
      %2676 = vmatprep.subr.bf16.mxu0 0
      %2677 = vmatpush1.bf16.msra.mxu0 0
      %2678 = vmatprep.subr.bf16.mxu0 0
      %2679 = vmatpush1.bf16.msra.mxu0 0
      %2680 = vmatprep.subr.bf16.mxu0 0
      %2681 = vmatpush1.bf16.msra.mxu0 0
      %2682 = vmatprep.mubr.bf16.mxu0 0
      %2683 = vmatmul.mubr.bf16.gmra.mrb[0].mxu0 %v2586
      %v2684 = vpop.f32.mrb[0].mxu0
      %v2685 = vadd.f32 0.0, %v2684
      %v2686 = vpop.f32.mrb[0].mxu0
      %v2687 = vpop.f32.mrb[0].mxu0
      %v2688 = vadd.f32 0.0, %v2687
      %v2689 = vpop.f32.mrb[0].mxu0
      %2690 = vmatprep.mubr.bf16.mxu0 0
      %2691 = vmatmul.mubr.bf16.gmra.mrb[0].mxu0 %v2587
      %v2692 = vpop.f32.mrb[0].mxu0
      %v2693 = vadd.f32 0.0, %v2692
      %v2694 = vpop.f32.mrb[0].mxu0
      %v2695 = vpop.f32.mrb[0].mxu0
      %v2696 = vadd.f32 0.0, %v2695
      %v2697 = vpop.f32.mrb[0].mxu0
      %2698 = vmatprep.mubr.bf16.mxu0 0
      %2699 = vmatmul.mubr.bf16.gmra.mrb[0].mxu0 %v2588
      %v2700 = vpop.f32.mrb[0].mxu0
      %v2701 = vadd.f32 0.0, %v2700
      %v2702 = vpop.f32.mrb[0].mxu0
      %v2703 = vpop.f32.mrb[0].mxu0
      %v2704 = vadd.f32 0.0, %v2703
      %v2705 = vpop.f32.mrb[0].mxu0
      %2706 = vmatprep.mubr.bf16.mxu0 0
      %2707 = vmatmul.mubr.bf16.gmra.mrb[0].mxu0 %v2589
      %v2708 = vpop.f32.mrb[0].mxu0
      %v2709 = vadd.f32 0.0, %v2708
      %v2710 = vpop.f32.mrb[0].mxu0
      %v2711 = vpop.f32.mrb[0].mxu0
      %v2712 = vadd.f32 0.0, %v2711
      %v2713 = vpop.f32.mrb[0].mxu0
      %2714 = vmatprep.mubr.bf16.mxu0 0
      %2715 = vmatmul.mubr.bf16.gmra.mrb[0].mxu0 %v2590
      %v2716 = vpop.f32.mrb[0].mxu0
      %v2717 = vadd.f32 0.0, %v2716
      %v2718 = vpop.f32.mrb[0].mxu0
      %v2719 = vpop.f32.mrb[0].mxu0
      %v2720 = vadd.f32 0.0, %v2719
      %v2721 = vpop.f32.mrb[0].mxu0
      %2722 = vmatprep.mubr.bf16.mxu0 0
      %2723 = vmatmul.mubr.bf16.gmra.mrb[0].mxu0 %v2591
      %v2724 = vpop.f32.mrb[0].mxu0
      %v2725 = vadd.f32 0.0, %v2724
      %v2726 = vpop.f32.mrb[0].mxu0
      %v2727 = vpop.f32.mrb[0].mxu0
      %v2728 = vadd.f32 0.0, %v2727
      %v2729 = vpop.f32.mrb[0].mxu0
      %2730 = vmatprep.mubr.bf16.mxu0 0
      %2731 = vmatmul.mubr.bf16.gmra.mrb[0].mxu0 %v2592
      %v2732 = vpop.f32.mrb[0].mxu0
      %v2733 = vadd.f32 0.0, %v2732
      %v2734 = vpop.f32.mrb[0].mxu0
      %v2735 = vpop.f32.mrb[0].mxu0
      %v2736 = vadd.f32 0.0, %v2735
      %v2737 = vpop.f32.mrb[0].mxu0
      %2738 = vmatprep.mubr.bf16.mxu0 0
      %2739 = vmatmul.mubr.bf16.gmra.mrb[0].mxu0 %v2593
      %v2740 = vpop.f32.mrb[0].mxu0
      %v2741 = vadd.f32 0.0, %v2740
      %v2742 = vpop.f32.mrb[0].mxu0
      %v2743 = vpop.f32.mrb[0].mxu0
      %v2744 = vadd.f32 0.0, %v2743
      %v2745 = vpop.f32.mrb[0].mxu0
      %2746 = vdwg.mxu0
      %v2747 = vadd.f32 %v2321, %v2685
      %v2748 = vadd.f32 %v2322, %v2688
      %v2749 = vadd.f32 %v2323, %v2693
      %v2750 = vadd.f32 %v2324, %v2696
      %v2751 = vadd.f32 %v2325, %v2701
      %v2752 = vadd.f32 %v2326, %v2704
      %v2753 = vadd.f32 %v2327, %v2709
      %v2754 = vadd.f32 %v2328, %v2712
      %v2755 = vadd.f32 %v2329, %v2717
      %v2756 = vadd.f32 %v2330, %v2720
      %v2757 = vadd.f32 %v2331, %v2725
      %v2758 = vadd.f32 %v2332, %v2728
      %v2759 = vadd.f32 %v2333, %v2733
      %v2760 = vadd.f32 %v2334, %v2736
      %v2761 = vadd.f32 %v2335, %v2741
      %v2762 = vadd.f32 %v2336, %v2744
      %v2763 = vld [vmem:[%s2094] sm:$0xe]
      %v2764 = vld [vmem:[%s2094 + $0xc] sm:$0xe]
      %v2765 = vld [vmem:[%s2094 + $0x18] sm:$0xe]
      %v2766 = vld [vmem:[%s2094 + $0x24] sm:$0xe]
      %v2767 = vld [vmem:[%s2094 + $0x30] sm:$0xe]
      %v2768 = vld [vmem:[%s2094 + $0x3c] sm:$0xe]
      %v2769 = vld [vmem:[%s2094 + $0x48] sm:$0xe]
      %v2770 = vld [vmem:[%s2094 + $0x54] sm:$0xe]
      %v2795 = vrot.slane %v2763, 5
      %v2796 = vrot.slane %v2795, 4
      %v2797 = vrot.slane %v2338, 5
      %v2798 = vsel %vm854, %v2796, %v2797
      %v2799 = vrot.slane %v2797, 4
      %v2800 = vrot.slane %v2339, 5
      %v2801 = vsel %vm854, %v2799, %v2800
      %v2802 = vrot.slane %v2764, 5
      %v2803 = vrot.slane %v2802, 4
      %v2804 = vrot.slane %v2341, 5
      %v2805 = vsel %vm854, %v2803, %v2804
      %v2806 = vrot.slane %v2804, 4
      %v2807 = vrot.slane %v2342, 5
      %v2808 = vsel %vm854, %v2806, %v2807
      %v2809 = vrot.slane %v2765, 5
      %v2810 = vrot.slane %v2809, 4
      %v2811 = vrot.slane %v2344, 5
      %v2812 = vsel %vm854, %v2810, %v2811
      %v2813 = vrot.slane %v2811, 4
      %v2814 = vrot.slane %v2345, 5
      %v2815 = vsel %vm854, %v2813, %v2814
      %v2816 = vrot.slane %v2766, 5
      %v2817 = vrot.slane %v2816, 4
      %v2818 = vrot.slane %v2347, 5
      %v2819 = vsel %vm854, %v2817, %v2818
      %v2820 = vrot.slane %v2818, 4
      %v2821 = vrot.slane %v2348, 5
      %v2822 = vsel %vm854, %v2820, %v2821
      %v2823 = vrot.slane %v2767, 5
      %v2824 = vrot.slane %v2823, 4
      %v2825 = vrot.slane %v2350, 5
      %v2826 = vsel %vm854, %v2824, %v2825
      %v2827 = vrot.slane %v2825, 4
      %v2828 = vrot.slane %v2351, 5
      %v2829 = vsel %vm854, %v2827, %v2828
      %v2830 = vrot.slane %v2768, 5
      %v2831 = vrot.slane %v2830, 4
      %v2832 = vrot.slane %v2353, 5
      %v2833 = vsel %vm854, %v2831, %v2832
      %v2834 = vrot.slane %v2832, 4
      %v2835 = vrot.slane %v2354, 5
      %v2836 = vsel %vm854, %v2834, %v2835
      %v2837 = vrot.slane %v2769, 5
      %v2838 = vrot.slane %v2837, 4
      %v2839 = vrot.slane %v2356, 5
      %v2840 = vsel %vm854, %v2838, %v2839
      %v2841 = vrot.slane %v2839, 4
      %v2842 = vrot.slane %v2357, 5
      %v2843 = vsel %vm854, %v2841, %v2842
      %v2844 = vrot.slane %v2770, 5
      %v2845 = vrot.slane %v2844, 4
      %v2846 = vrot.slane %v2359, 5
      %v2847 = vsel %vm854, %v2845, %v2846
      %v2848 = vrot.slane %v2846, 4
      %v2849 = vrot.slane %v2360, 5
      %v2850 = vsel %vm854, %v2848, %v2849
      %s2851 = scalar_lea.vmem %s186, 512
      %v2852 = vld [vmem:[%s2851] sm:$0xf]
      %v2853 = vld [vmem:[%s2851 + $0x4] sm:$0xf]
      %v2854 = vld [vmem:[%s2851 + $0x8] sm:$0xf]
      %v2855 = vld [vmem:[%s2851 + $0xc] sm:$0xf]
      %v2856 = vld [vmem:[%s2851 + $0x10] sm:$0xf]
      %v2857 = vld [vmem:[%s2851 + $0x14] sm:$0xf]
      %v2858 = vld [vmem:[%s2851 + $0x18] sm:$0xf]
      %v2859 = vld [vmem:[%s2851 + $0x1c] sm:$0xf]
      %v2860 = vld [vmem:[%s2851 + $0x20] sm:$0xf]
      %v2861 = vld [vmem:[%s2851 + $0x24] sm:$0xf]
      %v2862 = vld [vmem:[%s2851 + $0x28] sm:$0xf]
      %v2863 = vld [vmem:[%s2851 + $0x2c] sm:$0xf]
      %v2864 = vld [vmem:[%s2851 + $0x30] sm:$0xf]
      %v2865 = vld [vmem:[%s2851 + $0x34] sm:$0xf]
      %v2866 = vld [vmem:[%s2851 + $0x38] sm:$0xf]
      %v2867 = vld [vmem:[%s2851 + $0x3c] sm:$0xf]
      %v2868 = vunpack.c.l.b16 %v2798
      %v2869 = vunpack.c.l.b16 %v2801
      %v2870 = vunpack.c.l.b16 %v2805
      %v2871 = vunpack.c.l.b16 %v2808
      %v2872 = vunpack.c.l.b16 %v2812
      %v2873 = vunpack.c.l.b16 %v2815
      %v2874 = vunpack.c.l.b16 %v2819
      %v2875 = vunpack.c.l.b16 %v2822
      %v2876 = vunpack.c.l.b16 %v2826
      %v2877 = vunpack.c.l.b16 %v2829
      %v2878 = vunpack.c.l.b16 %v2833
      %v2879 = vunpack.c.l.b16 %v2836
      %v2880 = vunpack.c.l.b16 %v2840
      %v2881 = vunpack.c.l.b16 %v2843
      %v2882 = vunpack.c.l.b16 %v2847
      %v2883 = vunpack.c.l.b16 %v2850
      %v2884 = vpack.c.b16 %v2869, %v2868
      %v2885 = vpack.c.b16 %v2871, %v2870
      %v2886 = vpack.c.b16 %v2873, %v2872
      %v2887 = vpack.c.b16 %v2875, %v2874
      %v2888 = vpack.c.b16 %v2877, %v2876
      %v2889 = vpack.c.b16 %v2879, %v2878
      %v2890 = vpack.c.b16 %v2881, %v2880
      %v2891 = vpack.c.b16 %v2883, %v2882
      %v2916 = vunpack.c.l.b16 %v2852
      %v2917 = vunpack.c.l.b16 %v2853
      %v2918 = vunpack.c.l.b16 %v2854
      %v2919 = vunpack.c.l.b16 %v2855
      %v2920 = vunpack.c.l.b16 %v2856
      %v2921 = vunpack.c.l.b16 %v2857
      %v2922 = vunpack.c.l.b16 %v2858
      %v2923 = vunpack.c.l.b16 %v2859
      %v2924 = vunpack.c.l.b16 %v2860
      %v2925 = vunpack.c.l.b16 %v2861
      %v2926 = vunpack.c.l.b16 %v2862
      %v2927 = vunpack.c.l.b16 %v2863
      %v2928 = vunpack.c.l.b16 %v2864
      %v2929 = vunpack.c.l.b16 %v2865
      %v2930 = vunpack.c.l.b16 %v2866
      %v2931 = vunpack.c.l.b16 %v2867
      %v2932 = vpack.c.b16 %v2917, %v2916
      %v2933 = vpack.c.b16 %v2919, %v2918
      %v2934 = vpack.c.b16 %v2921, %v2920
      %v2935 = vpack.c.b16 %v2923, %v2922
      %v2936 = vpack.c.b16 %v2925, %v2924
      %v2937 = vpack.c.b16 %v2927, %v2926
      %v2938 = vpack.c.b16 %v2929, %v2928
      %v2939 = vpack.c.b16 %v2931, %v2930
      %2948 = vmatprep.subr.bf16.mxu0 0
      %2949 = vmatpush1.bf16.msra.mxu0 %v2932
      %2950 = vmatprep.subr.bf16.mxu0 0
      %2951 = vmatpush1.bf16.msra.mxu0 %v2933
      %2952 = vmatprep.subr.bf16.mxu0 0
      %2953 = vmatpush1.bf16.msra.mxu0 %v2934
      %2954 = vmatprep.subr.bf16.mxu0 0
      %2955 = vmatpush1.bf16.msra.mxu0 %v2935
      %2956 = vmatprep.subr.bf16.mxu0 0
      %2957 = vmatpush1.bf16.msra.mxu0 %v2936
      %2958 = vmatprep.subr.bf16.mxu0 0
      %2959 = vmatpush1.bf16.msra.mxu0 %v2937
      %2960 = vmatprep.subr.bf16.mxu0 0
      %2961 = vmatpush1.bf16.msra.mxu0 %v2938
      %2962 = vmatprep.subr.bf16.mxu0 0
      %2963 = vmatpush1.bf16.msra.mxu0 %v2939
      %2964 = vmatprep.subr.bf16.mxu0 0
      %2965 = vmatpush1.bf16.msra.mxu0 0
      %2966 = vmatprep.subr.bf16.mxu0 0
      %2967 = vmatpush1.bf16.msra.mxu0 0
      %2968 = vmatprep.subr.bf16.mxu0 0
      %2969 = vmatpush1.bf16.msra.mxu0 0
      %2970 = vmatprep.subr.bf16.mxu0 0
      %2971 = vmatpush1.bf16.msra.mxu0 0
      %2972 = vmatprep.subr.bf16.mxu0 0
      %2973 = vmatpush1.bf16.msra.mxu0 0
      %2974 = vmatprep.subr.bf16.mxu0 0
      %2975 = vmatpush1.bf16.msra.mxu0 0
      %2976 = vmatprep.subr.bf16.mxu0 0
      %2977 = vmatpush1.bf16.msra.mxu0 0
      %2978 = vmatprep.subr.bf16.mxu0 0
      %2979 = vmatpush1.bf16.msra.mxu0 0
      %2980 = vmatprep.mubr.bf16.mxu0 0
      %2981 = vmatmul.mubr.bf16.gmra.mrb[0].mxu0 %v2884
      %v2982 = vpop.f32.mrb[0].mxu0
      %v2983 = vadd.f32 0.0, %v2982
      %v2984 = vpop.f32.mrb[0].mxu0
      %v2985 = vpop.f32.mrb[0].mxu0
      %v2986 = vadd.f32 0.0, %v2985
      %v2987 = vpop.f32.mrb[0].mxu0
      %2988 = vmatprep.mubr.bf16.mxu0 0
      %2989 = vmatmul.mubr.bf16.gmra.mrb[0].mxu0 %v2885
      %v2990 = vpop.f32.mrb[0].mxu0
      %v2991 = vadd.f32 0.0, %v2990
      %v2992 = vpop.f32.mrb[0].mxu0
      %v2993 = vpop.f32.mrb[0].mxu0
      %v2994 = vadd.f32 0.0, %v2993
      %v2995 = vpop.f32.mrb[0].mxu0
      %2996 = vmatprep.mubr.bf16.mxu0 0
      %2997 = vmatmul.mubr.bf16.gmra.mrb[0].mxu0 %v2886
      %v2998 = vpop.f32.mrb[0].mxu0
      %v2999 = vadd.f32 0.0, %v2998
      %v3000 = vpop.f32.mrb[0].mxu0
      %v3001 = vpop.f32.mrb[0].mxu0
      %v3002 = vadd.f32 0.0, %v3001
      %v3003 = vpop.f32.mrb[0].mxu0
      %3004 = vmatprep.mubr.bf16.mxu0 0
      %3005 = vmatmul.mubr.bf16.gmra.mrb[0].mxu0 %v2887
      %v3006 = vpop.f32.mrb[0].mxu0
      %v3007 = vadd.f32 0.0, %v3006
      %v3008 = vpop.f32.mrb[0].mxu0
      %v3009 = vpop.f32.mrb[0].mxu0
      %v3010 = vadd.f32 0.0, %v3009
      %v3011 = vpop.f32.mrb[0].mxu0
      %3012 = vmatprep.mubr.bf16.mxu0 0
      %3013 = vmatmul.mubr.bf16.gmra.mrb[0].mxu0 %v2888
      %v3014 = vpop.f32.mrb[0].mxu0
      %v3015 = vadd.f32 0.0, %v3014
      %v3016 = vpop.f32.mrb[0].mxu0
      %v3017 = vpop.f32.mrb[0].mxu0
      %v3018 = vadd.f32 0.0, %v3017
      %v3019 = vpop.f32.mrb[0].mxu0
      %3020 = vmatprep.mubr.bf16.mxu0 0
      %3021 = vmatmul.mubr.bf16.gmra.mrb[0].mxu0 %v2889
      %v3022 = vpop.f32.mrb[0].mxu0
      %v3023 = vadd.f32 0.0, %v3022
      %v3024 = vpop.f32.mrb[0].mxu0
      %v3025 = vpop.f32.mrb[0].mxu0
      %v3026 = vadd.f32 0.0, %v3025
      %v3027 = vpop.f32.mrb[0].mxu0
      %3028 = vmatprep.mubr.bf16.mxu0 0
      %3029 = vmatmul.mubr.bf16.gmra.mrb[0].mxu0 %v2890
      %v3030 = vpop.f32.mrb[0].mxu0
      %v3031 = vadd.f32 0.0, %v3030
      %v3032 = vpop.f32.mrb[0].mxu0
      %v3033 = vpop.f32.mrb[0].mxu0
      %v3034 = vadd.f32 0.0, %v3033
      %v3035 = vpop.f32.mrb[0].mxu0
      %3036 = vmatprep.mubr.bf16.mxu0 0
      %3037 = vmatmul.mubr.bf16.gmra.mrb[0].mxu0 %v2891
      %v3038 = vpop.f32.mrb[0].mxu0
      %v3039 = vadd.f32 0.0, %v3038
      %v3040 = vpop.f32.mrb[0].mxu0
      %v3041 = vpop.f32.mrb[0].mxu0
      %v3042 = vadd.f32 0.0, %v3041
      %v3043 = vpop.f32.mrb[0].mxu0
      %3044 = vdwg.mxu0
      %v3045 = vadd.f32 %v2747, %v2983
      %v3046 = vadd.f32 %v2748, %v2986
      %v3047 = vadd.f32 %v2749, %v2991
      %v3048 = vadd.f32 %v2750, %v2994
      %v3049 = vadd.f32 %v2751, %v2999
      %v3050 = vadd.f32 %v2752, %v3002
      %v3051 = vadd.f32 %v2753, %v3007
      %v3052 = vadd.f32 %v2754, %v3010
      %v3053 = vadd.f32 %v2755, %v3015
      %v3054 = vadd.f32 %v2756, %v3018
      %v3055 = vadd.f32 %v2757, %v3023
      %v3056 = vadd.f32 %v2758, %v3026
      %v3057 = vadd.f32 %v2759, %v3031
      %v3058 = vadd.f32 %v2760, %v3034
      %v3059 = vadd.f32 %v2761, %v3039
      %v3060 = vadd.f32 %v2762, %v3042
      %3061 = vst [vmem:[%s199] sm:$0xff] %v3045
      %3062 = vst [vmem:[%s199 + $0x8] sm:$0xff] %v3046
      %3063 = vst [vmem:[%s199 + $0x10] sm:$0xff] %v3047
      %3064 = vst [vmem:[%s199 + $0x18] sm:$0xff] %v3048
      %3065 = vst [vmem:[%s199 + $0x20] sm:$0xff] %v3049
      %3066 = vst [vmem:[%s199 + $0x28] sm:$0xff] %v3050
      %3067 = vst [vmem:[%s199 + $0x30] sm:$0xff] %v3051
      %3068 = vst [vmem:[%s199 + $0x38] sm:$0xff] %v3052
      %3069 = vst [vmem:[%s199 + $0x40] sm:$0xff] %v3053
      %3070 = vst [vmem:[%s199 + $0x48] sm:$0xff] %v3054
      %3071 = vst [vmem:[%s199 + $0x50] sm:$0xff] %v3055
      %3072 = vst [vmem:[%s199 + $0x58] sm:$0xff] %v3056
      %3073 = vst [vmem:[%s199 + $0x60] sm:$0xff] %v3057
      %3074 = vst [vmem:[%s199 + $0x68] sm:$0xff] %v3058
      %3075 = vst [vmem:[%s199 + $0x70] sm:$0xff] %v3059
      %3076 = vst [vmem:[%s199 + $0x78] sm:$0xff] %v3060
      %s3077 = smul.u32 8, %s20
      %p3078 = scmp.lt.s32.totalorder %s18, 1
      %s3079 = scalar_select %p3078, %s18, 1
      %p3080 = scmp.lt.s32.totalorder %s3077, 15
      %s3081 = scalar_select %p3080, %s3077, 15
      %p3082 = scmp.lt.s32.totalorder %s19, 0
      %s3083 = scalar_select %p3082, %s19, 0
      %s3084 = smul.addr %s3081, 2
      %s3085 = sadd.s32 %s3083, %s3084
      %s3086 = smul.addr %s3079, 32
      %s3087 = sadd.s32 %s3085, %s3086
      %s3088 = smul.addr %s3087, 8
      %s3089 = scalar_lea.vmem %s2, %s3088
      // Predicated region
      $region29: #{scconv2d_pallas.9} parent=27 // pred_check
        %p3090 = pneg %p106
      $region30: #{scconv2d_pallas.9} parent=27 // pred_check_branch
        %3092 = sbr.rel (%p3090) target = $region32
      $region31: #{scconv2d_pallas.9} parent=27 // pred_region
        %s3093 = smul.u32 8, %s20
      $region32: #{scconv2d_pallas.9} parent=27 // pred_fallthru
        _
    $region28: #{scconv2d_pallas.9} parent=5 // pred_fallthru
      _
    %p3094 = scmp.le.s32.totalorder 2, %s8
    // Predicated region
    $region33: #{scconv2d_pallas.9} parent=5 // pred_check
      %p3095 = pneg %p3094
    $region34: #{scconv2d_pallas.9} parent=5 // pred_check_branch
      %3097 = sbr.rel (%p3095) target = $region36
    $region35: #{scconv2d_pallas.9} parent=5 // pred_region
      %s3098 = ssub.s32 %s8, 2
      // Predicated region
      $region37: #{scconv2d_pallas.9} parent=35 // pred_check
        %p3099 = pneg %p112
      $region38: #{scconv2d_pallas.9} parent=35 // pred_check_branch
        %3101 = sbr.rel (%p3099) target = $region40
      $region39: #{scconv2d_pallas.9} parent=35 // pred_region
        %s3102 = smul.u32 8, %s23
        %p3103 = scmp.lt.s32.totalorder %s21, 1
        %s3104 = scalar_select %p3103, %s21, 1
        %p3105 = scmp.lt.s32.totalorder %s3102, 15
        %s3106 = scalar_select %p3105, %s3102, 15
        %p3107 = scmp.lt.s32.totalorder %s22, 0
        %s3108 = scalar_select %p3107, %s22, 0
        %s3109 = smul.addr %s3106, 2
        %s3110 = sadd.s32 %s3108, %s3109
        %s3111 = smul.addr %s3104, 32
        %s3112 = sadd.s32 %s3110, %s3111
        %s3113 = smul.addr %s3112, 8
        %s3114 = scalar_lea.vmem %s2, %s3113
      $region40: #{scconv2d_pallas.9} parent=35 // pred_fallthru
        _
    $region36: #{scconv2d_pallas.9} parent=5 // pred_fallthru
      _
  $region6: #{scconv2d_pallas.9} parent=0 // loop_footer
    %s12 = sadd.s32 1, %s8
  $region7: #{scconv2d_pallas.9} parent=0 // loop_footer_branch
    %7 = sbr.rel target = $region3
  $region8: #{scconv2d_pallas.9} parent=0 // loop_exit
    _

</llo_original>
